<compile_context>
chip_gen: v6e
topology: v6e:2x2x1
jax: 0.10.0
libtpu: 0.0.40
codegen_flags: <defaults>
</compile_context>

<pallas_src>
import functools

import jax
import jax.numpy as jnp
from jax.experimental import pallas as pl
from jax.experimental.pallas import tpu as pltpu


_VMEM_LIMIT_BYTES = 48 * 1024 * 1024  # below v7x's 64 MiB and v5e/v6e's 128 MiB


def _choose_batch_tile(B, S, max_rows=512, min_steps=2):
    """How many sequences to fold into one grid step.

    Targets a large M dimension for the MXU (rows = Bt*S) while keeping at
    least `min_steps` grid steps (megacore) and a legal (8, 128)-tileable
    row-block shape.
    """
    def legal(d):
        return B % d == 0 and (d == B or (d * S) % 8 == 0)

    divisors = [d for d in range(1, B + 1) if legal(d)]
    fitting = [d for d in divisors if d * S <= max_rows] or [min(divisors)]
    bt = max(fitting)
    if B // bt < min_steps:
        multi = [d for d in fitting if B // d >= min_steps]
        if multi:
            bt = max(multi)
    return bt


def _encoder_layer_kernel(x_ref, mask_ref,
                          g1_ref, b1_ref,
                          wqkv_ref, bqkv_ref, wo_ref, bo_ref,
                          g2_ref, b2_ref,
                          w1_ref, bb1_ref, w2_ref, bb2_ref,
                          o_ref, *, Bt, S, D, H, DK, EPS, head_batched):
    f32, bf16 = jnp.float32, jnp.bfloat16
    R = Bt * S                                    # rows handled by this grid step

    x = x_ref[...].astype(f32)                    # (R, D)
    m = mask_ref[...].astype(f32)                 # (Bt, 1, S)
    # Hoisted additive mask bias: 0 where kept, -1e9 where masked (== masked_fill).
    neg_bias = (m - 1.0) * 1e9                    # (Bt, 1, S)

    def layer_norm(v, g, b):
        # a_2*(x-mean)/(std+eps)+b_2 with torch.std (unbiased, /(D-1)), eps=1e-6.
        mean = jnp.mean(v, axis=-1, keepdims=True)
        var = jnp.sum((v - mean) ** 2, axis=-1, keepdims=True) * (1.0 / (D - 1))
        inv = pl.reciprocal(jnp.sqrt(var) + EPS, approx=True)   # EUP slot
        return g * (v - mean) * inv + b

    # ---- sublayer 0: multi-head self-attention --------------------------------
    xn = layer_norm(x, g1_ref[...], b1_ref[...])
    # One fused (R, D) x (D, 3D) projection; bf16 operands, f32 accumulation.
    qkv = jnp.dot(xn.astype(bf16), wqkv_ref[...],
                  preferred_element_type=f32) + bqkv_ref[...]
    inv_scale = 1.0 / (DK ** 0.5)
    q = qkv[:, 0 * D:1 * D] * inv_scale           # fold 1/sqrt(dk) into q once
    k = qkv[:, 1 * D:2 * D]
    v = qkv[:, 2 * D:3 * D]

    if head_batched:
        # Heads as the batch dim of a single batched dot_general — no per-head
        # lane slicing and no lane-axis concatenate.
        def to_heads(t):                          # (R, H*DK) -> (H*Bt, S, DK)
            t = t.reshape(R, H, DK)
            t = pltpu.einshape("mhd->hmd", t)     # (H, R, DK)
            return t.reshape(H * Bt, S, DK).astype(bf16)

        q3, k3, v3 = to_heads(q), to_heads(k), to_heads(v)
        bias = jnp.broadcast_to(neg_bias[None], (H, Bt, 1, S)).reshape(H * Bt, 1, S)

        s = jnp.einsum("nqd,nkd->nqk", q3, k3,
                       preferred_element_type=f32) + bias         # (H*Bt, S, S)
        s = s - jnp.max(s, axis=-1, keepdims=True)
        p = jnp.exp(s)
        p = p * pl.reciprocal(jnp.sum(p, axis=-1, keepdims=True), approx=True)
        ctx = jnp.einsum("nqk,nkd->nqd", p.astype(bf16), v3,
                         preferred_element_type=f32)               # (H*Bt, S, DK)
        ctx = pltpu.einshape("hmd->mhd", ctx.reshape(H, R, DK))    # (R, H, DK)
        ctx = ctx.reshape(R, D)
    else:
        # Conservative fallback: static per-(sequence, head) loop with lane slices.
        rows = []
        for b in range(Bt):
            r0 = b * S
            heads = []
            for h in range(H):
                lo = h * DK
                qh = q[r0:r0 + S, lo:lo + DK]
                kh = k[r0:r0 + S, lo:lo + DK]
                vh = v[r0:r0 + S, lo:lo + DK]
                s = jnp.dot(qh.astype(bf16), kh.T.astype(bf16),
                            preferred_element_type=f32) + neg_bias[b]
                s = s - jnp.max(s, axis=-1, keepdims=True)
                p = jnp.exp(s)
                p = p * pl.reciprocal(jnp.sum(p, axis=-1, keepdims=True), approx=True)
                heads.append(jnp.dot(p.astype(bf16), vh.astype(bf16),
                                     preferred_element_type=f32))
            rows.append(jnp.concatenate(heads, axis=-1))
        ctx = jnp.concatenate(rows, axis=0) if Bt > 1 else rows[0]

    attn_out = jnp.dot(ctx.astype(bf16), wo_ref[...],
                       preferred_element_type=f32) + bo_ref[...]
    x1 = x + attn_out                             # residual (dropout = identity)

    # ---- sublayer 1: position-wise feed forward --------------------------------
    # TODO(synk): for very long S (>=1k), tile keys flash-style and row-tile the FF
    # so the (rows, S) scores and (rows, Dff) hidden are not fully VMEM-resident.
    xn2 = layer_norm(x1, g2_ref[...], b2_ref[...])
    h1 = jnp.maximum(
        jnp.dot(xn2.astype(bf16), w1_ref[...], preferred_element_type=f32)
        + bb1_ref[...], 0.0)
    ff = jnp.dot(h1.astype(bf16), w2_ref[...], preferred_element_type=f32) + bb2_ref[...]

    o_ref[...] = (x1 + ff).astype(o_ref.dtype)


def encoder_layer_pallas(x, mask, params, *, num_heads):
    B, S, D = x.shape
    Dff = params["w1"].shape[1]
    H = num_heads
    assert D % H == 0
    DK = D // H
    f32, bf16 = jnp.float32, jnp.bfloat16

    # Matmul weights live in HBM as bf16 (halves weight DMA bytes + resident VMEM);
    # biases / LayerNorm params stay f32 (applied on the VPU in f32).
    wqkv = jnp.concatenate([params["wq"], params["wk"], params["wv"]], axis=1).astype(bf16)
    bqkv = jnp.concatenate([params["bq"], params["bk"], params["bv"]], axis=1).astype(f32)
    wo, bo = params["wo"].astype(bf16), params["bo"].astype(f32)
    w1, b1 = params["w1"].astype(bf16), params["b1"].astype(f32)
    w2, b2 = params["w2"].astype(bf16), params["b2"].astype(f32)
    g1, be1 = params["ln1_g"].astype(f32), params["ln1_b"].astype(f32)
    g2, be2 = params["ln2_g"].astype(f32), params["ln2_b"].astype(f32)

    Bt = _choose_batch_tile(B, S)
    R = Bt * S
    # Flatten (B, S, D) -> (B*S, D): one lane-dense row slab feeding all matmuls
    # and the output store (fully unmasked stores whenever D % 128 == 0).
    xf = x.reshape(B * S, D)

    def build(head_batched, single_buffer_weights, vmem_limit):
        kernel = functools.partial(
            _encoder_layer_kernel, Bt=Bt, S=S, D=D, H=H, DK=DK, EPS=1e-6,
            head_batched=head_batched)

        def const_spec(shape):
            idx = lambda i: (0,) * len(shape)
            if single_buffer_weights:
                # Block never changes (constant index map): a single buffer halves
                # resident weight VMEM — matters on v7x's 64 MiB per TensorCore.
                return pl.BlockSpec(shape, idx, pipeline_mode=pl.Buffered(1))
            return pl.BlockSpec(shape, idx)

        in_specs = [
            pl.BlockSpec((R, D), lambda i: (i, 0)),          # x rows
            pl.BlockSpec((Bt, 1, S), lambda i: (i, 0, 0)),   # mask
            const_spec((1, D)), const_spec((1, D)),          # ln1 gamma / beta
            const_spec((D, 3 * D)), const_spec((1, 3 * D)),  # fused Wqkv, bqkv
            const_spec((D, D)), const_spec((1, D)),          # Wo, bo
            const_spec((1, D)), const_spec((1, D)),          # ln2 gamma / beta
            const_spec((D, Dff)), const_spec((1, Dff)),      # W1, b1
            const_spec((Dff, D)), const_spec((1, D)),        # W2, b2
        ]
        cp = dict(dimension_semantics=("parallel",))
        if vmem_limit is not None:
            cp["vmem_limit_bytes"] = vmem_limit
        return pl.pallas_call(
            kernel,
            out_shape=jax.ShapeDtypeStruct((B * S, D), x.dtype),
            grid=(B // Bt,),
            in_specs=in_specs,
            out_specs=pl.BlockSpec((R, D), lambda i: (i, 0)),
            compiler_params=pltpu.CompilerParams(**cp),
        )

    args = (xf, mask, g1, be1, wqkv, bqkv, wo, bo, g2, be2, w1, b1, w2, b2)
    # Try the most aggressive variant first; fall back if the local Mosaic build
    # rejects head-major relayouts / single-buffered specs / the raised vmem cap.
    attempts = (
        (True, True, _VMEM_LIMIT_BYTES),
        (True, False, _VMEM_LIMIT_BYTES),
        (False, False, _VMEM_LIMIT_BYTES),
        (False, False, None),
    )
    out, last_err = None, None
    for head_batched, single_buf, vmem_limit in attempts:
        try:
            out = jax.block_until_ready(
                build(head_batched, single_buf, vmem_limit)(*args))
            break
        except Exception as e:  # lowering support differs across jax/Mosaic builds
            last_err = e
    if out is None:
        raise last_err
    return out.reshape(B, S, D)


def encoder_layer_ref(x, mask, params, *, num_heads, matmul_dtype=jnp.float32):
    """Pure-JAX reference mirroring the PyTorch forward (eval / dropout = 0).

    matmul_dtype=jnp.bfloat16 mirrors the kernel's MXU operand precision
    (accumulation stays f32); all other math is f32.
    """
    B, S, D = x.shape
    H = num_heads
    DK = D // H

    def mm(a, b):
        return jnp.dot(a.astype(matmul_dtype), b.astype(matmul_dtype),
                       preferred_element_type=jnp.float32)

    def layer_norm(v, g, b):
        mean = jnp.mean(v, axis=-1, keepdims=True)
        var = jnp.sum((v - mean) ** 2, axis=-1, keepdims=True) / (D - 1)
        std = jnp.sqrt(var)
        return g[0] * (v - mean) / (std + 1e-6) + b[0]

    xn = layer_norm(x, params["ln1_g"], params["ln1_b"])
    q = mm(xn, params["wq"]) + params["bq"][0]
    k = mm(xn, params["wk"]) + params["bk"][0]
    v = mm(xn, params["wv"]) + params["bv"][0]
    q = q.reshape(B, S, H, DK).transpose(0, 2, 1, 3)
    k = k.reshape(B, S, H, DK).transpose(0, 2, 1, 3)
    v = v.reshape(B, S, H, DK).transpose(0, 2, 1, 3)
    scores = jnp.einsum("bhqd,bhkd->bhqk",
                        q.astype(matmul_dtype), k.astype(matmul_dtype),
                        preferred_element_type=jnp.float32) / jnp.sqrt(jnp.float32(DK))
    scores = jnp.where(mask[:, None, :, :] == 0.0, -1e9, scores)
    p = jax.nn.softmax(scores, axis=-1)
    attn = jnp.einsum("bhqk,bhkd->bhqd",
                      p.astype(matmul_dtype), v.astype(matmul_dtype),
                      preferred_element_type=jnp.float32)
    attn = attn.transpose(0, 2, 1, 3).reshape(B, S, D)
    attn = mm(attn, params["wo"]) + params["bo"][0]
    x1 = x + attn
    xn2 = layer_norm(x1, params["ln2_g"], params["ln2_b"])
    h1 = jnp.maximum(mm(xn2, params["w1"]) + params["b1"][0], 0.0)
    ff = mm(h1, params["w2"]) + params["b2"][0]
    return x1 + ff


def make_params(key, D, Dff):
    ks = jax.random.split(key, 12)
    n = lambda k, shape, s: (jax.random.normal(k, shape, jnp.float32) * s)
    return {
        "ln1_g": jnp.ones((1, D), jnp.float32),
        "ln1_b": jnp.zeros((1, D), jnp.float32),
        "ln2_g": jnp.ones((1, D), jnp.float32),
        "ln2_b": jnp.zeros((1, D), jnp.float32),
        "wq": n(ks[0], (D, D), 0.1),  "bq": n(ks[1], (1, D), 0.01),
        "wk": n(ks[2], (D, D), 0.1),  "bk": n(ks[3], (1, D), 0.01),
        "wv": n(ks[4], (D, D), 0.1),  "bv": n(ks[5], (1, D), 0.01),
        "wo": n(ks[6], (D, D), 0.1),  "bo": n(ks[7], (1, D), 0.01),
        "w1": n(ks[8], (D, Dff), 0.1), "b1": n(ks[9], (1, Dff), 0.01),
        "w2": n(ks[10], (Dff, D), 0.1), "b2": n(ks[11], (1, D), 0.01),
    }


if __name__ == "__main__":
    B, S, D, H, Dff = 2, 8, 32, 4, 64

    key = jax.random.PRNGKey(0)
    kx, kp = jax.random.split(key)
    x = jax.random.normal(kx, (B, S, D), jnp.float32)
    # padding-style mask: last 2 key positions of batch 1 are masked out
    mask = jnp.ones((B, 1, S), jnp.float32)
    mask = mask.at[1, 0, -2:].set(0.0)
    params = make_params(kp, D, Dff)

    out = encoder_layer_pallas(x, mask, params, num_heads=H)
    out = jax.block_until_ready(out)

    # Reference mirrors the PyTorch module; matmul operands cast to bf16 to match
    # the kernel's MXU operand precision (accumulation is f32 in both).
    ref = encoder_layer_ref(x, mask, params, num_heads=H, matmul_dtype=jnp.bfloat16)
    assert out.shape == (B, S, D)
    err = float(jnp.max(jnp.abs(out - ref)))
    assert jnp.allclose(out, ref, atol=2e-2, rtol=2e-2), f"mismatch vs reference, max|d|={err}"

    print("KERNEL_OK")
</pallas_src>

<mosaic_0001>
module attributes {stable_mosaic.version = 11 : i64} {
  func.func @_encoder_layer_kernel(%arg0: i32, %arg1: memref<8x32xf32, #tpu.memory_space<vmem>>, %arg2: memref<1x1x8xf32, #tpu.memory_space<vmem>>, %arg3: memref<1x32xf32, #tpu.memory_space<vmem>>, %arg4: memref<1x32xf32, #tpu.memory_space<vmem>>, %arg5: memref<32x96xbf16, #tpu.memory_space<vmem>>, %arg6: memref<1x96xf32, #tpu.memory_space<vmem>>, %arg7: memref<32x32xbf16, #tpu.memory_space<vmem>>, %arg8: memref<1x32xf32, #tpu.memory_space<vmem>>, %arg9: memref<1x32xf32, #tpu.memory_space<vmem>>, %arg10: memref<1x32xf32, #tpu.memory_space<vmem>>, %arg11: memref<32x64xbf16, #tpu.memory_space<vmem>>, %arg12: memref<1x64xf32, #tpu.memory_space<vmem>>, %arg13: memref<64x32xbf16, #tpu.memory_space<vmem>>, %arg14: memref<1x32xf32, #tpu.memory_space<vmem>>, %arg15: memref<8x32xf32, #tpu.memory_space<vmem>>) attributes {dimension_semantics = [#tpu.dimension_semantics<parallel>], iteration_bounds = array<i64: 2>, scalar_prefetch = 0 : i64, scratch_operands = 0 : i64, tpu.core_type = #tpu.core_type<tc>, window_params = [{transform_indices = @transform_0, window_bounds = array<i64: 8, 32>}, {transform_indices = @transform_1, window_bounds = array<i64: 1, 1, 8>}, {pipeline_mode = #tpu.pipeline_mode<synchronous>, transform_indices = @transform_2, window_bounds = array<i64: 1, 32>}, {pipeline_mode = #tpu.pipeline_mode<synchronous>, transform_indices = @transform_3, window_bounds = array<i64: 1, 32>}, {pipeline_mode = #tpu.pipeline_mode<synchronous>, transform_indices = @transform_4, window_bounds = array<i64: 32, 96>}, {pipeline_mode = #tpu.pipeline_mode<synchronous>, transform_indices = @transform_5, window_bounds = array<i64: 1, 96>}, {pipeline_mode = #tpu.pipeline_mode<synchronous>, transform_indices = @transform_6, window_bounds = array<i64: 32, 32>}, {pipeline_mode = #tpu.pipeline_mode<synchronous>, transform_indices = @transform_7, window_bounds = array<i64: 1, 32>}, {pipeline_mode = #tpu.pipeline_mode<synchronous>, transform_indices = @transform_8, window_bounds = array<i64: 1, 32>}, {pipeline_mode = #tpu.pipeline_mode<synchronous>, transform_indices = @transform_9, window_bounds = array<i64: 1, 32>}, {pipeline_mode = #tpu.pipeline_mode<synchronous>, transform_indices = @transform_10, window_bounds = array<i64: 32, 64>}, {pipeline_mode = #tpu.pipeline_mode<synchronous>, transform_indices = @transform_11, window_bounds = array<i64: 1, 64>}, {pipeline_mode = #tpu.pipeline_mode<synchronous>, transform_indices = @transform_12, window_bounds = array<i64: 64, 32>}, {pipeline_mode = #tpu.pipeline_mode<synchronous>, transform_indices = @transform_13, window_bounds = array<i64: 1, 32>}, {transform_indices = @transform_14, window_bounds = array<i64: 8, 32>}]} {
    %c0 = arith.constant 0 : index
    %c0_0 = arith.constant 0 : index
    %0 = vector.load %arg1[%c0, %c0_0] : memref<8x32xf32, #tpu.memory_space<vmem>>, vector<8x32xf32>
    %c0_1 = arith.constant 0 : index
    %c0_2 = arith.constant 0 : index
    %c0_3 = arith.constant 0 : index
    %1 = vector.load %arg2[%c0_1, %c0_2, %c0_3] : memref<1x1x8xf32, #tpu.memory_space<vmem>>, vector<1x1x8xf32>
    %cst = arith.constant 1.000000e+00 : f32
    %2 = vector.broadcast %cst : f32 to vector<1x1x8xf32>
    %3 = arith.subf %1, %2 : vector<1x1x8xf32>
    %cst_4 = arith.constant 1.000000e+09 : f32
    %4 = vector.broadcast %cst_4 : f32 to vector<1x1x8xf32>
    %5 = arith.mulf %3, %4 : vector<1x1x8xf32>
    %c0_5 = arith.constant 0 : index
    %c0_6 = arith.constant 0 : index
    %6 = vector.load %arg3[%c0_5, %c0_6] : memref<1x32xf32, #tpu.memory_space<vmem>>, vector<1x32xf32>
    %c0_7 = arith.constant 0 : index
    %c0_8 = arith.constant 0 : index
    %7 = vector.load %arg4[%c0_7, %c0_8] : memref<1x32xf32, #tpu.memory_space<vmem>>, vector<1x32xf32>
    %cst_9 = arith.constant dense<0.000000e+00> : vector<8xf32>
    %8 = vector.multi_reduction <add>, %0, %cst_9 [1] : vector<8x32xf32> to vector<8xf32>
    %9 = vector.shape_cast %8 : vector<8xf32> to vector<8x1xf32>
    %cst_10 = arith.constant 3.200000e+01 : f32
    %10 = vector.broadcast %cst_10 : f32 to vector<8x1xf32>
    %11 = arith.divf %9, %10 : vector<8x1xf32>
    %12 = vector.broadcast %11 : vector<8x1xf32> to vector<8x32xf32>
    %13 = arith.subf %0, %12 : vector<8x32xf32>
    %14 = arith.mulf %13, %13 : vector<8x32xf32>
    %cst_11 = arith.constant dense<0.000000e+00> : vector<8xf32>
    %15 = vector.multi_reduction <add>, %14, %cst_11 [1] : vector<8x32xf32> to vector<8xf32>
    %16 = vector.shape_cast %15 : vector<8xf32> to vector<8x1xf32>
    %cst_12 = arith.constant 0.0322580636 : f32
    %17 = vector.broadcast %cst_12 : f32 to vector<8x1xf32>
    %18 = arith.mulf %16, %17 : vector<8x1xf32>
    %19 = math.sqrt %18 : vector<8x1xf32>
    %cst_13 = arith.constant 9.99999997E-7 : f32
    %20 = vector.broadcast %cst_13 : f32 to vector<8x1xf32>
    %21 = arith.addf %19, %20 : vector<8x1xf32>
    %22 = tpu.reciprocal %21 {approx = true} : vector<8x1xf32> -> vector<8x1xf32>
    %23 = vector.broadcast %11 : vector<8x1xf32> to vector<8x32xf32>
    %24 = arith.subf %0, %23 : vector<8x32xf32>
    %25 = vector.broadcast %6 : vector<1x32xf32> to vector<8x32xf32>
    %26 = arith.mulf %25, %24 : vector<8x32xf32>
    %27 = vector.broadcast %22 : vector<8x1xf32> to vector<8x32xf32>
    %28 = arith.mulf %26, %27 : vector<8x32xf32>
    %29 = vector.broadcast %7 : vector<1x32xf32> to vector<8x32xf32>
    %30 = arith.addf %28, %29 : vector<8x32xf32>
    %31 = arith.truncf %30 : vector<8x32xf32> to vector<8x32xbf16>
    %c0_14 = arith.constant 0 : index
    %c0_15 = arith.constant 0 : index
    %32 = vector.load %arg5[%c0_14, %c0_15] : memref<32x96xbf16, #tpu.memory_space<vmem>>, vector<32x96xbf16>
    %cst_16 = arith.constant dense<0.000000e+00> : vector<8x96xf32>
    %33 = tpu.matmul %31, %32, %cst_16 {dimension_numbers = #tpu.dot_dimension_numbers<[1], [0], [0], [1], [0, 0, 1, 1], [], []>} : vector<8x32xbf16>, vector<32x96xbf16>, vector<8x96xf32> -> vector<8x96xf32>
    %c0_17 = arith.constant 0 : index
    %c0_18 = arith.constant 0 : index
    %34 = vector.load %arg6[%c0_17, %c0_18] : memref<1x96xf32, #tpu.memory_space<vmem>>, vector<1x96xf32>
    %35 = vector.broadcast %34 : vector<1x96xf32> to vector<8x96xf32>
    %36 = arith.addf %33, %35 : vector<8x96xf32>
    %37 = vector.extract_strided_slice %36 {offsets = [0, 0], sizes = [8, 32], strides = [1, 1]} : vector<8x96xf32> to vector<8x32xf32>
    %cst_19 = arith.constant 0.353553385 : f32
    %38 = vector.broadcast %cst_19 : f32 to vector<8x32xf32>
    %39 = arith.mulf %37, %38 : vector<8x32xf32>
    %40 = vector.extract_strided_slice %36 {offsets = [0, 32], sizes = [8, 32], strides = [1, 1]} : vector<8x96xf32> to vector<8x32xf32>
    %41 = vector.extract_strided_slice %36 {offsets = [0, 64], sizes = [8, 32], strides = [1, 1]} : vector<8x96xf32> to vector<8x32xf32>
    %42 = vector.shape_cast %39 : vector<8x32xf32> to vector<8x4x8xf32>
    %43 = tpu.transpose %42, [1, 0, 2] : vector<8x4x8xf32> -> vector<4x8x8xf32>
    %44 = arith.truncf %43 : vector<4x8x8xf32> to vector<4x8x8xbf16>
    %45 = vector.shape_cast %40 : vector<8x32xf32> to vector<8x4x8xf32>
    %46 = tpu.transpose %45, [1, 0, 2] : vector<8x4x8xf32> -> vector<4x8x8xf32>
    %47 = arith.truncf %46 : vector<4x8x8xf32> to vector<4x8x8xbf16>
    %48 = vector.shape_cast %41 : vector<8x32xf32> to vector<8x4x8xf32>
    %49 = tpu.transpose %48, [1, 0, 2] : vector<8x4x8xf32> -> vector<4x8x8xf32>
    %50 = arith.truncf %49 : vector<4x8x8xf32> to vector<4x8x8xbf16>
    %51 = vector.shape_cast %5 : vector<1x1x8xf32> to vector<1x1x1x8xf32>
    %52 = vector.shape_cast %51 : vector<1x1x1x8xf32> to vector<1x1x1x8xf32>
    %53 = vector.broadcast %52 : vector<1x1x1x8xf32> to vector<4x1x1x8xf32>
    %54 = vector.shape_cast %53 : vector<4x1x1x8xf32> to vector<4x1x8xf32>
    "tpu.trace_start"() <{level = 10 : i32, message = "nqd,nkd->nqk"}> : () -> ()
    %cst_20 = arith.constant dense<0.000000e+00> : vector<4x8x8xf32>
    %55 = tpu.matmul %44, %47, %cst_20 {dimension_numbers = #tpu.dot_dimension_numbers<[2], [2], [1], [1], [0, 0, 0, 1, 1, 1], [0], [0]>} : vector<4x8x8xbf16>, vector<4x8x8xbf16>, vector<4x8x8xf32> -> vector<4x8x8xf32>
    "tpu.trace_stop"() : () -> ()
    %56 = vector.broadcast %54 : vector<4x1x8xf32> to vector<4x8x8xf32>
    %57 = arith.addf %55, %56 : vector<4x8x8xf32>
    %cst_21 = arith.constant dense<0xFF800000> : vector<4x8xf32>
    %58 = vector.multi_reduction <maximumf>, %57, %cst_21 [2] : vector<4x8x8xf32> to vector<4x8xf32>
    %59 = vector.shape_cast %58 : vector<4x8xf32> to vector<4x8x1xf32>
    %60 = vector.broadcast %59 : vector<4x8x1xf32> to vector<4x8x8xf32>
    %61 = arith.subf %57, %60 : vector<4x8x8xf32>
    %62 = math.exp %61 : vector<4x8x8xf32>
    %cst_22 = arith.constant dense<0.000000e+00> : vector<4x8xf32>
    %63 = vector.multi_reduction <add>, %62, %cst_22 [2] : vector<4x8x8xf32> to vector<4x8xf32>
    %64 = vector.shape_cast %63 : vector<4x8xf32> to vector<4x8x1xf32>
    %65 = tpu.reciprocal %64 {approx = true} : vector<4x8x1xf32> -> vector<4x8x1xf32>
    %66 = vector.broadcast %65 : vector<4x8x1xf32> to vector<4x8x8xf32>
    %67 = arith.mulf %62, %66 : vector<4x8x8xf32>
    %68 = arith.truncf %67 : vector<4x8x8xf32> to vector<4x8x8xbf16>
    "tpu.trace_start"() <{level = 10 : i32, message = "nqk,nkd->nqd"}> : () -> ()
    %cst_23 = arith.constant dense<0.000000e+00> : vector<4x8x8xf32>
    %69 = tpu.matmul %68, %50, %cst_23 {dimension_numbers = #tpu.dot_dimension_numbers<[2], [1], [1], [2], [0, 0, 0, 1, 1, 2], [0], [0]>} : vector<4x8x8xbf16>, vector<4x8x8xbf16>, vector<4x8x8xf32> -> vector<4x8x8xf32>
    "tpu.trace_stop"() : () -> ()
    %70 = tpu.transpose %69, [1, 0, 2] : vector<4x8x8xf32> -> vector<8x4x8xf32>
    %71 = vector.shape_cast %70 : vector<8x4x8xf32> to vector<8x32xf32>
    %72 = arith.truncf %71 : vector<8x32xf32> to vector<8x32xbf16>
    %c0_24 = arith.constant 0 : index
    %c0_25 = arith.constant 0 : index
    %73 = vector.load %arg7[%c0_24, %c0_25] : memref<32x32xbf16, #tpu.memory_space<vmem>>, vector<32x32xbf16>
    %cst_26 = arith.constant dense<0.000000e+00> : vector<8x32xf32>
    %74 = tpu.matmul %72, %73, %cst_26 {dimension_numbers = #tpu.dot_dimension_numbers<[1], [0], [0], [1], [0, 0, 1, 1], [], []>} : vector<8x32xbf16>, vector<32x32xbf16>, vector<8x32xf32> -> vector<8x32xf32>
    %c0_27 = arith.constant 0 : index
    %c0_28 = arith.constant 0 : index
    %75 = vector.load %arg8[%c0_27, %c0_28] : memref<1x32xf32, #tpu.memory_space<vmem>>, vector<1x32xf32>
    %76 = vector.broadcast %75 : vector<1x32xf32> to vector<8x32xf32>
    %77 = arith.addf %74, %76 : vector<8x32xf32>
    %78 = arith.addf %0, %77 : vector<8x32xf32>
    %c0_29 = arith.constant 0 : index
    %c0_30 = arith.constant 0 : index
    %79 = vector.load %arg9[%c0_29, %c0_30] : memref<1x32xf32, #tpu.memory_space<vmem>>, vector<1x32xf32>
    %c0_31 = arith.constant 0 : index
    %c0_32 = arith.constant 0 : index
    %80 = vector.load %arg10[%c0_31, %c0_32] : memref<1x32xf32, #tpu.memory_space<vmem>>, vector<1x32xf32>
    %cst_33 = arith.constant dense<0.000000e+00> : vector<8xf32>
    %81 = vector.multi_reduction <add>, %78, %cst_33 [1] : vector<8x32xf32> to vector<8xf32>
    %82 = vector.shape_cast %81 : vector<8xf32> to vector<8x1xf32>
    %cst_34 = arith.constant 3.200000e+01 : f32
    %83 = vector.broadcast %cst_34 : f32 to vector<8x1xf32>
    %84 = arith.divf %82, %83 : vector<8x1xf32>
    %85 = vector.broadcast %84 : vector<8x1xf32> to vector<8x32xf32>
    %86 = arith.subf %78, %85 : vector<8x32xf32>
    %87 = arith.mulf %86, %86 : vector<8x32xf32>
    %cst_35 = arith.constant dense<0.000000e+00> : vector<8xf32>
    %88 = vector.multi_reduction <add>, %87, %cst_35 [1] : vector<8x32xf32> to vector<8xf32>
    %89 = vector.shape_cast %88 : vector<8xf32> to vector<8x1xf32>
    %cst_36 = arith.constant 0.0322580636 : f32
    %90 = vector.broadcast %cst_36 : f32 to vector<8x1xf32>
    %91 = arith.mulf %89, %90 : vector<8x1xf32>
    %92 = math.sqrt %91 : vector<8x1xf32>
    %cst_37 = arith.constant 9.99999997E-7 : f32
    %93 = vector.broadcast %cst_37 : f32 to vector<8x1xf32>
    %94 = arith.addf %92, %93 : vector<8x1xf32>
    %95 = tpu.reciprocal %94 {approx = true} : vector<8x1xf32> -> vector<8x1xf32>
    %96 = vector.broadcast %84 : vector<8x1xf32> to vector<8x32xf32>
    %97 = arith.subf %78, %96 : vector<8x32xf32>
    %98 = vector.broadcast %79 : vector<1x32xf32> to vector<8x32xf32>
    %99 = arith.mulf %98, %97 : vector<8x32xf32>
    %100 = vector.broadcast %95 : vector<8x1xf32> to vector<8x32xf32>
    %101 = arith.mulf %99, %100 : vector<8x32xf32>
    %102 = vector.broadcast %80 : vector<1x32xf32> to vector<8x32xf32>
    %103 = arith.addf %101, %102 : vector<8x32xf32>
    %104 = arith.truncf %103 : vector<8x32xf32> to vector<8x32xbf16>
    %c0_38 = arith.constant 0 : index
    %c0_39 = arith.constant 0 : index
    %105 = vector.load %arg11[%c0_38, %c0_39] : memref<32x64xbf16, #tpu.memory_space<vmem>>, vector<32x64xbf16>
    %cst_40 = arith.constant dense<0.000000e+00> : vector<8x64xf32>
    %106 = tpu.matmul %104, %105, %cst_40 {dimension_numbers = #tpu.dot_dimension_numbers<[1], [0], [0], [1], [0, 0, 1, 1], [], []>} : vector<8x32xbf16>, vector<32x64xbf16>, vector<8x64xf32> -> vector<8x64xf32>
    %c0_41 = arith.constant 0 : index
    %c0_42 = arith.constant 0 : index
    %107 = vector.load %arg12[%c0_41, %c0_42] : memref<1x64xf32, #tpu.memory_space<vmem>>, vector<1x64xf32>
    %108 = vector.broadcast %107 : vector<1x64xf32> to vector<8x64xf32>
    %109 = arith.addf %106, %108 : vector<8x64xf32>
    %cst_43 = arith.constant 0.000000e+00 : f32
    %110 = vector.broadcast %cst_43 : f32 to vector<8x64xf32>
    %111 = arith.maximumf %109, %110 : vector<8x64xf32>
    %112 = arith.truncf %111 : vector<8x64xf32> to vector<8x64xbf16>
    %c0_44 = arith.constant 0 : index
    %c0_45 = arith.constant 0 : index
    %113 = vector.load %arg13[%c0_44, %c0_45] : memref<64x32xbf16, #tpu.memory_space<vmem>>, vector<64x32xbf16>
    %cst_46 = arith.constant dense<0.000000e+00> : vector<8x32xf32>
    %114 = tpu.matmul %112, %113, %cst_46 {dimension_numbers = #tpu.dot_dimension_numbers<[1], [0], [0], [1], [0, 0, 1, 1], [], []>} : vector<8x64xbf16>, vector<64x32xbf16>, vector<8x32xf32> -> vector<8x32xf32>
    %c0_47 = arith.constant 0 : index
    %c0_48 = arith.constant 0 : index
    %115 = vector.load %arg14[%c0_47, %c0_48] : memref<1x32xf32, #tpu.memory_space<vmem>>, vector<1x32xf32>
    %116 = vector.broadcast %115 : vector<1x32xf32> to vector<8x32xf32>
    %117 = arith.addf %114, %116 : vector<8x32xf32>
    %118 = arith.addf %78, %117 : vector<8x32xf32>
    %c0_49 = arith.constant 0 : index
    %c0_50 = arith.constant 0 : index
    %119 = vector.load %arg15[%c0_49, %c0_50] : memref<8x32xf32, #tpu.memory_space<vmem>>, vector<8x32xf32>
    tpu.vector_store %arg15[%c0_49, %c0_50], %118 {strides = array<i32>} : memref<8x32xf32, #tpu.memory_space<vmem>>, vector<8x32xf32>,
    return
  }
  func.func @transform_0(%arg0: i32) -> (i32, i32) {
    %c0_i32 = arith.constant 0 : i32
    %c0_i32_0 = arith.constant 0 : i32
    return %arg0, %c0_i32 : i32, i32
  }
  func.func @transform_1(%arg0: i32) -> (i32, i32, i32) {
    %c0_i32 = arith.constant 0 : i32
    %c0_i32_0 = arith.constant 0 : i32
    %c0_i32_1 = arith.constant 0 : i32
    return %arg0, %c0_i32, %c0_i32_0 : i32, i32, i32
  }
  func.func @transform_2(%arg0: i32) -> (i32, i32) {
    %c0_i32 = arith.constant 0 : i32
    %c0_i32_0 = arith.constant 0 : i32
    %c0_i32_1 = arith.constant 0 : i32
    return %c0_i32, %c0_i32_0 : i32, i32
  }
  func.func @transform_3(%arg0: i32) -> (i32, i32) {
    %c0_i32 = arith.constant 0 : i32
    %c0_i32_0 = arith.constant 0 : i32
    %c0_i32_1 = arith.constant 0 : i32
    return %c0_i32, %c0_i32_0 : i32, i32
  }
  func.func @transform_4(%arg0: i32) -> (i32, i32) {
    %c0_i32 = arith.constant 0 : i32
    %c0_i32_0 = arith.constant 0 : i32
    %c0_i32_1 = arith.constant 0 : i32
    return %c0_i32, %c0_i32_0 : i32, i32
  }
  func.func @transform_5(%arg0: i32) -> (i32, i32) {
    %c0_i32 = arith.constant 0 : i32
    %c0_i32_0 = arith.constant 0 : i32
    %c0_i32_1 = arith.constant 0 : i32
    return %c0_i32, %c0_i32_0 : i32, i32
  }
  func.func @transform_6(%arg0: i32) -> (i32, i32) {
    %c0_i32 = arith.constant 0 : i32
    %c0_i32_0 = arith.constant 0 : i32
    %c0_i32_1 = arith.constant 0 : i32
    return %c0_i32, %c0_i32_0 : i32, i32
  }
  func.func @transform_7(%arg0: i32) -> (i32, i32) {
    %c0_i32 = arith.constant 0 : i32
    %c0_i32_0 = arith.constant 0 : i32
    %c0_i32_1 = arith.constant 0 : i32
    return %c0_i32, %c0_i32_0 : i32, i32
  }
  func.func @transform_8(%arg0: i32) -> (i32, i32) {
    %c0_i32 = arith.constant 0 : i32
    %c0_i32_0 = arith.constant 0 : i32
    %c0_i32_1 = arith.constant 0 : i32
    return %c0_i32, %c0_i32_0 : i32, i32
  }
  func.func @transform_9(%arg0: i32) -> (i32, i32) {
    %c0_i32 = arith.constant 0 : i32
    %c0_i32_0 = arith.constant 0 : i32
    %c0_i32_1 = arith.constant 0 : i32
    return %c0_i32, %c0_i32_0 : i32, i32
  }
  func.func @transform_10(%arg0: i32) -> (i32, i32) {
    %c0_i32 = arith.constant 0 : i32
    %c0_i32_0 = arith.constant 0 : i32
    %c0_i32_1 = arith.constant 0 : i32
    return %c0_i32, %c0_i32_0 : i32, i32
  }
  func.func @transform_11(%arg0: i32) -> (i32, i32) {
    %c0_i32 = arith.constant 0 : i32
    %c0_i32_0 = arith.constant 0 : i32
    %c0_i32_1 = arith.constant 0 : i32
    return %c0_i32, %c0_i32_0 : i32, i32
  }
  func.func @transform_12(%arg0: i32) -> (i32, i32) {
    %c0_i32 = arith.constant 0 : i32
    %c0_i32_0 = arith.constant 0 : i32
    %c0_i32_1 = arith.constant 0 : i32
    return %c0_i32, %c0_i32_0 : i32, i32
  }
  func.func @transform_13(%arg0: i32) -> (i32, i32) {
    %c0_i32 = arith.constant 0 : i32
    %c0_i32_0 = arith.constant 0 : i32
    %c0_i32_1 = arith.constant 0 : i32
    return %c0_i32, %c0_i32_0 : i32, i32
  }
  func.func @transform_14(%arg0: i32) -> (i32, i32) {
    %c0_i32 = arith.constant 0 : i32
    %c0_i32_0 = arith.constant 0 : i32
    return %arg0, %c0_i32 : i32, i32
  }
}

module attributes {stable_mosaic.version = 11 : i64} {
  func.func @_encoder_layer_kernel(%arg0: i32, %arg1: memref<8x32xf32, #tpu.memory_space<vmem>>, %arg2: memref<1x1x8xf32, #tpu.memory_space<vmem>>, %arg3: memref<1x32xf32, #tpu.memory_space<vmem>>, %arg4: memref<1x32xf32, #tpu.memory_space<vmem>>, %arg5: memref<32x96xbf16, #tpu.memory_space<vmem>>, %arg6: memref<1x96xf32, #tpu.memory_space<vmem>>, %arg7: memref<32x32xbf16, #tpu.memory_space<vmem>>, %arg8: memref<1x32xf32, #tpu.memory_space<vmem>>, %arg9: memref<1x32xf32, #tpu.memory_space<vmem>>, %arg10: memref<1x32xf32, #tpu.memory_space<vmem>>, %arg11: memref<32x64xbf16, #tpu.memory_space<vmem>>, %arg12: memref<1x64xf32, #tpu.memory_space<vmem>>, %arg13: memref<64x32xbf16, #tpu.memory_space<vmem>>, %arg14: memref<1x32xf32, #tpu.memory_space<vmem>>, %arg15: memref<8x32xf32, #tpu.memory_space<vmem>>) attributes {dimension_semantics = [#tpu.dimension_semantics<parallel>], iteration_bounds = array<i64: 2>, scalar_prefetch = 0 : i64, scratch_operands = 0 : i64, tpu.core_type = #tpu.core_type<tc>, window_params = [{transform_indices = @transform_0, window_bounds = array<i64: 8, 32>}, {transform_indices = @transform_1, window_bounds = array<i64: 1, 1, 8>}, {pipeline_mode = #tpu.pipeline_mode<synchronous>, transform_indices = @transform_2, window_bounds = array<i64: 1, 32>}, {pipeline_mode = #tpu.pipeline_mode<synchronous>, transform_indices = @transform_3, window_bounds = array<i64: 1, 32>}, {pipeline_mode = #tpu.pipeline_mode<synchronous>, transform_indices = @transform_4, window_bounds = array<i64: 32, 96>}, {pipeline_mode = #tpu.pipeline_mode<synchronous>, transform_indices = @transform_5, window_bounds = array<i64: 1, 96>}, {pipeline_mode = #tpu.pipeline_mode<synchronous>, transform_indices = @transform_6, window_bounds = array<i64: 32, 32>}, {pipeline_mode = #tpu.pipeline_mode<synchronous>, transform_indices = @transform_7, window_bounds = array<i64: 1, 32>}, {pipeline_mode = #tpu.pipeline_mode<synchronous>, transform_indices = @transform_8, window_bounds = array<i64: 1, 32>}, {pipeline_mode = #tpu.pipeline_mode<synchronous>, transform_indices = @transform_9, window_bounds = array<i64: 1, 32>}, {pipeline_mode = #tpu.pipeline_mode<synchronous>, transform_indices = @transform_10, window_bounds = array<i64: 32, 64>}, {pipeline_mode = #tpu.pipeline_mode<synchronous>, transform_indices = @transform_11, window_bounds = array<i64: 1, 64>}, {pipeline_mode = #tpu.pipeline_mode<synchronous>, transform_indices = @transform_12, window_bounds = array<i64: 64, 32>}, {pipeline_mode = #tpu.pipeline_mode<synchronous>, transform_indices = @transform_13, window_bounds = array<i64: 1, 32>}, {transform_indices = @transform_14, window_bounds = array<i64: 8, 32>}]} {
    %c0 = arith.constant 0 : index
    %c0_0 = arith.constant 0 : index
    %0 = vector.load %arg1[%c0, %c0_0] : memref<8x32xf32, #tpu.memory_space<vmem>>, vector<8x32xf32>
    %c0_1 = arith.constant 0 : index
    %c0_2 = arith.constant 0 : index
    %c0_3 = arith.constant 0 : index
    %1 = vector.load %arg2[%c0_1, %c0_2, %c0_3] : memref<1x1x8xf32, #tpu.memory_space<vmem>>, vector<1x1x8xf32>
    %cst = arith.constant 1.000000e+00 : f32
    %2 = vector.broadcast %cst : f32 to vector<1x1x8xf32>
    %3 = arith.subf %1, %2 : vector<1x1x8xf32>
    %cst_4 = arith.constant 1.000000e+09 : f32
    %4 = vector.broadcast %cst_4 : f32 to vector<1x1x8xf32>
    %5 = arith.mulf %3, %4 : vector<1x1x8xf32>
    %c0_5 = arith.constant 0 : index
    %c0_6 = arith.constant 0 : index
    %6 = vector.load %arg3[%c0_5, %c0_6] : memref<1x32xf32, #tpu.memory_space<vmem>>, vector<1x32xf32>
    %c0_7 = arith.constant 0 : index
    %c0_8 = arith.constant 0 : index
    %7 = vector.load %arg4[%c0_7, %c0_8] : memref<1x32xf32, #tpu.memory_space<vmem>>, vector<1x32xf32>
    %cst_9 = arith.constant dense<0.000000e+00> : vector<8xf32>
    %8 = vector.multi_reduction <add>, %0, %cst_9 [1] : vector<8x32xf32> to vector<8xf32>
    %9 = vector.shape_cast %8 : vector<8xf32> to vector<8x1xf32>
    %cst_10 = arith.constant 3.200000e+01 : f32
    %10 = vector.broadcast %cst_10 : f32 to vector<8x1xf32>
    %11 = arith.divf %9, %10 : vector<8x1xf32>
    %12 = vector.broadcast %11 : vector<8x1xf32> to vector<8x32xf32>
    %13 = arith.subf %0, %12 : vector<8x32xf32>
    %14 = arith.mulf %13, %13 : vector<8x32xf32>
    %cst_11 = arith.constant dense<0.000000e+00> : vector<8xf32>
    %15 = vector.multi_reduction <add>, %14, %cst_11 [1] : vector<8x32xf32> to vector<8xf32>
    %16 = vector.shape_cast %15 : vector<8xf32> to vector<8x1xf32>
    %cst_12 = arith.constant 0.0322580636 : f32
    %17 = vector.broadcast %cst_12 : f32 to vector<8x1xf32>
    %18 = arith.mulf %16, %17 : vector<8x1xf32>
    %19 = math.sqrt %18 : vector<8x1xf32>
    %cst_13 = arith.constant 9.99999997E-7 : f32
    %20 = vector.broadcast %cst_13 : f32 to vector<8x1xf32>
    %21 = arith.addf %19, %20 : vector<8x1xf32>
    %22 = tpu.reciprocal %21 {approx = true} : vector<8x1xf32> -> vector<8x1xf32>
    %23 = vector.broadcast %11 : vector<8x1xf32> to vector<8x32xf32>
    %24 = arith.subf %0, %23 : vector<8x32xf32>
    %25 = vector.broadcast %6 : vector<1x32xf32> to vector<8x32xf32>
    %26 = arith.mulf %25, %24 : vector<8x32xf32>
    %27 = vector.broadcast %22 : vector<8x1xf32> to vector<8x32xf32>
    %28 = arith.mulf %26, %27 : vector<8x32xf32>
    %29 = vector.broadcast %7 : vector<1x32xf32> to vector<8x32xf32>
    %30 = arith.addf %28, %29 : vector<8x32xf32>
    %31 = arith.truncf %30 : vector<8x32xf32> to vector<8x32xbf16>
    %c0_14 = arith.constant 0 : index
    %c0_15 = arith.constant 0 : index
    %32 = vector.load %arg5[%c0_14, %c0_15] : memref<32x96xbf16, #tpu.memory_space<vmem>>, vector<32x96xbf16>
    %cst_16 = arith.constant dense<0.000000e+00> : vector<8x96xf32>
    %33 = tpu.matmul %31, %32, %cst_16 {dimension_numbers = #tpu.dot_dimension_numbers<[1], [0], [0], [1], [0, 0, 1, 1], [], []>} : vector<8x32xbf16>, vector<32x96xbf16>, vector<8x96xf32> -> vector<8x96xf32>
    %c0_17 = arith.constant 0 : index
    %c0_18 = arith.constant 0 : index
    %34 = vector.load %arg6[%c0_17, %c0_18] : memref<1x96xf32, #tpu.memory_space<vmem>>, vector<1x96xf32>
    %35 = vector.broadcast %34 : vector<1x96xf32> to vector<8x96xf32>
    %36 = arith.addf %33, %35 : vector<8x96xf32>
    %37 = vector.extract_strided_slice %36 {offsets = [0, 0], sizes = [8, 32], strides = [1, 1]} : vector<8x96xf32> to vector<8x32xf32>
    %cst_19 = arith.constant 0.353553385 : f32
    %38 = vector.broadcast %cst_19 : f32 to vector<8x32xf32>
    %39 = arith.mulf %37, %38 : vector<8x32xf32>
    %40 = vector.extract_strided_slice %36 {offsets = [0, 32], sizes = [8, 32], strides = [1, 1]} : vector<8x96xf32> to vector<8x32xf32>
    %41 = vector.extract_strided_slice %36 {offsets = [0, 64], sizes = [8, 32], strides = [1, 1]} : vector<8x96xf32> to vector<8x32xf32>
    %42 = vector.shape_cast %39 : vector<8x32xf32> to vector<8x4x8xf32>
    %43 = tpu.transpose %42, [1, 0, 2] : vector<8x4x8xf32> -> vector<4x8x8xf32>
    %44 = arith.truncf %43 : vector<4x8x8xf32> to vector<4x8x8xbf16>
    %45 = vector.shape_cast %40 : vector<8x32xf32> to vector<8x4x8xf32>
    %46 = tpu.transpose %45, [1, 0, 2] : vector<8x4x8xf32> -> vector<4x8x8xf32>
    %47 = arith.truncf %46 : vector<4x8x8xf32> to vector<4x8x8xbf16>
    %48 = vector.shape_cast %41 : vector<8x32xf32> to vector<8x4x8xf32>
    %49 = tpu.transpose %48, [1, 0, 2] : vector<8x4x8xf32> -> vector<4x8x8xf32>
    %50 = arith.truncf %49 : vector<4x8x8xf32> to vector<4x8x8xbf16>
    %51 = vector.shape_cast %5 : vector<1x1x8xf32> to vector<1x1x1x8xf32>
    %52 = vector.shape_cast %51 : vector<1x1x1x8xf32> to vector<1x1x1x8xf32>
    %53 = vector.broadcast %52 : vector<1x1x1x8xf32> to vector<4x1x1x8xf32>
    %54 = vector.shape_cast %53 : vector<4x1x1x8xf32> to vector<4x1x8xf32>
    "tpu.trace_start"() <{level = 10 : i32, message = "nqd,nkd->nqk"}> : () -> ()
    %cst_20 = arith.constant dense<0.000000e+00> : vector<4x8x8xf32>
    %55 = tpu.matmul %44, %47, %cst_20 {dimension_numbers = #tpu.dot_dimension_numbers<[2], [2], [1], [1], [0, 0, 0, 1, 1, 1], [0], [0]>} : vector<4x8x8xbf16>, vector<4x8x8xbf16>, vector<4x8x8xf32> -> vector<4x8x8xf32>
    "tpu.trace_stop"() : () -> ()
    %56 = vector.broadcast %54 : vector<4x1x8xf32> to vector<4x8x8xf32>
    %57 = arith.addf %55, %56 : vector<4x8x8xf32>
    %cst_21 = arith.constant dense<0xFF800000> : vector<4x8xf32>
    %58 = vector.multi_reduction <maximumf>, %57, %cst_21 [2] : vector<4x8x8xf32> to vector<4x8xf32>
    %59 = vector.shape_cast %58 : vector<4x8xf32> to vector<4x8x1xf32>
    %60 = vector.broadcast %59 : vector<4x8x1xf32> to vector<4x8x8xf32>
    %61 = arith.subf %57, %60 : vector<4x8x8xf32>
    %62 = math.exp %61 : vector<4x8x8xf32>
    %cst_22 = arith.constant dense<0.000000e+00> : vector<4x8xf32>
    %63 = vector.multi_reduction <add>, %62, %cst_22 [2] : vector<4x8x8xf32> to vector<4x8xf32>
    %64 = vector.shape_cast %63 : vector<4x8xf32> to vector<4x8x1xf32>
    %65 = tpu.reciprocal %64 {approx = true} : vector<4x8x1xf32> -> vector<4x8x1xf32>
    %66 = vector.broadcast %65 : vector<4x8x1xf32> to vector<4x8x8xf32>
    %67 = arith.mulf %62, %66 : vector<4x8x8xf32>
    %68 = arith.truncf %67 : vector<4x8x8xf32> to vector<4x8x8xbf16>
    "tpu.trace_start"() <{level = 10 : i32, message = "nqk,nkd->nqd"}> : () -> ()
    %cst_23 = arith.constant dense<0.000000e+00> : vector<4x8x8xf32>
    %69 = tpu.matmul %68, %50, %cst_23 {dimension_numbers = #tpu.dot_dimension_numbers<[2], [1], [1], [2], [0, 0, 0, 1, 1, 2], [0], [0]>} : vector<4x8x8xbf16>, vector<4x8x8xbf16>, vector<4x8x8xf32> -> vector<4x8x8xf32>
    "tpu.trace_stop"() : () -> ()
    %70 = tpu.transpose %69, [1, 0, 2] : vector<4x8x8xf32> -> vector<8x4x8xf32>
    %71 = vector.shape_cast %70 : vector<8x4x8xf32> to vector<8x32xf32>
    %72 = arith.truncf %71 : vector<8x32xf32> to vector<8x32xbf16>
    %c0_24 = arith.constant 0 : index
    %c0_25 = arith.constant 0 : index
    %73 = vector.load %arg7[%c0_24, %c0_25] : memref<32x32xbf16, #tpu.memory_space<vmem>>, vector<32x32xbf16>
    %cst_26 = arith.constant dense<0.000000e+00> : vector<8x32xf32>
    %74 = tpu.matmul %72, %73, %cst_26 {dimension_numbers = #tpu.dot_dimension_numbers<[1], [0], [0], [1], [0, 0, 1, 1], [], []>} : vector<8x32xbf16>, vector<32x32xbf16>, vector<8x32xf32> -> vector<8x32xf32>
    %c0_27 = arith.constant 0 : index
    %c0_28 = arith.constant 0 : index
    %75 = vector.load %arg8[%c0_27, %c0_28] : memref<1x32xf32, #tpu.memory_space<vmem>>, vector<1x32xf32>
    %76 = vector.broadcast %75 : vector<1x32xf32> to vector<8x32xf32>
    %77 = arith.addf %74, %76 : vector<8x32xf32>
    %78 = arith.addf %0, %77 : vector<8x32xf32>
    %c0_29 = arith.constant 0 : index
    %c0_30 = arith.constant 0 : index
    %79 = vector.load %arg9[%c0_29, %c0_30] : memref<1x32xf32, #tpu.memory_space<vmem>>, vector<1x32xf32>
    %c0_31 = arith.constant 0 : index
    %c0_32 = arith.constant 0 : index
    %80 = vector.load %arg10[%c0_31, %c0_32] : memref<1x32xf32, #tpu.memory_space<vmem>>, vector<1x32xf32>
    %cst_33 = arith.constant dense<0.000000e+00> : vector<8xf32>
    %81 = vector.multi_reduction <add>, %78, %cst_33 [1] : vector<8x32xf32> to vector<8xf32>
    %82 = vector.shape_cast %81 : vector<8xf32> to vector<8x1xf32>
    %cst_34 = arith.constant 3.200000e+01 : f32
    %83 = vector.broadcast %cst_34 : f32 to vector<8x1xf32>
    %84 = arith.divf %82, %83 : vector<8x1xf32>
    %85 = vector.broadcast %84 : vector<8x1xf32> to vector<8x32xf32>
    %86 = arith.subf %78, %85 : vector<8x32xf32>
    %87 = arith.mulf %86, %86 : vector<8x32xf32>
    %cst_35 = arith.constant dense<0.000000e+00> : vector<8xf32>
    %88 = vector.multi_reduction <add>, %87, %cst_35 [1] : vector<8x32xf32> to vector<8xf32>
    %89 = vector.shape_cast %88 : vector<8xf32> to vector<8x1xf32>
    %cst_36 = arith.constant 0.0322580636 : f32
    %90 = vector.broadcast %cst_36 : f32 to vector<8x1xf32>
    %91 = arith.mulf %89, %90 : vector<8x1xf32>
    %92 = math.sqrt %91 : vector<8x1xf32>
    %cst_37 = arith.constant 9.99999997E-7 : f32
    %93 = vector.broadcast %cst_37 : f32 to vector<8x1xf32>
    %94 = arith.addf %92, %93 : vector<8x1xf32>
    %95 = tpu.reciprocal %94 {approx = true} : vector<8x1xf32> -> vector<8x1xf32>
    %96 = vector.broadcast %84 : vector<8x1xf32> to vector<8x32xf32>
    %97 = arith.subf %78, %96 : vector<8x32xf32>
    %98 = vector.broadcast %79 : vector<1x32xf32> to vector<8x32xf32>
    %99 = arith.mulf %98, %97 : vector<8x32xf32>
    %100 = vector.broadcast %95 : vector<8x1xf32> to vector<8x32xf32>
    %101 = arith.mulf %99, %100 : vector<8x32xf32>
    %102 = vector.broadcast %80 : vector<1x32xf32> to vector<8x32xf32>
    %103 = arith.addf %101, %102 : vector<8x32xf32>
    %104 = arith.truncf %103 : vector<8x32xf32> to vector<8x32xbf16>
    %c0_38 = arith.constant 0 : index
    %c0_39 = arith.constant 0 : index
    %105 = vector.load %arg11[%c0_38, %c0_39] : memref<32x64xbf16, #tpu.memory_space<vmem>>, vector<32x64xbf16>
    %cst_40 = arith.constant dense<0.000000e+00> : vector<8x64xf32>
    %106 = tpu.matmul %104, %105, %cst_40 {dimension_numbers = #tpu.dot_dimension_numbers<[1], [0], [0], [1], [0, 0, 1, 1], [], []>} : vector<8x32xbf16>, vector<32x64xbf16>, vector<8x64xf32> -> vector<8x64xf32>
    %c0_41 = arith.constant 0 : index
    %c0_42 = arith.constant 0 : index
    %107 = vector.load %arg12[%c0_41, %c0_42] : memref<1x64xf32, #tpu.memory_space<vmem>>, vector<1x64xf32>
    %108 = vector.broadcast %107 : vector<1x64xf32> to vector<8x64xf32>
    %109 = arith.addf %106, %108 : vector<8x64xf32>
    %cst_43 = arith.constant 0.000000e+00 : f32
    %110 = vector.broadcast %cst_43 : f32 to vector<8x64xf32>
    %111 = arith.maximumf %109, %110 : vector<8x64xf32>
    %112 = arith.truncf %111 : vector<8x64xf32> to vector<8x64xbf16>
    %c0_44 = arith.constant 0 : index
    %c0_45 = arith.constant 0 : index
    %113 = vector.load %arg13[%c0_44, %c0_45] : memref<64x32xbf16, #tpu.memory_space<vmem>>, vector<64x32xbf16>
    %cst_46 = arith.constant dense<0.000000e+00> : vector<8x32xf32>
    %114 = tpu.matmul %112, %113, %cst_46 {dimension_numbers = #tpu.dot_dimension_numbers<[1], [0], [0], [1], [0, 0, 1, 1], [], []>} : vector<8x64xbf16>, vector<64x32xbf16>, vector<8x32xf32> -> vector<8x32xf32>
    %c0_47 = arith.constant 0 : index
    %c0_48 = arith.constant 0 : index
    %115 = vector.load %arg14[%c0_47, %c0_48] : memref<1x32xf32, #tpu.memory_space<vmem>>, vector<1x32xf32>
    %116 = vector.broadcast %115 : vector<1x32xf32> to vector<8x32xf32>
    %117 = arith.addf %114, %116 : vector<8x32xf32>
    %118 = arith.addf %78, %117 : vector<8x32xf32>
    %c0_49 = arith.constant 0 : index
    %c0_50 = arith.constant 0 : index
    %119 = vector.load %arg15[%c0_49, %c0_50] : memref<8x32xf32, #tpu.memory_space<vmem>>, vector<8x32xf32>
    tpu.vector_store %arg15[%c0_49, %c0_50], %118 {strides = array<i32>} : memref<8x32xf32, #tpu.memory_space<vmem>>, vector<8x32xf32>,
    return
  }
  func.func @transform_0(%arg0: i32) -> (i32, i32) {
    %c0_i32 = arith.constant 0 : i32
    %c0_i32_0 = arith.constant 0 : i32
    return %arg0, %c0_i32 : i32, i32
  }
  func.func @transform_1(%arg0: i32) -> (i32, i32, i32) {
    %c0_i32 = arith.constant 0 : i32
    %c0_i32_0 = arith.constant 0 : i32
    %c0_i32_1 = arith.constant 0 : i32
    return %arg0, %c0_i32, %c0_i32_0 : i32, i32, i32
  }
  func.func @transform_2(%arg0: i32) -> (i32, i32) {
    %c0_i32 = arith.constant 0 : i32
    %c0_i32_0 = arith.constant 0 : i32
    %c0_i32_1 = arith.constant 0 : i32
    return %c0_i32, %c0_i32_0 : i32, i32
  }
  func.func @transform_3(%arg0: i32) -> (i32, i32) {
    %c0_i32 = arith.constant 0 : i32
    %c0_i32_0 = arith.constant 0 : i32
    %c0_i32_1 = arith.constant 0 : i32
    return %c0_i32, %c0_i32_0 : i32, i32
  }
  func.func @transform_4(%arg0: i32) -> (i32, i32) {
    %c0_i32 = arith.constant 0 : i32
    %c0_i32_0 = arith.constant 0 : i32
    %c0_i32_1 = arith.constant 0 : i32
    return %c0_i32, %c0_i32_0 : i32, i32
  }
  func.func @transform_5(%arg0: i32) -> (i32, i32) {
    %c0_i32 = arith.constant 0 : i32
    %c0_i32_0 = arith.constant 0 : i32
    %c0_i32_1 = arith.constant 0 : i32
    return %c0_i32, %c0_i32_0 : i32, i32
  }
  func.func @transform_6(%arg0: i32) -> (i32, i32) {
    %c0_i32 = arith.constant 0 : i32
    %c0_i32_0 = arith.constant 0 : i32
    %c0_i32_1 = arith.constant 0 : i32
    return %c0_i32, %c0_i32_0 : i32, i32
  }
  func.func @transform_7(%arg0: i32) -> (i32, i32) {
    %c0_i32 = arith.constant 0 : i32
    %c0_i32_0 = arith.constant 0 : i32
    %c0_i32_1 = arith.constant 0 : i32
    return %c0_i32, %c0_i32_0 : i32, i32
  }
  func.func @transform_8(%arg0: i32) -> (i32, i32) {
    %c0_i32 = arith.constant 0 : i32
    %c0_i32_0 = arith.constant 0 : i32
    %c0_i32_1 = arith.constant 0 : i32
    return %c0_i32, %c0_i32_0 : i32, i32
  }
  func.func @transform_9(%arg0: i32) -> (i32, i32) {
    %c0_i32 = arith.constant 0 : i32
    %c0_i32_0 = arith.constant 0 : i32
    %c0_i32_1 = arith.constant 0 : i32
    return %c0_i32, %c0_i32_0 : i32, i32
  }
  func.func @transform_10(%arg0: i32) -> (i32, i32) {
    %c0_i32 = arith.constant 0 : i32
    %c0_i32_0 = arith.constant 0 : i32
    %c0_i32_1 = arith.constant 0 : i32
    return %c0_i32, %c0_i32_0 : i32, i32
  }
  func.func @transform_11(%arg0: i32) -> (i32, i32) {
    %c0_i32 = arith.constant 0 : i32
    %c0_i32_0 = arith.constant 0 : i32
    %c0_i32_1 = arith.constant 0 : i32
    return %c0_i32, %c0_i32_0 : i32, i32
  }
  func.func @transform_12(%arg0: i32) -> (i32, i32) {
    %c0_i32 = arith.constant 0 : i32
    %c0_i32_0 = arith.constant 0 : i32
    %c0_i32_1 = arith.constant 0 : i32
    return %c0_i32, %c0_i32_0 : i32, i32
  }
  func.func @transform_13(%arg0: i32) -> (i32, i32) {
    %c0_i32 = arith.constant 0 : i32
    %c0_i32_0 = arith.constant 0 : i32
    %c0_i32_1 = arith.constant 0 : i32
    return %c0_i32, %c0_i32_0 : i32, i32
  }
  func.func @transform_14(%arg0: i32) -> (i32, i32) {
    %c0_i32 = arith.constant 0 : i32
    %c0_i32_0 = arith.constant 0 : i32
    return %arg0, %c0_i32 : i32, i32
  }
}

module attributes {stable_mosaic.version = 11 : i64} {
  func.func @_encoder_layer_kernel(%arg0: i32, %arg1: memref<8x32xf32, #tpu.memory_space<vmem>>, %arg2: memref<1x1x8xf32, #tpu.memory_space<vmem>>, %arg3: memref<1x32xf32, #tpu.memory_space<vmem>>, %arg4: memref<1x32xf32, #tpu.memory_space<vmem>>, %arg5: memref<32x96xbf16, #tpu.memory_space<vmem>>, %arg6: memref<1x96xf32, #tpu.memory_space<vmem>>, %arg7: memref<32x32xbf16, #tpu.memory_space<vmem>>, %arg8: memref<1x32xf32, #tpu.memory_space<vmem>>, %arg9: memref<1x32xf32, #tpu.memory_space<vmem>>, %arg10: memref<1x32xf32, #tpu.memory_space<vmem>>, %arg11: memref<32x64xbf16, #tpu.memory_space<vmem>>, %arg12: memref<1x64xf32, #tpu.memory_space<vmem>>, %arg13: memref<64x32xbf16, #tpu.memory_space<vmem>>, %arg14: memref<1x32xf32, #tpu.memory_space<vmem>>, %arg15: memref<8x32xf32, #tpu.memory_space<vmem>>) attributes {dimension_semantics = [#tpu.dimension_semantics<parallel>], iteration_bounds = array<i64: 2>, scalar_prefetch = 0 : i64, scratch_operands = 0 : i64, tpu.core_type = #tpu.core_type<tc>, window_params = [{transform_indices = @transform_0, window_bounds = array<i64: 8, 32>}, {transform_indices = @transform_1, window_bounds = array<i64: 1, 1, 8>}, {pipeline_mode = #tpu.pipeline_mode<synchronous>, transform_indices = @transform_2, window_bounds = array<i64: 1, 32>}, {pipeline_mode = #tpu.pipeline_mode<synchronous>, transform_indices = @transform_3, window_bounds = array<i64: 1, 32>}, {pipeline_mode = #tpu.pipeline_mode<synchronous>, transform_indices = @transform_4, window_bounds = array<i64: 32, 96>}, {pipeline_mode = #tpu.pipeline_mode<synchronous>, transform_indices = @transform_5, window_bounds = array<i64: 1, 96>}, {pipeline_mode = #tpu.pipeline_mode<synchronous>, transform_indices = @transform_6, window_bounds = array<i64: 32, 32>}, {pipeline_mode = #tpu.pipeline_mode<synchronous>, transform_indices = @transform_7, window_bounds = array<i64: 1, 32>}, {pipeline_mode = #tpu.pipeline_mode<synchronous>, transform_indices = @transform_8, window_bounds = array<i64: 1, 32>}, {pipeline_mode = #tpu.pipeline_mode<synchronous>, transform_indices = @transform_9, window_bounds = array<i64: 1, 32>}, {pipeline_mode = #tpu.pipeline_mode<synchronous>, transform_indices = @transform_10, window_bounds = array<i64: 32, 64>}, {pipeline_mode = #tpu.pipeline_mode<synchronous>, transform_indices = @transform_11, window_bounds = array<i64: 1, 64>}, {pipeline_mode = #tpu.pipeline_mode<synchronous>, transform_indices = @transform_12, window_bounds = array<i64: 64, 32>}, {pipeline_mode = #tpu.pipeline_mode<synchronous>, transform_indices = @transform_13, window_bounds = array<i64: 1, 32>}, {transform_indices = @transform_14, window_bounds = array<i64: 8, 32>}]} {
    %c0 = arith.constant 0 : index
    %c0_0 = arith.constant 0 : index
    %0 = vector.load %arg1[%c0, %c0_0] : memref<8x32xf32, #tpu.memory_space<vmem>>, vector<8x32xf32>
    %c0_1 = arith.constant 0 : index
    %c0_2 = arith.constant 0 : index
    %c0_3 = arith.constant 0 : index
    %1 = vector.load %arg2[%c0_1, %c0_2, %c0_3] : memref<1x1x8xf32, #tpu.memory_space<vmem>>, vector<1x1x8xf32>
    %cst = arith.constant 1.000000e+00 : f32
    %2 = vector.broadcast %cst : f32 to vector<1x1x8xf32>
    %3 = arith.subf %1, %2 : vector<1x1x8xf32>
    %cst_4 = arith.constant 1.000000e+09 : f32
    %4 = vector.broadcast %cst_4 : f32 to vector<1x1x8xf32>
    %5 = arith.mulf %3, %4 : vector<1x1x8xf32>
    %c0_5 = arith.constant 0 : index
    %c0_6 = arith.constant 0 : index
    %6 = vector.load %arg3[%c0_5, %c0_6] : memref<1x32xf32, #tpu.memory_space<vmem>>, vector<1x32xf32>
    %c0_7 = arith.constant 0 : index
    %c0_8 = arith.constant 0 : index
    %7 = vector.load %arg4[%c0_7, %c0_8] : memref<1x32xf32, #tpu.memory_space<vmem>>, vector<1x32xf32>
    %cst_9 = arith.constant dense<0.000000e+00> : vector<8xf32>
    %8 = vector.multi_reduction <add>, %0, %cst_9 [1] : vector<8x32xf32> to vector<8xf32>
    %9 = vector.shape_cast %8 : vector<8xf32> to vector<8x1xf32>
    %cst_10 = arith.constant 3.200000e+01 : f32
    %10 = vector.broadcast %cst_10 : f32 to vector<8x1xf32>
    %11 = arith.divf %9, %10 : vector<8x1xf32>
    %12 = vector.broadcast %11 : vector<8x1xf32> to vector<8x32xf32>
    %13 = arith.subf %0, %12 : vector<8x32xf32>
    %14 = arith.mulf %13, %13 : vector<8x32xf32>
    %cst_11 = arith.constant dense<0.000000e+00> : vector<8xf32>
    %15 = vector.multi_reduction <add>, %14, %cst_11 [1] : vector<8x32xf32> to vector<8xf32>
    %16 = vector.shape_cast %15 : vector<8xf32> to vector<8x1xf32>
    %cst_12 = arith.constant 0.0322580636 : f32
    %17 = vector.broadcast %cst_12 : f32 to vector<8x1xf32>
    %18 = arith.mulf %16, %17 : vector<8x1xf32>
    %19 = math.sqrt %18 : vector<8x1xf32>
    %cst_13 = arith.constant 9.99999997E-7 : f32
    %20 = vector.broadcast %cst_13 : f32 to vector<8x1xf32>
    %21 = arith.addf %19, %20 : vector<8x1xf32>
    %22 = tpu.reciprocal %21 {approx = true} : vector<8x1xf32> -> vector<8x1xf32>
    %23 = vector.broadcast %11 : vector<8x1xf32> to vector<8x32xf32>
    %24 = arith.subf %0, %23 : vector<8x32xf32>
    %25 = vector.broadcast %6 : vector<1x32xf32> to vector<8x32xf32>
    %26 = arith.mulf %25, %24 : vector<8x32xf32>
    %27 = vector.broadcast %22 : vector<8x1xf32> to vector<8x32xf32>
    %28 = arith.mulf %26, %27 : vector<8x32xf32>
    %29 = vector.broadcast %7 : vector<1x32xf32> to vector<8x32xf32>
    %30 = arith.addf %28, %29 : vector<8x32xf32>
    %31 = arith.truncf %30 : vector<8x32xf32> to vector<8x32xbf16>
    %c0_14 = arith.constant 0 : index
    %c0_15 = arith.constant 0 : index
    %32 = vector.load %arg5[%c0_14, %c0_15] : memref<32x96xbf16, #tpu.memory_space<vmem>>, vector<32x96xbf16>
    %cst_16 = arith.constant dense<0.000000e+00> : vector<8x96xf32>
    %33 = tpu.matmul %31, %32, %cst_16 {dimension_numbers = #tpu.dot_dimension_numbers<[1], [0], [0], [1], [0, 0, 1, 1], [], []>} : vector<8x32xbf16>, vector<32x96xbf16>, vector<8x96xf32> -> vector<8x96xf32>
    %c0_17 = arith.constant 0 : index
    %c0_18 = arith.constant 0 : index
    %34 = vector.load %arg6[%c0_17, %c0_18] : memref<1x96xf32, #tpu.memory_space<vmem>>, vector<1x96xf32>
    %35 = vector.broadcast %34 : vector<1x96xf32> to vector<8x96xf32>
    %36 = arith.addf %33, %35 : vector<8x96xf32>
    %37 = vector.extract_strided_slice %36 {offsets = [0, 0], sizes = [8, 32], strides = [1, 1]} : vector<8x96xf32> to vector<8x32xf32>
    %cst_19 = arith.constant 0.353553385 : f32
    %38 = vector.broadcast %cst_19 : f32 to vector<8x32xf32>
    %39 = arith.mulf %37, %38 : vector<8x32xf32>
    %40 = vector.extract_strided_slice %36 {offsets = [0, 32], sizes = [8, 32], strides = [1, 1]} : vector<8x96xf32> to vector<8x32xf32>
    %41 = vector.extract_strided_slice %36 {offsets = [0, 64], sizes = [8, 32], strides = [1, 1]} : vector<8x96xf32> to vector<8x32xf32>
    %42 = vector.extract_strided_slice %39 {offsets = [0, 0], sizes = [8, 8], strides = [1, 1]} : vector<8x32xf32> to vector<8x8xf32>
    %43 = vector.extract_strided_slice %40 {offsets = [0, 0], sizes = [8, 8], strides = [1, 1]} : vector<8x32xf32> to vector<8x8xf32>
    %44 = vector.extract_strided_slice %41 {offsets = [0, 0], sizes = [8, 8], strides = [1, 1]} : vector<8x32xf32> to vector<8x8xf32>
    %45 = arith.truncf %42 : vector<8x8xf32> to vector<8x8xbf16>
    %46 = tpu.transpose %43, [1, 0] : vector<8x8xf32> -> vector<8x8xf32>
    %47 = arith.truncf %46 : vector<8x8xf32> to vector<8x8xbf16>
    %cst_20 = arith.constant dense<0.000000e+00> : vector<8x8xf32>
    %48 = tpu.matmul %45, %47, %cst_20 {dimension_numbers = #tpu.dot_dimension_numbers<[1], [0], [0], [1], [0, 0, 1, 1], [], []>} : vector<8x8xbf16>, vector<8x8xbf16>, vector<8x8xf32> -> vector<8x8xf32>
    %49 = vector.shape_cast %5 : vector<1x1x8xf32> to vector<1x8xf32>
    %50 = vector.broadcast %49 : vector<1x8xf32> to vector<8x8xf32>
    %51 = arith.addf %48, %50 : vector<8x8xf32>
    %cst_21 = arith.constant dense<0xFF800000> : vector<8xf32>
    %52 = vector.multi_reduction <maximumf>, %51, %cst_21 [1] : vector<8x8xf32> to vector<8xf32>
    %53 = vector.shape_cast %52 : vector<8xf32> to vector<8x1xf32>
    %54 = vector.broadcast %53 : vector<8x1xf32> to vector<8x8xf32>
    %55 = arith.subf %51, %54 : vector<8x8xf32>
    %56 = math.exp %55 : vector<8x8xf32>
    %cst_22 = arith.constant dense<0.000000e+00> : vector<8xf32>
    %57 = vector.multi_reduction <add>, %56, %cst_22 [1] : vector<8x8xf32> to vector<8xf32>
    %58 = vector.shape_cast %57 : vector<8xf32> to vector<8x1xf32>
    %59 = tpu.reciprocal %58 {approx = true} : vector<8x1xf32> -> vector<8x1xf32>
    %60 = vector.broadcast %59 : vector<8x1xf32> to vector<8x8xf32>
    %61 = arith.mulf %56, %60 : vector<8x8xf32>
    %62 = arith.truncf %61 : vector<8x8xf32> to vector<8x8xbf16>
    %63 = arith.truncf %44 : vector<8x8xf32> to vector<8x8xbf16>
    %cst_23 = arith.constant dense<0.000000e+00> : vector<8x8xf32>
    %64 = tpu.matmul %62, %63, %cst_23 {dimension_numbers = #tpu.dot_dimension_numbers<[1], [0], [0], [1], [0, 0, 1, 1], [], []>} : vector<8x8xbf16>, vector<8x8xbf16>, vector<8x8xf32> -> vector<8x8xf32>
    %65 = vector.extract_strided_slice %39 {offsets = [0, 8], sizes = [8, 8], strides = [1, 1]} : vector<8x32xf32> to vector<8x8xf32>
    %66 = vector.extract_strided_slice %40 {offsets = [0, 8], sizes = [8, 8], strides = [1, 1]} : vector<8x32xf32> to vector<8x8xf32>
    %67 = vector.extract_strided_slice %41 {offsets = [0, 8], sizes = [8, 8], strides = [1, 1]} : vector<8x32xf32> to vector<8x8xf32>
    %68 = arith.truncf %65 : vector<8x8xf32> to vector<8x8xbf16>
    %69 = tpu.transpose %66, [1, 0] : vector<8x8xf32> -> vector<8x8xf32>
    %70 = arith.truncf %69 : vector<8x8xf32> to vector<8x8xbf16>
    %cst_24 = arith.constant dense<0.000000e+00> : vector<8x8xf32>
    %71 = tpu.matmul %68, %70, %cst_24 {dimension_numbers = #tpu.dot_dimension_numbers<[1], [0], [0], [1], [0, 0, 1, 1], [], []>} : vector<8x8xbf16>, vector<8x8xbf16>, vector<8x8xf32> -> vector<8x8xf32>
    %72 = vector.shape_cast %5 : vector<1x1x8xf32> to vector<1x8xf32>
    %73 = vector.broadcast %72 : vector<1x8xf32> to vector<8x8xf32>
    %74 = arith.addf %71, %73 : vector<8x8xf32>
    %cst_25 = arith.constant dense<0xFF800000> : vector<8xf32>
    %75 = vector.multi_reduction <maximumf>, %74, %cst_25 [1] : vector<8x8xf32> to vector<8xf32>
    %76 = vector.shape_cast %75 : vector<8xf32> to vector<8x1xf32>
    %77 = vector.broadcast %76 : vector<8x1xf32> to vector<8x8xf32>
    %78 = arith.subf %74, %77 : vector<8x8xf32>
    %79 = math.exp %78 : vector<8x8xf32>
    %cst_26 = arith.constant dense<0.000000e+00> : vector<8xf32>
    %80 = vector.multi_reduction <add>, %79, %cst_26 [1] : vector<8x8xf32> to vector<8xf32>
    %81 = vector.shape_cast %80 : vector<8xf32> to vector<8x1xf32>
    %82 = tpu.reciprocal %81 {approx = true} : vector<8x1xf32> -> vector<8x1xf32>
    %83 = vector.broadcast %82 : vector<8x1xf32> to vector<8x8xf32>
    %84 = arith.mulf %79, %83 : vector<8x8xf32>
    %85 = arith.truncf %84 : vector<8x8xf32> to vector<8x8xbf16>
    %86 = arith.truncf %67 : vector<8x8xf32> to vector<8x8xbf16>
    %cst_27 = arith.constant dense<0.000000e+00> : vector<8x8xf32>
    %87 = tpu.matmul %85, %86, %cst_27 {dimension_numbers = #tpu.dot_dimension_numbers<[1], [0], [0], [1], [0, 0, 1, 1], [], []>} : vector<8x8xbf16>, vector<8x8xbf16>, vector<8x8xf32> -> vector<8x8xf32>
    %88 = vector.extract_strided_slice %39 {offsets = [0, 16], sizes = [8, 8], strides = [1, 1]} : vector<8x32xf32> to vector<8x8xf32>
    %89 = vector.extract_strided_slice %40 {offsets = [0, 16], sizes = [8, 8], strides = [1, 1]} : vector<8x32xf32> to vector<8x8xf32>
    %90 = vector.extract_strided_slice %41 {offsets = [0, 16], sizes = [8, 8], strides = [1, 1]} : vector<8x32xf32> to vector<8x8xf32>
    %91 = arith.truncf %88 : vector<8x8xf32> to vector<8x8xbf16>
    %92 = tpu.transpose %89, [1, 0] : vector<8x8xf32> -> vector<8x8xf32>
    %93 = arith.truncf %92 : vector<8x8xf32> to vector<8x8xbf16>
    %cst_28 = arith.constant dense<0.000000e+00> : vector<8x8xf32>
    %94 = tpu.matmul %91, %93, %cst_28 {dimension_numbers = #tpu.dot_dimension_numbers<[1], [0], [0], [1], [0, 0, 1, 1], [], []>} : vector<8x8xbf16>, vector<8x8xbf16>, vector<8x8xf32> -> vector<8x8xf32>
    %95 = vector.shape_cast %5 : vector<1x1x8xf32> to vector<1x8xf32>
    %96 = vector.broadcast %95 : vector<1x8xf32> to vector<8x8xf32>
    %97 = arith.addf %94, %96 : vector<8x8xf32>
    %cst_29 = arith.constant dense<0xFF800000> : vector<8xf32>
    %98 = vector.multi_reduction <maximumf>, %97, %cst_29 [1] : vector<8x8xf32> to vector<8xf32>
    %99 = vector.shape_cast %98 : vector<8xf32> to vector<8x1xf32>
    %100 = vector.broadcast %99 : vector<8x1xf32> to vector<8x8xf32>
    %101 = arith.subf %97, %100 : vector<8x8xf32>
    %102 = math.exp %101 : vector<8x8xf32>
    %cst_30 = arith.constant dense<0.000000e+00> : vector<8xf32>
    %103 = vector.multi_reduction <add>, %102, %cst_30 [1] : vector<8x8xf32> to vector<8xf32>
    %104 = vector.shape_cast %103 : vector<8xf32> to vector<8x1xf32>
    %105 = tpu.reciprocal %104 {approx = true} : vector<8x1xf32> -> vector<8x1xf32>
    %106 = vector.broadcast %105 : vector<8x1xf32> to vector<8x8xf32>
    %107 = arith.mulf %102, %106 : vector<8x8xf32>
    %108 = arith.truncf %107 : vector<8x8xf32> to vector<8x8xbf16>
    %109 = arith.truncf %90 : vector<8x8xf32> to vector<8x8xbf16>
    %cst_31 = arith.constant dense<0.000000e+00> : vector<8x8xf32>
    %110 = tpu.matmul %108, %109, %cst_31 {dimension_numbers = #tpu.dot_dimension_numbers<[1], [0], [0], [1], [0, 0, 1, 1], [], []>} : vector<8x8xbf16>, vector<8x8xbf16>, vector<8x8xf32> -> vector<8x8xf32>
    %111 = vector.extract_strided_slice %39 {offsets = [0, 24], sizes = [8, 8], strides = [1, 1]} : vector<8x32xf32> to vector<8x8xf32>
    %112 = vector.extract_strided_slice %40 {offsets = [0, 24], sizes = [8, 8], strides = [1, 1]} : vector<8x32xf32> to vector<8x8xf32>
    %113 = vector.extract_strided_slice %41 {offsets = [0, 24], sizes = [8, 8], strides = [1, 1]} : vector<8x32xf32> to vector<8x8xf32>
    %114 = arith.truncf %111 : vector<8x8xf32> to vector<8x8xbf16>
    %115 = tpu.transpose %112, [1, 0] : vector<8x8xf32> -> vector<8x8xf32>
    %116 = arith.truncf %115 : vector<8x8xf32> to vector<8x8xbf16>
    %cst_32 = arith.constant dense<0.000000e+00> : vector<8x8xf32>
    %117 = tpu.matmul %114, %116, %cst_32 {dimension_numbers = #tpu.dot_dimension_numbers<[1], [0], [0], [1], [0, 0, 1, 1], [], []>} : vector<8x8xbf16>, vector<8x8xbf16>, vector<8x8xf32> -> vector<8x8xf32>
    %118 = vector.shape_cast %5 : vector<1x1x8xf32> to vector<1x8xf32>
    %119 = vector.broadcast %118 : vector<1x8xf32> to vector<8x8xf32>
    %120 = arith.addf %117, %119 : vector<8x8xf32>
    %cst_33 = arith.constant dense<0xFF800000> : vector<8xf32>
    %121 = vector.multi_reduction <maximumf>, %120, %cst_33 [1] : vector<8x8xf32> to vector<8xf32>
    %122 = vector.shape_cast %121 : vector<8xf32> to vector<8x1xf32>
    %123 = vector.broadcast %122 : vector<8x1xf32> to vector<8x8xf32>
    %124 = arith.subf %120, %123 : vector<8x8xf32>
    %125 = math.exp %124 : vector<8x8xf32>
    %cst_34 = arith.constant dense<0.000000e+00> : vector<8xf32>
    %126 = vector.multi_reduction <add>, %125, %cst_34 [1] : vector<8x8xf32> to vector<8xf32>
    %127 = vector.shape_cast %126 : vector<8xf32> to vector<8x1xf32>
    %128 = tpu.reciprocal %127 {approx = true} : vector<8x1xf32> -> vector<8x1xf32>
    %129 = vector.broadcast %128 : vector<8x1xf32> to vector<8x8xf32>
    %130 = arith.mulf %125, %129 : vector<8x8xf32>
    %131 = arith.truncf %130 : vector<8x8xf32> to vector<8x8xbf16>
    %132 = arith.truncf %113 : vector<8x8xf32> to vector<8x8xbf16>
    %cst_35 = arith.constant dense<0.000000e+00> : vector<8x8xf32>
    %133 = tpu.matmul %131, %132, %cst_35 {dimension_numbers = #tpu.dot_dimension_numbers<[1], [0], [0], [1], [0, 0, 1, 1], [], []>} : vector<8x8xbf16>, vector<8x8xbf16>, vector<8x8xf32> -> vector<8x8xf32>
    %134 = tpu.concatenate %64, %87, %110, %133 in 1 : vector<8x8xf32>, vector<8x8xf32>, vector<8x8xf32>, vector<8x8xf32> -> vector<8x32xf32>
    %135 = arith.truncf %134 : vector<8x32xf32> to vector<8x32xbf16>
    %c0_36 = arith.constant 0 : index
    %c0_37 = arith.constant 0 : index
    %136 = vector.load %arg7[%c0_36, %c0_37] : memref<32x32xbf16, #tpu.memory_space<vmem>>, vector<32x32xbf16>
    %cst_38 = arith.constant dense<0.000000e+00> : vector<8x32xf32>
    %137 = tpu.matmul %135, %136, %cst_38 {dimension_numbers = #tpu.dot_dimension_numbers<[1], [0], [0], [1], [0, 0, 1, 1], [], []>} : vector<8x32xbf16>, vector<32x32xbf16>, vector<8x32xf32> -> vector<8x32xf32>
    %c0_39 = arith.constant 0 : index
    %c0_40 = arith.constant 0 : index
    %138 = vector.load %arg8[%c0_39, %c0_40] : memref<1x32xf32, #tpu.memory_space<vmem>>, vector<1x32xf32>
    %139 = vector.broadcast %138 : vector<1x32xf32> to vector<8x32xf32>
    %140 = arith.addf %137, %139 : vector<8x32xf32>
    %141 = arith.addf %0, %140 : vector<8x32xf32>
    %c0_41 = arith.constant 0 : index
    %c0_42 = arith.constant 0 : index
    %142 = vector.load %arg9[%c0_41, %c0_42] : memref<1x32xf32, #tpu.memory_space<vmem>>, vector<1x32xf32>
    %c0_43 = arith.constant 0 : index
    %c0_44 = arith.constant 0 : index
    %143 = vector.load %arg10[%c0_43, %c0_44] : memref<1x32xf32, #tpu.memory_space<vmem>>, vector<1x32xf32>
    %cst_45 = arith.constant dense<0.000000e+00> : vector<8xf32>
    %144 = vector.multi_reduction <add>, %141, %cst_45 [1] : vector<8x32xf32> to vector<8xf32>
    %145 = vector.shape_cast %144 : vector<8xf32> to vector<8x1xf32>
    %cst_46 = arith.constant 3.200000e+01 : f32
    %146 = vector.broadcast %cst_46 : f32 to vector<8x1xf32>
    %147 = arith.divf %145, %146 : vector<8x1xf32>
    %148 = vector.broadcast %147 : vector<8x1xf32> to vector<8x32xf32>
    %149 = arith.subf %141, %148 : vector<8x32xf32>
    %150 = arith.mulf %149, %149 : vector<8x32xf32>
    %cst_47 = arith.constant dense<0.000000e+00> : vector<8xf32>
    %151 = vector.multi_reduction <add>, %150, %cst_47 [1] : vector<8x32xf32> to vector<8xf32>
    %152 = vector.shape_cast %151 : vector<8xf32> to vector<8x1xf32>
    %cst_48 = arith.constant 0.0322580636 : f32
    %153 = vector.broadcast %cst_48 : f32 to vector<8x1xf32>
    %154 = arith.mulf %152, %153 : vector<8x1xf32>
    %155 = math.sqrt %154 : vector<8x1xf32>
    %cst_49 = arith.constant 9.99999997E-7 : f32
    %156 = vector.broadcast %cst_49 : f32 to vector<8x1xf32>
    %157 = arith.addf %155, %156 : vector<8x1xf32>
    %158 = tpu.reciprocal %157 {approx = true} : vector<8x1xf32> -> vector<8x1xf32>
    %159 = vector.broadcast %147 : vector<8x1xf32> to vector<8x32xf32>
    %160 = arith.subf %141, %159 : vector<8x32xf32>
    %161 = vector.broadcast %142 : vector<1x32xf32> to vector<8x32xf32>
    %162 = arith.mulf %161, %160 : vector<8x32xf32>
    %163 = vector.broadcast %158 : vector<8x1xf32> to vector<8x32xf32>
    %164 = arith.mulf %162, %163 : vector<8x32xf32>
    %165 = vector.broadcast %143 : vector<1x32xf32> to vector<8x32xf32>
    %166 = arith.addf %164, %165 : vector<8x32xf32>
    %167 = arith.truncf %166 : vector<8x32xf32> to vector<8x32xbf16>
    %c0_50 = arith.constant 0 : index
    %c0_51 = arith.constant 0 : index
    %168 = vector.load %arg11[%c0_50, %c0_51] : memref<32x64xbf16, #tpu.memory_space<vmem>>, vector<32x64xbf16>
    %cst_52 = arith.constant dense<0.000000e+00> : vector<8x64xf32>
    %169 = tpu.matmul %167, %168, %cst_52 {dimension_numbers = #tpu.dot_dimension_numbers<[1], [0], [0], [1], [0, 0, 1, 1], [], []>} : vector<8x32xbf16>, vector<32x64xbf16>, vector<8x64xf32> -> vector<8x64xf32>
    %c0_53 = arith.constant 0 : index
    %c0_54 = arith.constant 0 : index
    %170 = vector.load %arg12[%c0_53, %c0_54] : memref<1x64xf32, #tpu.memory_space<vmem>>, vector<1x64xf32>
    %171 = vector.broadcast %170 : vector<1x64xf32> to vector<8x64xf32>
    %172 = arith.addf %169, %171 : vector<8x64xf32>
    %cst_55 = arith.constant 0.000000e+00 : f32
    %173 = vector.broadcast %cst_55 : f32 to vector<8x64xf32>
    %174 = arith.maximumf %172, %173 : vector<8x64xf32>
    %175 = arith.truncf %174 : vector<8x64xf32> to vector<8x64xbf16>
    %c0_56 = arith.constant 0 : index
    %c0_57 = arith.constant 0 : index
    %176 = vector.load %arg13[%c0_56, %c0_57] : memref<64x32xbf16, #tpu.memory_space<vmem>>, vector<64x32xbf16>
    %cst_58 = arith.constant dense<0.000000e+00> : vector<8x32xf32>
    %177 = tpu.matmul %175, %176, %cst_58 {dimension_numbers = #tpu.dot_dimension_numbers<[1], [0], [0], [1], [0, 0, 1, 1], [], []>} : vector<8x64xbf16>, vector<64x32xbf16>, vector<8x32xf32> -> vector<8x32xf32>
    %c0_59 = arith.constant 0 : index
    %c0_60 = arith.constant 0 : index
    %178 = vector.load %arg14[%c0_59, %c0_60] : memref<1x32xf32, #tpu.memory_space<vmem>>, vector<1x32xf32>
    %179 = vector.broadcast %178 : vector<1x32xf32> to vector<8x32xf32>
    %180 = arith.addf %177, %179 : vector<8x32xf32>
    %181 = arith.addf %141, %180 : vector<8x32xf32>
    %c0_61 = arith.constant 0 : index
    %c0_62 = arith.constant 0 : index
    %182 = vector.load %arg15[%c0_61, %c0_62] : memref<8x32xf32, #tpu.memory_space<vmem>>, vector<8x32xf32>
    tpu.vector_store %arg15[%c0_61, %c0_62], %181 {strides = array<i32>} : memref<8x32xf32, #tpu.memory_space<vmem>>, vector<8x32xf32>,
    return
  }
  func.func @transform_0(%arg0: i32) -> (i32, i32) {
    %c0_i32 = arith.constant 0 : i32
    %c0_i32_0 = arith.constant 0 : i32
    return %arg0, %c0_i32 : i32, i32
  }
  func.func @transform_1(%arg0: i32) -> (i32, i32, i32) {
    %c0_i32 = arith.constant 0 : i32
    %c0_i32_0 = arith.constant 0 : i32
    %c0_i32_1 = arith.constant 0 : i32
    return %arg0, %c0_i32, %c0_i32_0 : i32, i32, i32
  }
  func.func @transform_2(%arg0: i32) -> (i32, i32) {
    %c0_i32 = arith.constant 0 : i32
    %c0_i32_0 = arith.constant 0 : i32
    %c0_i32_1 = arith.constant 0 : i32
    return %c0_i32, %c0_i32_0 : i32, i32
  }
  func.func @transform_3(%arg0: i32) -> (i32, i32) {
    %c0_i32 = arith.constant 0 : i32
    %c0_i32_0 = arith.constant 0 : i32
    %c0_i32_1 = arith.constant 0 : i32
    return %c0_i32, %c0_i32_0 : i32, i32
  }
  func.func @transform_4(%arg0: i32) -> (i32, i32) {
    %c0_i32 = arith.constant 0 : i32
    %c0_i32_0 = arith.constant 0 : i32
    %c0_i32_1 = arith.constant 0 : i32
    return %c0_i32, %c0_i32_0 : i32, i32
  }
  func.func @transform_5(%arg0: i32) -> (i32, i32) {
    %c0_i32 = arith.constant 0 : i32
    %c0_i32_0 = arith.constant 0 : i32
    %c0_i32_1 = arith.constant 0 : i32
    return %c0_i32, %c0_i32_0 : i32, i32
  }
  func.func @transform_6(%arg0: i32) -> (i32, i32) {
    %c0_i32 = arith.constant 0 : i32
    %c0_i32_0 = arith.constant 0 : i32
    %c0_i32_1 = arith.constant 0 : i32
    return %c0_i32, %c0_i32_0 : i32, i32
  }
  func.func @transform_7(%arg0: i32) -> (i32, i32) {
    %c0_i32 = arith.constant 0 : i32
    %c0_i32_0 = arith.constant 0 : i32
    %c0_i32_1 = arith.constant 0 : i32
    return %c0_i32, %c0_i32_0 : i32, i32
  }
  func.func @transform_8(%arg0: i32) -> (i32, i32) {
    %c0_i32 = arith.constant 0 : i32
    %c0_i32_0 = arith.constant 0 : i32
    %c0_i32_1 = arith.constant 0 : i32
    return %c0_i32, %c0_i32_0 : i32, i32
  }
  func.func @transform_9(%arg0: i32) -> (i32, i32) {
    %c0_i32 = arith.constant 0 : i32
    %c0_i32_0 = arith.constant 0 : i32
    %c0_i32_1 = arith.constant 0 : i32
    return %c0_i32, %c0_i32_0 : i32, i32
  }
  func.func @transform_10(%arg0: i32) -> (i32, i32) {
    %c0_i32 = arith.constant 0 : i32
    %c0_i32_0 = arith.constant 0 : i32
    %c0_i32_1 = arith.constant 0 : i32
    return %c0_i32, %c0_i32_0 : i32, i32
  }
  func.func @transform_11(%arg0: i32) -> (i32, i32) {
    %c0_i32 = arith.constant 0 : i32
    %c0_i32_0 = arith.constant 0 : i32
    %c0_i32_1 = arith.constant 0 : i32
    return %c0_i32, %c0_i32_0 : i32, i32
  }
  func.func @transform_12(%arg0: i32) -> (i32, i32) {
    %c0_i32 = arith.constant 0 : i32
    %c0_i32_0 = arith.constant 0 : i32
    %c0_i32_1 = arith.constant 0 : i32
    return %c0_i32, %c0_i32_0 : i32, i32
  }
  func.func @transform_13(%arg0: i32) -> (i32, i32) {
    %c0_i32 = arith.constant 0 : i32
    %c0_i32_0 = arith.constant 0 : i32
    %c0_i32_1 = arith.constant 0 : i32
    return %c0_i32, %c0_i32_0 : i32, i32
  }
  func.func @transform_14(%arg0: i32) -> (i32, i32) {
    %c0_i32 = arith.constant 0 : i32
    %c0_i32_0 = arith.constant 0 : i32
    return %arg0, %c0_i32 : i32, i32
  }
}

module attributes {stable_mosaic.version = 11 : i64} {
  func.func @_encoder_layer_kernel(%arg0: i32, %arg1: memref<8x32xf32, #tpu.memory_space<vmem>>, %arg2: memref<1x1x8xf32, #tpu.memory_space<vmem>>, %arg3: memref<1x32xf32, #tpu.memory_space<vmem>>, %arg4: memref<1x32xf32, #tpu.memory_space<vmem>>, %arg5: memref<32x96xbf16, #tpu.memory_space<vmem>>, %arg6: memref<1x96xf32, #tpu.memory_space<vmem>>, %arg7: memref<32x32xbf16, #tpu.memory_space<vmem>>, %arg8: memref<1x32xf32, #tpu.memory_space<vmem>>, %arg9: memref<1x32xf32, #tpu.memory_space<vmem>>, %arg10: memref<1x32xf32, #tpu.memory_space<vmem>>, %arg11: memref<32x64xbf16, #tpu.memory_space<vmem>>, %arg12: memref<1x64xf32, #tpu.memory_space<vmem>>, %arg13: memref<64x32xbf16, #tpu.memory_space<vmem>>, %arg14: memref<1x32xf32, #tpu.memory_space<vmem>>, %arg15: memref<8x32xf32, #tpu.memory_space<vmem>>) attributes {dimension_semantics = [#tpu.dimension_semantics<parallel>], iteration_bounds = array<i64: 2>, scalar_prefetch = 0 : i64, scratch_operands = 0 : i64, tpu.core_type = #tpu.core_type<tc>, window_params = [{transform_indices = @transform_0, window_bounds = array<i64: 8, 32>}, {transform_indices = @transform_1, window_bounds = array<i64: 1, 1, 8>}, {pipeline_mode = #tpu.pipeline_mode<synchronous>, transform_indices = @transform_2, window_bounds = array<i64: 1, 32>}, {pipeline_mode = #tpu.pipeline_mode<synchronous>, transform_indices = @transform_3, window_bounds = array<i64: 1, 32>}, {pipeline_mode = #tpu.pipeline_mode<synchronous>, transform_indices = @transform_4, window_bounds = array<i64: 32, 96>}, {pipeline_mode = #tpu.pipeline_mode<synchronous>, transform_indices = @transform_5, window_bounds = array<i64: 1, 96>}, {pipeline_mode = #tpu.pipeline_mode<synchronous>, transform_indices = @transform_6, window_bounds = array<i64: 32, 32>}, {pipeline_mode = #tpu.pipeline_mode<synchronous>, transform_indices = @transform_7, window_bounds = array<i64: 1, 32>}, {pipeline_mode = #tpu.pipeline_mode<synchronous>, transform_indices = @transform_8, window_bounds = array<i64: 1, 32>}, {pipeline_mode = #tpu.pipeline_mode<synchronous>, transform_indices = @transform_9, window_bounds = array<i64: 1, 32>}, {pipeline_mode = #tpu.pipeline_mode<synchronous>, transform_indices = @transform_10, window_bounds = array<i64: 32, 64>}, {pipeline_mode = #tpu.pipeline_mode<synchronous>, transform_indices = @transform_11, window_bounds = array<i64: 1, 64>}, {pipeline_mode = #tpu.pipeline_mode<synchronous>, transform_indices = @transform_12, window_bounds = array<i64: 64, 32>}, {pipeline_mode = #tpu.pipeline_mode<synchronous>, transform_indices = @transform_13, window_bounds = array<i64: 1, 32>}, {transform_indices = @transform_14, window_bounds = array<i64: 8, 32>}]} {
    %c0 = arith.constant 0 : index
    %c0_0 = arith.constant 0 : index
    %0 = vector.load %arg1[%c0, %c0_0] : memref<8x32xf32, #tpu.memory_space<vmem>>, vector<8x32xf32>
    %c0_1 = arith.constant 0 : index
    %c0_2 = arith.constant 0 : index
    %c0_3 = arith.constant 0 : index
    %1 = vector.load %arg2[%c0_1, %c0_2, %c0_3] : memref<1x1x8xf32, #tpu.memory_space<vmem>>, vector<1x1x8xf32>
    %cst = arith.constant 1.000000e+00 : f32
    %2 = vector.broadcast %cst : f32 to vector<1x1x8xf32>
    %3 = arith.subf %1, %2 : vector<1x1x8xf32>
    %cst_4 = arith.constant 1.000000e+09 : f32
    %4 = vector.broadcast %cst_4 : f32 to vector<1x1x8xf32>
    %5 = arith.mulf %3, %4 : vector<1x1x8xf32>
    %c0_5 = arith.constant 0 : index
    %c0_6 = arith.constant 0 : index
    %6 = vector.load %arg3[%c0_5, %c0_6] : memref<1x32xf32, #tpu.memory_space<vmem>>, vector<1x32xf32>
    %c0_7 = arith.constant 0 : index
    %c0_8 = arith.constant 0 : index
    %7 = vector.load %arg4[%c0_7, %c0_8] : memref<1x32xf32, #tpu.memory_space<vmem>>, vector<1x32xf32>
    %cst_9 = arith.constant dense<0.000000e+00> : vector<8xf32>
    %8 = vector.multi_reduction <add>, %0, %cst_9 [1] : vector<8x32xf32> to vector<8xf32>
    %9 = vector.shape_cast %8 : vector<8xf32> to vector<8x1xf32>
    %cst_10 = arith.constant 3.200000e+01 : f32
    %10 = vector.broadcast %cst_10 : f32 to vector<8x1xf32>
    %11 = arith.divf %9, %10 : vector<8x1xf32>
    %12 = vector.broadcast %11 : vector<8x1xf32> to vector<8x32xf32>
    %13 = arith.subf %0, %12 : vector<8x32xf32>
    %14 = arith.mulf %13, %13 : vector<8x32xf32>
    %cst_11 = arith.constant dense<0.000000e+00> : vector<8xf32>
    %15 = vector.multi_reduction <add>, %14, %cst_11 [1] : vector<8x32xf32> to vector<8xf32>
    %16 = vector.shape_cast %15 : vector<8xf32> to vector<8x1xf32>
    %cst_12 = arith.constant 0.0322580636 : f32
    %17 = vector.broadcast %cst_12 : f32 to vector<8x1xf32>
    %18 = arith.mulf %16, %17 : vector<8x1xf32>
    %19 = math.sqrt %18 : vector<8x1xf32>
    %cst_13 = arith.constant 9.99999997E-7 : f32
    %20 = vector.broadcast %cst_13 : f32 to vector<8x1xf32>
    %21 = arith.addf %19, %20 : vector<8x1xf32>
    %22 = tpu.reciprocal %21 {approx = true} : vector<8x1xf32> -> vector<8x1xf32>
    %23 = vector.broadcast %11 : vector<8x1xf32> to vector<8x32xf32>
    %24 = arith.subf %0, %23 : vector<8x32xf32>
    %25 = vector.broadcast %6 : vector<1x32xf32> to vector<8x32xf32>
    %26 = arith.mulf %25, %24 : vector<8x32xf32>
    %27 = vector.broadcast %22 : vector<8x1xf32> to vector<8x32xf32>
    %28 = arith.mulf %26, %27 : vector<8x32xf32>
    %29 = vector.broadcast %7 : vector<1x32xf32> to vector<8x32xf32>
    %30 = arith.addf %28, %29 : vector<8x32xf32>
    %31 = arith.truncf %30 : vector<8x32xf32> to vector<8x32xbf16>
    %c0_14 = arith.constant 0 : index
    %c0_15 = arith.constant 0 : index
    %32 = vector.load %arg5[%c0_14, %c0_15] : memref<32x96xbf16, #tpu.memory_space<vmem>>, vector<32x96xbf16>
    %cst_16 = arith.constant dense<0.000000e+00> : vector<8x96xf32>
    %33 = tpu.matmul %31, %32, %cst_16 {dimension_numbers = #tpu.dot_dimension_numbers<[1], [0], [0], [1], [0, 0, 1, 1], [], []>} : vector<8x32xbf16>, vector<32x96xbf16>, vector<8x96xf32> -> vector<8x96xf32>
    %c0_17 = arith.constant 0 : index
    %c0_18 = arith.constant 0 : index
    %34 = vector.load %arg6[%c0_17, %c0_18] : memref<1x96xf32, #tpu.memory_space<vmem>>, vector<1x96xf32>
    %35 = vector.broadcast %34 : vector<1x96xf32> to vector<8x96xf32>
    %36 = arith.addf %33, %35 : vector<8x96xf32>
    %37 = vector.extract_strided_slice %36 {offsets = [0, 0], sizes = [8, 32], strides = [1, 1]} : vector<8x96xf32> to vector<8x32xf32>
    %cst_19 = arith.constant 0.353553385 : f32
    %38 = vector.broadcast %cst_19 : f32 to vector<8x32xf32>
    %39 = arith.mulf %37, %38 : vector<8x32xf32>
    %40 = vector.extract_strided_slice %36 {offsets = [0, 32], sizes = [8, 32], strides = [1, 1]} : vector<8x96xf32> to vector<8x32xf32>
    %41 = vector.extract_strided_slice %36 {offsets = [0, 64], sizes = [8, 32], strides = [1, 1]} : vector<8x96xf32> to vector<8x32xf32>
    %42 = vector.extract_strided_slice %39 {offsets = [0, 0], sizes = [8, 8], strides = [1, 1]} : vector<8x32xf32> to vector<8x8xf32>
    %43 = vector.extract_strided_slice %40 {offsets = [0, 0], sizes = [8, 8], strides = [1, 1]} : vector<8x32xf32> to vector<8x8xf32>
    %44 = vector.extract_strided_slice %41 {offsets = [0, 0], sizes = [8, 8], strides = [1, 1]} : vector<8x32xf32> to vector<8x8xf32>
    %45 = arith.truncf %42 : vector<8x8xf32> to vector<8x8xbf16>
    %46 = tpu.transpose %43, [1, 0] : vector<8x8xf32> -> vector<8x8xf32>
    %47 = arith.truncf %46 : vector<8x8xf32> to vector<8x8xbf16>
    %cst_20 = arith.constant dense<0.000000e+00> : vector<8x8xf32>
    %48 = tpu.matmul %45, %47, %cst_20 {dimension_numbers = #tpu.dot_dimension_numbers<[1], [0], [0], [1], [0, 0, 1, 1], [], []>} : vector<8x8xbf16>, vector<8x8xbf16>, vector<8x8xf32> -> vector<8x8xf32>
    %49 = vector.shape_cast %5 : vector<1x1x8xf32> to vector<1x8xf32>
    %50 = vector.broadcast %49 : vector<1x8xf32> to vector<8x8xf32>
    %51 = arith.addf %48, %50 : vector<8x8xf32>
    %cst_21 = arith.constant dense<0xFF800000> : vector<8xf32>
    %52 = vector.multi_reduction <maximumf>, %51, %cst_21 [1] : vector<8x8xf32> to vector<8xf32>
    %53 = vector.shape_cast %52 : vector<8xf32> to vector<8x1xf32>
    %54 = vector.broadcast %53 : vector<8x1xf32> to vector<8x8xf32>
    %55 = arith.subf %51, %54 : vector<8x8xf32>
    %56 = math.exp %55 : vector<8x8xf32>
    %cst_22 = arith.constant dense<0.000000e+00> : vector<8xf32>
    %57 = vector.multi_reduction <add>, %56, %cst_22 [1] : vector<8x8xf32> to vector<8xf32>
    %58 = vector.shape_cast %57 : vector<8xf32> to vector<8x1xf32>
    %59 = tpu.reciprocal %58 {approx = true} : vector<8x1xf32> -> vector<8x1xf32>
    %60 = vector.broadcast %59 : vector<8x1xf32> to vector<8x8xf32>
    %61 = arith.mulf %56, %60 : vector<8x8xf32>
    %62 = arith.truncf %61 : vector<8x8xf32> to vector<8x8xbf16>
    %63 = arith.truncf %44 : vector<8x8xf32> to vector<8x8xbf16>
    %cst_23 = arith.constant dense<0.000000e+00> : vector<8x8xf32>
    %64 = tpu.matmul %62, %63, %cst_23 {dimension_numbers = #tpu.dot_dimension_numbers<[1], [0], [0], [1], [0, 0, 1, 1], [], []>} : vector<8x8xbf16>, vector<8x8xbf16>, vector<8x8xf32> -> vector<8x8xf32>
    %65 = vector.extract_strided_slice %39 {offsets = [0, 8], sizes = [8, 8], strides = [1, 1]} : vector<8x32xf32> to vector<8x8xf32>
    %66 = vector.extract_strided_slice %40 {offsets = [0, 8], sizes = [8, 8], strides = [1, 1]} : vector<8x32xf32> to vector<8x8xf32>
    %67 = vector.extract_strided_slice %41 {offsets = [0, 8], sizes = [8, 8], strides = [1, 1]} : vector<8x32xf32> to vector<8x8xf32>
    %68 = arith.truncf %65 : vector<8x8xf32> to vector<8x8xbf16>
    %69 = tpu.transpose %66, [1, 0] : vector<8x8xf32> -> vector<8x8xf32>
    %70 = arith.truncf %69 : vector<8x8xf32> to vector<8x8xbf16>
    %cst_24 = arith.constant dense<0.000000e+00> : vector<8x8xf32>
    %71 = tpu.matmul %68, %70, %cst_24 {dimension_numbers = #tpu.dot_dimension_numbers<[1], [0], [0], [1], [0, 0, 1, 1], [], []>} : vector<8x8xbf16>, vector<8x8xbf16>, vector<8x8xf32> -> vector<8x8xf32>
    %72 = vector.shape_cast %5 : vector<1x1x8xf32> to vector<1x8xf32>
    %73 = vector.broadcast %72 : vector<1x8xf32> to vector<8x8xf32>
    %74 = arith.addf %71, %73 : vector<8x8xf32>
    %cst_25 = arith.constant dense<0xFF800000> : vector<8xf32>
    %75 = vector.multi_reduction <maximumf>, %74, %cst_25 [1] : vector<8x8xf32> to vector<8xf32>
    %76 = vector.shape_cast %75 : vector<8xf32> to vector<8x1xf32>
    %77 = vector.broadcast %76 : vector<8x1xf32> to vector<8x8xf32>
    %78 = arith.subf %74, %77 : vector<8x8xf32>
    %79 = math.exp %78 : vector<8x8xf32>
    %cst_26 = arith.constant dense<0.000000e+00> : vector<8xf32>
    %80 = vector.multi_reduction <add>, %79, %cst_26 [1] : vector<8x8xf32> to vector<8xf32>
    %81 = vector.shape_cast %80 : vector<8xf32> to vector<8x1xf32>
    %82 = tpu.reciprocal %81 {approx = true} : vector<8x1xf32> -> vector<8x1xf32>
    %83 = vector.broadcast %82 : vector<8x1xf32> to vector<8x8xf32>
    %84 = arith.mulf %79, %83 : vector<8x8xf32>
    %85 = arith.truncf %84 : vector<8x8xf32> to vector<8x8xbf16>
    %86 = arith.truncf %67 : vector<8x8xf32> to vector<8x8xbf16>
    %cst_27 = arith.constant dense<0.000000e+00> : vector<8x8xf32>
    %87 = tpu.matmul %85, %86, %cst_27 {dimension_numbers = #tpu.dot_dimension_numbers<[1], [0], [0], [1], [0, 0, 1, 1], [], []>} : vector<8x8xbf16>, vector<8x8xbf16>, vector<8x8xf32> -> vector<8x8xf32>
    %88 = vector.extract_strided_slice %39 {offsets = [0, 16], sizes = [8, 8], strides = [1, 1]} : vector<8x32xf32> to vector<8x8xf32>
    %89 = vector.extract_strided_slice %40 {offsets = [0, 16], sizes = [8, 8], strides = [1, 1]} : vector<8x32xf32> to vector<8x8xf32>
    %90 = vector.extract_strided_slice %41 {offsets = [0, 16], sizes = [8, 8], strides = [1, 1]} : vector<8x32xf32> to vector<8x8xf32>
    %91 = arith.truncf %88 : vector<8x8xf32> to vector<8x8xbf16>
    %92 = tpu.transpose %89, [1, 0] : vector<8x8xf32> -> vector<8x8xf32>
    %93 = arith.truncf %92 : vector<8x8xf32> to vector<8x8xbf16>
    %cst_28 = arith.constant dense<0.000000e+00> : vector<8x8xf32>
    %94 = tpu.matmul %91, %93, %cst_28 {dimension_numbers = #tpu.dot_dimension_numbers<[1], [0], [0], [1], [0, 0, 1, 1], [], []>} : vector<8x8xbf16>, vector<8x8xbf16>, vector<8x8xf32> -> vector<8x8xf32>
    %95 = vector.shape_cast %5 : vector<1x1x8xf32> to vector<1x8xf32>
    %96 = vector.broadcast %95 : vector<1x8xf32> to vector<8x8xf32>
    %97 = arith.addf %94, %96 : vector<8x8xf32>
    %cst_29 = arith.constant dense<0xFF800000> : vector<8xf32>
    %98 = vector.multi_reduction <maximumf>, %97, %cst_29 [1] : vector<8x8xf32> to vector<8xf32>
    %99 = vector.shape_cast %98 : vector<8xf32> to vector<8x1xf32>
    %100 = vector.broadcast %99 : vector<8x1xf32> to vector<8x8xf32>
    %101 = arith.subf %97, %100 : vector<8x8xf32>
    %102 = math.exp %101 : vector<8x8xf32>
    %cst_30 = arith.constant dense<0.000000e+00> : vector<8xf32>
    %103 = vector.multi_reduction <add>, %102, %cst_30 [1] : vector<8x8xf32> to vector<8xf32>
    %104 = vector.shape_cast %103 : vector<8xf32> to vector<8x1xf32>
    %105 = tpu.reciprocal %104 {approx = true} : vector<8x1xf32> -> vector<8x1xf32>
    %106 = vector.broadcast %105 : vector<8x1xf32> to vector<8x8xf32>
    %107 = arith.mulf %102, %106 : vector<8x8xf32>
    %108 = arith.truncf %107 : vector<8x8xf32> to vector<8x8xbf16>
    %109 = arith.truncf %90 : vector<8x8xf32> to vector<8x8xbf16>
    %cst_31 = arith.constant dense<0.000000e+00> : vector<8x8xf32>
    %110 = tpu.matmul %108, %109, %cst_31 {dimension_numbers = #tpu.dot_dimension_numbers<[1], [0], [0], [1], [0, 0, 1, 1], [], []>} : vector<8x8xbf16>, vector<8x8xbf16>, vector<8x8xf32> -> vector<8x8xf32>
    %111 = vector.extract_strided_slice %39 {offsets = [0, 24], sizes = [8, 8], strides = [1, 1]} : vector<8x32xf32> to vector<8x8xf32>
    %112 = vector.extract_strided_slice %40 {offsets = [0, 24], sizes = [8, 8], strides = [1, 1]} : vector<8x32xf32> to vector<8x8xf32>
    %113 = vector.extract_strided_slice %41 {offsets = [0, 24], sizes = [8, 8], strides = [1, 1]} : vector<8x32xf32> to vector<8x8xf32>
    %114 = arith.truncf %111 : vector<8x8xf32> to vector<8x8xbf16>
    %115 = tpu.transpose %112, [1, 0] : vector<8x8xf32> -> vector<8x8xf32>
    %116 = arith.truncf %115 : vector<8x8xf32> to vector<8x8xbf16>
    %cst_32 = arith.constant dense<0.000000e+00> : vector<8x8xf32>
    %117 = tpu.matmul %114, %116, %cst_32 {dimension_numbers = #tpu.dot_dimension_numbers<[1], [0], [0], [1], [0, 0, 1, 1], [], []>} : vector<8x8xbf16>, vector<8x8xbf16>, vector<8x8xf32> -> vector<8x8xf32>
    %118 = vector.shape_cast %5 : vector<1x1x8xf32> to vector<1x8xf32>
    %119 = vector.broadcast %118 : vector<1x8xf32> to vector<8x8xf32>
    %120 = arith.addf %117, %119 : vector<8x8xf32>
    %cst_33 = arith.constant dense<0xFF800000> : vector<8xf32>
    %121 = vector.multi_reduction <maximumf>, %120, %cst_33 [1] : vector<8x8xf32> to vector<8xf32>
    %122 = vector.shape_cast %121 : vector<8xf32> to vector<8x1xf32>
    %123 = vector.broadcast %122 : vector<8x1xf32> to vector<8x8xf32>
    %124 = arith.subf %120, %123 : vector<8x8xf32>
    %125 = math.exp %124 : vector<8x8xf32>
    %cst_34 = arith.constant dense<0.000000e+00> : vector<8xf32>
    %126 = vector.multi_reduction <add>, %125, %cst_34 [1] : vector<8x8xf32> to vector<8xf32>
    %127 = vector.shape_cast %126 : vector<8xf32> to vector<8x1xf32>
    %128 = tpu.reciprocal %127 {approx = true} : vector<8x1xf32> -> vector<8x1xf32>
    %129 = vector.broadcast %128 : vector<8x1xf32> to vector<8x8xf32>
    %130 = arith.mulf %125, %129 : vector<8x8xf32>
    %131 = arith.truncf %130 : vector<8x8xf32> to vector<8x8xbf16>
    %132 = arith.truncf %113 : vector<8x8xf32> to vector<8x8xbf16>
    %cst_35 = arith.constant dense<0.000000e+00> : vector<8x8xf32>
    %133 = tpu.matmul %131, %132, %cst_35 {dimension_numbers = #tpu.dot_dimension_numbers<[1], [0], [0], [1], [0, 0, 1, 1], [], []>} : vector<8x8xbf16>, vector<8x8xbf16>, vector<8x8xf32> -> vector<8x8xf32>
    %134 = tpu.concatenate %64, %87, %110, %133 in 1 : vector<8x8xf32>, vector<8x8xf32>, vector<8x8xf32>, vector<8x8xf32> -> vector<8x32xf32>
    %135 = arith.truncf %134 : vector<8x32xf32> to vector<8x32xbf16>
    %c0_36 = arith.constant 0 : index
    %c0_37 = arith.constant 0 : index
    %136 = vector.load %arg7[%c0_36, %c0_37] : memref<32x32xbf16, #tpu.memory_space<vmem>>, vector<32x32xbf16>
    %cst_38 = arith.constant dense<0.000000e+00> : vector<8x32xf32>
    %137 = tpu.matmul %135, %136, %cst_38 {dimension_numbers = #tpu.dot_dimension_numbers<[1], [0], [0], [1], [0, 0, 1, 1], [], []>} : vector<8x32xbf16>, vector<32x32xbf16>, vector<8x32xf32> -> vector<8x32xf32>
    %c0_39 = arith.constant 0 : index
    %c0_40 = arith.constant 0 : index
    %138 = vector.load %arg8[%c0_39, %c0_40] : memref<1x32xf32, #tpu.memory_space<vmem>>, vector<1x32xf32>
    %139 = vector.broadcast %138 : vector<1x32xf32> to vector<8x32xf32>
    %140 = arith.addf %137, %139 : vector<8x32xf32>
    %141 = arith.addf %0, %140 : vector<8x32xf32>
    %c0_41 = arith.constant 0 : index
    %c0_42 = arith.constant 0 : index
    %142 = vector.load %arg9[%c0_41, %c0_42] : memref<1x32xf32, #tpu.memory_space<vmem>>, vector<1x32xf32>
    %c0_43 = arith.constant 0 : index
    %c0_44 = arith.constant 0 : index
    %143 = vector.load %arg10[%c0_43, %c0_44] : memref<1x32xf32, #tpu.memory_space<vmem>>, vector<1x32xf32>
    %cst_45 = arith.constant dense<0.000000e+00> : vector<8xf32>
    %144 = vector.multi_reduction <add>, %141, %cst_45 [1] : vector<8x32xf32> to vector<8xf32>
    %145 = vector.shape_cast %144 : vector<8xf32> to vector<8x1xf32>
    %cst_46 = arith.constant 3.200000e+01 : f32
    %146 = vector.broadcast %cst_46 : f32 to vector<8x1xf32>
    %147 = arith.divf %145, %146 : vector<8x1xf32>
    %148 = vector.broadcast %147 : vector<8x1xf32> to vector<8x32xf32>
    %149 = arith.subf %141, %148 : vector<8x32xf32>
    %150 = arith.mulf %149, %149 : vector<8x32xf32>
    %cst_47 = arith.constant dense<0.000000e+00> : vector<8xf32>
    %151 = vector.multi_reduction <add>, %150, %cst_47 [1] : vector<8x32xf32> to vector<8xf32>
    %152 = vector.shape_cast %151 : vector<8xf32> to vector<8x1xf32>
    %cst_48 = arith.constant 0.0322580636 : f32
    %153 = vector.broadcast %cst_48 : f32 to vector<8x1xf32>
    %154 = arith.mulf %152, %153 : vector<8x1xf32>
    %155 = math.sqrt %154 : vector<8x1xf32>
    %cst_49 = arith.constant 9.99999997E-7 : f32
    %156 = vector.broadcast %cst_49 : f32 to vector<8x1xf32>
    %157 = arith.addf %155, %156 : vector<8x1xf32>
    %158 = tpu.reciprocal %157 {approx = true} : vector<8x1xf32> -> vector<8x1xf32>
    %159 = vector.broadcast %147 : vector<8x1xf32> to vector<8x32xf32>
    %160 = arith.subf %141, %159 : vector<8x32xf32>
    %161 = vector.broadcast %142 : vector<1x32xf32> to vector<8x32xf32>
    %162 = arith.mulf %161, %160 : vector<8x32xf32>
    %163 = vector.broadcast %158 : vector<8x1xf32> to vector<8x32xf32>
    %164 = arith.mulf %162, %163 : vector<8x32xf32>
    %165 = vector.broadcast %143 : vector<1x32xf32> to vector<8x32xf32>
    %166 = arith.addf %164, %165 : vector<8x32xf32>
    %167 = arith.truncf %166 : vector<8x32xf32> to vector<8x32xbf16>
    %c0_50 = arith.constant 0 : index
    %c0_51 = arith.constant 0 : index
    %168 = vector.load %arg11[%c0_50, %c0_51] : memref<32x64xbf16, #tpu.memory_space<vmem>>, vector<32x64xbf16>
    %cst_52 = arith.constant dense<0.000000e+00> : vector<8x64xf32>
    %169 = tpu.matmul %167, %168, %cst_52 {dimension_numbers = #tpu.dot_dimension_numbers<[1], [0], [0], [1], [0, 0, 1, 1], [], []>} : vector<8x32xbf16>, vector<32x64xbf16>, vector<8x64xf32> -> vector<8x64xf32>
    %c0_53 = arith.constant 0 : index
    %c0_54 = arith.constant 0 : index
    %170 = vector.load %arg12[%c0_53, %c0_54] : memref<1x64xf32, #tpu.memory_space<vmem>>, vector<1x64xf32>
    %171 = vector.broadcast %170 : vector<1x64xf32> to vector<8x64xf32>
    %172 = arith.addf %169, %171 : vector<8x64xf32>
    %cst_55 = arith.constant 0.000000e+00 : f32
    %173 = vector.broadcast %cst_55 : f32 to vector<8x64xf32>
    %174 = arith.maximumf %172, %173 : vector<8x64xf32>
    %175 = arith.truncf %174 : vector<8x64xf32> to vector<8x64xbf16>
    %c0_56 = arith.constant 0 : index
    %c0_57 = arith.constant 0 : index
    %176 = vector.load %arg13[%c0_56, %c0_57] : memref<64x32xbf16, #tpu.memory_space<vmem>>, vector<64x32xbf16>
    %cst_58 = arith.constant dense<0.000000e+00> : vector<8x32xf32>
    %177 = tpu.matmul %175, %176, %cst_58 {dimension_numbers = #tpu.dot_dimension_numbers<[1], [0], [0], [1], [0, 0, 1, 1], [], []>} : vector<8x64xbf16>, vector<64x32xbf16>, vector<8x32xf32> -> vector<8x32xf32>
    %c0_59 = arith.constant 0 : index
    %c0_60 = arith.constant 0 : index
    %178 = vector.load %arg14[%c0_59, %c0_60] : memref<1x32xf32, #tpu.memory_space<vmem>>, vector<1x32xf32>
    %179 = vector.broadcast %178 : vector<1x32xf32> to vector<8x32xf32>
    %180 = arith.addf %177, %179 : vector<8x32xf32>
    %181 = arith.addf %141, %180 : vector<8x32xf32>
    %c0_61 = arith.constant 0 : index
    %c0_62 = arith.constant 0 : index
    %182 = vector.load %arg15[%c0_61, %c0_62] : memref<8x32xf32, #tpu.memory_space<vmem>>, vector<8x32xf32>
    tpu.vector_store %arg15[%c0_61, %c0_62], %181 {strides = array<i32>} : memref<8x32xf32, #tpu.memory_space<vmem>>, vector<8x32xf32>,
    return
  }
  func.func @transform_0(%arg0: i32) -> (i32, i32) {
    %c0_i32 = arith.constant 0 : i32
    %c0_i32_0 = arith.constant 0 : i32
    return %arg0, %c0_i32 : i32, i32
  }
  func.func @transform_1(%arg0: i32) -> (i32, i32, i32) {
    %c0_i32 = arith.constant 0 : i32
    %c0_i32_0 = arith.constant 0 : i32
    %c0_i32_1 = arith.constant 0 : i32
    return %arg0, %c0_i32, %c0_i32_0 : i32, i32, i32
  }
  func.func @transform_2(%arg0: i32) -> (i32, i32) {
    %c0_i32 = arith.constant 0 : i32
    %c0_i32_0 = arith.constant 0 : i32
    %c0_i32_1 = arith.constant 0 : i32
    return %c0_i32, %c0_i32_0 : i32, i32
  }
  func.func @transform_3(%arg0: i32) -> (i32, i32) {
    %c0_i32 = arith.constant 0 : i32
    %c0_i32_0 = arith.constant 0 : i32
    %c0_i32_1 = arith.constant 0 : i32
    return %c0_i32, %c0_i32_0 : i32, i32
  }
  func.func @transform_4(%arg0: i32) -> (i32, i32) {
    %c0_i32 = arith.constant 0 : i32
    %c0_i32_0 = arith.constant 0 : i32
    %c0_i32_1 = arith.constant 0 : i32
    return %c0_i32, %c0_i32_0 : i32, i32
  }
  func.func @transform_5(%arg0: i32) -> (i32, i32) {
    %c0_i32 = arith.constant 0 : i32
    %c0_i32_0 = arith.constant 0 : i32
    %c0_i32_1 = arith.constant 0 : i32
    return %c0_i32, %c0_i32_0 : i32, i32
  }
  func.func @transform_6(%arg0: i32) -> (i32, i32) {
    %c0_i32 = arith.constant 0 : i32
    %c0_i32_0 = arith.constant 0 : i32
    %c0_i32_1 = arith.constant 0 : i32
    return %c0_i32, %c0_i32_0 : i32, i32
  }
  func.func @transform_7(%arg0: i32) -> (i32, i32) {
    %c0_i32 = arith.constant 0 : i32
    %c0_i32_0 = arith.constant 0 : i32
    %c0_i32_1 = arith.constant 0 : i32
    return %c0_i32, %c0_i32_0 : i32, i32
  }
  func.func @transform_8(%arg0: i32) -> (i32, i32) {
    %c0_i32 = arith.constant 0 : i32
    %c0_i32_0 = arith.constant 0 : i32
    %c0_i32_1 = arith.constant 0 : i32
    return %c0_i32, %c0_i32_0 : i32, i32
  }
  func.func @transform_9(%arg0: i32) -> (i32, i32) {
    %c0_i32 = arith.constant 0 : i32
    %c0_i32_0 = arith.constant 0 : i32
    %c0_i32_1 = arith.constant 0 : i32
    return %c0_i32, %c0_i32_0 : i32, i32
  }
  func.func @transform_10(%arg0: i32) -> (i32, i32) {
    %c0_i32 = arith.constant 0 : i32
    %c0_i32_0 = arith.constant 0 : i32
    %c0_i32_1 = arith.constant 0 : i32
    return %c0_i32, %c0_i32_0 : i32, i32
  }
  func.func @transform_11(%arg0: i32) -> (i32, i32) {
    %c0_i32 = arith.constant 0 : i32
    %c0_i32_0 = arith.constant 0 : i32
    %c0_i32_1 = arith.constant 0 : i32
    return %c0_i32, %c0_i32_0 : i32, i32
  }
  func.func @transform_12(%arg0: i32) -> (i32, i32) {
    %c0_i32 = arith.constant 0 : i32
    %c0_i32_0 = arith.constant 0 : i32
    %c0_i32_1 = arith.constant 0 : i32
    return %c0_i32, %c0_i32_0 : i32, i32
  }
  func.func @transform_13(%arg0: i32) -> (i32, i32) {
    %c0_i32 = arith.constant 0 : i32
    %c0_i32_0 = arith.constant 0 : i32
    %c0_i32_1 = arith.constant 0 : i32
    return %c0_i32, %c0_i32_0 : i32, i32
  }
  func.func @transform_14(%arg0: i32) -> (i32, i32) {
    %c0_i32 = arith.constant 0 : i32
    %c0_i32_0 = arith.constant 0 : i32
    return %arg0, %c0_i32 : i32, i32
  }
}

</mosaic_0001>

<llo_original>
// kernel: tpu_custom_call.1
$region0: #{tpu_custom_call.1}
  #allocation0 [shape = 'u32[]', space=smem, size = 0x4, offset = 0x4, fixed_abs, tag = 'smem constant byte address 0x4 - core index']
  #allocation1 [shape = 'u32[144,128]{1,0:T(1,128)}', space=vmem, size = 0x12000, scoped, tag = 'internal scratch']
  %s0 = inlined_call_operand.vmem [shape: f32[16,32], index: 0, kind: input, shape index: {}]
  %s1 = inlined_call_operand.hbm [shape: f32[2,1,8], index: 1, kind: input, shape index: {}]
  %s2 = inlined_call_operand.hbm [shape: f32[1,32], index: 2, kind: input, shape index: {}]
  %s3 = inlined_call_operand.hbm [shape: f32[1,32], index: 3, kind: input, shape index: {}]
  %s4 = inlined_call_operand.vmem [shape: bf16[32,96], index: 4, kind: input, shape index: {}]
  %s5 = inlined_call_operand.hbm [shape: f32[1,96], index: 5, kind: input, shape index: {}]
  %s6 = inlined_call_operand.vmem [shape: bf16[32,32], index: 6, kind: input, shape index: {}]
  %s7 = inlined_call_operand.hbm [shape: f32[1,32], index: 7, kind: input, shape index: {}]
  %s8 = inlined_call_operand.hbm [shape: f32[1,32], index: 8, kind: input, shape index: {}]
  %s9 = inlined_call_operand.hbm [shape: f32[1,32], index: 9, kind: input, shape index: {}]
  %s10 = inlined_call_operand.vmem [shape: bf16[32,64], index: 10, kind: input, shape index: {}]
  %s11 = inlined_call_operand.vmem [shape: f32[1,64], index: 11, kind: input, shape index: {}]
  %s12 = inlined_call_operand.vmem [shape: bf16[64,32], index: 12, kind: input, shape index: {}]
  %s13 = inlined_call_operand.vmem [shape: f32[1,32], index: 13, kind: input, shape index: {}]
  %s14 = inlined_call_operand.hbm [shape: f32[16,32], index: 14, kind: output, shape index: {}]
  %s15 = sld [smem:[#allocation0]]
  $region117: #{tpu_custom_call.1} parent=0
    _
  %s17 = ssub.s32 1, %s15
  %s18 = scalar_select 0, %s17, %s15
  $region1: #{tpu_custom_call.1} parent=0
    #allocation2 [shape = 'u8[1024]{0}', space=vmem, size = 0x400, scoped, tag = 'input window, operand 1']
    #allocation3 [shape = 's32[2]{0}', space=sflag, size = 0x8, scoped, tag = 'scoped memory for tpu_custom_call.1']
    #allocation4 [shape = 's32[2]{0}', space=sflag, size = 0x8, scoped, tag = 'scoped memory for tpu_custom_call.1']
    #allocation5 [shape = 'u8[512]{0}', space=vmem, size = 0x400, scoped, tag = 'input window, operand 2, single buffered']
    #allocation6 [shape = 's32[1]{0}', space=sflag, size = 0x4, scoped, tag = 'scoped memory for tpu_custom_call.1']
    #allocation7 [shape = 'u8[512]{0}', space=vmem, size = 0x400, scoped, tag = 'input window, operand 3, single buffered']
    #allocation8 [shape = 'u8[512]{0}', space=vmem, size = 0x400, scoped, tag = 'input window, operand 5, single buffered']
    #allocation9 [shape = 's32[1]{0}', space=sflag, size = 0x4, scoped, tag = 'scoped memory for tpu_custom_call.1']
    #allocation10 [shape = 'u8[512]{0}', space=vmem, size = 0x400, scoped, tag = 'input window, operand 7, single buffered']
    #allocation11 [shape = 'u8[512]{0}', space=vmem, size = 0x400, scoped, tag = 'input window, operand 8, single buffered']
    #allocation12 [shape = 's32[1]{0}', space=sflag, size = 0x4, scoped, tag = 'scoped memory for tpu_custom_call.1']
    #allocation13 [shape = 'u8[512]{0}', space=vmem, size = 0x400, scoped, tag = 'input window, operand 9, single buffered']
    #allocation14 [shape = 'u8[8192]{0}', space=vmem, size = 0x2000, scoped, tag = 'output window, operand 0']
    %19 = vsyncpa [#allocation3], 0
    %s20 = scalar_lea.sflag [#allocation3], 1
    %21 = vsyncpa %s20, 0
    %22 = vsyncpa [#allocation6], 0
    %23 = vsyncpa [#allocation9], 0
    %24 = vsyncpa [#allocation12], 0
    %25 = vsyncpa [#allocation4], 0
    %s26 = scalar_lea.sflag [#allocation4], 1
    %27 = vsyncpa %s26, 0
    loop: start=0, step=1, limit=4
    $region2: #{tpu_custom_call.1} parent=1 // loop_pre_header
      _
    $region3: #{tpu_custom_call.1} parent=1 // loop_header
      %s29 = sphi 0, %s33
      %p30 = scmp.ge.s32.totalorder %s29, 4
      %s39 = sphi 0, %s41
      %s42 = sphi 0, %s39
      %s43 = sphi 0, %s42
      %s59 = sphi 0, %s43
      %s65 = sphi 0, %s67
      %s68 = sphi 0, %s65
      %s69 = sphi 0, %s68
      %s85 = sphi 0, %s69
      %s89 = sphi 0, %s89
      %s91 = sphi 0, %s89
      %s92 = sphi 0, %s91
      %s106 = sphi 0, %s92
      %s110 = sphi 0, %s110
      %s112 = sphi 0, %s110
      %s113 = sphi 0, %s112
      %s127 = sphi 0, %s113
      %s131 = sphi 0, %s131
      %s133 = sphi 0, %s131
      %s134 = sphi 0, %s133
      %s148 = sphi 0, %s134
      %s152 = sphi 0, %s152
      %s154 = sphi 0, %s152
      %s155 = sphi 0, %s154
      %s169 = sphi 0, %s155
      %s173 = sphi 0, %s173
      %s175 = sphi 0, %s173
      %s176 = sphi 0, %s175
      %s190 = sphi 0, %s176
      %s194 = sphi 0, %s194
      %s196 = sphi 0, %s194
      %s197 = sphi 0, %s196
      %s211 = sphi 0, %s197
      %s215 = sphi 0, %s215
      %s217 = sphi 0, %s215
      %s218 = sphi 0, %s217
      %s232 = sphi 0, %s218
      %s236 = sphi 0, %s236
      %s238 = sphi 0, %s236
      %s239 = sphi 0, %s238
      %s253 = sphi 0, %s239
      %s257 = sphi 0, %s257
      %s259 = sphi 0, %s257
      %s260 = sphi 0, %s259
      %s274 = sphi 0, %s260
      %s278 = sphi 0, %s278
      %s280 = sphi 0, %s278
      %s281 = sphi 0, %s280
      %s295 = sphi 0, %s281
      %s299 = sphi 0, %s299
      %s301 = sphi 0, %s299
      %s302 = sphi 0, %s301
      %s316 = sphi 0, %s302
      %s320 = sphi 0, %s320
      %s322 = sphi 0, %s320
      %s323 = sphi 0, %s322
      %s337 = sphi 0, %s323
      %s343 = sphi 0, %s345
      %s346 = sphi 0, %s343
      %s347 = sphi 0, %s346
      %s363 = sphi 0, %s347
    $region4: #{tpu_custom_call.1} parent=1 // loop_header_branch
      %32 = sbr.rel (%p30) target = $region8
    $region5: #{tpu_custom_call.1} parent=1 // loop_body
      %s34 = ssub.s32 %s29, 1
      %s35 = ssub.s32 %s29, 2
      %s36 = sadd.s32 %s29, 1
      %s37 = ssub.s32 %s29, %s36
      %p38 = scmp.eq.s32.totalorder %s37, 0
      %s40 = sadd.s32 %s39, 1
      %s41 = scalar_select %p38, %s39, %s40
      %p44 = pneg %p38
      %p45 = scmp.eq.s32.totalorder %s29, 1
      %p46 = por %p44, %p45
      %p47 = scmp.ne.s32.totalorder %s39, %s42
      %p48 = scmp.eq.s32.totalorder %s29, 0
      %p49 = por %p47, %p48
      %p50 = scmp.ne.s32.totalorder %s39, %s42
      %p51 = scmp.eq.s32.totalorder %s34, 1
      %p52 = por %p50, %p51
      %p53 = scmp.ne.s32.totalorder %s42, %s43
      %p54 = scmp.eq.s32.totalorder %s34, 0
      %p55 = por %p53, %p54
      %p56 = scmp.ne.s32.totalorder %s42, %s43
      %p57 = scmp.eq.s32.totalorder %s35, 1
      %p58 = por %p56, %p57
      %p60 = scmp.ne.s32.totalorder %s43, %s59
      %p61 = scmp.eq.s32.totalorder %s35, 0
      %p62 = por %p60, %p61
      %s63 = ssub.s32 %s29, %s36
      %p64 = scmp.eq.s32.totalorder %s63, 0
      %s66 = sadd.s32 %s65, 1
      %s67 = scalar_select %p64, %s65, %s66
      %p70 = pneg %p64
      %p71 = scmp.eq.s32.totalorder %s29, 1
      %p72 = por %p70, %p71
      %p73 = scmp.ne.s32.totalorder %s65, %s68
      %p74 = scmp.eq.s32.totalorder %s29, 0
      %p75 = por %p73, %p74
      %p76 = scmp.ne.s32.totalorder %s65, %s68
      %p77 = scmp.eq.s32.totalorder %s34, 1
      %p78 = por %p76, %p77
      %p79 = scmp.ne.s32.totalorder %s68, %s69
      %p80 = scmp.eq.s32.totalorder %s34, 0
      %p81 = por %p79, %p80
      %p82 = scmp.ne.s32.totalorder %s68, %s69
      %p83 = scmp.eq.s32.totalorder %s35, 1
      %p84 = por %p82, %p83
      %p86 = scmp.ne.s32.totalorder %s69, %s85
      %p87 = scmp.eq.s32.totalorder %s35, 0
      %p88 = por %p86, %p87
      %s90 = sadd.s32 %s89, 1
      %p93 = scmp.eq.s32.totalorder %s29, 1
      %p94 = scmp.ne.s32.totalorder %s89, %s91
      %p95 = scmp.eq.s32.totalorder %s29, 0
      %p96 = por %p94, %p95
      %p97 = scmp.ne.s32.totalorder %s89, %s91
      %p98 = scmp.eq.s32.totalorder %s34, 1
      %p99 = por %p97, %p98
      %p100 = scmp.ne.s32.totalorder %s91, %s92
      %p101 = scmp.eq.s32.totalorder %s34, 0
      %p102 = por %p100, %p101
      %p103 = scmp.ne.s32.totalorder %s91, %s92
      %p104 = scmp.eq.s32.totalorder %s35, 1
      %p105 = por %p103, %p104
      %p107 = scmp.ne.s32.totalorder %s92, %s106
      %p108 = scmp.eq.s32.totalorder %s35, 0
      %p109 = por %p107, %p108
      %s111 = sadd.s32 %s110, 1
      %p114 = scmp.eq.s32.totalorder %s29, 1
      %p115 = scmp.ne.s32.totalorder %s110, %s112
      %p116 = scmp.eq.s32.totalorder %s29, 0
      %p117 = por %p115, %p116
      %p118 = scmp.ne.s32.totalorder %s110, %s112
      %p119 = scmp.eq.s32.totalorder %s34, 1
      %p120 = por %p118, %p119
      %p121 = scmp.ne.s32.totalorder %s112, %s113
      %p122 = scmp.eq.s32.totalorder %s34, 0
      %p123 = por %p121, %p122
      %p124 = scmp.ne.s32.totalorder %s112, %s113
      %p125 = scmp.eq.s32.totalorder %s35, 1
      %p126 = por %p124, %p125
      %p128 = scmp.ne.s32.totalorder %s113, %s127
      %p129 = scmp.eq.s32.totalorder %s35, 0
      %p130 = por %p128, %p129
      %s132 = sadd.s32 %s131, 1
      %p135 = scmp.eq.s32.totalorder %s29, 1
      %p136 = scmp.ne.s32.totalorder %s131, %s133
      %p137 = scmp.eq.s32.totalorder %s29, 0
      %p138 = por %p136, %p137
      %p139 = scmp.ne.s32.totalorder %s131, %s133
      %p140 = scmp.eq.s32.totalorder %s34, 1
      %p141 = por %p139, %p140
      %p142 = scmp.ne.s32.totalorder %s133, %s134
      %p143 = scmp.eq.s32.totalorder %s34, 0
      %p144 = por %p142, %p143
      %p145 = scmp.ne.s32.totalorder %s133, %s134
      %p146 = scmp.eq.s32.totalorder %s35, 1
      %p147 = por %p145, %p146
      %p149 = scmp.ne.s32.totalorder %s134, %s148
      %p150 = scmp.eq.s32.totalorder %s35, 0
      %p151 = por %p149, %p150
      %s153 = sadd.s32 %s152, 1
      %p156 = scmp.eq.s32.totalorder %s29, 1
      %p157 = scmp.ne.s32.totalorder %s152, %s154
      %p158 = scmp.eq.s32.totalorder %s29, 0
      %p159 = por %p157, %p158
      %p160 = scmp.ne.s32.totalorder %s152, %s154
      %p161 = scmp.eq.s32.totalorder %s34, 1
      %p162 = por %p160, %p161
      %p163 = scmp.ne.s32.totalorder %s154, %s155
      %p164 = scmp.eq.s32.totalorder %s34, 0
      %p165 = por %p163, %p164
      %p166 = scmp.ne.s32.totalorder %s154, %s155
      %p167 = scmp.eq.s32.totalorder %s35, 1
      %p168 = por %p166, %p167
      %p170 = scmp.ne.s32.totalorder %s155, %s169
      %p171 = scmp.eq.s32.totalorder %s35, 0
      %p172 = por %p170, %p171
      %s174 = sadd.s32 %s173, 1
      %p177 = scmp.eq.s32.totalorder %s29, 1
      %p178 = scmp.ne.s32.totalorder %s173, %s175
      %p179 = scmp.eq.s32.totalorder %s29, 0
      %p180 = por %p178, %p179
      %p181 = scmp.ne.s32.totalorder %s173, %s175
      %p182 = scmp.eq.s32.totalorder %s34, 1
      %p183 = por %p181, %p182
      %p184 = scmp.ne.s32.totalorder %s175, %s176
      %p185 = scmp.eq.s32.totalorder %s34, 0
      %p186 = por %p184, %p185
      %p187 = scmp.ne.s32.totalorder %s175, %s176
      %p188 = scmp.eq.s32.totalorder %s35, 1
      %p189 = por %p187, %p188
      %p191 = scmp.ne.s32.totalorder %s176, %s190
      %p192 = scmp.eq.s32.totalorder %s35, 0
      %p193 = por %p191, %p192
      %s195 = sadd.s32 %s194, 1
      %p198 = scmp.eq.s32.totalorder %s29, 1
      %p199 = scmp.ne.s32.totalorder %s194, %s196
      %p200 = scmp.eq.s32.totalorder %s29, 0
      %p201 = por %p199, %p200
      %p202 = scmp.ne.s32.totalorder %s194, %s196
      %p203 = scmp.eq.s32.totalorder %s34, 1
      %p204 = por %p202, %p203
      %p205 = scmp.ne.s32.totalorder %s196, %s197
      %p206 = scmp.eq.s32.totalorder %s34, 0
      %p207 = por %p205, %p206
      %p208 = scmp.ne.s32.totalorder %s196, %s197
      %p209 = scmp.eq.s32.totalorder %s35, 1
      %p210 = por %p208, %p209
      %p212 = scmp.ne.s32.totalorder %s197, %s211
      %p213 = scmp.eq.s32.totalorder %s35, 0
      %p214 = por %p212, %p213
      %s216 = sadd.s32 %s215, 1
      %p219 = scmp.eq.s32.totalorder %s29, 1
      %p220 = scmp.ne.s32.totalorder %s215, %s217
      %p221 = scmp.eq.s32.totalorder %s29, 0
      %p222 = por %p220, %p221
      %p223 = scmp.ne.s32.totalorder %s215, %s217
      %p224 = scmp.eq.s32.totalorder %s34, 1
      %p225 = por %p223, %p224
      %p226 = scmp.ne.s32.totalorder %s217, %s218
      %p227 = scmp.eq.s32.totalorder %s34, 0
      %p228 = por %p226, %p227
      %p229 = scmp.ne.s32.totalorder %s217, %s218
      %p230 = scmp.eq.s32.totalorder %s35, 1
      %p231 = por %p229, %p230
      %p233 = scmp.ne.s32.totalorder %s218, %s232
      %p234 = scmp.eq.s32.totalorder %s35, 0
      %p235 = por %p233, %p234
      %s237 = sadd.s32 %s236, 1
      %p240 = scmp.eq.s32.totalorder %s29, 1
      %p241 = scmp.ne.s32.totalorder %s236, %s238
      %p242 = scmp.eq.s32.totalorder %s29, 0
      %p243 = por %p241, %p242
      %p244 = scmp.ne.s32.totalorder %s236, %s238
      %p245 = scmp.eq.s32.totalorder %s34, 1
      %p246 = por %p244, %p245
      %p247 = scmp.ne.s32.totalorder %s238, %s239
      %p248 = scmp.eq.s32.totalorder %s34, 0
      %p249 = por %p247, %p248
      %p250 = scmp.ne.s32.totalorder %s238, %s239
      %p251 = scmp.eq.s32.totalorder %s35, 1
      %p252 = por %p250, %p251
      %p254 = scmp.ne.s32.totalorder %s239, %s253
      %p255 = scmp.eq.s32.totalorder %s35, 0
      %p256 = por %p254, %p255
      %s258 = sadd.s32 %s257, 1
      %p261 = scmp.eq.s32.totalorder %s29, 1
      %p262 = scmp.ne.s32.totalorder %s257, %s259
      %p263 = scmp.eq.s32.totalorder %s29, 0
      %p264 = por %p262, %p263
      %p265 = scmp.ne.s32.totalorder %s257, %s259
      %p266 = scmp.eq.s32.totalorder %s34, 1
      %p267 = por %p265, %p266
      %p268 = scmp.ne.s32.totalorder %s259, %s260
      %p269 = scmp.eq.s32.totalorder %s34, 0
      %p270 = por %p268, %p269
      %p271 = scmp.ne.s32.totalorder %s259, %s260
      %p272 = scmp.eq.s32.totalorder %s35, 1
      %p273 = por %p271, %p272
      %p275 = scmp.ne.s32.totalorder %s260, %s274
      %p276 = scmp.eq.s32.totalorder %s35, 0
      %p277 = por %p275, %p276
      %s279 = sadd.s32 %s278, 1
      %p282 = scmp.eq.s32.totalorder %s29, 1
      %p283 = scmp.ne.s32.totalorder %s278, %s280
      %p284 = scmp.eq.s32.totalorder %s29, 0
      %p285 = por %p283, %p284
      %p286 = scmp.ne.s32.totalorder %s278, %s280
      %p287 = scmp.eq.s32.totalorder %s34, 1
      %p288 = por %p286, %p287
      %p289 = scmp.ne.s32.totalorder %s280, %s281
      %p290 = scmp.eq.s32.totalorder %s34, 0
      %p291 = por %p289, %p290
      %p292 = scmp.ne.s32.totalorder %s280, %s281
      %p293 = scmp.eq.s32.totalorder %s35, 1
      %p294 = por %p292, %p293
      %p296 = scmp.ne.s32.totalorder %s281, %s295
      %p297 = scmp.eq.s32.totalorder %s35, 0
      %p298 = por %p296, %p297
      %s300 = sadd.s32 %s299, 1
      %p303 = scmp.eq.s32.totalorder %s29, 1
      %p304 = scmp.ne.s32.totalorder %s299, %s301
      %p305 = scmp.eq.s32.totalorder %s29, 0
      %p306 = por %p304, %p305
      %p307 = scmp.ne.s32.totalorder %s299, %s301
      %p308 = scmp.eq.s32.totalorder %s34, 1
      %p309 = por %p307, %p308
      %p310 = scmp.ne.s32.totalorder %s301, %s302
      %p311 = scmp.eq.s32.totalorder %s34, 0
      %p312 = por %p310, %p311
      %p313 = scmp.ne.s32.totalorder %s301, %s302
      %p314 = scmp.eq.s32.totalorder %s35, 1
      %p315 = por %p313, %p314
      %p317 = scmp.ne.s32.totalorder %s302, %s316
      %p318 = scmp.eq.s32.totalorder %s35, 0
      %p319 = por %p317, %p318
      %s321 = sadd.s32 %s320, 1
      %p324 = scmp.eq.s32.totalorder %s29, 1
      %p325 = scmp.ne.s32.totalorder %s320, %s322
      %p326 = scmp.eq.s32.totalorder %s29, 0
      %p327 = por %p325, %p326
      %p328 = scmp.ne.s32.totalorder %s320, %s322
      %p329 = scmp.eq.s32.totalorder %s34, 1
      %p330 = por %p328, %p329
      %p331 = scmp.ne.s32.totalorder %s322, %s323
      %p332 = scmp.eq.s32.totalorder %s34, 0
      %p333 = por %p331, %p332
      %p334 = scmp.ne.s32.totalorder %s322, %s323
      %p335 = scmp.eq.s32.totalorder %s35, 1
      %p336 = por %p334, %p335
      %p338 = scmp.ne.s32.totalorder %s323, %s337
      %p339 = scmp.eq.s32.totalorder %s35, 0
      %p340 = por %p338, %p339
      %s341 = ssub.s32 %s29, %s36
      %p342 = scmp.eq.s32.totalorder %s341, 0
      %s344 = sadd.s32 %s343, 1
      %s345 = scalar_select %p342, %s343, %s344
      %p348 = pneg %p342
      %p349 = scmp.eq.s32.totalorder %s29, 1
      %p350 = por %p348, %p349
      %p351 = scmp.ne.s32.totalorder %s343, %s346
      %p352 = scmp.eq.s32.totalorder %s29, 0
      %p353 = por %p351, %p352
      %p354 = scmp.ne.s32.totalorder %s343, %s346
      %p355 = scmp.eq.s32.totalorder %s34, 1
      %p356 = por %p354, %p355
      %p357 = scmp.ne.s32.totalorder %s346, %s347
      %p358 = scmp.eq.s32.totalorder %s34, 0
      %p359 = por %p357, %p358
      %p360 = scmp.ne.s32.totalorder %s346, %s347
      %p361 = scmp.eq.s32.totalorder %s35, 1
      %p362 = por %p360, %p361
      %p364 = scmp.ne.s32.totalorder %s347, %s363
      %p365 = scmp.eq.s32.totalorder %s35, 0
      %p366 = por %p364, %p365
      %p367 = scmp.le.s32.totalorder 1, %s29
      %p368 = scmp.lt.s32.totalorder %s29, 3
      %p369 = pnand %p367, %p368
      %p370 = pneg %p369
      // Predicated region
      $region9: #{tpu_custom_call.1} parent=5 // pred_check
        _
      $region10: #{tpu_custom_call.1} parent=5 // pred_check_branch
        %372 = sbr.rel (%p369) target = $region12
      $region11: #{tpu_custom_call.1} parent=5 // pred_region
        %s373 = ssub.s32 %s29, 1
        // Predicated region
        $region13: #{tpu_custom_call.1} parent=11 // pred_check
          %p374 = pneg %p102
        $region14: #{tpu_custom_call.1} parent=11 // pred_check_branch
          %376 = sbr.rel (%p374) target = $region16
        $region15: #{tpu_custom_call.1} parent=11 // pred_region
          %s378 = ssub.s32 16, 16
          %379 = vsyncadd [#allocation6], %s378
          %s381 = sshll.u32 [#allocation5], 4
          %s382 = int_to_ptr.vmem [resolvable:$true] %s381
          %384 = dma.hbm_to_vmem [thread:$0]  %s2, 16, %s382, [#allocation6]
        $region16: #{tpu_custom_call.1} parent=11 // pred_fallthru
          _
        // Predicated region
        $region17: #{tpu_custom_call.1} parent=11 // pred_check
          %p385 = pneg %p123
        $region18: #{tpu_custom_call.1} parent=11 // pred_check_branch
          %387 = sbr.rel (%p385) target = $region20
        $region19: #{tpu_custom_call.1} parent=11 // pred_region
          %s389 = ssub.s32 16, 16
          %390 = vsyncadd [#allocation6], %s389
          %s392 = sshll.u32 [#allocation7], 4
          %s393 = int_to_ptr.vmem [resolvable:$true] %s392
          %395 = dma.hbm_to_vmem [thread:$0]  %s3, 16, %s393, [#allocation6]
        $region20: #{tpu_custom_call.1} parent=11 // pred_fallthru
          _
        // Predicated region
        $region21: #{tpu_custom_call.1} parent=11 // pred_check
          %p396 = pneg %p144
        $region22: #{tpu_custom_call.1} parent=11 // pred_check_branch
          %398 = sbr.rel (%p396) target = $region24
        $region23: #{tpu_custom_call.1} parent=11 // pred_region
          _
        $region24: #{tpu_custom_call.1} parent=11 // pred_fallthru
          _
        // Predicated region
        $region25: #{tpu_custom_call.1} parent=11 // pred_check
          %p399 = pneg %p165
        $region26: #{tpu_custom_call.1} parent=11 // pred_check_branch
          %401 = sbr.rel (%p399) target = $region28
        $region27: #{tpu_custom_call.1} parent=11 // pred_region
          %s403 = ssub.s32 16, 16
          %404 = vsyncadd [#allocation9], %s403
          %s406 = sshll.u32 [#allocation8], 4
          %s407 = int_to_ptr.vmem [resolvable:$true] %s406
          %409 = dma.hbm_to_vmem [thread:$0]  %s5, 16, %s407, [#allocation9]
        $region28: #{tpu_custom_call.1} parent=11 // pred_fallthru
          _
        // Predicated region
        $region29: #{tpu_custom_call.1} parent=11 // pred_check
          %p410 = pneg %p186
        $region30: #{tpu_custom_call.1} parent=11 // pred_check_branch
          %412 = sbr.rel (%p410) target = $region32
        $region31: #{tpu_custom_call.1} parent=11 // pred_region
          _
        $region32: #{tpu_custom_call.1} parent=11 // pred_fallthru
          _
        // Predicated region
        $region33: #{tpu_custom_call.1} parent=11 // pred_check
          %p413 = pneg %p207
        $region34: #{tpu_custom_call.1} parent=11 // pred_check_branch
          %415 = sbr.rel (%p413) target = $region36
        $region35: #{tpu_custom_call.1} parent=11 // pred_region
          %s417 = ssub.s32 16, 16
          %418 = vsyncadd [#allocation9], %s417
          %s420 = sshll.u32 [#allocation10], 4
          %s421 = int_to_ptr.vmem [resolvable:$true] %s420
          %423 = dma.hbm_to_vmem [thread:$0]  %s7, 16, %s421, [#allocation9]
        $region36: #{tpu_custom_call.1} parent=11 // pred_fallthru
          _
        // Predicated region
        $region37: #{tpu_custom_call.1} parent=11 // pred_check
          %p424 = pneg %p228
        $region38: #{tpu_custom_call.1} parent=11 // pred_check_branch
          %426 = sbr.rel (%p424) target = $region40
        $region39: #{tpu_custom_call.1} parent=11 // pred_region
          %s428 = ssub.s32 16, 16
          %429 = vsyncadd [#allocation12], %s428
          %s431 = sshll.u32 [#allocation11], 4
          %s432 = int_to_ptr.vmem [resolvable:$true] %s431
          %434 = dma.hbm_to_vmem [thread:$0]  %s8, 16, %s432, [#allocation12]
        $region40: #{tpu_custom_call.1} parent=11 // pred_fallthru
          _
        // Predicated region
        $region41: #{tpu_custom_call.1} parent=11 // pred_check
          %p435 = pneg %p249
        $region42: #{tpu_custom_call.1} parent=11 // pred_check_branch
          %437 = sbr.rel (%p435) target = $region44
        $region43: #{tpu_custom_call.1} parent=11 // pred_region
          %s439 = ssub.s32 16, 16
          %440 = vsyncadd [#allocation12], %s439
          %s442 = sshll.u32 [#allocation13], 4
          %s443 = int_to_ptr.vmem [resolvable:$true] %s442
          %445 = dma.hbm_to_vmem [thread:$0]  %s9, 16, %s443, [#allocation12]
        $region44: #{tpu_custom_call.1} parent=11 // pred_fallthru
          _
        // Predicated region
        $region45: #{tpu_custom_call.1} parent=11 // pred_check
          %p446 = pneg %p270
        $region46: #{tpu_custom_call.1} parent=11 // pred_check_branch
          %448 = sbr.rel (%p446) target = $region48
        $region47: #{tpu_custom_call.1} parent=11 // pred_region
          _
        $region48: #{tpu_custom_call.1} parent=11 // pred_fallthru
          _
        // Predicated region
        $region49: #{tpu_custom_call.1} parent=11 // pred_check
          %p449 = pneg %p291
        $region50: #{tpu_custom_call.1} parent=11 // pred_check_branch
          %451 = sbr.rel (%p449) target = $region52
        $region51: #{tpu_custom_call.1} parent=11 // pred_region
          _
        $region52: #{tpu_custom_call.1} parent=11 // pred_fallthru
          _
        // Predicated region
        $region53: #{tpu_custom_call.1} parent=11 // pred_check
          %p452 = pneg %p312
        $region54: #{tpu_custom_call.1} parent=11 // pred_check_branch
          %454 = sbr.rel (%p452) target = $region56
        $region55: #{tpu_custom_call.1} parent=11 // pred_region
          _
        $region56: #{tpu_custom_call.1} parent=11 // pred_fallthru
          _
        // Predicated region
        $region57: #{tpu_custom_call.1} parent=11 // pred_check
          %p455 = pneg %p333
        $region58: #{tpu_custom_call.1} parent=11 // pred_check_branch
          %457 = sbr.rel (%p455) target = $region60
        $region59: #{tpu_custom_call.1} parent=11 // pred_region
          _
        $region60: #{tpu_custom_call.1} parent=11 // pred_fallthru
          _
      $region12: #{tpu_custom_call.1} parent=5 // pred_fallthru
        _
      %p458 = scmp.lt.s32.totalorder %s29, 2
      // Predicated region
      $region61: #{tpu_custom_call.1} parent=5 // pred_check
        %p459 = pneg %p458
      $region62: #{tpu_custom_call.1} parent=5 // pred_check_branch
        %461 = sbr.rel (%p459) target = $region64
      $region63: #{tpu_custom_call.1} parent=5 // pred_region
        // Predicated region
        $region65: #{tpu_custom_call.1} parent=63 // pred_check
          %p462 = pneg %p49
        $region66: #{tpu_custom_call.1} parent=63 // pred_check_branch
          %464 = sbr.rel (%p462) target = $region68
        $region67: #{tpu_custom_call.1} parent=63 // pred_region
          %p465 = scmp.lt.s32.totalorder %s29, 1
          %s466 = scalar_select %p465, %s29, 1
          %s467 = smul.addr %s466, 8
          %s468 = scalar_lea.vmem %s0, %s467
        $region68: #{tpu_custom_call.1} parent=63 // pred_fallthru
          _
        // Predicated region
        $region69: #{tpu_custom_call.1} parent=63 // pred_check
          %p469 = pneg %p75
        $region70: #{tpu_custom_call.1} parent=63 // pred_check_branch
          %471 = sbr.rel (%p469) target = $region72
        $region71: #{tpu_custom_call.1} parent=63 // pred_region
          %s472 = sand.u32 %s65, 1
          %s473 = scalar_lea.sflag [#allocation3], %s472
          %s474 = sand.u32 %s65, 1
          %s475 = scalar_lea.vmem [#allocation2], %s474
          %s477 = ssub.s32 16, 16
          %478 = vsyncadd %s473, %s477
          %s479 = smul.addr %s29, 16
          %s480 = scalar_lea.hbm %s1, %s479
          %s482 = sshll.u32 %s475, 4
          %s483 = int_to_ptr.vmem [resolvable:$true] %s482
          %485 = dma.hbm_to_vmem [thread:$0]  %s480, 16, %s483, %s473
        $region72: #{tpu_custom_call.1} parent=63 // pred_fallthru
          _
      $region64: #{tpu_custom_call.1} parent=5 // pred_fallthru
        _
      %p486 = scmp.le.s32.totalorder 1, %s29
      %p487 = scmp.lt.s32.totalorder %s29, 3
      %p488 = pnand %p486, %p487
      %p489 = pneg %p488
      // Predicated region
      $region73: #{tpu_custom_call.1} parent=5 // pred_check
        _
      $region74: #{tpu_custom_call.1} parent=5 // pred_check_branch
        %491 = sbr.rel (%p488) target = $region76
      $region75: #{tpu_custom_call.1} parent=5 // pred_region
        %s492 = ssub.s32 %s29, 1
        %s493 = sand.u32 %s68, 1
        %s494 = scalar_lea.sflag [#allocation3], %s493
        %s495 = sand.u32 %s68, 1
        %s496 = scalar_lea.vmem [#allocation2], %s495
        // Predicated region
        $region77: #{tpu_custom_call.1} parent=75 // pred_check
          %p497 = pneg %p81
        $region78: #{tpu_custom_call.1} parent=75 // pred_check_branch
          %499 = sbr.rel (%p497) target = $region80
        $region79: #{tpu_custom_call.1} parent=75 // pred_region
          %500 = dma.done %s494, 16
        $region80: #{tpu_custom_call.1} parent=75 // pred_fallthru
          _
        // Predicated region
        $region81: #{tpu_custom_call.1} parent=75 // pred_check
          %p501 = pneg %p102
        $region82: #{tpu_custom_call.1} parent=75 // pred_check_branch
          %503 = sbr.rel (%p501) target = $region84
        $region83: #{tpu_custom_call.1} parent=75 // pred_region
          %504 = dma.done [#allocation6], 16
        $region84: #{tpu_custom_call.1} parent=75 // pred_fallthru
          _
        // Predicated region
        $region85: #{tpu_custom_call.1} parent=75 // pred_check
          %p505 = pneg %p123
        $region86: #{tpu_custom_call.1} parent=75 // pred_check_branch
          %507 = sbr.rel (%p505) target = $region88
        $region87: #{tpu_custom_call.1} parent=75 // pred_region
          %508 = dma.done [#allocation6], 16
        $region88: #{tpu_custom_call.1} parent=75 // pred_fallthru
          _
        // Predicated region
        $region89: #{tpu_custom_call.1} parent=75 // pred_check
          %p509 = pneg %p165
        $region90: #{tpu_custom_call.1} parent=75 // pred_check_branch
          %511 = sbr.rel (%p509) target = $region92
        $region91: #{tpu_custom_call.1} parent=75 // pred_region
          %512 = dma.done [#allocation9], 16
        $region92: #{tpu_custom_call.1} parent=75 // pred_fallthru
          _
        // Predicated region
        $region93: #{tpu_custom_call.1} parent=75 // pred_check
          %p513 = pneg %p207
        $region94: #{tpu_custom_call.1} parent=75 // pred_check_branch
          %515 = sbr.rel (%p513) target = $region96
        $region95: #{tpu_custom_call.1} parent=75 // pred_region
          %516 = dma.done [#allocation9], 16
        $region96: #{tpu_custom_call.1} parent=75 // pred_fallthru
          _
        // Predicated region
        $region97: #{tpu_custom_call.1} parent=75 // pred_check
          %p517 = pneg %p228
        $region98: #{tpu_custom_call.1} parent=75 // pred_check_branch
          %519 = sbr.rel (%p517) target = $region100
        $region99: #{tpu_custom_call.1} parent=75 // pred_region
          %520 = dma.done [#allocation12], 16
        $region100: #{tpu_custom_call.1} parent=75 // pred_fallthru
          _
        // Predicated region
        $region101: #{tpu_custom_call.1} parent=75 // pred_check
          %p521 = pneg %p249
        $region102: #{tpu_custom_call.1} parent=75 // pred_check_branch
          %523 = sbr.rel (%p521) target = $region104
        $region103: #{tpu_custom_call.1} parent=75 // pred_region
          %524 = dma.done [#allocation12], 16
        $region104: #{tpu_custom_call.1} parent=75 // pred_fallthru
          _
        %p525 = scmp.lt.s32.totalorder %s34, 1
        %s526 = scalar_select %p525, %s34, 1
        %s527 = smul.addr %s526, 8
        %s528 = scalar_lea.vmem %s0, %s527
        %p529 = pneg %p55
        %p530 = pneg %p52
        %s531 = sand.u32 %s68, 1
        %s532 = scalar_lea.sflag [#allocation3], %s531
        %s533 = sand.u32 %s68, 1
        %s534 = scalar_lea.vmem [#allocation2], %s533
        %p535 = pneg %p81
        %p536 = pneg %p78
        %p537 = pneg %p102
        %p538 = pneg %p99
        %p539 = pneg %p123
        %p540 = pneg %p120
        %p541 = pneg %p144
        %p542 = pneg %p141
        %p543 = pneg %p165
        %p544 = pneg %p162
        %p545 = pneg %p186
        %p546 = pneg %p183
        %p547 = pneg %p207
        %p548 = pneg %p204
        %p549 = pneg %p228
        %p550 = pneg %p225
        %p551 = pneg %p249
        %p552 = pneg %p246
        %p553 = pneg %p270
        %p554 = pneg %p267
        %p555 = pneg %p291
        %p556 = pneg %p288
        %p557 = pneg %p312
        %p558 = pneg %p309
        %p559 = pneg %p333
        %p560 = pneg %p330
        %p561 = pneg %p359
        %p562 = pneg %p356
        %s563 = sand.u32 %s346, 1
        %s564 = scalar_lea.sflag [#allocation4], %s563
        %s565 = sand.u32 %s346, 1
        %s566 = smul.addr %s565, 8
        %s567 = scalar_lea.vmem [#allocation14], %s566
        %p568 = scmp.lt.s32.totalorder %s34, 1
        %s569 = scalar_select %p568, %s34, 1
        %s570 = smul.addr %s569, 8
        %s571 = scalar_lea.vmem %s0, %s570
        %v573 = vld [vmem:[%s571] sm:$0xff]
        %v574 = vld [vmem:[%s496] sm:$0x1]
        %v575 = vsub.f32 %v574, 1.0
        %v576 = vmul.f32 %v575, 1e+09
        %v577 = vld [vmem:[#allocation5] sm:$0x1]
        %v578 = vld [vmem:[#allocation7] sm:$0x1]
        %vm579 = vcmask 261120
        %v580 = vsel %vm579, %v573, 0.0
        %581 = vadd.xlane.f32.xlu0 %v580
        %v582 = vpop.xlane.xlu0 %581
        %v583 = vrcp.pop 32.0
        %v584 = vmul.f32 %v582, %v583
        %v585 = vsub.f32 %v573, %v584
        %v586 = vmul.f32 %v585, %v585
        %v587 = vsel %vm579, %v586, 0.0
        %588 = vadd.xlane.f32.xlu0 %v587
        %v589 = vpop.xlane.xlu0 %588
        %v590 = vmul.f32 %v589, 0.032258064
        %v591 = vrsqrt.pop %v590
        %v592 = vmul.f32 %v590, %v591
        %vm593 = vcmp.eq.f32.partialorder %v590, inf
        %v594 = vsel %vm593, %v590, %v592
        %vm595 = vcmp.eq.f32.partialorder %v590, 0.0
        %v596 = vand.u32 %v590, 2147483648
        %v597 = vsel %vm595, %v596, %v594
        %v598 = vadd.f32 %v597, 1e-06
        %v599 = vrcp.pop %v598
        %v601 = vlaneseq
        %v602 = vshrl.u32 %v601, 7
        %v603 = vsub.s32 0, %v602
        %v604 = vrot.slane %v577, %v603
        %v606 = vmul.f32 %v604, %v585
        %v607 = vmul.f32 %v606, %v599
        %v609 = vlaneseq
        %v610 = vshrl.u32 %v609, 7
        %v611 = vsub.s32 0, %v610
        %v612 = vrot.slane %v578, %v611
        %v614 = vadd.f32 %v607, %v612
        %v615 = vpack.c.bf16 %v614, %v614
        %v616 = vld [vmem:[%s4] sm:$0xf]
        %v617 = vld [vmem:[%s4 + $0x4] sm:$0xf]
        %v618 = vld [vmem:[%s4 + $0x8] sm:$0xf]
        %v619 = vld [vmem:[%s4 + $0xc] sm:$0xf]
        %v620 = vld [vmem:[#allocation8] sm:$0x1]
        %v622 = vlaneseq
        %v623 = vshrl.u32 %v622, 7
        %v624 = vsub.s32 0, %v623
        %v625 = vrot.slane %v620, %v624
        %v631 = vunpack.c.l.b16 %v616
        %v632 = vunpack.c.l.b16 %v617
        %v633 = vunpack.c.l.b16 %v618
        %v634 = vunpack.c.l.b16 %v619
        %v635 = vpack.c.b16 %v632, %v631
        %v636 = vpack.c.b16 %v634, %v633
        %v640 = vsel %vm579, %v615, 0
        %642 = vmatprep.subr.bf16.mxu0 0
        %643 = vmatpush1.bf16.msra.mxu0 0
        %644 = vmatprep.subr.bf16.mxu0 0
        %645 = vmatpush1.bf16.msra.mxu0 0
        %646 = vmatprep.subr.bf16.mxu0 0
        %647 = vmatpush1.bf16.msra.mxu0 0
        %648 = vmatprep.subr.bf16.mxu0 0
        %649 = vmatpush1.bf16.msra.mxu0 0
        %650 = vmatprep.subr.bf16.mxu0 0
        %651 = vmatpush1.bf16.msra.mxu0 0
        %652 = vmatprep.subr.bf16.mxu0 0
        %653 = vmatpush1.bf16.msra.mxu0 0
        %654 = vmatprep.subr.bf16.mxu0 0
        %655 = vmatpush1.bf16.msra.mxu0 %v636
        %656 = vmatprep.subr.bf16.mxu0 0
        %657 = vmatpush1.bf16.msra.mxu0 %v635
        %658 = vmatprep.subr.bf16.mxu0 0
        %659 = vmatpush2.bf16.msra.mxu0 0
        %660 = vmatprep.subr.bf16.mxu0 0
        %661 = vmatpush2.bf16.msra.mxu0 0
        %662 = vmatprep.subr.bf16.mxu0 0
        %663 = vmatpush2.bf16.msra.mxu0 0
        %664 = vmatprep.subr.bf16.mxu0 0
        %665 = vmatpush2.bf16.msra.mxu0 0
        %666 = vmatprep.subr.bf16.mxu0 0
        %667 = vmatpush2.bf16.msra.mxu0 0
        %668 = vmatprep.subr.bf16.mxu0 0
        %669 = vmatpush2.bf16.msra.mxu0 0
        %670 = vmatprep.subr.bf16.mxu0 0
        %671 = vmatpush2.bf16.msra.mxu0 0
        %672 = vmatprep.subr.bf16.mxu0 0
        %673 = vmatpush2.bf16.msra.mxu0 0
        %674 = vmatprep.mubr.bf16.mxu0 0
        %675 = vmatmul.mubr.bf16.gmra.mxu0 %v640
        %v676 = vpop.f32.mrf.mxu0
        %v677 = vadd.f32 %v625, %v676
        %v678 = vpop.f32.mrf.mxu0
        %v679 = vpop.f32.mrf.mxu0
        %v680 = vpop.f32.mrf.mxu0
        %681 = vdwg.mxu0
        %v682 = vmul.f32 %v677, 0.35355338
        %684 = vrot.lane.b32.xlu0 %v682, 120
        %v685 = vpop.permute.xlu0 %684
        %687 = vrot.lane.b32.xlu0 %v682, 112
        %v688 = vpop.permute.xlu0 %687
        %690 = vrot.lane.b32.xlu0 %v682, 104
        %v691 = vpop.permute.xlu0 %690
        %v693 = vcombine.low %v682, %v688
        %v694 = vcombine.high %v682, %v688
        %v696 = vunpack.c.l.s4 1983009808
        %v697 = vunpack.c.0.s8 %v696
        %v698 = vlaneseq
        %v699 = vshrl.u32 %v698, 7
        %v700 = vsub.s32 %v697, %v699
        %v701 = vrot.slane %v693, %v700
        %v703 = vunpack.c.l.s4 1983009808
        %v704 = vunpack.c.0.s8 %v703
        %v705 = vlaneseq
        %v706 = vshrl.u32 %v705, 7
        %v707 = vsub.s32 %v704, %v706
        %v708 = vrot.slane %v694, %v707
        %v709 = vcombine.low %v685, %v691
        %v710 = vcombine.high %v685, %v691
        %v712 = vunpack.c.l.s4 1983009808
        %v713 = vunpack.c.0.s8 %v712
        %v714 = vlaneseq
        %v715 = vshrl.u32 %v714, 7
        %v716 = vsub.s32 %v713, %v715
        %v717 = vrot.slane %v709, %v716
        %v719 = vunpack.c.l.s4 1983009808
        %v720 = vunpack.c.0.s8 %v719
        %v721 = vlaneseq
        %v722 = vshrl.u32 %v721, 7
        %v723 = vsub.s32 %v720, %v722
        %v724 = vrot.slane %v710, %v723
        %v725 = vcombine.low %v701, %v717
        %v726 = vcombine.high %v701, %v717
        %v728 = vunpack.c.l.s4 1934713408
        %v729 = vunpack.c.0.s8 %v728
        %v730 = vlaneseq
        %v731 = vshrl.u32 %v730, 7
        %v732 = vsub.s32 %v729, %v731
        %v733 = vrot.slane %v725, %v732
        %v735 = vunpack.c.l.s4 1934713408
        %v736 = vunpack.c.0.s8 %v735
        %v737 = vlaneseq
        %v738 = vshrl.u32 %v737, 7
        %v739 = vsub.s32 %v736, %v738
        %v740 = vrot.slane %v726, %v739
        %v741 = vcombine.low %v708, %v724
        %v742 = vcombine.high %v708, %v724
        %v744 = vunpack.c.l.s4 1934713408
        %v745 = vunpack.c.0.s8 %v744
        %v746 = vlaneseq
        %v747 = vshrl.u32 %v746, 7
        %v748 = vsub.s32 %v745, %v747
        %v749 = vrot.slane %v741, %v748
        %v751 = vunpack.c.l.s4 1934713408
        %v752 = vunpack.c.0.s8 %v751
        %v753 = vlaneseq
        %v754 = vshrl.u32 %v753, 7
        %v755 = vsub.s32 %v752, %v754
        %v756 = vrot.slane %v742, %v755
        %v757 = vcombine.high %v733, 0.0
        %v758 = vcombine.high %v740, 0.0
        %v759 = vcombine.high %v749, 0.0
        %v760 = vcombine.high %v756, 0.0
        %v761 = vcombine.low %v733, %v740
        %v763 = vunpack.c.l.s4 1983009808
        %v764 = vunpack.c.0.s8 %v763
        %v765 = vlaneseq
        %v766 = vshrl.u32 %v765, 7
        %v767 = vsub.s32 %v764, %v766
        %v768 = vrot.slane %v761, %v767
        %v769 = vcombine.low %v757, %v758
        %v771 = vunpack.c.l.s4 1983009808
        %v772 = vunpack.c.0.s8 %v771
        %v773 = vlaneseq
        %v774 = vshrl.u32 %v773, 7
        %v775 = vsub.s32 %v772, %v774
        %v776 = vrot.slane %v769, %v775
        %v777 = vcombine.low %v749, %v756
        %v779 = vunpack.c.l.s4 1983009808
        %v780 = vunpack.c.0.s8 %v779
        %v781 = vlaneseq
        %v782 = vshrl.u32 %v781, 7
        %v783 = vsub.s32 %v780, %v782
        %v784 = vrot.slane %v777, %v783
        %v785 = vcombine.low %v759, %v760
        %v787 = vunpack.c.l.s4 1983009808
        %v788 = vunpack.c.0.s8 %v787
        %v789 = vlaneseq
        %v790 = vshrl.u32 %v789, 7
        %v791 = vsub.s32 %v788, %v790
        %v792 = vrot.slane %v785, %v791
        %v793 = vcombine.low %v768, %v776
        %v794 = vcombine.high %v768, %v776
        %v796 = vunpack.c.l.s4 1934713408
        %v797 = vunpack.c.0.s8 %v796
        %v798 = vlaneseq
        %v799 = vshrl.u32 %v798, 7
        %v800 = vsub.s32 %v797, %v799
        %v801 = vrot.slane %v793, %v800
        %v803 = vunpack.c.l.s4 1934713408
        %v804 = vunpack.c.0.s8 %v803
        %v805 = vlaneseq
        %v806 = vshrl.u32 %v805, 7
        %v807 = vsub.s32 %v804, %v806
        %v808 = vrot.slane %v794, %v807
        %v809 = vcombine.low %v784, %v792
        %v810 = vcombine.high %v784, %v792
        %v812 = vunpack.c.l.s4 1934713408
        %v813 = vunpack.c.0.s8 %v812
        %v814 = vlaneseq
        %v815 = vshrl.u32 %v814, 7
        %v816 = vsub.s32 %v813, %v815
        %v817 = vrot.slane %v809, %v816
        %v819 = vunpack.c.l.s4 1934713408
        %v820 = vunpack.c.0.s8 %v819
        %v821 = vlaneseq
        %v822 = vshrl.u32 %v821, 7
        %v823 = vsub.s32 %v820, %v822
        %v824 = vrot.slane %v810, %v823
        %v825 = vcombine.low %v801, %v817
        %v826 = vcombine.high %v801, %v817
        %v827 = vcombine.low %v808, %v824
        %v828 = vcombine.high %v808, %v824
        %v829 = vpack.c.bf16 %v825, %v825
        %v830 = vpack.c.bf16 %v826, %v826
        %v831 = vpack.c.bf16 %v827, %v827
        %v832 = vpack.c.bf16 %v828, %v828
        %834 = vrot.lane.b32.xlu0 %v677, 120
        %v835 = vpop.permute.xlu0 %834
        %836 = vrot.lane.b32.xlu0 %v677, 112
        %v837 = vpop.permute.xlu0 %836
        %838 = vrot.lane.b32.xlu0 %v677, 104
        %v839 = vpop.permute.xlu0 %838
        %840 = vrot.lane.b32.xlu0 %v677, 96
        %v841 = vpop.permute.xlu0 %840
        %842 = vrot.lane.b32.xlu0 %v835, 96
        %v843 = vpop.permute.xlu0 %842
        %844 = vrot.lane.b32.xlu0 %v837, 96
        %v845 = vpop.permute.xlu0 %844
        %846 = vrot.lane.b32.xlu0 %v839, 96
        %v847 = vpop.permute.xlu0 %846
        %v852 = vcombine.low %v841, %v845
        %v853 = vcombine.high %v841, %v845
        %v855 = vunpack.c.l.s4 1983009808
        %v856 = vunpack.c.0.s8 %v855
        %v857 = vlaneseq
        %v858 = vshrl.u32 %v857, 7
        %v859 = vsub.s32 %v856, %v858
        %v860 = vrot.slane %v852, %v859
        %v862 = vunpack.c.l.s4 1983009808
        %v863 = vunpack.c.0.s8 %v862
        %v864 = vlaneseq
        %v865 = vshrl.u32 %v864, 7
        %v866 = vsub.s32 %v863, %v865
        %v867 = vrot.slane %v853, %v866
        %v868 = vcombine.low %v843, %v847
        %v869 = vcombine.high %v843, %v847
        %v871 = vunpack.c.l.s4 1983009808
        %v872 = vunpack.c.0.s8 %v871
        %v873 = vlaneseq
        %v874 = vshrl.u32 %v873, 7
        %v875 = vsub.s32 %v872, %v874
        %v876 = vrot.slane %v868, %v875
        %v878 = vunpack.c.l.s4 1983009808
        %v879 = vunpack.c.0.s8 %v878
        %v880 = vlaneseq
        %v881 = vshrl.u32 %v880, 7
        %v882 = vsub.s32 %v879, %v881
        %v883 = vrot.slane %v869, %v882
        %v884 = vcombine.low %v860, %v876
        %v885 = vcombine.high %v860, %v876
        %v887 = vunpack.c.l.s4 1934713408
        %v888 = vunpack.c.0.s8 %v887
        %v889 = vlaneseq
        %v890 = vshrl.u32 %v889, 7
        %v891 = vsub.s32 %v888, %v890
        %v892 = vrot.slane %v884, %v891
        %v894 = vunpack.c.l.s4 1934713408
        %v895 = vunpack.c.0.s8 %v894
        %v896 = vlaneseq
        %v897 = vshrl.u32 %v896, 7
        %v898 = vsub.s32 %v895, %v897
        %v899 = vrot.slane %v885, %v898
        %v900 = vcombine.low %v867, %v883
        %v901 = vcombine.high %v867, %v883
        %v903 = vunpack.c.l.s4 1934713408
        %v904 = vunpack.c.0.s8 %v903
        %v905 = vlaneseq
        %v906 = vshrl.u32 %v905, 7
        %v907 = vsub.s32 %v904, %v906
        %v908 = vrot.slane %v900, %v907
        %v910 = vunpack.c.l.s4 1934713408
        %v911 = vunpack.c.0.s8 %v910
        %v912 = vlaneseq
        %v913 = vshrl.u32 %v912, 7
        %v914 = vsub.s32 %v911, %v913
        %v915 = vrot.slane %v901, %v914
        %v916 = vcombine.high %v892, 0.0
        %v917 = vcombine.high %v899, 0.0
        %v918 = vcombine.high %v908, 0.0
        %v919 = vcombine.high %v915, 0.0
        %v920 = vcombine.low %v892, %v899
        %v922 = vunpack.c.l.s4 1983009808
        %v923 = vunpack.c.0.s8 %v922
        %v924 = vlaneseq
        %v925 = vshrl.u32 %v924, 7
        %v926 = vsub.s32 %v923, %v925
        %v927 = vrot.slane %v920, %v926
        %v928 = vcombine.low %v916, %v917
        %v930 = vunpack.c.l.s4 1983009808
        %v931 = vunpack.c.0.s8 %v930
        %v932 = vlaneseq
        %v933 = vshrl.u32 %v932, 7
        %v934 = vsub.s32 %v931, %v933
        %v935 = vrot.slane %v928, %v934
        %v936 = vcombine.low %v908, %v915
        %v938 = vunpack.c.l.s4 1983009808
        %v939 = vunpack.c.0.s8 %v938
        %v940 = vlaneseq
        %v941 = vshrl.u32 %v940, 7
        %v942 = vsub.s32 %v939, %v941
        %v943 = vrot.slane %v936, %v942
        %v944 = vcombine.low %v918, %v919
        %v946 = vunpack.c.l.s4 1983009808
        %v947 = vunpack.c.0.s8 %v946
        %v948 = vlaneseq
        %v949 = vshrl.u32 %v948, 7
        %v950 = vsub.s32 %v947, %v949
        %v951 = vrot.slane %v944, %v950
        %v952 = vcombine.low %v927, %v935
        %v953 = vcombine.high %v927, %v935
        %v955 = vunpack.c.l.s4 1934713408
        %v956 = vunpack.c.0.s8 %v955
        %v957 = vlaneseq
        %v958 = vshrl.u32 %v957, 7
        %v959 = vsub.s32 %v956, %v958
        %v960 = vrot.slane %v952, %v959
        %v962 = vunpack.c.l.s4 1934713408
        %v963 = vunpack.c.0.s8 %v962
        %v964 = vlaneseq
        %v965 = vshrl.u32 %v964, 7
        %v966 = vsub.s32 %v963, %v965
        %v967 = vrot.slane %v953, %v966
        %v968 = vcombine.low %v943, %v951
        %v969 = vcombine.high %v943, %v951
        %v971 = vunpack.c.l.s4 1934713408
        %v972 = vunpack.c.0.s8 %v971
        %v973 = vlaneseq
        %v974 = vshrl.u32 %v973, 7
        %v975 = vsub.s32 %v972, %v974
        %v976 = vrot.slane %v968, %v975
        %v978 = vunpack.c.l.s4 1934713408
        %v979 = vunpack.c.0.s8 %v978
        %v980 = vlaneseq
        %v981 = vshrl.u32 %v980, 7
        %v982 = vsub.s32 %v979, %v981
        %v983 = vrot.slane %v969, %v982
        %v984 = vcombine.low %v960, %v976
        %v985 = vcombine.high %v960, %v976
        %v986 = vcombine.low %v967, %v983
        %v987 = vcombine.high %v967, %v983
        %v988 = vpack.c.bf16 %v984, %v984
        %v989 = vpack.c.bf16 %v985, %v985
        %v990 = vpack.c.bf16 %v986, %v986
        %v991 = vpack.c.bf16 %v987, %v987
        %992 = vrot.lane.b32.xlu0 %v677, 64
        %v993 = vpop.permute.xlu0 %992
        %994 = vrot.lane.b32.xlu0 %v835, 64
        %v995 = vpop.permute.xlu0 %994
        %996 = vrot.lane.b32.xlu0 %v837, 64
        %v997 = vpop.permute.xlu0 %996
        %998 = vrot.lane.b32.xlu0 %v839, 64
        %v999 = vpop.permute.xlu0 %998
        %v1004 = vcombine.low %v993, %v997
        %v1005 = vcombine.high %v993, %v997
        %v1007 = vunpack.c.l.s4 1983009808
        %v1008 = vunpack.c.0.s8 %v1007
        %v1009 = vlaneseq
        %v1010 = vshrl.u32 %v1009, 7
        %v1011 = vsub.s32 %v1008, %v1010
        %v1012 = vrot.slane %v1004, %v1011
        %v1014 = vunpack.c.l.s4 1983009808
        %v1015 = vunpack.c.0.s8 %v1014
        %v1016 = vlaneseq
        %v1017 = vshrl.u32 %v1016, 7
        %v1018 = vsub.s32 %v1015, %v1017
        %v1019 = vrot.slane %v1005, %v1018
        %v1020 = vcombine.low %v995, %v999
        %v1021 = vcombine.high %v995, %v999
        %v1023 = vunpack.c.l.s4 1983009808
        %v1024 = vunpack.c.0.s8 %v1023
        %v1025 = vlaneseq
        %v1026 = vshrl.u32 %v1025, 7
        %v1027 = vsub.s32 %v1024, %v1026
        %v1028 = vrot.slane %v1020, %v1027
        %v1030 = vunpack.c.l.s4 1983009808
        %v1031 = vunpack.c.0.s8 %v1030
        %v1032 = vlaneseq
        %v1033 = vshrl.u32 %v1032, 7
        %v1034 = vsub.s32 %v1031, %v1033
        %v1035 = vrot.slane %v1021, %v1034
        %v1036 = vcombine.low %v1012, %v1028
        %v1037 = vcombine.high %v1012, %v1028
        %v1039 = vunpack.c.l.s4 1934713408
        %v1040 = vunpack.c.0.s8 %v1039
        %v1041 = vlaneseq
        %v1042 = vshrl.u32 %v1041, 7
        %v1043 = vsub.s32 %v1040, %v1042
        %v1044 = vrot.slane %v1036, %v1043
        %v1046 = vunpack.c.l.s4 1934713408
        %v1047 = vunpack.c.0.s8 %v1046
        %v1048 = vlaneseq
        %v1049 = vshrl.u32 %v1048, 7
        %v1050 = vsub.s32 %v1047, %v1049
        %v1051 = vrot.slane %v1037, %v1050
        %v1052 = vcombine.low %v1019, %v1035
        %v1053 = vcombine.high %v1019, %v1035
        %v1055 = vunpack.c.l.s4 1934713408
        %v1056 = vunpack.c.0.s8 %v1055
        %v1057 = vlaneseq
        %v1058 = vshrl.u32 %v1057, 7
        %v1059 = vsub.s32 %v1056, %v1058
        %v1060 = vrot.slane %v1052, %v1059
        %v1062 = vunpack.c.l.s4 1934713408
        %v1063 = vunpack.c.0.s8 %v1062
        %v1064 = vlaneseq
        %v1065 = vshrl.u32 %v1064, 7
        %v1066 = vsub.s32 %v1063, %v1065
        %v1067 = vrot.slane %v1053, %v1066
        %v1068 = vcombine.high %v1044, 0.0
        %v1069 = vcombine.high %v1051, 0.0
        %v1070 = vcombine.high %v1060, 0.0
        %v1071 = vcombine.high %v1067, 0.0
        %v1072 = vcombine.low %v1044, %v1051
        %v1074 = vunpack.c.l.s4 1983009808
        %v1075 = vunpack.c.0.s8 %v1074
        %v1076 = vlaneseq
        %v1077 = vshrl.u32 %v1076, 7
        %v1078 = vsub.s32 %v1075, %v1077
        %v1079 = vrot.slane %v1072, %v1078
        %v1080 = vcombine.low %v1068, %v1069
        %v1082 = vunpack.c.l.s4 1983009808
        %v1083 = vunpack.c.0.s8 %v1082
        %v1084 = vlaneseq
        %v1085 = vshrl.u32 %v1084, 7
        %v1086 = vsub.s32 %v1083, %v1085
        %v1087 = vrot.slane %v1080, %v1086
        %v1088 = vcombine.low %v1060, %v1067
        %v1090 = vunpack.c.l.s4 1983009808
        %v1091 = vunpack.c.0.s8 %v1090
        %v1092 = vlaneseq
        %v1093 = vshrl.u32 %v1092, 7
        %v1094 = vsub.s32 %v1091, %v1093
        %v1095 = vrot.slane %v1088, %v1094
        %v1096 = vcombine.low %v1070, %v1071
        %v1098 = vunpack.c.l.s4 1983009808
        %v1099 = vunpack.c.0.s8 %v1098
        %v1100 = vlaneseq
        %v1101 = vshrl.u32 %v1100, 7
        %v1102 = vsub.s32 %v1099, %v1101
        %v1103 = vrot.slane %v1096, %v1102
        %v1104 = vcombine.low %v1079, %v1087
        %v1105 = vcombine.high %v1079, %v1087
        %v1107 = vunpack.c.l.s4 1934713408
        %v1108 = vunpack.c.0.s8 %v1107
        %v1109 = vlaneseq
        %v1110 = vshrl.u32 %v1109, 7
        %v1111 = vsub.s32 %v1108, %v1110
        %v1112 = vrot.slane %v1104, %v1111
        %v1114 = vunpack.c.l.s4 1934713408
        %v1115 = vunpack.c.0.s8 %v1114
        %v1116 = vlaneseq
        %v1117 = vshrl.u32 %v1116, 7
        %v1118 = vsub.s32 %v1115, %v1117
        %v1119 = vrot.slane %v1105, %v1118
        %v1120 = vcombine.low %v1095, %v1103
        %v1121 = vcombine.high %v1095, %v1103
        %v1123 = vunpack.c.l.s4 1934713408
        %v1124 = vunpack.c.0.s8 %v1123
        %v1125 = vlaneseq
        %v1126 = vshrl.u32 %v1125, 7
        %v1127 = vsub.s32 %v1124, %v1126
        %v1128 = vrot.slane %v1120, %v1127
        %v1130 = vunpack.c.l.s4 1934713408
        %v1131 = vunpack.c.0.s8 %v1130
        %v1132 = vlaneseq
        %v1133 = vshrl.u32 %v1132, 7
        %v1134 = vsub.s32 %v1131, %v1133
        %v1135 = vrot.slane %v1121, %v1134
        %v1136 = vcombine.low %v1112, %v1128
        %v1137 = vcombine.high %v1112, %v1128
        %v1138 = vcombine.low %v1119, %v1135
        %v1139 = vcombine.high %v1119, %v1135
        %v1140 = vpack.c.bf16 %v1136, %v1136
        %v1141 = vpack.c.bf16 %v1137, %v1137
        %v1142 = vpack.c.bf16 %v1138, %v1138
        %v1143 = vpack.c.bf16 %v1139, %v1139
        %v1145 = vlaneseq
        %v1146 = vshrl.u32 %v1145, 7
        %v1147 = vsub.s32 0, %v1146
        %v1148 = vrot.slane %v576, %v1147
        %vm1150 = vcmask 64512
        %v1152 = vsel %vm1150, %v829, 0
        %v1155 = vsel %vm1150, %v988, 0
        %1157 = vmatprep.subr.bf16.mxu0 0
        %1158 = vmatpush1.bf16.xpose.msra.mxu0 0
        %1159 = vmatprep.subr.bf16.mxu0 0
        %1160 = vmatpush1.bf16.xpose.msra.mxu0 0
        %1161 = vmatprep.subr.bf16.mxu0 0
        %1162 = vmatpush1.bf16.xpose.msra.mxu0 0
        %1163 = vmatprep.subr.bf16.mxu0 0
        %1164 = vmatpush1.bf16.xpose.msra.mxu0 0
        %1165 = vmatprep.subr.bf16.mxu0 0
        %1166 = vmatpush1.bf16.xpose.msra.mxu0 0
        %1167 = vmatprep.subr.bf16.mxu0 0
        %1168 = vmatpush1.bf16.xpose.msra.mxu0 0
        %1169 = vmatprep.subr.bf16.mxu0 0
        %1170 = vmatpush1.bf16.xpose.msra.mxu0 0
        %1171 = vmatprep.subr.bf16.mxu0 0
        %1172 = vmatpush1.bf16.xpose.msra.mxu0 %v1155
        %1173 = vmatprep.subr.bf16.mxu0 0
        %1174 = vmatpush2.bf16.xpose.msra.mxu0 0
        %1175 = vmatprep.subr.bf16.mxu0 0
        %1176 = vmatpush2.bf16.xpose.msra.mxu0 0
        %1177 = vmatprep.subr.bf16.mxu0 0
        %1178 = vmatpush2.bf16.xpose.msra.mxu0 0
        %1179 = vmatprep.subr.bf16.mxu0 0
        %1180 = vmatpush2.bf16.xpose.msra.mxu0 0
        %1181 = vmatprep.subr.bf16.mxu0 0
        %1182 = vmatpush2.bf16.xpose.msra.mxu0 0
        %1183 = vmatprep.subr.bf16.mxu0 0
        %1184 = vmatpush2.bf16.xpose.msra.mxu0 0
        %1185 = vmatprep.subr.bf16.mxu0 0
        %1186 = vmatpush2.bf16.xpose.msra.mxu0 0
        %1187 = vmatprep.subr.bf16.mxu0 0
        %1188 = vmatpush2.bf16.xpose.msra.mxu0 0
        %1189 = vmatprep.mubr.bf16.mxu0 0
        %1190 = vmatmul.mubr.bf16.gmra.mxu0 %v1152
        %v1191 = vpop.f32.mrf.mxu0
        %v1192 = vadd.f32 %v1148, %v1191
        %v1193 = vpop.f32.mrf.mxu0
        %v1194 = vpop.f32.mrf.mxu0
        %v1195 = vpop.f32.mrf.mxu0
        %1196 = vdwg.mxu0
        %v1198 = vsel %vm1150, %v830, 0
        %v1201 = vsel %vm1150, %v989, 0
        %1203 = vmatprep.subr.bf16.mxu0 0
        %1204 = vmatpush1.bf16.xpose.msra.mxu0 0
        %1205 = vmatprep.subr.bf16.mxu0 0
        %1206 = vmatpush1.bf16.xpose.msra.mxu0 0
        %1207 = vmatprep.subr.bf16.mxu0 0
        %1208 = vmatpush1.bf16.xpose.msra.mxu0 0
        %1209 = vmatprep.subr.bf16.mxu0 0
        %1210 = vmatpush1.bf16.xpose.msra.mxu0 0
        %1211 = vmatprep.subr.bf16.mxu0 0
        %1212 = vmatpush1.bf16.xpose.msra.mxu0 0
        %1213 = vmatprep.subr.bf16.mxu0 0
        %1214 = vmatpush1.bf16.xpose.msra.mxu0 0
        %1215 = vmatprep.subr.bf16.mxu0 0
        %1216 = vmatpush1.bf16.xpose.msra.mxu0 0
        %1217 = vmatprep.subr.bf16.mxu0 0
        %1218 = vmatpush1.bf16.xpose.msra.mxu0 %v1201
        %1219 = vmatprep.subr.bf16.mxu0 0
        %1220 = vmatpush2.bf16.xpose.msra.mxu0 0
        %1221 = vmatprep.subr.bf16.mxu0 0
        %1222 = vmatpush2.bf16.xpose.msra.mxu0 0
        %1223 = vmatprep.subr.bf16.mxu0 0
        %1224 = vmatpush2.bf16.xpose.msra.mxu0 0
        %1225 = vmatprep.subr.bf16.mxu0 0
        %1226 = vmatpush2.bf16.xpose.msra.mxu0 0
        %1227 = vmatprep.subr.bf16.mxu0 0
        %1228 = vmatpush2.bf16.xpose.msra.mxu0 0
        %1229 = vmatprep.subr.bf16.mxu0 0
        %1230 = vmatpush2.bf16.xpose.msra.mxu0 0
        %1231 = vmatprep.subr.bf16.mxu0 0
        %1232 = vmatpush2.bf16.xpose.msra.mxu0 0
        %1233 = vmatprep.subr.bf16.mxu0 0
        %1234 = vmatpush2.bf16.xpose.msra.mxu0 0
        %1235 = vmatprep.mubr.bf16.mxu0 0
        %1236 = vmatmul.mubr.bf16.gmra.mxu0 %v1198
        %v1237 = vpop.f32.mrf.mxu0
        %v1238 = vadd.f32 %v1148, %v1237
        %v1239 = vpop.f32.mrf.mxu0
        %v1240 = vpop.f32.mrf.mxu0
        %v1241 = vpop.f32.mrf.mxu0
        %1242 = vdwg.mxu0
        %v1244 = vsel %vm1150, %v831, 0
        %v1247 = vsel %vm1150, %v990, 0
        %1249 = vmatprep.subr.bf16.mxu0 0
        %1250 = vmatpush1.bf16.xpose.msra.mxu0 0
        %1251 = vmatprep.subr.bf16.mxu0 0
        %1252 = vmatpush1.bf16.xpose.msra.mxu0 0
        %1253 = vmatprep.subr.bf16.mxu0 0
        %1254 = vmatpush1.bf16.xpose.msra.mxu0 0
        %1255 = vmatprep.subr.bf16.mxu0 0
        %1256 = vmatpush1.bf16.xpose.msra.mxu0 0
        %1257 = vmatprep.subr.bf16.mxu0 0
        %1258 = vmatpush1.bf16.xpose.msra.mxu0 0
        %1259 = vmatprep.subr.bf16.mxu0 0
        %1260 = vmatpush1.bf16.xpose.msra.mxu0 0
        %1261 = vmatprep.subr.bf16.mxu0 0
        %1262 = vmatpush1.bf16.xpose.msra.mxu0 0
        %1263 = vmatprep.subr.bf16.mxu0 0
        %1264 = vmatpush1.bf16.xpose.msra.mxu0 %v1247
        %1265 = vmatprep.subr.bf16.mxu0 0
        %1266 = vmatpush2.bf16.xpose.msra.mxu0 0
        %1267 = vmatprep.subr.bf16.mxu0 0
        %1268 = vmatpush2.bf16.xpose.msra.mxu0 0
        %1269 = vmatprep.subr.bf16.mxu0 0
        %1270 = vmatpush2.bf16.xpose.msra.mxu0 0
        %1271 = vmatprep.subr.bf16.mxu0 0
        %1272 = vmatpush2.bf16.xpose.msra.mxu0 0
        %1273 = vmatprep.subr.bf16.mxu0 0
        %1274 = vmatpush2.bf16.xpose.msra.mxu0 0
        %1275 = vmatprep.subr.bf16.mxu0 0
        %1276 = vmatpush2.bf16.xpose.msra.mxu0 0
        %1277 = vmatprep.subr.bf16.mxu0 0
        %1278 = vmatpush2.bf16.xpose.msra.mxu0 0
        %1279 = vmatprep.subr.bf16.mxu0 0
        %1280 = vmatpush2.bf16.xpose.msra.mxu0 0
        %1281 = vmatprep.mubr.bf16.mxu0 0
        %1282 = vmatmul.mubr.bf16.gmra.mxu0 %v1244
        %v1283 = vpop.f32.mrf.mxu0
        %v1284 = vadd.f32 %v1148, %v1283
        %v1285 = vpop.f32.mrf.mxu0
        %v1286 = vpop.f32.mrf.mxu0
        %v1287 = vpop.f32.mrf.mxu0
        %1288 = vdwg.mxu0
        %v1290 = vsel %vm1150, %v832, 0
        %v1293 = vsel %vm1150, %v991, 0
        %1295 = vmatprep.subr.bf16.mxu0 0
        %1296 = vmatpush1.bf16.xpose.msra.mxu0 0
        %1297 = vmatprep.subr.bf16.mxu0 0
        %1298 = vmatpush1.bf16.xpose.msra.mxu0 0
        %1299 = vmatprep.subr.bf16.mxu0 0
        %1300 = vmatpush1.bf16.xpose.msra.mxu0 0
        %1301 = vmatprep.subr.bf16.mxu0 0
        %1302 = vmatpush1.bf16.xpose.msra.mxu0 0
        %1303 = vmatprep.subr.bf16.mxu0 0
        %1304 = vmatpush1.bf16.xpose.msra.mxu0 0
        %1305 = vmatprep.subr.bf16.mxu0 0
        %1306 = vmatpush1.bf16.xpose.msra.mxu0 0
        %1307 = vmatprep.subr.bf16.mxu0 0
        %1308 = vmatpush1.bf16.xpose.msra.mxu0 0
        %1309 = vmatprep.subr.bf16.mxu0 0
        %1310 = vmatpush1.bf16.xpose.msra.mxu0 %v1293
        %1311 = vmatprep.subr.bf16.mxu0 0
        %1312 = vmatpush2.bf16.xpose.msra.mxu0 0
        %1313 = vmatprep.subr.bf16.mxu0 0
        %1314 = vmatpush2.bf16.xpose.msra.mxu0 0
        %1315 = vmatprep.subr.bf16.mxu0 0
        %1316 = vmatpush2.bf16.xpose.msra.mxu0 0
        %1317 = vmatprep.subr.bf16.mxu0 0
        %1318 = vmatpush2.bf16.xpose.msra.mxu0 0
        %1319 = vmatprep.subr.bf16.mxu0 0
        %1320 = vmatpush2.bf16.xpose.msra.mxu0 0
        %1321 = vmatprep.subr.bf16.mxu0 0
        %1322 = vmatpush2.bf16.xpose.msra.mxu0 0
        %1323 = vmatprep.subr.bf16.mxu0 0
        %1324 = vmatpush2.bf16.xpose.msra.mxu0 0
        %1325 = vmatprep.subr.bf16.mxu0 0
        %1326 = vmatpush2.bf16.xpose.msra.mxu0 0
        %1327 = vmatprep.mubr.bf16.mxu0 0
        %1328 = vmatmul.mubr.bf16.gmra.mxu0 %v1290
        %v1329 = vpop.f32.mrf.mxu0
        %v1330 = vadd.f32 %v1148, %v1329
        %v1331 = vpop.f32.mrf.mxu0
        %v1332 = vpop.f32.mrf.mxu0
        %v1333 = vpop.f32.mrf.mxu0
        %1334 = vdwg.mxu0
        %v1335 = vsel %vm1150, %v1192, -inf
        %1336 = vmax.xlane.f32.xlu0 %v1335
        %v1337 = vpop.xlane.xlu0 %1336
        %v1338 = vsel %vm1150, %v1238, -inf
        %1339 = vmax.xlane.f32.xlu0 %v1338
        %v1340 = vpop.xlane.xlu0 %1339
        %v1341 = vsel %vm1150, %v1284, -inf
        %1342 = vmax.xlane.f32.xlu0 %v1341
        %v1343 = vpop.xlane.xlu0 %1342
        %v1344 = vsel %vm1150, %v1330, -inf
        %1345 = vmax.xlane.f32.xlu0 %v1344
        %v1346 = vpop.xlane.xlu0 %1345
        %v1347 = vsub.f32 %v1192, %v1337
        %v1348 = vsub.f32 %v1238, %v1340
        %v1349 = vsub.f32 %v1284, %v1343
        %v1350 = vsub.f32 %v1330, %v1346
        %v1351 = vmul.f32 %v1347, 1.442695
        %v1352 = vpow.pop %v1351
        %v1353 = vmul.f32 %v1348, 1.442695
        %v1354 = vpow.pop %v1353
        %v1355 = vmul.f32 %v1349, 1.442695
        %v1356 = vpow.pop %v1355
        %v1357 = vmul.f32 %v1350, 1.442695
        %v1358 = vpow.pop %v1357
        %v1359 = vsel %vm1150, %v1352, 0.0
        %1360 = vadd.xlane.f32.xlu0 %v1359
        %v1361 = vpop.xlane.xlu0 %1360
        %v1362 = vsel %vm1150, %v1354, 0.0
        %1363 = vadd.xlane.f32.xlu0 %v1362
        %v1364 = vpop.xlane.xlu0 %1363
        %v1365 = vsel %vm1150, %v1356, 0.0
        %1366 = vadd.xlane.f32.xlu0 %v1365
        %v1367 = vpop.xlane.xlu0 %1366
        %v1368 = vsel %vm1150, %v1358, 0.0
        %1369 = vadd.xlane.f32.xlu0 %v1368
        %v1370 = vpop.xlane.xlu0 %1369
        %v1371 = vrcp.pop %v1361
        %v1372 = vrcp.pop %v1364
        %v1373 = vrcp.pop %v1367
        %v1374 = vrcp.pop %v1370
        %v1375 = vmul.f32 %v1352, %v1371
        %v1376 = vmul.f32 %v1354, %v1372
        %v1377 = vmul.f32 %v1356, %v1373
        %v1378 = vmul.f32 %v1358, %v1374
        %v1379 = vpack.c.bf16 %v1375, %v1375
        %v1380 = vpack.c.bf16 %v1376, %v1376
        %v1381 = vpack.c.bf16 %v1377, %v1377
        %v1382 = vpack.c.bf16 %v1378, %v1378
        %v1384 = vsel %vm1150, %v1379, 0
        %vm1386 = vcmask 1043456
        %v1388 = vsel %vm1386, %v1140, 0
        %1390 = vmatprep.subr.bf16.mxu0 0
        %1391 = vmatpush1.bf16.msra.mxu0 0
        %1392 = vmatprep.subr.bf16.mxu0 0
        %1393 = vmatpush1.bf16.msra.mxu0 0
        %1394 = vmatprep.subr.bf16.mxu0 0
        %1395 = vmatpush1.bf16.msra.mxu0 0
        %1396 = vmatprep.subr.bf16.mxu0 0
        %1397 = vmatpush1.bf16.msra.mxu0 0
        %1398 = vmatprep.subr.bf16.mxu0 0
        %1399 = vmatpush1.bf16.msra.mxu0 0
        %1400 = vmatprep.subr.bf16.mxu0 0
        %1401 = vmatpush1.bf16.msra.mxu0 0
        %1402 = vmatprep.subr.bf16.mxu0 0
        %1403 = vmatpush1.bf16.msra.mxu0 0
        %1404 = vmatprep.subr.bf16.mxu0 0
        %1405 = vmatpush1.bf16.msra.mxu0 %v1388
        %1406 = vmatprep.subr.bf16.mxu0 0
        %1407 = vmatpush2.bf16.msra.mxu0 0
        %1408 = vmatprep.subr.bf16.mxu0 0
        %1409 = vmatpush2.bf16.msra.mxu0 0
        %1410 = vmatprep.subr.bf16.mxu0 0
        %1411 = vmatpush2.bf16.msra.mxu0 0
        %1412 = vmatprep.subr.bf16.mxu0 0
        %1413 = vmatpush2.bf16.msra.mxu0 0
        %1414 = vmatprep.subr.bf16.mxu0 0
        %1415 = vmatpush2.bf16.msra.mxu0 0
        %1416 = vmatprep.subr.bf16.mxu0 0
        %1417 = vmatpush2.bf16.msra.mxu0 0
        %1418 = vmatprep.subr.bf16.mxu0 0
        %1419 = vmatpush2.bf16.msra.mxu0 0
        %1420 = vmatprep.subr.bf16.mxu0 0
        %1421 = vmatpush2.bf16.msra.mxu0 0
        %1422 = vmatprep.mubr.bf16.mxu0 0
        %1423 = vmatmul.mubr.bf16.gmra.mxu0 %v1384
        %v1424 = vpop.f32.mrf.mxu0
        %v1425 = vadd.f32 0.0, %v1424
        %v1426 = vpop.f32.mrf.mxu0
        %v1427 = vpop.f32.mrf.mxu0
        %v1428 = vpop.f32.mrf.mxu0
        %1429 = vdwg.mxu0
        %v1431 = vsel %vm1150, %v1380, 0
        %v1434 = vsel %vm1386, %v1141, 0
        %1436 = vmatprep.subr.bf16.mxu0 0
        %1437 = vmatpush1.bf16.msra.mxu0 0
        %1438 = vmatprep.subr.bf16.mxu0 0
        %1439 = vmatpush1.bf16.msra.mxu0 0
        %1440 = vmatprep.subr.bf16.mxu0 0
        %1441 = vmatpush1.bf16.msra.mxu0 0
        %1442 = vmatprep.subr.bf16.mxu0 0
        %1443 = vmatpush1.bf16.msra.mxu0 0
        %1444 = vmatprep.subr.bf16.mxu0 0
        %1445 = vmatpush1.bf16.msra.mxu0 0
        %1446 = vmatprep.subr.bf16.mxu0 0
        %1447 = vmatpush1.bf16.msra.mxu0 0
        %1448 = vmatprep.subr.bf16.mxu0 0
        %1449 = vmatpush1.bf16.msra.mxu0 0
        %1450 = vmatprep.subr.bf16.mxu0 0
        %1451 = vmatpush1.bf16.msra.mxu0 %v1434
        %1452 = vmatprep.subr.bf16.mxu0 0
        %1453 = vmatpush2.bf16.msra.mxu0 0
        %1454 = vmatprep.subr.bf16.mxu0 0
        %1455 = vmatpush2.bf16.msra.mxu0 0
        %1456 = vmatprep.subr.bf16.mxu0 0
        %1457 = vmatpush2.bf16.msra.mxu0 0
        %1458 = vmatprep.subr.bf16.mxu0 0
        %1459 = vmatpush2.bf16.msra.mxu0 0
        %1460 = vmatprep.subr.bf16.mxu0 0
        %1461 = vmatpush2.bf16.msra.mxu0 0
        %1462 = vmatprep.subr.bf16.mxu0 0
        %1463 = vmatpush2.bf16.msra.mxu0 0
        %1464 = vmatprep.subr.bf16.mxu0 0
        %1465 = vmatpush2.bf16.msra.mxu0 0
        %1466 = vmatprep.subr.bf16.mxu0 0
        %1467 = vmatpush2.bf16.msra.mxu0 0
        %1468 = vmatprep.mubr.bf16.mxu0 0
        %1469 = vmatmul.mubr.bf16.gmra.mxu0 %v1431
        %v1470 = vpop.f32.mrf.mxu0
        %v1471 = vadd.f32 0.0, %v1470
        %v1472 = vpop.f32.mrf.mxu0
        %v1473 = vpop.f32.mrf.mxu0
        %v1474 = vpop.f32.mrf.mxu0
        %1475 = vdwg.mxu0
        %v1477 = vsel %vm1150, %v1381, 0
        %v1480 = vsel %vm1386, %v1142, 0
        %1482 = vmatprep.subr.bf16.mxu0 0
        %1483 = vmatpush1.bf16.msra.mxu0 0
        %1484 = vmatprep.subr.bf16.mxu0 0
        %1485 = vmatpush1.bf16.msra.mxu0 0
        %1486 = vmatprep.subr.bf16.mxu0 0
        %1487 = vmatpush1.bf16.msra.mxu0 0
        %1488 = vmatprep.subr.bf16.mxu0 0
        %1489 = vmatpush1.bf16.msra.mxu0 0
        %1490 = vmatprep.subr.bf16.mxu0 0
        %1491 = vmatpush1.bf16.msra.mxu0 0
        %1492 = vmatprep.subr.bf16.mxu0 0
        %1493 = vmatpush1.bf16.msra.mxu0 0
        %1494 = vmatprep.subr.bf16.mxu0 0
        %1495 = vmatpush1.bf16.msra.mxu0 0
        %1496 = vmatprep.subr.bf16.mxu0 0
        %1497 = vmatpush1.bf16.msra.mxu0 %v1480
        %1498 = vmatprep.subr.bf16.mxu0 0
        %1499 = vmatpush2.bf16.msra.mxu0 0
        %1500 = vmatprep.subr.bf16.mxu0 0
        %1501 = vmatpush2.bf16.msra.mxu0 0
        %1502 = vmatprep.subr.bf16.mxu0 0
        %1503 = vmatpush2.bf16.msra.mxu0 0
        %1504 = vmatprep.subr.bf16.mxu0 0
        %1505 = vmatpush2.bf16.msra.mxu0 0
        %1506 = vmatprep.subr.bf16.mxu0 0
        %1507 = vmatpush2.bf16.msra.mxu0 0
        %1508 = vmatprep.subr.bf16.mxu0 0
        %1509 = vmatpush2.bf16.msra.mxu0 0
        %1510 = vmatprep.subr.bf16.mxu0 0
        %1511 = vmatpush2.bf16.msra.mxu0 0
        %1512 = vmatprep.subr.bf16.mxu0 0
        %1513 = vmatpush2.bf16.msra.mxu0 0
        %1514 = vmatprep.mubr.bf16.mxu0 0
        %1515 = vmatmul.mubr.bf16.gmra.mxu0 %v1477
        %v1516 = vpop.f32.mrf.mxu0
        %v1517 = vadd.f32 0.0, %v1516
        %v1518 = vpop.f32.mrf.mxu0
        %v1519 = vpop.f32.mrf.mxu0
        %v1520 = vpop.f32.mrf.mxu0
        %1521 = vdwg.mxu0
        %v1523 = vsel %vm1150, %v1382, 0
        %v1526 = vsel %vm1386, %v1143, 0
        %1528 = vmatprep.subr.bf16.mxu0 0
        %1529 = vmatpush1.bf16.msra.mxu0 0
        %1530 = vmatprep.subr.bf16.mxu0 0
        %1531 = vmatpush1.bf16.msra.mxu0 0
        %1532 = vmatprep.subr.bf16.mxu0 0
        %1533 = vmatpush1.bf16.msra.mxu0 0
        %1534 = vmatprep.subr.bf16.mxu0 0
        %1535 = vmatpush1.bf16.msra.mxu0 0
        %1536 = vmatprep.subr.bf16.mxu0 0
        %1537 = vmatpush1.bf16.msra.mxu0 0
        %1538 = vmatprep.subr.bf16.mxu0 0
        %1539 = vmatpush1.bf16.msra.mxu0 0
        %1540 = vmatprep.subr.bf16.mxu0 0
        %1541 = vmatpush1.bf16.msra.mxu0 0
        %1542 = vmatprep.subr.bf16.mxu0 0
        %1543 = vmatpush1.bf16.msra.mxu0 %v1526
        %1544 = vmatprep.subr.bf16.mxu0 0
        %1545 = vmatpush2.bf16.msra.mxu0 0
        %1546 = vmatprep.subr.bf16.mxu0 0
        %1547 = vmatpush2.bf16.msra.mxu0 0
        %1548 = vmatprep.subr.bf16.mxu0 0
        %1549 = vmatpush2.bf16.msra.mxu0 0
        %1550 = vmatprep.subr.bf16.mxu0 0
        %1551 = vmatpush2.bf16.msra.mxu0 0
        %1552 = vmatprep.subr.bf16.mxu0 0
        %1553 = vmatpush2.bf16.msra.mxu0 0
        %1554 = vmatprep.subr.bf16.mxu0 0
        %1555 = vmatpush2.bf16.msra.mxu0 0
        %1556 = vmatprep.subr.bf16.mxu0 0
        %1557 = vmatpush2.bf16.msra.mxu0 0
        %1558 = vmatprep.subr.bf16.mxu0 0
        %1559 = vmatpush2.bf16.msra.mxu0 0
        %1560 = vmatprep.mubr.bf16.mxu0 0
        %1561 = vmatmul.mubr.bf16.gmra.mxu0 %v1523
        %v1562 = vpop.f32.mrf.mxu0
        %v1563 = vadd.f32 0.0, %v1562
        %v1564 = vpop.f32.mrf.mxu0
        %v1565 = vpop.f32.mrf.mxu0
        %v1566 = vpop.f32.mrf.mxu0
        %1567 = vdwg.mxu0
        %v1568 = vcombine.low %v1425, %v1517
        %v1569 = vcombine.high %v1425, %v1517
        %v1571 = vunpack.c.l.s4 1983009808
        %v1572 = vunpack.c.0.s8 %v1571
        %v1573 = vlaneseq
        %v1574 = vshrl.u32 %v1573, 7
        %v1575 = vsub.s32 %v1572, %v1574
        %v1576 = vrot.slane %v1568, %v1575
        %v1578 = vunpack.c.l.s4 1983009808
        %v1579 = vunpack.c.0.s8 %v1578
        %v1580 = vlaneseq
        %v1581 = vshrl.u32 %v1580, 7
        %v1582 = vsub.s32 %v1579, %v1581
        %v1583 = vrot.slane %v1569, %v1582
        %v1584 = vcombine.low %v1471, %v1563
        %v1585 = vcombine.high %v1471, %v1563
        %v1587 = vunpack.c.l.s4 1983009808
        %v1588 = vunpack.c.0.s8 %v1587
        %v1589 = vlaneseq
        %v1590 = vshrl.u32 %v1589, 7
        %v1591 = vsub.s32 %v1588, %v1590
        %v1592 = vrot.slane %v1584, %v1591
        %v1594 = vunpack.c.l.s4 1983009808
        %v1595 = vunpack.c.0.s8 %v1594
        %v1596 = vlaneseq
        %v1597 = vshrl.u32 %v1596, 7
        %v1598 = vsub.s32 %v1595, %v1597
        %v1599 = vrot.slane %v1585, %v1598
        %v1600 = vcombine.low %v1576, %v1592
        %v1601 = vcombine.high %v1576, %v1592
        %v1603 = vunpack.c.l.s4 1934713408
        %v1604 = vunpack.c.0.s8 %v1603
        %v1605 = vlaneseq
        %v1606 = vshrl.u32 %v1605, 7
        %v1607 = vsub.s32 %v1604, %v1606
        %v1608 = vrot.slane %v1600, %v1607
        %v1610 = vunpack.c.l.s4 1934713408
        %v1611 = vunpack.c.0.s8 %v1610
        %v1612 = vlaneseq
        %v1613 = vshrl.u32 %v1612, 7
        %v1614 = vsub.s32 %v1611, %v1613
        %v1615 = vrot.slane %v1601, %v1614
        %v1616 = vcombine.low %v1583, %v1599
        %v1617 = vcombine.high %v1583, %v1599
        %v1619 = vunpack.c.l.s4 1934713408
        %v1620 = vunpack.c.0.s8 %v1619
        %v1621 = vlaneseq
        %v1622 = vshrl.u32 %v1621, 7
        %v1623 = vsub.s32 %v1620, %v1622
        %v1624 = vrot.slane %v1616, %v1623
        %v1626 = vunpack.c.l.s4 1934713408
        %v1627 = vunpack.c.0.s8 %v1626
        %v1628 = vlaneseq
        %v1629 = vshrl.u32 %v1628, 7
        %v1630 = vsub.s32 %v1627, %v1629
        %v1631 = vrot.slane %v1617, %v1630
        %v1632 = vcombine.high %v1608, 0.0
        %v1633 = vcombine.high %v1615, 0.0
        %v1634 = vcombine.high %v1624, 0.0
        %v1635 = vcombine.high %v1631, 0.0
        %v1636 = vcombine.low %v1608, %v1615
        %v1638 = vunpack.c.l.s4 1983009808
        %v1639 = vunpack.c.0.s8 %v1638
        %v1640 = vlaneseq
        %v1641 = vshrl.u32 %v1640, 7
        %v1642 = vsub.s32 %v1639, %v1641
        %v1643 = vrot.slane %v1636, %v1642
        %v1644 = vcombine.low %v1632, %v1633
        %v1646 = vunpack.c.l.s4 1983009808
        %v1647 = vunpack.c.0.s8 %v1646
        %v1648 = vlaneseq
        %v1649 = vshrl.u32 %v1648, 7
        %v1650 = vsub.s32 %v1647, %v1649
        %v1651 = vrot.slane %v1644, %v1650
        %v1652 = vcombine.low %v1624, %v1631
        %v1654 = vunpack.c.l.s4 1983009808
        %v1655 = vunpack.c.0.s8 %v1654
        %v1656 = vlaneseq
        %v1657 = vshrl.u32 %v1656, 7
        %v1658 = vsub.s32 %v1655, %v1657
        %v1659 = vrot.slane %v1652, %v1658
        %v1660 = vcombine.low %v1634, %v1635
        %v1662 = vunpack.c.l.s4 1983009808
        %v1663 = vunpack.c.0.s8 %v1662
        %v1664 = vlaneseq
        %v1665 = vshrl.u32 %v1664, 7
        %v1666 = vsub.s32 %v1663, %v1665
        %v1667 = vrot.slane %v1660, %v1666
        %v1668 = vcombine.low %v1643, %v1651
        %v1669 = vcombine.high %v1643, %v1651
        %v1671 = vunpack.c.l.s4 1934713408
        %v1672 = vunpack.c.0.s8 %v1671
        %v1673 = vlaneseq
        %v1674 = vshrl.u32 %v1673, 7
        %v1675 = vsub.s32 %v1672, %v1674
        %v1676 = vrot.slane %v1668, %v1675
        %v1678 = vunpack.c.l.s4 1934713408
        %v1679 = vunpack.c.0.s8 %v1678
        %v1680 = vlaneseq
        %v1681 = vshrl.u32 %v1680, 7
        %v1682 = vsub.s32 %v1679, %v1681
        %v1683 = vrot.slane %v1669, %v1682
        %v1684 = vcombine.low %v1659, %v1667
        %v1685 = vcombine.high %v1659, %v1667
        %v1687 = vunpack.c.l.s4 1934713408
        %v1688 = vunpack.c.0.s8 %v1687
        %v1689 = vlaneseq
        %v1690 = vshrl.u32 %v1689, 7
        %v1691 = vsub.s32 %v1688, %v1690
        %v1692 = vrot.slane %v1684, %v1691
        %v1694 = vunpack.c.l.s4 1934713408
        %v1695 = vunpack.c.0.s8 %v1694
        %v1696 = vlaneseq
        %v1697 = vshrl.u32 %v1696, 7
        %v1698 = vsub.s32 %v1695, %v1697
        %v1699 = vrot.slane %v1685, %v1698
        %v1700 = vcombine.low %v1676, %v1692
        %v1701 = vcombine.high %v1676, %v1692
        %v1702 = vcombine.low %v1683, %v1699
        %v1703 = vcombine.high %v1683, %v1699
        %1705 = vrot.lane.b32.xlu0 %v1701, 8
        %v1706 = vpop.permute.xlu0 %1705
        %1709 = vrot.lane.b32.xlu0 %v1702, 16
        %v1710 = vpop.permute.xlu0 %1709
        %1713 = vrot.lane.b32.xlu0 %v1703, 24
        %v1714 = vpop.permute.xlu0 %1713
        %v1716 = vsel %vm1150, %v1700, %v1706
        %vm1717 = vcmask 130048
        %v1718 = vsel %vm1717, %v1716, %v1710
        %vm1719 = vcmask 195584
        %v1720 = vsel %vm1719, %v1718, %v1714
        %v1721 = vpack.c.bf16 %v1720, %v1720
        %v1722 = vld [vmem:[%s6] sm:$0xf]
        %v1723 = vld [vmem:[%s6 + $0x4] sm:$0xf]
        %v1724 = vld [vmem:[%s6 + $0x8] sm:$0xf]
        %v1725 = vld [vmem:[%s6 + $0xc] sm:$0xf]
        %v1726 = vld [vmem:[#allocation10] sm:$0x1]
        %v1728 = vlaneseq
        %v1729 = vshrl.u32 %v1728, 7
        %v1730 = vsub.s32 0, %v1729
        %v1731 = vrot.slane %v1726, %v1730
        %v1737 = vunpack.c.l.b16 %v1722
        %v1738 = vunpack.c.l.b16 %v1723
        %v1739 = vunpack.c.l.b16 %v1724
        %v1740 = vunpack.c.l.b16 %v1725
        %v1741 = vpack.c.b16 %v1738, %v1737
        %v1742 = vpack.c.b16 %v1740, %v1739
        %v1746 = vsel %vm579, %v1721, 0
        %1748 = vmatprep.subr.bf16.mxu0 0
        %1749 = vmatpush1.bf16.msra.mxu0 0
        %1750 = vmatprep.subr.bf16.mxu0 0
        %1751 = vmatpush1.bf16.msra.mxu0 0
        %1752 = vmatprep.subr.bf16.mxu0 0
        %1753 = vmatpush1.bf16.msra.mxu0 0
        %1754 = vmatprep.subr.bf16.mxu0 0
        %1755 = vmatpush1.bf16.msra.mxu0 0
        %1756 = vmatprep.subr.bf16.mxu0 0
        %1757 = vmatpush1.bf16.msra.mxu0 0
        %1758 = vmatprep.subr.bf16.mxu0 0
        %1759 = vmatpush1.bf16.msra.mxu0 0
        %1760 = vmatprep.subr.bf16.mxu0 0
        %1761 = vmatpush1.bf16.msra.mxu0 %v1742
        %1762 = vmatprep.subr.bf16.mxu0 0
        %1763 = vmatpush1.bf16.msra.mxu0 %v1741
        %1764 = vmatprep.subr.bf16.mxu0 0
        %1765 = vmatpush2.bf16.msra.mxu0 0
        %1766 = vmatprep.subr.bf16.mxu0 0
        %1767 = vmatpush2.bf16.msra.mxu0 0
        %1768 = vmatprep.subr.bf16.mxu0 0
        %1769 = vmatpush2.bf16.msra.mxu0 0
        %1770 = vmatprep.subr.bf16.mxu0 0
        %1771 = vmatpush2.bf16.msra.mxu0 0
        %1772 = vmatprep.subr.bf16.mxu0 0
        %1773 = vmatpush2.bf16.msra.mxu0 0
        %1774 = vmatprep.subr.bf16.mxu0 0
        %1775 = vmatpush2.bf16.msra.mxu0 0
        %1776 = vmatprep.subr.bf16.mxu0 0
        %1777 = vmatpush2.bf16.msra.mxu0 0
        %1778 = vmatprep.subr.bf16.mxu0 0
        %1779 = vmatpush2.bf16.msra.mxu0 0
        %1780 = vmatprep.mubr.bf16.mxu0 0
        %1781 = vmatmul.mubr.bf16.gmra.mxu0 %v1746
        %v1782 = vpop.f32.mrf.mxu0
        %v1783 = vadd.f32 %v1731, %v1782
        %v1784 = vpop.f32.mrf.mxu0
        %v1785 = vpop.f32.mrf.mxu0
        %v1786 = vpop.f32.mrf.mxu0
        %1787 = vdwg.mxu0
        %v1788 = vadd.f32 %v573, %v1783
        %v1789 = vld [vmem:[#allocation11] sm:$0x1]
        %v1790 = vld [vmem:[#allocation13] sm:$0x1]
        %v1791 = vsel %vm579, %v1788, 0.0
        %1792 = vadd.xlane.f32.xlu0 %v1791
        %v1793 = vpop.xlane.xlu0 %1792
        %v1794 = vmul.f32 %v1793, %v583
        %v1795 = vsub.f32 %v1788, %v1794
        %v1796 = vmul.f32 %v1795, %v1795
        %v1797 = vsel %vm579, %v1796, 0.0
        %1798 = vadd.xlane.f32.xlu0 %v1797
        %v1799 = vpop.xlane.xlu0 %1798
        %v1800 = vmul.f32 %v1799, 0.032258064
        %v1801 = vrsqrt.pop %v1800
        %v1802 = vmul.f32 %v1800, %v1801
        %vm1803 = vcmp.eq.f32.partialorder %v1800, inf
        %v1804 = vsel %vm1803, %v1800, %v1802
        %vm1805 = vcmp.eq.f32.partialorder %v1800, 0.0
        %v1806 = vand.u32 %v1800, 2147483648
        %v1807 = vsel %vm1805, %v1806, %v1804
        %v1808 = vadd.f32 %v1807, 1e-06
        %v1809 = vrcp.pop %v1808
        %v1811 = vlaneseq
        %v1812 = vshrl.u32 %v1811, 7
        %v1813 = vsub.s32 0, %v1812
        %v1814 = vrot.slane %v1789, %v1813
        %v1816 = vmul.f32 %v1814, %v1795
        %v1817 = vmul.f32 %v1816, %v1809
        %v1819 = vlaneseq
        %v1820 = vshrl.u32 %v1819, 7
        %v1821 = vsub.s32 0, %v1820
        %v1822 = vrot.slane %v1790, %v1821
        %v1824 = vadd.f32 %v1817, %v1822
        %v1825 = vpack.c.bf16 %v1824, %v1824
        %v1826 = vld [vmem:[%s10] sm:$0xf]
        %v1827 = vld [vmem:[%s10 + $0x4] sm:$0xf]
        %v1828 = vld [vmem:[%s10 + $0x8] sm:$0xf]
        %v1829 = vld [vmem:[%s10 + $0xc] sm:$0xf]
        %v1830 = vld [vmem:[%s11] sm:$0x1]
        %v1832 = vlaneseq
        %v1833 = vshrl.u32 %v1832, 7
        %v1834 = vsub.s32 0, %v1833
        %v1835 = vrot.slane %v1830, %v1834
        %v1841 = vunpack.c.l.b16 %v1826
        %v1842 = vunpack.c.l.b16 %v1827
        %v1843 = vunpack.c.l.b16 %v1828
        %v1844 = vunpack.c.l.b16 %v1829
        %v1845 = vpack.c.b16 %v1842, %v1841
        %v1846 = vpack.c.b16 %v1844, %v1843
        %v1850 = vsel %vm579, %v1825, 0
        %1852 = vmatprep.subr.bf16.mxu0 0
        %1853 = vmatpush1.bf16.msra.mxu0 0
        %1854 = vmatprep.subr.bf16.mxu0 0
        %1855 = vmatpush1.bf16.msra.mxu0 0
        %1856 = vmatprep.subr.bf16.mxu0 0
        %1857 = vmatpush1.bf16.msra.mxu0 0
        %1858 = vmatprep.subr.bf16.mxu0 0
        %1859 = vmatpush1.bf16.msra.mxu0 0
        %1860 = vmatprep.subr.bf16.mxu0 0
        %1861 = vmatpush1.bf16.msra.mxu0 0
        %1862 = vmatprep.subr.bf16.mxu0 0
        %1863 = vmatpush1.bf16.msra.mxu0 0
        %1864 = vmatprep.subr.bf16.mxu0 0
        %1865 = vmatpush1.bf16.msra.mxu0 %v1846
        %1866 = vmatprep.subr.bf16.mxu0 0
        %1867 = vmatpush1.bf16.msra.mxu0 %v1845
        %1868 = vmatprep.subr.bf16.mxu0 0
        %1869 = vmatpush2.bf16.msra.mxu0 0
        %1870 = vmatprep.subr.bf16.mxu0 0
        %1871 = vmatpush2.bf16.msra.mxu0 0
        %1872 = vmatprep.subr.bf16.mxu0 0
        %1873 = vmatpush2.bf16.msra.mxu0 0
        %1874 = vmatprep.subr.bf16.mxu0 0
        %1875 = vmatpush2.bf16.msra.mxu0 0
        %1876 = vmatprep.subr.bf16.mxu0 0
        %1877 = vmatpush2.bf16.msra.mxu0 0
        %1878 = vmatprep.subr.bf16.mxu0 0
        %1879 = vmatpush2.bf16.msra.mxu0 0
        %1880 = vmatprep.subr.bf16.mxu0 0
        %1881 = vmatpush2.bf16.msra.mxu0 0
        %1882 = vmatprep.subr.bf16.mxu0 0
        %1883 = vmatpush2.bf16.msra.mxu0 0
        %1884 = vmatprep.mubr.bf16.mxu0 0
        %1885 = vmatmul.mubr.bf16.gmra.mxu0 %v1850
        %v1886 = vpop.f32.mrf.mxu0
        %v1887 = vadd.f32 %v1835, %v1886
        %v1888 = vpop.f32.mrf.mxu0
        %v1889 = vpop.f32.mrf.mxu0
        %v1890 = vpop.f32.mrf.mxu0
        %1891 = vdwg.mxu0
        %v1892 = vmax.f32 %v1887, 0.0
        %v1893 = vpack.c.bf16 %v1892, %v1892
        %v1894 = vld [vmem:[%s12] sm:$0xf]
        %v1895 = vld [vmem:[%s12 + $0x4] sm:$0xf]
        %v1896 = vld [vmem:[%s12 + $0x8] sm:$0xf]
        %v1897 = vld [vmem:[%s12 + $0xc] sm:$0xf]
        %v1898 = vld [vmem:[%s12 + $0x10] sm:$0xf]
        %v1899 = vld [vmem:[%s12 + $0x14] sm:$0xf]
        %v1900 = vld [vmem:[%s12 + $0x18] sm:$0xf]
        %v1901 = vld [vmem:[%s12 + $0x1c] sm:$0xf]
        %v1902 = vld [vmem:[%s13] sm:$0x1]
        %v1904 = vlaneseq
        %v1905 = vshrl.u32 %v1904, 7
        %v1906 = vsub.s32 0, %v1905
        %v1907 = vrot.slane %v1902, %v1906
        %v1917 = vunpack.c.l.b16 %v1894
        %v1918 = vunpack.c.l.b16 %v1895
        %v1919 = vunpack.c.l.b16 %v1896
        %v1920 = vunpack.c.l.b16 %v1897
        %v1921 = vunpack.c.l.b16 %v1898
        %v1922 = vunpack.c.l.b16 %v1899
        %v1923 = vunpack.c.l.b16 %v1900
        %v1924 = vunpack.c.l.b16 %v1901
        %v1925 = vpack.c.b16 %v1918, %v1917
        %v1926 = vpack.c.b16 %v1920, %v1919
        %v1927 = vpack.c.b16 %v1922, %v1921
        %v1928 = vpack.c.b16 %v1924, %v1923
        %vm1933 = vcmask 523264
        %v1935 = vsel %vm1933, %v1893, 0
        %1937 = vmatprep.subr.bf16.mxu0 0
        %1938 = vmatpush1.bf16.msra.mxu0 0
        %1939 = vmatprep.subr.bf16.mxu0 0
        %1940 = vmatpush1.bf16.msra.mxu0 0
        %1941 = vmatprep.subr.bf16.mxu0 0
        %1942 = vmatpush1.bf16.msra.mxu0 0
        %1943 = vmatprep.subr.bf16.mxu0 0
        %1944 = vmatpush1.bf16.msra.mxu0 0
        %1945 = vmatprep.subr.bf16.mxu0 0
        %1946 = vmatpush1.bf16.msra.mxu0 %v1928
        %1947 = vmatprep.subr.bf16.mxu0 0
        %1948 = vmatpush1.bf16.msra.mxu0 %v1927
        %1949 = vmatprep.subr.bf16.mxu0 0
        %1950 = vmatpush1.bf16.msra.mxu0 %v1926
        %1951 = vmatprep.subr.bf16.mxu0 0
        %1952 = vmatpush1.bf16.msra.mxu0 %v1925
        %1953 = vmatprep.subr.bf16.mxu0 0
        %1954 = vmatpush2.bf16.msra.mxu0 0
        %1955 = vmatprep.subr.bf16.mxu0 0
        %1956 = vmatpush2.bf16.msra.mxu0 0
        %1957 = vmatprep.subr.bf16.mxu0 0
        %1958 = vmatpush2.bf16.msra.mxu0 0
        %1959 = vmatprep.subr.bf16.mxu0 0
        %1960 = vmatpush2.bf16.msra.mxu0 0
        %1961 = vmatprep.subr.bf16.mxu0 0
        %1962 = vmatpush2.bf16.msra.mxu0 0
        %1963 = vmatprep.subr.bf16.mxu0 0
        %1964 = vmatpush2.bf16.msra.mxu0 0
        %1965 = vmatprep.subr.bf16.mxu0 0
        %1966 = vmatpush2.bf16.msra.mxu0 0
        %1967 = vmatprep.subr.bf16.mxu0 0
        %1968 = vmatpush2.bf16.msra.mxu0 0
        %1969 = vmatprep.mubr.bf16.mxu0 0
        %1970 = vmatmul.mubr.bf16.gmra.mxu0 %v1935
        %v1971 = vpop.f32.mrf.mxu0
        %v1972 = vadd.f32 %v1907, %v1971
        %v1973 = vpop.f32.mrf.mxu0
        %v1974 = vpop.f32.mrf.mxu0
        %v1975 = vpop.f32.mrf.mxu0
        %1976 = vdwg.mxu0
        %v1977 = vadd.f32 %v1788, %v1972
        %1978 = vst.msk [vmem:[%s567] sm:$0xff] %vm579, %v1977
        %s1979 = sand.u32 %s346, 1
        %s1980 = scalar_lea.sflag [#allocation4], %s1979
        %s1981 = sand.u32 %s346, 1
        %s1982 = smul.addr %s1981, 8
        %s1983 = scalar_lea.vmem [#allocation14], %s1982
        // Predicated region
        $region105: #{tpu_custom_call.1} parent=75 // pred_check
          %p1984 = pneg %p356
        $region106: #{tpu_custom_call.1} parent=75 // pred_check_branch
          %1986 = sbr.rel (%p1984) target = $region108
        $region107: #{tpu_custom_call.1} parent=75 // pred_region
          %s1988 = ssub.s32 128, 128
          %1989 = vsyncadd %s1980, %s1988
          %s1990 = smul.addr %s34, 128
          %s1991 = scalar_lea.hbm %s14, %s1990
          %s1993 = sshll.u32 %s1983, 4
          %s1994 = int_to_ptr.vmem [resolvable:$true] %s1993
          %1996 = dma.vmem_to_hbm [thread:$0]  %s1994, 128, %s1991, %s1980
        $region108: #{tpu_custom_call.1} parent=75 // pred_fallthru
          _
      $region76: #{tpu_custom_call.1} parent=5 // pred_fallthru
        _
      %p1997 = scmp.le.s32.totalorder 2, %s29
      // Predicated region
      $region109: #{tpu_custom_call.1} parent=5 // pred_check
        %p1998 = pneg %p1997
      $region110: #{tpu_custom_call.1} parent=5 // pred_check_branch
        %2000 = sbr.rel (%p1998) target = $region112
      $region111: #{tpu_custom_call.1} parent=5 // pred_region
        %s2001 = ssub.s32 %s29, 2
        // Predicated region
        $region113: #{tpu_custom_call.1} parent=111 // pred_check
          %p2002 = pneg %p362
        $region114: #{tpu_custom_call.1} parent=111 // pred_check_branch
          %2004 = sbr.rel (%p2002) target = $region116
        $region115: #{tpu_custom_call.1} parent=111 // pred_region
          %s2005 = sand.u32 %s347, 1
          %s2006 = scalar_lea.sflag [#allocation4], %s2005
          %s2007 = sand.u32 %s347, 1
          %s2008 = smul.addr %s2007, 8
          %s2009 = scalar_lea.vmem [#allocation14], %s2008
          %2010 = dma.done %s2006, 128
        $region116: #{tpu_custom_call.1} parent=111 // pred_fallthru
          _
      $region112: #{tpu_custom_call.1} parent=5 // pred_fallthru
        _
    $region6: #{tpu_custom_call.1} parent=1 // loop_footer
      %s33 = sadd.s32 1, %s29
    $region7: #{tpu_custom_call.1} parent=1 // loop_footer_branch
      %28 = sbr.rel target = $region3
    $region8: #{tpu_custom_call.1} parent=1 // loop_exit
      _
    %2011 = vsyncpa [#allocation3], 1
    %s2012 = scalar_lea.sflag [#allocation3], 1
    %2013 = vsyncpa %s2012, 1
    %2014 = vsyncpa [#allocation6], 1
    %2015 = vsyncpa [#allocation9], 1
    %2016 = vsyncpa [#allocation12], 1
    %2017 = vsyncpa [#allocation4], 1
    %s2018 = scalar_lea.sflag [#allocation4], 1
    %2019 = vsyncpa %s2018, 1

// kernel: tpu_custom_call.1
$region0: #{tpu_custom_call.1}
  #allocation0 [shape = 'u32[]', space=smem, size = 0x4, offset = 0x4, fixed_abs, tag = 'smem constant byte address 0x4 - core index']
  #allocation1 [shape = 'u32[144,128]{1,0:T(1,128)}', space=vmem, size = 0x12000, scoped, tag = 'internal scratch']
  %s0 = inlined_call_operand.vmem [shape: f32[16,32], index: 0, kind: input, shape index: {}]
  %s1 = inlined_call_operand.hbm [shape: f32[2,1,8], index: 1, kind: input, shape index: {}]
  %s2 = inlined_call_operand.hbm [shape: f32[1,32], index: 2, kind: input, shape index: {}]
  %s3 = inlined_call_operand.hbm [shape: f32[1,32], index: 3, kind: input, shape index: {}]
  %s4 = inlined_call_operand.vmem [shape: bf16[32,96], index: 4, kind: input, shape index: {}]
  %s5 = inlined_call_operand.hbm [shape: f32[1,96], index: 5, kind: input, shape index: {}]
  %s6 = inlined_call_operand.vmem [shape: bf16[32,32], index: 6, kind: input, shape index: {}]
  %s7 = inlined_call_operand.hbm [shape: f32[1,32], index: 7, kind: input, shape index: {}]
  %s8 = inlined_call_operand.hbm [shape: f32[1,32], index: 8, kind: input, shape index: {}]
  %s9 = inlined_call_operand.hbm [shape: f32[1,32], index: 9, kind: input, shape index: {}]
  %s10 = inlined_call_operand.vmem [shape: bf16[32,64], index: 10, kind: input, shape index: {}]
  %s11 = inlined_call_operand.vmem [shape: f32[1,64], index: 11, kind: input, shape index: {}]
  %s12 = inlined_call_operand.vmem [shape: bf16[64,32], index: 12, kind: input, shape index: {}]
  %s13 = inlined_call_operand.vmem [shape: f32[1,32], index: 13, kind: input, shape index: {}]
  %s14 = inlined_call_operand.hbm [shape: f32[16,32], index: 14, kind: output, shape index: {}]
  %s15 = sld [smem:[#allocation0]]
  $region117: #{tpu_custom_call.1} parent=0
    _
  %s17 = ssub.s32 1, %s15
  %s18 = scalar_select 0, %s17, %s15
  $region1: #{tpu_custom_call.1} parent=0
    #allocation2 [shape = 'u8[1024]{0}', space=vmem, size = 0x400, scoped, tag = 'input window, operand 1']
    #allocation3 [shape = 's32[2]{0}', space=sflag, size = 0x8, scoped, tag = 'scoped memory for tpu_custom_call.1']
    #allocation4 [shape = 's32[2]{0}', space=sflag, size = 0x8, scoped, tag = 'scoped memory for tpu_custom_call.1']
    #allocation5 [shape = 'u8[512]{0}', space=vmem, size = 0x400, scoped, tag = 'input window, operand 2, single buffered']
    #allocation6 [shape = 's32[1]{0}', space=sflag, size = 0x4, scoped, tag = 'scoped memory for tpu_custom_call.1']
    #allocation7 [shape = 'u8[512]{0}', space=vmem, size = 0x400, scoped, tag = 'input window, operand 3, single buffered']
    #allocation8 [shape = 'u8[512]{0}', space=vmem, size = 0x400, scoped, tag = 'input window, operand 5, single buffered']
    #allocation9 [shape = 's32[1]{0}', space=sflag, size = 0x4, scoped, tag = 'scoped memory for tpu_custom_call.1']
    #allocation10 [shape = 'u8[512]{0}', space=vmem, size = 0x400, scoped, tag = 'input window, operand 7, single buffered']
    #allocation11 [shape = 'u8[512]{0}', space=vmem, size = 0x400, scoped, tag = 'input window, operand 8, single buffered']
    #allocation12 [shape = 's32[1]{0}', space=sflag, size = 0x4, scoped, tag = 'scoped memory for tpu_custom_call.1']
    #allocation13 [shape = 'u8[512]{0}', space=vmem, size = 0x400, scoped, tag = 'input window, operand 9, single buffered']
    #allocation14 [shape = 'u8[8192]{0}', space=vmem, size = 0x2000, scoped, tag = 'output window, operand 0']
    %19 = vsyncpa [#allocation3], 0
    %s20 = scalar_lea.sflag [#allocation3], 1
    %21 = vsyncpa %s20, 0
    %22 = vsyncpa [#allocation6], 0
    %23 = vsyncpa [#allocation9], 0
    %24 = vsyncpa [#allocation12], 0
    %25 = vsyncpa [#allocation4], 0
    %s26 = scalar_lea.sflag [#allocation4], 1
    %27 = vsyncpa %s26, 0
    loop: start=0, step=1, limit=4
    $region2: #{tpu_custom_call.1} parent=1 // loop_pre_header
      _
    $region3: #{tpu_custom_call.1} parent=1 // loop_header
      %s29 = sphi 0, %s33
      %p30 = scmp.ge.s32.totalorder %s29, 4
      %s39 = sphi 0, %s41
      %s42 = sphi 0, %s39
      %s43 = sphi 0, %s42
      %s59 = sphi 0, %s43
      %s65 = sphi 0, %s67
      %s68 = sphi 0, %s65
      %s69 = sphi 0, %s68
      %s85 = sphi 0, %s69
      %s89 = sphi 0, %s89
      %s91 = sphi 0, %s89
      %s92 = sphi 0, %s91
      %s106 = sphi 0, %s92
      %s110 = sphi 0, %s110
      %s112 = sphi 0, %s110
      %s113 = sphi 0, %s112
      %s127 = sphi 0, %s113
      %s131 = sphi 0, %s131
      %s133 = sphi 0, %s131
      %s134 = sphi 0, %s133
      %s148 = sphi 0, %s134
      %s152 = sphi 0, %s152
      %s154 = sphi 0, %s152
      %s155 = sphi 0, %s154
      %s169 = sphi 0, %s155
      %s173 = sphi 0, %s173
      %s175 = sphi 0, %s173
      %s176 = sphi 0, %s175
      %s190 = sphi 0, %s176
      %s194 = sphi 0, %s194
      %s196 = sphi 0, %s194
      %s197 = sphi 0, %s196
      %s211 = sphi 0, %s197
      %s215 = sphi 0, %s215
      %s217 = sphi 0, %s215
      %s218 = sphi 0, %s217
      %s232 = sphi 0, %s218
      %s236 = sphi 0, %s236
      %s238 = sphi 0, %s236
      %s239 = sphi 0, %s238
      %s253 = sphi 0, %s239
      %s257 = sphi 0, %s257
      %s259 = sphi 0, %s257
      %s260 = sphi 0, %s259
      %s274 = sphi 0, %s260
      %s278 = sphi 0, %s278
      %s280 = sphi 0, %s278
      %s281 = sphi 0, %s280
      %s295 = sphi 0, %s281
      %s299 = sphi 0, %s299
      %s301 = sphi 0, %s299
      %s302 = sphi 0, %s301
      %s316 = sphi 0, %s302
      %s320 = sphi 0, %s320
      %s322 = sphi 0, %s320
      %s323 = sphi 0, %s322
      %s337 = sphi 0, %s323
      %s343 = sphi 0, %s345
      %s346 = sphi 0, %s343
      %s347 = sphi 0, %s346
      %s363 = sphi 0, %s347
    $region4: #{tpu_custom_call.1} parent=1 // loop_header_branch
      %32 = sbr.rel (%p30) target = $region8
    $region5: #{tpu_custom_call.1} parent=1 // loop_body
      %s34 = ssub.s32 %s29, 1
      %s35 = ssub.s32 %s29, 2
      %s36 = sadd.s32 %s29, 1
      %s37 = ssub.s32 %s29, %s36
      %p38 = scmp.eq.s32.totalorder %s37, 0
      %s40 = sadd.s32 %s39, 1
      %s41 = scalar_select %p38, %s39, %s40
      %p44 = pneg %p38
      %p45 = scmp.eq.s32.totalorder %s29, 1
      %p46 = por %p44, %p45
      %p47 = scmp.ne.s32.totalorder %s39, %s42
      %p48 = scmp.eq.s32.totalorder %s29, 0
      %p49 = por %p47, %p48
      %p50 = scmp.ne.s32.totalorder %s39, %s42
      %p51 = scmp.eq.s32.totalorder %s34, 1
      %p52 = por %p50, %p51
      %p53 = scmp.ne.s32.totalorder %s42, %s43
      %p54 = scmp.eq.s32.totalorder %s34, 0
      %p55 = por %p53, %p54
      %p56 = scmp.ne.s32.totalorder %s42, %s43
      %p57 = scmp.eq.s32.totalorder %s35, 1
      %p58 = por %p56, %p57
      %p60 = scmp.ne.s32.totalorder %s43, %s59
      %p61 = scmp.eq.s32.totalorder %s35, 0
      %p62 = por %p60, %p61
      %s63 = ssub.s32 %s29, %s36
      %p64 = scmp.eq.s32.totalorder %s63, 0
      %s66 = sadd.s32 %s65, 1
      %s67 = scalar_select %p64, %s65, %s66
      %p70 = pneg %p64
      %p71 = scmp.eq.s32.totalorder %s29, 1
      %p72 = por %p70, %p71
      %p73 = scmp.ne.s32.totalorder %s65, %s68
      %p74 = scmp.eq.s32.totalorder %s29, 0
      %p75 = por %p73, %p74
      %p76 = scmp.ne.s32.totalorder %s65, %s68
      %p77 = scmp.eq.s32.totalorder %s34, 1
      %p78 = por %p76, %p77
      %p79 = scmp.ne.s32.totalorder %s68, %s69
      %p80 = scmp.eq.s32.totalorder %s34, 0
      %p81 = por %p79, %p80
      %p82 = scmp.ne.s32.totalorder %s68, %s69
      %p83 = scmp.eq.s32.totalorder %s35, 1
      %p84 = por %p82, %p83
      %p86 = scmp.ne.s32.totalorder %s69, %s85
      %p87 = scmp.eq.s32.totalorder %s35, 0
      %p88 = por %p86, %p87
      %s90 = sadd.s32 %s89, 1
      %p93 = scmp.eq.s32.totalorder %s29, 1
      %p94 = scmp.ne.s32.totalorder %s89, %s91
      %p95 = scmp.eq.s32.totalorder %s29, 0
      %p96 = por %p94, %p95
      %p97 = scmp.ne.s32.totalorder %s89, %s91
      %p98 = scmp.eq.s32.totalorder %s34, 1
      %p99 = por %p97, %p98
      %p100 = scmp.ne.s32.totalorder %s91, %s92
      %p101 = scmp.eq.s32.totalorder %s34, 0
      %p102 = por %p100, %p101
      %p103 = scmp.ne.s32.totalorder %s91, %s92
      %p104 = scmp.eq.s32.totalorder %s35, 1
      %p105 = por %p103, %p104
      %p107 = scmp.ne.s32.totalorder %s92, %s106
      %p108 = scmp.eq.s32.totalorder %s35, 0
      %p109 = por %p107, %p108
      %s111 = sadd.s32 %s110, 1
      %p114 = scmp.eq.s32.totalorder %s29, 1
      %p115 = scmp.ne.s32.totalorder %s110, %s112
      %p116 = scmp.eq.s32.totalorder %s29, 0
      %p117 = por %p115, %p116
      %p118 = scmp.ne.s32.totalorder %s110, %s112
      %p119 = scmp.eq.s32.totalorder %s34, 1
      %p120 = por %p118, %p119
      %p121 = scmp.ne.s32.totalorder %s112, %s113
      %p122 = scmp.eq.s32.totalorder %s34, 0
      %p123 = por %p121, %p122
      %p124 = scmp.ne.s32.totalorder %s112, %s113
      %p125 = scmp.eq.s32.totalorder %s35, 1
      %p126 = por %p124, %p125
      %p128 = scmp.ne.s32.totalorder %s113, %s127
      %p129 = scmp.eq.s32.totalorder %s35, 0
      %p130 = por %p128, %p129
      %s132 = sadd.s32 %s131, 1
      %p135 = scmp.eq.s32.totalorder %s29, 1
      %p136 = scmp.ne.s32.totalorder %s131, %s133
      %p137 = scmp.eq.s32.totalorder %s29, 0
      %p138 = por %p136, %p137
      %p139 = scmp.ne.s32.totalorder %s131, %s133
      %p140 = scmp.eq.s32.totalorder %s34, 1
      %p141 = por %p139, %p140
      %p142 = scmp.ne.s32.totalorder %s133, %s134
      %p143 = scmp.eq.s32.totalorder %s34, 0
      %p144 = por %p142, %p143
      %p145 = scmp.ne.s32.totalorder %s133, %s134
      %p146 = scmp.eq.s32.totalorder %s35, 1
      %p147 = por %p145, %p146
      %p149 = scmp.ne.s32.totalorder %s134, %s148
      %p150 = scmp.eq.s32.totalorder %s35, 0
      %p151 = por %p149, %p150
      %s153 = sadd.s32 %s152, 1
      %p156 = scmp.eq.s32.totalorder %s29, 1
      %p157 = scmp.ne.s32.totalorder %s152, %s154
      %p158 = scmp.eq.s32.totalorder %s29, 0
      %p159 = por %p157, %p158
      %p160 = scmp.ne.s32.totalorder %s152, %s154
      %p161 = scmp.eq.s32.totalorder %s34, 1
      %p162 = por %p160, %p161
      %p163 = scmp.ne.s32.totalorder %s154, %s155
      %p164 = scmp.eq.s32.totalorder %s34, 0
      %p165 = por %p163, %p164
      %p166 = scmp.ne.s32.totalorder %s154, %s155
      %p167 = scmp.eq.s32.totalorder %s35, 1
      %p168 = por %p166, %p167
      %p170 = scmp.ne.s32.totalorder %s155, %s169
      %p171 = scmp.eq.s32.totalorder %s35, 0
      %p172 = por %p170, %p171
      %s174 = sadd.s32 %s173, 1
      %p177 = scmp.eq.s32.totalorder %s29, 1
      %p178 = scmp.ne.s32.totalorder %s173, %s175
      %p179 = scmp.eq.s32.totalorder %s29, 0
      %p180 = por %p178, %p179
      %p181 = scmp.ne.s32.totalorder %s173, %s175
      %p182 = scmp.eq.s32.totalorder %s34, 1
      %p183 = por %p181, %p182
      %p184 = scmp.ne.s32.totalorder %s175, %s176
      %p185 = scmp.eq.s32.totalorder %s34, 0
      %p186 = por %p184, %p185
      %p187 = scmp.ne.s32.totalorder %s175, %s176
      %p188 = scmp.eq.s32.totalorder %s35, 1
      %p189 = por %p187, %p188
      %p191 = scmp.ne.s32.totalorder %s176, %s190
      %p192 = scmp.eq.s32.totalorder %s35, 0
      %p193 = por %p191, %p192
      %s195 = sadd.s32 %s194, 1
      %p198 = scmp.eq.s32.totalorder %s29, 1
      %p199 = scmp.ne.s32.totalorder %s194, %s196
      %p200 = scmp.eq.s32.totalorder %s29, 0
      %p201 = por %p199, %p200
      %p202 = scmp.ne.s32.totalorder %s194, %s196
      %p203 = scmp.eq.s32.totalorder %s34, 1
      %p204 = por %p202, %p203
      %p205 = scmp.ne.s32.totalorder %s196, %s197
      %p206 = scmp.eq.s32.totalorder %s34, 0
      %p207 = por %p205, %p206
      %p208 = scmp.ne.s32.totalorder %s196, %s197
      %p209 = scmp.eq.s32.totalorder %s35, 1
      %p210 = por %p208, %p209
      %p212 = scmp.ne.s32.totalorder %s197, %s211
      %p213 = scmp.eq.s32.totalorder %s35, 0
      %p214 = por %p212, %p213
      %s216 = sadd.s32 %s215, 1
      %p219 = scmp.eq.s32.totalorder %s29, 1
      %p220 = scmp.ne.s32.totalorder %s215, %s217
      %p221 = scmp.eq.s32.totalorder %s29, 0
      %p222 = por %p220, %p221
      %p223 = scmp.ne.s32.totalorder %s215, %s217
      %p224 = scmp.eq.s32.totalorder %s34, 1
      %p225 = por %p223, %p224
      %p226 = scmp.ne.s32.totalorder %s217, %s218
      %p227 = scmp.eq.s32.totalorder %s34, 0
      %p228 = por %p226, %p227
      %p229 = scmp.ne.s32.totalorder %s217, %s218
      %p230 = scmp.eq.s32.totalorder %s35, 1
      %p231 = por %p229, %p230
      %p233 = scmp.ne.s32.totalorder %s218, %s232
      %p234 = scmp.eq.s32.totalorder %s35, 0
      %p235 = por %p233, %p234
      %s237 = sadd.s32 %s236, 1
      %p240 = scmp.eq.s32.totalorder %s29, 1
      %p241 = scmp.ne.s32.totalorder %s236, %s238
      %p242 = scmp.eq.s32.totalorder %s29, 0
      %p243 = por %p241, %p242
      %p244 = scmp.ne.s32.totalorder %s236, %s238
      %p245 = scmp.eq.s32.totalorder %s34, 1
      %p246 = por %p244, %p245
      %p247 = scmp.ne.s32.totalorder %s238, %s239
      %p248 = scmp.eq.s32.totalorder %s34, 0
      %p249 = por %p247, %p248
      %p250 = scmp.ne.s32.totalorder %s238, %s239
      %p251 = scmp.eq.s32.totalorder %s35, 1
      %p252 = por %p250, %p251
      %p254 = scmp.ne.s32.totalorder %s239, %s253
      %p255 = scmp.eq.s32.totalorder %s35, 0
      %p256 = por %p254, %p255
      %s258 = sadd.s32 %s257, 1
      %p261 = scmp.eq.s32.totalorder %s29, 1
      %p262 = scmp.ne.s32.totalorder %s257, %s259
      %p263 = scmp.eq.s32.totalorder %s29, 0
      %p264 = por %p262, %p263
      %p265 = scmp.ne.s32.totalorder %s257, %s259
      %p266 = scmp.eq.s32.totalorder %s34, 1
      %p267 = por %p265, %p266
      %p268 = scmp.ne.s32.totalorder %s259, %s260
      %p269 = scmp.eq.s32.totalorder %s34, 0
      %p270 = por %p268, %p269
      %p271 = scmp.ne.s32.totalorder %s259, %s260
      %p272 = scmp.eq.s32.totalorder %s35, 1
      %p273 = por %p271, %p272
      %p275 = scmp.ne.s32.totalorder %s260, %s274
      %p276 = scmp.eq.s32.totalorder %s35, 0
      %p277 = por %p275, %p276
      %s279 = sadd.s32 %s278, 1
      %p282 = scmp.eq.s32.totalorder %s29, 1
      %p283 = scmp.ne.s32.totalorder %s278, %s280
      %p284 = scmp.eq.s32.totalorder %s29, 0
      %p285 = por %p283, %p284
      %p286 = scmp.ne.s32.totalorder %s278, %s280
      %p287 = scmp.eq.s32.totalorder %s34, 1
      %p288 = por %p286, %p287
      %p289 = scmp.ne.s32.totalorder %s280, %s281
      %p290 = scmp.eq.s32.totalorder %s34, 0
      %p291 = por %p289, %p290
      %p292 = scmp.ne.s32.totalorder %s280, %s281
      %p293 = scmp.eq.s32.totalorder %s35, 1
      %p294 = por %p292, %p293
      %p296 = scmp.ne.s32.totalorder %s281, %s295
      %p297 = scmp.eq.s32.totalorder %s35, 0
      %p298 = por %p296, %p297
      %s300 = sadd.s32 %s299, 1
      %p303 = scmp.eq.s32.totalorder %s29, 1
      %p304 = scmp.ne.s32.totalorder %s299, %s301
      %p305 = scmp.eq.s32.totalorder %s29, 0
      %p306 = por %p304, %p305
      %p307 = scmp.ne.s32.totalorder %s299, %s301
      %p308 = scmp.eq.s32.totalorder %s34, 1
      %p309 = por %p307, %p308
      %p310 = scmp.ne.s32.totalorder %s301, %s302
      %p311 = scmp.eq.s32.totalorder %s34, 0
      %p312 = por %p310, %p311
      %p313 = scmp.ne.s32.totalorder %s301, %s302
      %p314 = scmp.eq.s32.totalorder %s35, 1
      %p315 = por %p313, %p314
      %p317 = scmp.ne.s32.totalorder %s302, %s316
      %p318 = scmp.eq.s32.totalorder %s35, 0
      %p319 = por %p317, %p318
      %s321 = sadd.s32 %s320, 1
      %p324 = scmp.eq.s32.totalorder %s29, 1
      %p325 = scmp.ne.s32.totalorder %s320, %s322
      %p326 = scmp.eq.s32.totalorder %s29, 0
      %p327 = por %p325, %p326
      %p328 = scmp.ne.s32.totalorder %s320, %s322
      %p329 = scmp.eq.s32.totalorder %s34, 1
      %p330 = por %p328, %p329
      %p331 = scmp.ne.s32.totalorder %s322, %s323
      %p332 = scmp.eq.s32.totalorder %s34, 0
      %p333 = por %p331, %p332
      %p334 = scmp.ne.s32.totalorder %s322, %s323
      %p335 = scmp.eq.s32.totalorder %s35, 1
      %p336 = por %p334, %p335
      %p338 = scmp.ne.s32.totalorder %s323, %s337
      %p339 = scmp.eq.s32.totalorder %s35, 0
      %p340 = por %p338, %p339
      %s341 = ssub.s32 %s29, %s36
      %p342 = scmp.eq.s32.totalorder %s341, 0
      %s344 = sadd.s32 %s343, 1
      %s345 = scalar_select %p342, %s343, %s344
      %p348 = pneg %p342
      %p349 = scmp.eq.s32.totalorder %s29, 1
      %p350 = por %p348, %p349
      %p351 = scmp.ne.s32.totalorder %s343, %s346
      %p352 = scmp.eq.s32.totalorder %s29, 0
      %p353 = por %p351, %p352
      %p354 = scmp.ne.s32.totalorder %s343, %s346
      %p355 = scmp.eq.s32.totalorder %s34, 1
      %p356 = por %p354, %p355
      %p357 = scmp.ne.s32.totalorder %s346, %s347
      %p358 = scmp.eq.s32.totalorder %s34, 0
      %p359 = por %p357, %p358
      %p360 = scmp.ne.s32.totalorder %s346, %s347
      %p361 = scmp.eq.s32.totalorder %s35, 1
      %p362 = por %p360, %p361
      %p364 = scmp.ne.s32.totalorder %s347, %s363
      %p365 = scmp.eq.s32.totalorder %s35, 0
      %p366 = por %p364, %p365
      %p367 = scmp.le.s32.totalorder 1, %s29
      %p368 = scmp.lt.s32.totalorder %s29, 3
      %p369 = pnand %p367, %p368
      %p370 = pneg %p369
      // Predicated region
      $region9: #{tpu_custom_call.1} parent=5 // pred_check
        _
      $region10: #{tpu_custom_call.1} parent=5 // pred_check_branch
        %372 = sbr.rel (%p369) target = $region12
      $region11: #{tpu_custom_call.1} parent=5 // pred_region
        %s373 = ssub.s32 %s29, 1
        // Predicated region
        $region13: #{tpu_custom_call.1} parent=11 // pred_check
          %p374 = pneg %p102
        $region14: #{tpu_custom_call.1} parent=11 // pred_check_branch
          %376 = sbr.rel (%p374) target = $region16
        $region15: #{tpu_custom_call.1} parent=11 // pred_region
          %s378 = ssub.s32 16, 16
          %379 = vsyncadd [#allocation6], %s378
          %s381 = sshll.u32 [#allocation5], 4
          %s382 = int_to_ptr.vmem [resolvable:$true] %s381
          %384 = dma.hbm_to_vmem [thread:$0]  %s2, 16, %s382, [#allocation6]
        $region16: #{tpu_custom_call.1} parent=11 // pred_fallthru
          _
        // Predicated region
        $region17: #{tpu_custom_call.1} parent=11 // pred_check
          %p385 = pneg %p123
        $region18: #{tpu_custom_call.1} parent=11 // pred_check_branch
          %387 = sbr.rel (%p385) target = $region20
        $region19: #{tpu_custom_call.1} parent=11 // pred_region
          %s389 = ssub.s32 16, 16
          %390 = vsyncadd [#allocation6], %s389
          %s392 = sshll.u32 [#allocation7], 4
          %s393 = int_to_ptr.vmem [resolvable:$true] %s392
          %395 = dma.hbm_to_vmem [thread:$0]  %s3, 16, %s393, [#allocation6]
        $region20: #{tpu_custom_call.1} parent=11 // pred_fallthru
          _
        // Predicated region
        $region21: #{tpu_custom_call.1} parent=11 // pred_check
          %p396 = pneg %p144
        $region22: #{tpu_custom_call.1} parent=11 // pred_check_branch
          %398 = sbr.rel (%p396) target = $region24
        $region23: #{tpu_custom_call.1} parent=11 // pred_region
          _
        $region24: #{tpu_custom_call.1} parent=11 // pred_fallthru
          _
        // Predicated region
        $region25: #{tpu_custom_call.1} parent=11 // pred_check
          %p399 = pneg %p165
        $region26: #{tpu_custom_call.1} parent=11 // pred_check_branch
          %401 = sbr.rel (%p399) target = $region28
        $region27: #{tpu_custom_call.1} parent=11 // pred_region
          %s403 = ssub.s32 16, 16
          %404 = vsyncadd [#allocation9], %s403
          %s406 = sshll.u32 [#allocation8], 4
          %s407 = int_to_ptr.vmem [resolvable:$true] %s406
          %409 = dma.hbm_to_vmem [thread:$0]  %s5, 16, %s407, [#allocation9]
        $region28: #{tpu_custom_call.1} parent=11 // pred_fallthru
          _
        // Predicated region
        $region29: #{tpu_custom_call.1} parent=11 // pred_check
          %p410 = pneg %p186
        $region30: #{tpu_custom_call.1} parent=11 // pred_check_branch
          %412 = sbr.rel (%p410) target = $region32
        $region31: #{tpu_custom_call.1} parent=11 // pred_region
          _
        $region32: #{tpu_custom_call.1} parent=11 // pred_fallthru
          _
        // Predicated region
        $region33: #{tpu_custom_call.1} parent=11 // pred_check
          %p413 = pneg %p207
        $region34: #{tpu_custom_call.1} parent=11 // pred_check_branch
          %415 = sbr.rel (%p413) target = $region36
        $region35: #{tpu_custom_call.1} parent=11 // pred_region
          %s417 = ssub.s32 16, 16
          %418 = vsyncadd [#allocation9], %s417
          %s420 = sshll.u32 [#allocation10], 4
          %s421 = int_to_ptr.vmem [resolvable:$true] %s420
          %423 = dma.hbm_to_vmem [thread:$0]  %s7, 16, %s421, [#allocation9]
        $region36: #{tpu_custom_call.1} parent=11 // pred_fallthru
          _
        // Predicated region
        $region37: #{tpu_custom_call.1} parent=11 // pred_check
          %p424 = pneg %p228
        $region38: #{tpu_custom_call.1} parent=11 // pred_check_branch
          %426 = sbr.rel (%p424) target = $region40
        $region39: #{tpu_custom_call.1} parent=11 // pred_region
          %s428 = ssub.s32 16, 16
          %429 = vsyncadd [#allocation12], %s428
          %s431 = sshll.u32 [#allocation11], 4
          %s432 = int_to_ptr.vmem [resolvable:$true] %s431
          %434 = dma.hbm_to_vmem [thread:$0]  %s8, 16, %s432, [#allocation12]
        $region40: #{tpu_custom_call.1} parent=11 // pred_fallthru
          _
        // Predicated region
        $region41: #{tpu_custom_call.1} parent=11 // pred_check
          %p435 = pneg %p249
        $region42: #{tpu_custom_call.1} parent=11 // pred_check_branch
          %437 = sbr.rel (%p435) target = $region44
        $region43: #{tpu_custom_call.1} parent=11 // pred_region
          %s439 = ssub.s32 16, 16
          %440 = vsyncadd [#allocation12], %s439
          %s442 = sshll.u32 [#allocation13], 4
          %s443 = int_to_ptr.vmem [resolvable:$true] %s442
          %445 = dma.hbm_to_vmem [thread:$0]  %s9, 16, %s443, [#allocation12]
        $region44: #{tpu_custom_call.1} parent=11 // pred_fallthru
          _
        // Predicated region
        $region45: #{tpu_custom_call.1} parent=11 // pred_check
          %p446 = pneg %p270
        $region46: #{tpu_custom_call.1} parent=11 // pred_check_branch
          %448 = sbr.rel (%p446) target = $region48
        $region47: #{tpu_custom_call.1} parent=11 // pred_region
          _
        $region48: #{tpu_custom_call.1} parent=11 // pred_fallthru
          _
        // Predicated region
        $region49: #{tpu_custom_call.1} parent=11 // pred_check
          %p449 = pneg %p291
        $region50: #{tpu_custom_call.1} parent=11 // pred_check_branch
          %451 = sbr.rel (%p449) target = $region52
        $region51: #{tpu_custom_call.1} parent=11 // pred_region
          _
        $region52: #{tpu_custom_call.1} parent=11 // pred_fallthru
          _
        // Predicated region
        $region53: #{tpu_custom_call.1} parent=11 // pred_check
          %p452 = pneg %p312
        $region54: #{tpu_custom_call.1} parent=11 // pred_check_branch
          %454 = sbr.rel (%p452) target = $region56
        $region55: #{tpu_custom_call.1} parent=11 // pred_region
          _
        $region56: #{tpu_custom_call.1} parent=11 // pred_fallthru
          _
        // Predicated region
        $region57: #{tpu_custom_call.1} parent=11 // pred_check
          %p455 = pneg %p333
        $region58: #{tpu_custom_call.1} parent=11 // pred_check_branch
          %457 = sbr.rel (%p455) target = $region60
        $region59: #{tpu_custom_call.1} parent=11 // pred_region
          _
        $region60: #{tpu_custom_call.1} parent=11 // pred_fallthru
          _
      $region12: #{tpu_custom_call.1} parent=5 // pred_fallthru
        _
      %p458 = scmp.lt.s32.totalorder %s29, 2
      // Predicated region
      $region61: #{tpu_custom_call.1} parent=5 // pred_check
        %p459 = pneg %p458
      $region62: #{tpu_custom_call.1} parent=5 // pred_check_branch
        %461 = sbr.rel (%p459) target = $region64
      $region63: #{tpu_custom_call.1} parent=5 // pred_region
        // Predicated region
        $region65: #{tpu_custom_call.1} parent=63 // pred_check
          %p462 = pneg %p49
        $region66: #{tpu_custom_call.1} parent=63 // pred_check_branch
          %464 = sbr.rel (%p462) target = $region68
        $region67: #{tpu_custom_call.1} parent=63 // pred_region
          %p465 = scmp.lt.s32.totalorder %s29, 1
          %s466 = scalar_select %p465, %s29, 1
          %s467 = smul.addr %s466, 8
          %s468 = scalar_lea.vmem %s0, %s467
        $region68: #{tpu_custom_call.1} parent=63 // pred_fallthru
          _
        // Predicated region
        $region69: #{tpu_custom_call.1} parent=63 // pred_check
          %p469 = pneg %p75
        $region70: #{tpu_custom_call.1} parent=63 // pred_check_branch
          %471 = sbr.rel (%p469) target = $region72
        $region71: #{tpu_custom_call.1} parent=63 // pred_region
          %s472 = sand.u32 %s65, 1
          %s473 = scalar_lea.sflag [#allocation3], %s472
          %s474 = sand.u32 %s65, 1
          %s475 = scalar_lea.vmem [#allocation2], %s474
          %s477 = ssub.s32 16, 16
          %478 = vsyncadd %s473, %s477
          %s479 = smul.addr %s29, 16
          %s480 = scalar_lea.hbm %s1, %s479
          %s482 = sshll.u32 %s475, 4
          %s483 = int_to_ptr.vmem [resolvable:$true] %s482
          %485 = dma.hbm_to_vmem [thread:$0]  %s480, 16, %s483, %s473
        $region72: #{tpu_custom_call.1} parent=63 // pred_fallthru
          _
      $region64: #{tpu_custom_call.1} parent=5 // pred_fallthru
        _
      %p486 = scmp.le.s32.totalorder 1, %s29
      %p487 = scmp.lt.s32.totalorder %s29, 3
      %p488 = pnand %p486, %p487
      %p489 = pneg %p488
      // Predicated region
      $region73: #{tpu_custom_call.1} parent=5 // pred_check
        _
      $region74: #{tpu_custom_call.1} parent=5 // pred_check_branch
        %491 = sbr.rel (%p488) target = $region76
      $region75: #{tpu_custom_call.1} parent=5 // pred_region
        %s492 = ssub.s32 %s29, 1
        %s493 = sand.u32 %s68, 1
        %s494 = scalar_lea.sflag [#allocation3], %s493
        %s495 = sand.u32 %s68, 1
        %s496 = scalar_lea.vmem [#allocation2], %s495
        // Predicated region
        $region77: #{tpu_custom_call.1} parent=75 // pred_check
          %p497 = pneg %p81
        $region78: #{tpu_custom_call.1} parent=75 // pred_check_branch
          %499 = sbr.rel (%p497) target = $region80
        $region79: #{tpu_custom_call.1} parent=75 // pred_region
          %500 = dma.done %s494, 16
        $region80: #{tpu_custom_call.1} parent=75 // pred_fallthru
          _
        // Predicated region
        $region81: #{tpu_custom_call.1} parent=75 // pred_check
          %p501 = pneg %p102
        $region82: #{tpu_custom_call.1} parent=75 // pred_check_branch
          %503 = sbr.rel (%p501) target = $region84
        $region83: #{tpu_custom_call.1} parent=75 // pred_region
          %504 = dma.done [#allocation6], 16
        $region84: #{tpu_custom_call.1} parent=75 // pred_fallthru
          _
        // Predicated region
        $region85: #{tpu_custom_call.1} parent=75 // pred_check
          %p505 = pneg %p123
        $region86: #{tpu_custom_call.1} parent=75 // pred_check_branch
          %507 = sbr.rel (%p505) target = $region88
        $region87: #{tpu_custom_call.1} parent=75 // pred_region
          %508 = dma.done [#allocation6], 16
        $region88: #{tpu_custom_call.1} parent=75 // pred_fallthru
          _
        // Predicated region
        $region89: #{tpu_custom_call.1} parent=75 // pred_check
          %p509 = pneg %p165
        $region90: #{tpu_custom_call.1} parent=75 // pred_check_branch
          %511 = sbr.rel (%p509) target = $region92
        $region91: #{tpu_custom_call.1} parent=75 // pred_region
          %512 = dma.done [#allocation9], 16
        $region92: #{tpu_custom_call.1} parent=75 // pred_fallthru
          _
        // Predicated region
        $region93: #{tpu_custom_call.1} parent=75 // pred_check
          %p513 = pneg %p207
        $region94: #{tpu_custom_call.1} parent=75 // pred_check_branch
          %515 = sbr.rel (%p513) target = $region96
        $region95: #{tpu_custom_call.1} parent=75 // pred_region
          %516 = dma.done [#allocation9], 16
        $region96: #{tpu_custom_call.1} parent=75 // pred_fallthru
          _
        // Predicated region
        $region97: #{tpu_custom_call.1} parent=75 // pred_check
          %p517 = pneg %p228
        $region98: #{tpu_custom_call.1} parent=75 // pred_check_branch
          %519 = sbr.rel (%p517) target = $region100
        $region99: #{tpu_custom_call.1} parent=75 // pred_region
          %520 = dma.done [#allocation12], 16
        $region100: #{tpu_custom_call.1} parent=75 // pred_fallthru
          _
        // Predicated region
        $region101: #{tpu_custom_call.1} parent=75 // pred_check
          %p521 = pneg %p249
        $region102: #{tpu_custom_call.1} parent=75 // pred_check_branch
          %523 = sbr.rel (%p521) target = $region104
        $region103: #{tpu_custom_call.1} parent=75 // pred_region
          %524 = dma.done [#allocation12], 16
        $region104: #{tpu_custom_call.1} parent=75 // pred_fallthru
          _
        %p525 = scmp.lt.s32.totalorder %s34, 1
        %s526 = scalar_select %p525, %s34, 1
        %s527 = smul.addr %s526, 8
        %s528 = scalar_lea.vmem %s0, %s527
        %p529 = pneg %p55
        %p530 = pneg %p52
        %s531 = sand.u32 %s68, 1
        %s532 = scalar_lea.sflag [#allocation3], %s531
        %s533 = sand.u32 %s68, 1
        %s534 = scalar_lea.vmem [#allocation2], %s533
        %p535 = pneg %p81
        %p536 = pneg %p78
        %p537 = pneg %p102
        %p538 = pneg %p99
        %p539 = pneg %p123
        %p540 = pneg %p120
        %p541 = pneg %p144
        %p542 = pneg %p141
        %p543 = pneg %p165
        %p544 = pneg %p162
        %p545 = pneg %p186
        %p546 = pneg %p183
        %p547 = pneg %p207
        %p548 = pneg %p204
        %p549 = pneg %p228
        %p550 = pneg %p225
        %p551 = pneg %p249
        %p552 = pneg %p246
        %p553 = pneg %p270
        %p554 = pneg %p267
        %p555 = pneg %p291
        %p556 = pneg %p288
        %p557 = pneg %p312
        %p558 = pneg %p309
        %p559 = pneg %p333
        %p560 = pneg %p330
        %p561 = pneg %p359
        %p562 = pneg %p356
        %s563 = sand.u32 %s346, 1
        %s564 = scalar_lea.sflag [#allocation4], %s563
        %s565 = sand.u32 %s346, 1
        %s566 = smul.addr %s565, 8
        %s567 = scalar_lea.vmem [#allocation14], %s566
        %p568 = scmp.lt.s32.totalorder %s34, 1
        %s569 = scalar_select %p568, %s34, 1
        %s570 = smul.addr %s569, 8
        %s571 = scalar_lea.vmem %s0, %s570
        %v573 = vld [vmem:[%s571] sm:$0xff]
        %v574 = vld [vmem:[%s496] sm:$0x1]
        %v575 = vsub.f32 %v574, 1.0
        %v576 = vmul.f32 %v575, 1e+09
        %v577 = vld [vmem:[#allocation5] sm:$0x1]
        %v578 = vld [vmem:[#allocation7] sm:$0x1]
        %vm579 = vcmask 261120
        %v580 = vsel %vm579, %v573, 0.0
        %581 = vadd.xlane.f32.xlu0 %v580
        %v582 = vpop.xlane.xlu0 %581
        %v583 = vrcp.pop 32.0
        %v584 = vmul.f32 %v582, %v583
        %v585 = vsub.f32 %v573, %v584
        %v586 = vmul.f32 %v585, %v585
        %v587 = vsel %vm579, %v586, 0.0
        %588 = vadd.xlane.f32.xlu0 %v587
        %v589 = vpop.xlane.xlu0 %588
        %v590 = vmul.f32 %v589, 0.032258064
        %v591 = vrsqrt.pop %v590
        %v592 = vmul.f32 %v590, %v591
        %vm593 = vcmp.eq.f32.partialorder %v590, inf
        %v594 = vsel %vm593, %v590, %v592
        %vm595 = vcmp.eq.f32.partialorder %v590, 0.0
        %v596 = vand.u32 %v590, 2147483648
        %v597 = vsel %vm595, %v596, %v594
        %v598 = vadd.f32 %v597, 1e-06
        %v599 = vrcp.pop %v598
        %v601 = vlaneseq
        %v602 = vshrl.u32 %v601, 7
        %v603 = vsub.s32 0, %v602
        %v604 = vrot.slane %v577, %v603
        %v606 = vmul.f32 %v604, %v585
        %v607 = vmul.f32 %v606, %v599
        %v609 = vlaneseq
        %v610 = vshrl.u32 %v609, 7
        %v611 = vsub.s32 0, %v610
        %v612 = vrot.slane %v578, %v611
        %v614 = vadd.f32 %v607, %v612
        %v615 = vpack.c.bf16 %v614, %v614
        %v616 = vld [vmem:[%s4] sm:$0xf]
        %v617 = vld [vmem:[%s4 + $0x4] sm:$0xf]
        %v618 = vld [vmem:[%s4 + $0x8] sm:$0xf]
        %v619 = vld [vmem:[%s4 + $0xc] sm:$0xf]
        %v620 = vld [vmem:[#allocation8] sm:$0x1]
        %v622 = vlaneseq
        %v623 = vshrl.u32 %v622, 7
        %v624 = vsub.s32 0, %v623
        %v625 = vrot.slane %v620, %v624
        %v631 = vunpack.c.l.b16 %v616
        %v632 = vunpack.c.l.b16 %v617
        %v633 = vunpack.c.l.b16 %v618
        %v634 = vunpack.c.l.b16 %v619
        %v635 = vpack.c.b16 %v632, %v631
        %v636 = vpack.c.b16 %v634, %v633
        %v640 = vsel %vm579, %v615, 0
        %642 = vmatprep.subr.bf16.mxu0 0
        %643 = vmatpush1.bf16.msra.mxu0 0
        %644 = vmatprep.subr.bf16.mxu0 0
        %645 = vmatpush1.bf16.msra.mxu0 0
        %646 = vmatprep.subr.bf16.mxu0 0
        %647 = vmatpush1.bf16.msra.mxu0 0
        %648 = vmatprep.subr.bf16.mxu0 0
        %649 = vmatpush1.bf16.msra.mxu0 0
        %650 = vmatprep.subr.bf16.mxu0 0
        %651 = vmatpush1.bf16.msra.mxu0 0
        %652 = vmatprep.subr.bf16.mxu0 0
        %653 = vmatpush1.bf16.msra.mxu0 0
        %654 = vmatprep.subr.bf16.mxu0 0
        %655 = vmatpush1.bf16.msra.mxu0 %v636
        %656 = vmatprep.subr.bf16.mxu0 0
        %657 = vmatpush1.bf16.msra.mxu0 %v635
        %658 = vmatprep.subr.bf16.mxu0 0
        %659 = vmatpush2.bf16.msra.mxu0 0
        %660 = vmatprep.subr.bf16.mxu0 0
        %661 = vmatpush2.bf16.msra.mxu0 0
        %662 = vmatprep.subr.bf16.mxu0 0
        %663 = vmatpush2.bf16.msra.mxu0 0
        %664 = vmatprep.subr.bf16.mxu0 0
        %665 = vmatpush2.bf16.msra.mxu0 0
        %666 = vmatprep.subr.bf16.mxu0 0
        %667 = vmatpush2.bf16.msra.mxu0 0
        %668 = vmatprep.subr.bf16.mxu0 0
        %669 = vmatpush2.bf16.msra.mxu0 0
        %670 = vmatprep.subr.bf16.mxu0 0
        %671 = vmatpush2.bf16.msra.mxu0 0
        %672 = vmatprep.subr.bf16.mxu0 0
        %673 = vmatpush2.bf16.msra.mxu0 0
        %674 = vmatprep.mubr.bf16.mxu0 0
        %675 = vmatmul.mubr.bf16.gmra.mxu0 %v640
        %v676 = vpop.f32.mrf.mxu0
        %v677 = vadd.f32 %v625, %v676
        %v678 = vpop.f32.mrf.mxu0
        %v679 = vpop.f32.mrf.mxu0
        %v680 = vpop.f32.mrf.mxu0
        %681 = vdwg.mxu0
        %v682 = vmul.f32 %v677, 0.35355338
        %684 = vrot.lane.b32.xlu0 %v682, 120
        %v685 = vpop.permute.xlu0 %684
        %687 = vrot.lane.b32.xlu0 %v682, 112
        %v688 = vpop.permute.xlu0 %687
        %690 = vrot.lane.b32.xlu0 %v682, 104
        %v691 = vpop.permute.xlu0 %690
        %v693 = vcombine.low %v682, %v688
        %v694 = vcombine.high %v682, %v688
        %v696 = vunpack.c.l.s4 1983009808
        %v697 = vunpack.c.0.s8 %v696
        %v698 = vlaneseq
        %v699 = vshrl.u32 %v698, 7
        %v700 = vsub.s32 %v697, %v699
        %v701 = vrot.slane %v693, %v700
        %v703 = vunpack.c.l.s4 1983009808
        %v704 = vunpack.c.0.s8 %v703
        %v705 = vlaneseq
        %v706 = vshrl.u32 %v705, 7
        %v707 = vsub.s32 %v704, %v706
        %v708 = vrot.slane %v694, %v707
        %v709 = vcombine.low %v685, %v691
        %v710 = vcombine.high %v685, %v691
        %v712 = vunpack.c.l.s4 1983009808
        %v713 = vunpack.c.0.s8 %v712
        %v714 = vlaneseq
        %v715 = vshrl.u32 %v714, 7
        %v716 = vsub.s32 %v713, %v715
        %v717 = vrot.slane %v709, %v716
        %v719 = vunpack.c.l.s4 1983009808
        %v720 = vunpack.c.0.s8 %v719
        %v721 = vlaneseq
        %v722 = vshrl.u32 %v721, 7
        %v723 = vsub.s32 %v720, %v722
        %v724 = vrot.slane %v710, %v723
        %v725 = vcombine.low %v701, %v717
        %v726 = vcombine.high %v701, %v717
        %v728 = vunpack.c.l.s4 1934713408
        %v729 = vunpack.c.0.s8 %v728
        %v730 = vlaneseq
        %v731 = vshrl.u32 %v730, 7
        %v732 = vsub.s32 %v729, %v731
        %v733 = vrot.slane %v725, %v732
        %v735 = vunpack.c.l.s4 1934713408
        %v736 = vunpack.c.0.s8 %v735
        %v737 = vlaneseq
        %v738 = vshrl.u32 %v737, 7
        %v739 = vsub.s32 %v736, %v738
        %v740 = vrot.slane %v726, %v739
        %v741 = vcombine.low %v708, %v724
        %v742 = vcombine.high %v708, %v724
        %v744 = vunpack.c.l.s4 1934713408
        %v745 = vunpack.c.0.s8 %v744
        %v746 = vlaneseq
        %v747 = vshrl.u32 %v746, 7
        %v748 = vsub.s32 %v745, %v747
        %v749 = vrot.slane %v741, %v748
        %v751 = vunpack.c.l.s4 1934713408
        %v752 = vunpack.c.0.s8 %v751
        %v753 = vlaneseq
        %v754 = vshrl.u32 %v753, 7
        %v755 = vsub.s32 %v752, %v754
        %v756 = vrot.slane %v742, %v755
        %v757 = vcombine.high %v733, 0.0
        %v758 = vcombine.high %v740, 0.0
        %v759 = vcombine.high %v749, 0.0
        %v760 = vcombine.high %v756, 0.0
        %v761 = vcombine.low %v733, %v740
        %v763 = vunpack.c.l.s4 1983009808
        %v764 = vunpack.c.0.s8 %v763
        %v765 = vlaneseq
        %v766 = vshrl.u32 %v765, 7
        %v767 = vsub.s32 %v764, %v766
        %v768 = vrot.slane %v761, %v767
        %v769 = vcombine.low %v757, %v758
        %v771 = vunpack.c.l.s4 1983009808
        %v772 = vunpack.c.0.s8 %v771
        %v773 = vlaneseq
        %v774 = vshrl.u32 %v773, 7
        %v775 = vsub.s32 %v772, %v774
        %v776 = vrot.slane %v769, %v775
        %v777 = vcombine.low %v749, %v756
        %v779 = vunpack.c.l.s4 1983009808
        %v780 = vunpack.c.0.s8 %v779
        %v781 = vlaneseq
        %v782 = vshrl.u32 %v781, 7
        %v783 = vsub.s32 %v780, %v782
        %v784 = vrot.slane %v777, %v783
        %v785 = vcombine.low %v759, %v760
        %v787 = vunpack.c.l.s4 1983009808
        %v788 = vunpack.c.0.s8 %v787
        %v789 = vlaneseq
        %v790 = vshrl.u32 %v789, 7
        %v791 = vsub.s32 %v788, %v790
        %v792 = vrot.slane %v785, %v791
        %v793 = vcombine.low %v768, %v776
        %v794 = vcombine.high %v768, %v776
        %v796 = vunpack.c.l.s4 1934713408
        %v797 = vunpack.c.0.s8 %v796
        %v798 = vlaneseq
        %v799 = vshrl.u32 %v798, 7
        %v800 = vsub.s32 %v797, %v799
        %v801 = vrot.slane %v793, %v800
        %v803 = vunpack.c.l.s4 1934713408
        %v804 = vunpack.c.0.s8 %v803
        %v805 = vlaneseq
        %v806 = vshrl.u32 %v805, 7
        %v807 = vsub.s32 %v804, %v806
        %v808 = vrot.slane %v794, %v807
        %v809 = vcombine.low %v784, %v792
        %v810 = vcombine.high %v784, %v792
        %v812 = vunpack.c.l.s4 1934713408
        %v813 = vunpack.c.0.s8 %v812
        %v814 = vlaneseq
        %v815 = vshrl.u32 %v814, 7
        %v816 = vsub.s32 %v813, %v815
        %v817 = vrot.slane %v809, %v816
        %v819 = vunpack.c.l.s4 1934713408
        %v820 = vunpack.c.0.s8 %v819
        %v821 = vlaneseq
        %v822 = vshrl.u32 %v821, 7
        %v823 = vsub.s32 %v820, %v822
        %v824 = vrot.slane %v810, %v823
        %v825 = vcombine.low %v801, %v817
        %v826 = vcombine.high %v801, %v817
        %v827 = vcombine.low %v808, %v824
        %v828 = vcombine.high %v808, %v824
        %v829 = vpack.c.bf16 %v825, %v825
        %v830 = vpack.c.bf16 %v826, %v826
        %v831 = vpack.c.bf16 %v827, %v827
        %v832 = vpack.c.bf16 %v828, %v828
        %834 = vrot.lane.b32.xlu0 %v677, 120
        %v835 = vpop.permute.xlu0 %834
        %836 = vrot.lane.b32.xlu0 %v677, 112
        %v837 = vpop.permute.xlu0 %836
        %838 = vrot.lane.b32.xlu0 %v677, 104
        %v839 = vpop.permute.xlu0 %838
        %840 = vrot.lane.b32.xlu0 %v677, 96
        %v841 = vpop.permute.xlu0 %840
        %842 = vrot.lane.b32.xlu0 %v835, 96
        %v843 = vpop.permute.xlu0 %842
        %844 = vrot.lane.b32.xlu0 %v837, 96
        %v845 = vpop.permute.xlu0 %844
        %846 = vrot.lane.b32.xlu0 %v839, 96
        %v847 = vpop.permute.xlu0 %846
        %v852 = vcombine.low %v841, %v845
        %v853 = vcombine.high %v841, %v845
        %v855 = vunpack.c.l.s4 1983009808
        %v856 = vunpack.c.0.s8 %v855
        %v857 = vlaneseq
        %v858 = vshrl.u32 %v857, 7
        %v859 = vsub.s32 %v856, %v858
        %v860 = vrot.slane %v852, %v859
        %v862 = vunpack.c.l.s4 1983009808
        %v863 = vunpack.c.0.s8 %v862
        %v864 = vlaneseq
        %v865 = vshrl.u32 %v864, 7
        %v866 = vsub.s32 %v863, %v865
        %v867 = vrot.slane %v853, %v866
        %v868 = vcombine.low %v843, %v847
        %v869 = vcombine.high %v843, %v847
        %v871 = vunpack.c.l.s4 1983009808
        %v872 = vunpack.c.0.s8 %v871
        %v873 = vlaneseq
        %v874 = vshrl.u32 %v873, 7
        %v875 = vsub.s32 %v872, %v874
        %v876 = vrot.slane %v868, %v875
        %v878 = vunpack.c.l.s4 1983009808
        %v879 = vunpack.c.0.s8 %v878
        %v880 = vlaneseq
        %v881 = vshrl.u32 %v880, 7
        %v882 = vsub.s32 %v879, %v881
        %v883 = vrot.slane %v869, %v882
        %v884 = vcombine.low %v860, %v876
        %v885 = vcombine.high %v860, %v876
        %v887 = vunpack.c.l.s4 1934713408
        %v888 = vunpack.c.0.s8 %v887
        %v889 = vlaneseq
        %v890 = vshrl.u32 %v889, 7
        %v891 = vsub.s32 %v888, %v890
        %v892 = vrot.slane %v884, %v891
        %v894 = vunpack.c.l.s4 1934713408
        %v895 = vunpack.c.0.s8 %v894
        %v896 = vlaneseq
        %v897 = vshrl.u32 %v896, 7
        %v898 = vsub.s32 %v895, %v897
        %v899 = vrot.slane %v885, %v898
        %v900 = vcombine.low %v867, %v883
        %v901 = vcombine.high %v867, %v883
        %v903 = vunpack.c.l.s4 1934713408
        %v904 = vunpack.c.0.s8 %v903
        %v905 = vlaneseq
        %v906 = vshrl.u32 %v905, 7
        %v907 = vsub.s32 %v904, %v906
        %v908 = vrot.slane %v900, %v907
        %v910 = vunpack.c.l.s4 1934713408
        %v911 = vunpack.c.0.s8 %v910
        %v912 = vlaneseq
        %v913 = vshrl.u32 %v912, 7
        %v914 = vsub.s32 %v911, %v913
        %v915 = vrot.slane %v901, %v914
        %v916 = vcombine.high %v892, 0.0
        %v917 = vcombine.high %v899, 0.0
        %v918 = vcombine.high %v908, 0.0
        %v919 = vcombine.high %v915, 0.0
        %v920 = vcombine.low %v892, %v899
        %v922 = vunpack.c.l.s4 1983009808
        %v923 = vunpack.c.0.s8 %v922
        %v924 = vlaneseq
        %v925 = vshrl.u32 %v924, 7
        %v926 = vsub.s32 %v923, %v925
        %v927 = vrot.slane %v920, %v926
        %v928 = vcombine.low %v916, %v917
        %v930 = vunpack.c.l.s4 1983009808
        %v931 = vunpack.c.0.s8 %v930
        %v932 = vlaneseq
        %v933 = vshrl.u32 %v932, 7
        %v934 = vsub.s32 %v931, %v933
        %v935 = vrot.slane %v928, %v934
        %v936 = vcombine.low %v908, %v915
        %v938 = vunpack.c.l.s4 1983009808
        %v939 = vunpack.c.0.s8 %v938
        %v940 = vlaneseq
        %v941 = vshrl.u32 %v940, 7
        %v942 = vsub.s32 %v939, %v941
        %v943 = vrot.slane %v936, %v942
        %v944 = vcombine.low %v918, %v919
        %v946 = vunpack.c.l.s4 1983009808
        %v947 = vunpack.c.0.s8 %v946
        %v948 = vlaneseq
        %v949 = vshrl.u32 %v948, 7
        %v950 = vsub.s32 %v947, %v949
        %v951 = vrot.slane %v944, %v950
        %v952 = vcombine.low %v927, %v935
        %v953 = vcombine.high %v927, %v935
        %v955 = vunpack.c.l.s4 1934713408
        %v956 = vunpack.c.0.s8 %v955
        %v957 = vlaneseq
        %v958 = vshrl.u32 %v957, 7
        %v959 = vsub.s32 %v956, %v958
        %v960 = vrot.slane %v952, %v959
        %v962 = vunpack.c.l.s4 1934713408
        %v963 = vunpack.c.0.s8 %v962
        %v964 = vlaneseq
        %v965 = vshrl.u32 %v964, 7
        %v966 = vsub.s32 %v963, %v965
        %v967 = vrot.slane %v953, %v966
        %v968 = vcombine.low %v943, %v951
        %v969 = vcombine.high %v943, %v951
        %v971 = vunpack.c.l.s4 1934713408
        %v972 = vunpack.c.0.s8 %v971
        %v973 = vlaneseq
        %v974 = vshrl.u32 %v973, 7
        %v975 = vsub.s32 %v972, %v974
        %v976 = vrot.slane %v968, %v975
        %v978 = vunpack.c.l.s4 1934713408
        %v979 = vunpack.c.0.s8 %v978
        %v980 = vlaneseq
        %v981 = vshrl.u32 %v980, 7
        %v982 = vsub.s32 %v979, %v981
        %v983 = vrot.slane %v969, %v982
        %v984 = vcombine.low %v960, %v976
        %v985 = vcombine.high %v960, %v976
        %v986 = vcombine.low %v967, %v983
        %v987 = vcombine.high %v967, %v983
        %v988 = vpack.c.bf16 %v984, %v984
        %v989 = vpack.c.bf16 %v985, %v985
        %v990 = vpack.c.bf16 %v986, %v986
        %v991 = vpack.c.bf16 %v987, %v987
        %992 = vrot.lane.b32.xlu0 %v677, 64
        %v993 = vpop.permute.xlu0 %992
        %994 = vrot.lane.b32.xlu0 %v835, 64
        %v995 = vpop.permute.xlu0 %994
        %996 = vrot.lane.b32.xlu0 %v837, 64
        %v997 = vpop.permute.xlu0 %996
        %998 = vrot.lane.b32.xlu0 %v839, 64
        %v999 = vpop.permute.xlu0 %998
        %v1004 = vcombine.low %v993, %v997
        %v1005 = vcombine.high %v993, %v997
        %v1007 = vunpack.c.l.s4 1983009808
        %v1008 = vunpack.c.0.s8 %v1007
        %v1009 = vlaneseq
        %v1010 = vshrl.u32 %v1009, 7
        %v1011 = vsub.s32 %v1008, %v1010
        %v1012 = vrot.slane %v1004, %v1011
        %v1014 = vunpack.c.l.s4 1983009808
        %v1015 = vunpack.c.0.s8 %v1014
        %v1016 = vlaneseq
        %v1017 = vshrl.u32 %v1016, 7
        %v1018 = vsub.s32 %v1015, %v1017
        %v1019 = vrot.slane %v1005, %v1018
        %v1020 = vcombine.low %v995, %v999
        %v1021 = vcombine.high %v995, %v999
        %v1023 = vunpack.c.l.s4 1983009808
        %v1024 = vunpack.c.0.s8 %v1023
        %v1025 = vlaneseq
        %v1026 = vshrl.u32 %v1025, 7
        %v1027 = vsub.s32 %v1024, %v1026
        %v1028 = vrot.slane %v1020, %v1027
        %v1030 = vunpack.c.l.s4 1983009808
        %v1031 = vunpack.c.0.s8 %v1030
        %v1032 = vlaneseq
        %v1033 = vshrl.u32 %v1032, 7
        %v1034 = vsub.s32 %v1031, %v1033
        %v1035 = vrot.slane %v1021, %v1034
        %v1036 = vcombine.low %v1012, %v1028
        %v1037 = vcombine.high %v1012, %v1028
        %v1039 = vunpack.c.l.s4 1934713408
        %v1040 = vunpack.c.0.s8 %v1039
        %v1041 = vlaneseq
        %v1042 = vshrl.u32 %v1041, 7
        %v1043 = vsub.s32 %v1040, %v1042
        %v1044 = vrot.slane %v1036, %v1043
        %v1046 = vunpack.c.l.s4 1934713408
        %v1047 = vunpack.c.0.s8 %v1046
        %v1048 = vlaneseq
        %v1049 = vshrl.u32 %v1048, 7
        %v1050 = vsub.s32 %v1047, %v1049
        %v1051 = vrot.slane %v1037, %v1050
        %v1052 = vcombine.low %v1019, %v1035
        %v1053 = vcombine.high %v1019, %v1035
        %v1055 = vunpack.c.l.s4 1934713408
        %v1056 = vunpack.c.0.s8 %v1055
        %v1057 = vlaneseq
        %v1058 = vshrl.u32 %v1057, 7
        %v1059 = vsub.s32 %v1056, %v1058
        %v1060 = vrot.slane %v1052, %v1059
        %v1062 = vunpack.c.l.s4 1934713408
        %v1063 = vunpack.c.0.s8 %v1062
        %v1064 = vlaneseq
        %v1065 = vshrl.u32 %v1064, 7
        %v1066 = vsub.s32 %v1063, %v1065
        %v1067 = vrot.slane %v1053, %v1066
        %v1068 = vcombine.high %v1044, 0.0
        %v1069 = vcombine.high %v1051, 0.0
        %v1070 = vcombine.high %v1060, 0.0
        %v1071 = vcombine.high %v1067, 0.0
        %v1072 = vcombine.low %v1044, %v1051
        %v1074 = vunpack.c.l.s4 1983009808
        %v1075 = vunpack.c.0.s8 %v1074
        %v1076 = vlaneseq
        %v1077 = vshrl.u32 %v1076, 7
        %v1078 = vsub.s32 %v1075, %v1077
        %v1079 = vrot.slane %v1072, %v1078
        %v1080 = vcombine.low %v1068, %v1069
        %v1082 = vunpack.c.l.s4 1983009808
        %v1083 = vunpack.c.0.s8 %v1082
        %v1084 = vlaneseq
        %v1085 = vshrl.u32 %v1084, 7
        %v1086 = vsub.s32 %v1083, %v1085
        %v1087 = vrot.slane %v1080, %v1086
        %v1088 = vcombine.low %v1060, %v1067
        %v1090 = vunpack.c.l.s4 1983009808
        %v1091 = vunpack.c.0.s8 %v1090
        %v1092 = vlaneseq
        %v1093 = vshrl.u32 %v1092, 7
        %v1094 = vsub.s32 %v1091, %v1093
        %v1095 = vrot.slane %v1088, %v1094
        %v1096 = vcombine.low %v1070, %v1071
        %v1098 = vunpack.c.l.s4 1983009808
        %v1099 = vunpack.c.0.s8 %v1098
        %v1100 = vlaneseq
        %v1101 = vshrl.u32 %v1100, 7
        %v1102 = vsub.s32 %v1099, %v1101
        %v1103 = vrot.slane %v1096, %v1102
        %v1104 = vcombine.low %v1079, %v1087
        %v1105 = vcombine.high %v1079, %v1087
        %v1107 = vunpack.c.l.s4 1934713408
        %v1108 = vunpack.c.0.s8 %v1107
        %v1109 = vlaneseq
        %v1110 = vshrl.u32 %v1109, 7
        %v1111 = vsub.s32 %v1108, %v1110
        %v1112 = vrot.slane %v1104, %v1111
        %v1114 = vunpack.c.l.s4 1934713408
        %v1115 = vunpack.c.0.s8 %v1114
        %v1116 = vlaneseq
        %v1117 = vshrl.u32 %v1116, 7
        %v1118 = vsub.s32 %v1115, %v1117
        %v1119 = vrot.slane %v1105, %v1118
        %v1120 = vcombine.low %v1095, %v1103
        %v1121 = vcombine.high %v1095, %v1103
        %v1123 = vunpack.c.l.s4 1934713408
        %v1124 = vunpack.c.0.s8 %v1123
        %v1125 = vlaneseq
        %v1126 = vshrl.u32 %v1125, 7
        %v1127 = vsub.s32 %v1124, %v1126
        %v1128 = vrot.slane %v1120, %v1127
        %v1130 = vunpack.c.l.s4 1934713408
        %v1131 = vunpack.c.0.s8 %v1130
        %v1132 = vlaneseq
        %v1133 = vshrl.u32 %v1132, 7
        %v1134 = vsub.s32 %v1131, %v1133
        %v1135 = vrot.slane %v1121, %v1134
        %v1136 = vcombine.low %v1112, %v1128
        %v1137 = vcombine.high %v1112, %v1128
        %v1138 = vcombine.low %v1119, %v1135
        %v1139 = vcombine.high %v1119, %v1135
        %v1140 = vpack.c.bf16 %v1136, %v1136
        %v1141 = vpack.c.bf16 %v1137, %v1137
        %v1142 = vpack.c.bf16 %v1138, %v1138
        %v1143 = vpack.c.bf16 %v1139, %v1139
        %v1145 = vlaneseq
        %v1146 = vshrl.u32 %v1145, 7
        %v1147 = vsub.s32 0, %v1146
        %v1148 = vrot.slane %v576, %v1147
        %vm1150 = vcmask 64512
        %v1152 = vsel %vm1150, %v829, 0
        %v1155 = vsel %vm1150, %v988, 0
        %1157 = vmatprep.subr.bf16.mxu0 0
        %1158 = vmatpush1.bf16.xpose.msra.mxu0 0
        %1159 = vmatprep.subr.bf16.mxu0 0
        %1160 = vmatpush1.bf16.xpose.msra.mxu0 0
        %1161 = vmatprep.subr.bf16.mxu0 0
        %1162 = vmatpush1.bf16.xpose.msra.mxu0 0
        %1163 = vmatprep.subr.bf16.mxu0 0
        %1164 = vmatpush1.bf16.xpose.msra.mxu0 0
        %1165 = vmatprep.subr.bf16.mxu0 0
        %1166 = vmatpush1.bf16.xpose.msra.mxu0 0
        %1167 = vmatprep.subr.bf16.mxu0 0
        %1168 = vmatpush1.bf16.xpose.msra.mxu0 0
        %1169 = vmatprep.subr.bf16.mxu0 0
        %1170 = vmatpush1.bf16.xpose.msra.mxu0 0
        %1171 = vmatprep.subr.bf16.mxu0 0
        %1172 = vmatpush1.bf16.xpose.msra.mxu0 %v1155
        %1173 = vmatprep.subr.bf16.mxu0 0
        %1174 = vmatpush2.bf16.xpose.msra.mxu0 0
        %1175 = vmatprep.subr.bf16.mxu0 0
        %1176 = vmatpush2.bf16.xpose.msra.mxu0 0
        %1177 = vmatprep.subr.bf16.mxu0 0
        %1178 = vmatpush2.bf16.xpose.msra.mxu0 0
        %1179 = vmatprep.subr.bf16.mxu0 0
        %1180 = vmatpush2.bf16.xpose.msra.mxu0 0
        %1181 = vmatprep.subr.bf16.mxu0 0
        %1182 = vmatpush2.bf16.xpose.msra.mxu0 0
        %1183 = vmatprep.subr.bf16.mxu0 0
        %1184 = vmatpush2.bf16.xpose.msra.mxu0 0
        %1185 = vmatprep.subr.bf16.mxu0 0
        %1186 = vmatpush2.bf16.xpose.msra.mxu0 0
        %1187 = vmatprep.subr.bf16.mxu0 0
        %1188 = vmatpush2.bf16.xpose.msra.mxu0 0
        %1189 = vmatprep.mubr.bf16.mxu0 0
        %1190 = vmatmul.mubr.bf16.gmra.mxu0 %v1152
        %v1191 = vpop.f32.mrf.mxu0
        %v1192 = vadd.f32 %v1148, %v1191
        %v1193 = vpop.f32.mrf.mxu0
        %v1194 = vpop.f32.mrf.mxu0
        %v1195 = vpop.f32.mrf.mxu0
        %1196 = vdwg.mxu0
        %v1198 = vsel %vm1150, %v830, 0
        %v1201 = vsel %vm1150, %v989, 0
        %1203 = vmatprep.subr.bf16.mxu0 0
        %1204 = vmatpush1.bf16.xpose.msra.mxu0 0
        %1205 = vmatprep.subr.bf16.mxu0 0
        %1206 = vmatpush1.bf16.xpose.msra.mxu0 0
        %1207 = vmatprep.subr.bf16.mxu0 0
        %1208 = vmatpush1.bf16.xpose.msra.mxu0 0
        %1209 = vmatprep.subr.bf16.mxu0 0
        %1210 = vmatpush1.bf16.xpose.msra.mxu0 0
        %1211 = vmatprep.subr.bf16.mxu0 0
        %1212 = vmatpush1.bf16.xpose.msra.mxu0 0
        %1213 = vmatprep.subr.bf16.mxu0 0
        %1214 = vmatpush1.bf16.xpose.msra.mxu0 0
        %1215 = vmatprep.subr.bf16.mxu0 0
        %1216 = vmatpush1.bf16.xpose.msra.mxu0 0
        %1217 = vmatprep.subr.bf16.mxu0 0
        %1218 = vmatpush1.bf16.xpose.msra.mxu0 %v1201
        %1219 = vmatprep.subr.bf16.mxu0 0
        %1220 = vmatpush2.bf16.xpose.msra.mxu0 0
        %1221 = vmatprep.subr.bf16.mxu0 0
        %1222 = vmatpush2.bf16.xpose.msra.mxu0 0
        %1223 = vmatprep.subr.bf16.mxu0 0
        %1224 = vmatpush2.bf16.xpose.msra.mxu0 0
        %1225 = vmatprep.subr.bf16.mxu0 0
        %1226 = vmatpush2.bf16.xpose.msra.mxu0 0
        %1227 = vmatprep.subr.bf16.mxu0 0
        %1228 = vmatpush2.bf16.xpose.msra.mxu0 0
        %1229 = vmatprep.subr.bf16.mxu0 0
        %1230 = vmatpush2.bf16.xpose.msra.mxu0 0
        %1231 = vmatprep.subr.bf16.mxu0 0
        %1232 = vmatpush2.bf16.xpose.msra.mxu0 0
        %1233 = vmatprep.subr.bf16.mxu0 0
        %1234 = vmatpush2.bf16.xpose.msra.mxu0 0
        %1235 = vmatprep.mubr.bf16.mxu0 0
        %1236 = vmatmul.mubr.bf16.gmra.mxu0 %v1198
        %v1237 = vpop.f32.mrf.mxu0
        %v1238 = vadd.f32 %v1148, %v1237
        %v1239 = vpop.f32.mrf.mxu0
        %v1240 = vpop.f32.mrf.mxu0
        %v1241 = vpop.f32.mrf.mxu0
        %1242 = vdwg.mxu0
        %v1244 = vsel %vm1150, %v831, 0
        %v1247 = vsel %vm1150, %v990, 0
        %1249 = vmatprep.subr.bf16.mxu0 0
        %1250 = vmatpush1.bf16.xpose.msra.mxu0 0
        %1251 = vmatprep.subr.bf16.mxu0 0
        %1252 = vmatpush1.bf16.xpose.msra.mxu0 0
        %1253 = vmatprep.subr.bf16.mxu0 0
        %1254 = vmatpush1.bf16.xpose.msra.mxu0 0
        %1255 = vmatprep.subr.bf16.mxu0 0
        %1256 = vmatpush1.bf16.xpose.msra.mxu0 0
        %1257 = vmatprep.subr.bf16.mxu0 0
        %1258 = vmatpush1.bf16.xpose.msra.mxu0 0
        %1259 = vmatprep.subr.bf16.mxu0 0
        %1260 = vmatpush1.bf16.xpose.msra.mxu0 0
        %1261 = vmatprep.subr.bf16.mxu0 0
        %1262 = vmatpush1.bf16.xpose.msra.mxu0 0
        %1263 = vmatprep.subr.bf16.mxu0 0
        %1264 = vmatpush1.bf16.xpose.msra.mxu0 %v1247
        %1265 = vmatprep.subr.bf16.mxu0 0
        %1266 = vmatpush2.bf16.xpose.msra.mxu0 0
        %1267 = vmatprep.subr.bf16.mxu0 0
        %1268 = vmatpush2.bf16.xpose.msra.mxu0 0
        %1269 = vmatprep.subr.bf16.mxu0 0
        %1270 = vmatpush2.bf16.xpose.msra.mxu0 0
        %1271 = vmatprep.subr.bf16.mxu0 0
        %1272 = vmatpush2.bf16.xpose.msra.mxu0 0
        %1273 = vmatprep.subr.bf16.mxu0 0
        %1274 = vmatpush2.bf16.xpose.msra.mxu0 0
        %1275 = vmatprep.subr.bf16.mxu0 0
        %1276 = vmatpush2.bf16.xpose.msra.mxu0 0
        %1277 = vmatprep.subr.bf16.mxu0 0
        %1278 = vmatpush2.bf16.xpose.msra.mxu0 0
        %1279 = vmatprep.subr.bf16.mxu0 0
        %1280 = vmatpush2.bf16.xpose.msra.mxu0 0
        %1281 = vmatprep.mubr.bf16.mxu0 0
        %1282 = vmatmul.mubr.bf16.gmra.mxu0 %v1244
        %v1283 = vpop.f32.mrf.mxu0
        %v1284 = vadd.f32 %v1148, %v1283
        %v1285 = vpop.f32.mrf.mxu0
        %v1286 = vpop.f32.mrf.mxu0
        %v1287 = vpop.f32.mrf.mxu0
        %1288 = vdwg.mxu0
        %v1290 = vsel %vm1150, %v832, 0
        %v1293 = vsel %vm1150, %v991, 0
        %1295 = vmatprep.subr.bf16.mxu0 0
        %1296 = vmatpush1.bf16.xpose.msra.mxu0 0
        %1297 = vmatprep.subr.bf16.mxu0 0
        %1298 = vmatpush1.bf16.xpose.msra.mxu0 0
        %1299 = vmatprep.subr.bf16.mxu0 0
        %1300 = vmatpush1.bf16.xpose.msra.mxu0 0
        %1301 = vmatprep.subr.bf16.mxu0 0
        %1302 = vmatpush1.bf16.xpose.msra.mxu0 0
        %1303 = vmatprep.subr.bf16.mxu0 0
        %1304 = vmatpush1.bf16.xpose.msra.mxu0 0
        %1305 = vmatprep.subr.bf16.mxu0 0
        %1306 = vmatpush1.bf16.xpose.msra.mxu0 0
        %1307 = vmatprep.subr.bf16.mxu0 0
        %1308 = vmatpush1.bf16.xpose.msra.mxu0 0
        %1309 = vmatprep.subr.bf16.mxu0 0
        %1310 = vmatpush1.bf16.xpose.msra.mxu0 %v1293
        %1311 = vmatprep.subr.bf16.mxu0 0
        %1312 = vmatpush2.bf16.xpose.msra.mxu0 0
        %1313 = vmatprep.subr.bf16.mxu0 0
        %1314 = vmatpush2.bf16.xpose.msra.mxu0 0
        %1315 = vmatprep.subr.bf16.mxu0 0
        %1316 = vmatpush2.bf16.xpose.msra.mxu0 0
        %1317 = vmatprep.subr.bf16.mxu0 0
        %1318 = vmatpush2.bf16.xpose.msra.mxu0 0
        %1319 = vmatprep.subr.bf16.mxu0 0
        %1320 = vmatpush2.bf16.xpose.msra.mxu0 0
        %1321 = vmatprep.subr.bf16.mxu0 0
        %1322 = vmatpush2.bf16.xpose.msra.mxu0 0
        %1323 = vmatprep.subr.bf16.mxu0 0
        %1324 = vmatpush2.bf16.xpose.msra.mxu0 0
        %1325 = vmatprep.subr.bf16.mxu0 0
        %1326 = vmatpush2.bf16.xpose.msra.mxu0 0
        %1327 = vmatprep.mubr.bf16.mxu0 0
        %1328 = vmatmul.mubr.bf16.gmra.mxu0 %v1290
        %v1329 = vpop.f32.mrf.mxu0
        %v1330 = vadd.f32 %v1148, %v1329
        %v1331 = vpop.f32.mrf.mxu0
        %v1332 = vpop.f32.mrf.mxu0
        %v1333 = vpop.f32.mrf.mxu0
        %1334 = vdwg.mxu0
        %v1335 = vsel %vm1150, %v1192, -inf
        %1336 = vmax.xlane.f32.xlu0 %v1335
        %v1337 = vpop.xlane.xlu0 %1336
        %v1338 = vsel %vm1150, %v1238, -inf
        %1339 = vmax.xlane.f32.xlu0 %v1338
        %v1340 = vpop.xlane.xlu0 %1339
        %v1341 = vsel %vm1150, %v1284, -inf
        %1342 = vmax.xlane.f32.xlu0 %v1341
        %v1343 = vpop.xlane.xlu0 %1342
        %v1344 = vsel %vm1150, %v1330, -inf
        %1345 = vmax.xlane.f32.xlu0 %v1344
        %v1346 = vpop.xlane.xlu0 %1345
        %v1347 = vsub.f32 %v1192, %v1337
        %v1348 = vsub.f32 %v1238, %v1340
        %v1349 = vsub.f32 %v1284, %v1343
        %v1350 = vsub.f32 %v1330, %v1346
        %v1351 = vmul.f32 %v1347, 1.442695
        %v1352 = vpow.pop %v1351
        %v1353 = vmul.f32 %v1348, 1.442695
        %v1354 = vpow.pop %v1353
        %v1355 = vmul.f32 %v1349, 1.442695
        %v1356 = vpow.pop %v1355
        %v1357 = vmul.f32 %v1350, 1.442695
        %v1358 = vpow.pop %v1357
        %v1359 = vsel %vm1150, %v1352, 0.0
        %1360 = vadd.xlane.f32.xlu0 %v1359
        %v1361 = vpop.xlane.xlu0 %1360
        %v1362 = vsel %vm1150, %v1354, 0.0
        %1363 = vadd.xlane.f32.xlu0 %v1362
        %v1364 = vpop.xlane.xlu0 %1363
        %v1365 = vsel %vm1150, %v1356, 0.0
        %1366 = vadd.xlane.f32.xlu0 %v1365
        %v1367 = vpop.xlane.xlu0 %1366
        %v1368 = vsel %vm1150, %v1358, 0.0
        %1369 = vadd.xlane.f32.xlu0 %v1368
        %v1370 = vpop.xlane.xlu0 %1369
        %v1371 = vrcp.pop %v1361
        %v1372 = vrcp.pop %v1364
        %v1373 = vrcp.pop %v1367
        %v1374 = vrcp.pop %v1370
        %v1375 = vmul.f32 %v1352, %v1371
        %v1376 = vmul.f32 %v1354, %v1372
        %v1377 = vmul.f32 %v1356, %v1373
        %v1378 = vmul.f32 %v1358, %v1374
        %v1379 = vpack.c.bf16 %v1375, %v1375
        %v1380 = vpack.c.bf16 %v1376, %v1376
        %v1381 = vpack.c.bf16 %v1377, %v1377
        %v1382 = vpack.c.bf16 %v1378, %v1378
        %v1384 = vsel %vm1150, %v1379, 0
        %vm1386 = vcmask 1043456
        %v1388 = vsel %vm1386, %v1140, 0
        %1390 = vmatprep.subr.bf16.mxu0 0
        %1391 = vmatpush1.bf16.msra.mxu0 0
        %1392 = vmatprep.subr.bf16.mxu0 0
        %1393 = vmatpush1.bf16.msra.mxu0 0
        %1394 = vmatprep.subr.bf16.mxu0 0
        %1395 = vmatpush1.bf16.msra.mxu0 0
        %1396 = vmatprep.subr.bf16.mxu0 0
        %1397 = vmatpush1.bf16.msra.mxu0 0
        %1398 = vmatprep.subr.bf16.mxu0 0
        %1399 = vmatpush1.bf16.msra.mxu0 0
        %1400 = vmatprep.subr.bf16.mxu0 0
        %1401 = vmatpush1.bf16.msra.mxu0 0
        %1402 = vmatprep.subr.bf16.mxu0 0
        %1403 = vmatpush1.bf16.msra.mxu0 0
        %1404 = vmatprep.subr.bf16.mxu0 0
        %1405 = vmatpush1.bf16.msra.mxu0 %v1388
        %1406 = vmatprep.subr.bf16.mxu0 0
        %1407 = vmatpush2.bf16.msra.mxu0 0
        %1408 = vmatprep.subr.bf16.mxu0 0
        %1409 = vmatpush2.bf16.msra.mxu0 0
        %1410 = vmatprep.subr.bf16.mxu0 0
        %1411 = vmatpush2.bf16.msra.mxu0 0
        %1412 = vmatprep.subr.bf16.mxu0 0
        %1413 = vmatpush2.bf16.msra.mxu0 0
        %1414 = vmatprep.subr.bf16.mxu0 0
        %1415 = vmatpush2.bf16.msra.mxu0 0
        %1416 = vmatprep.subr.bf16.mxu0 0
        %1417 = vmatpush2.bf16.msra.mxu0 0
        %1418 = vmatprep.subr.bf16.mxu0 0
        %1419 = vmatpush2.bf16.msra.mxu0 0
        %1420 = vmatprep.subr.bf16.mxu0 0
        %1421 = vmatpush2.bf16.msra.mxu0 0
        %1422 = vmatprep.mubr.bf16.mxu0 0
        %1423 = vmatmul.mubr.bf16.gmra.mxu0 %v1384
        %v1424 = vpop.f32.mrf.mxu0
        %v1425 = vadd.f32 0.0, %v1424
        %v1426 = vpop.f32.mrf.mxu0
        %v1427 = vpop.f32.mrf.mxu0
        %v1428 = vpop.f32.mrf.mxu0
        %1429 = vdwg.mxu0
        %v1431 = vsel %vm1150, %v1380, 0
        %v1434 = vsel %vm1386, %v1141, 0
        %1436 = vmatprep.subr.bf16.mxu0 0
        %1437 = vmatpush1.bf16.msra.mxu0 0
        %1438 = vmatprep.subr.bf16.mxu0 0
        %1439 = vmatpush1.bf16.msra.mxu0 0
        %1440 = vmatprep.subr.bf16.mxu0 0
        %1441 = vmatpush1.bf16.msra.mxu0 0
        %1442 = vmatprep.subr.bf16.mxu0 0
        %1443 = vmatpush1.bf16.msra.mxu0 0
        %1444 = vmatprep.subr.bf16.mxu0 0
        %1445 = vmatpush1.bf16.msra.mxu0 0
        %1446 = vmatprep.subr.bf16.mxu0 0
        %1447 = vmatpush1.bf16.msra.mxu0 0
        %1448 = vmatprep.subr.bf16.mxu0 0
        %1449 = vmatpush1.bf16.msra.mxu0 0
        %1450 = vmatprep.subr.bf16.mxu0 0
        %1451 = vmatpush1.bf16.msra.mxu0 %v1434
        %1452 = vmatprep.subr.bf16.mxu0 0
        %1453 = vmatpush2.bf16.msra.mxu0 0
        %1454 = vmatprep.subr.bf16.mxu0 0
        %1455 = vmatpush2.bf16.msra.mxu0 0
        %1456 = vmatprep.subr.bf16.mxu0 0
        %1457 = vmatpush2.bf16.msra.mxu0 0
        %1458 = vmatprep.subr.bf16.mxu0 0
        %1459 = vmatpush2.bf16.msra.mxu0 0
        %1460 = vmatprep.subr.bf16.mxu0 0
        %1461 = vmatpush2.bf16.msra.mxu0 0
        %1462 = vmatprep.subr.bf16.mxu0 0
        %1463 = vmatpush2.bf16.msra.mxu0 0
        %1464 = vmatprep.subr.bf16.mxu0 0
        %1465 = vmatpush2.bf16.msra.mxu0 0
        %1466 = vmatprep.subr.bf16.mxu0 0
        %1467 = vmatpush2.bf16.msra.mxu0 0
        %1468 = vmatprep.mubr.bf16.mxu0 0
        %1469 = vmatmul.mubr.bf16.gmra.mxu0 %v1431
        %v1470 = vpop.f32.mrf.mxu0
        %v1471 = vadd.f32 0.0, %v1470
        %v1472 = vpop.f32.mrf.mxu0
        %v1473 = vpop.f32.mrf.mxu0
        %v1474 = vpop.f32.mrf.mxu0
        %1475 = vdwg.mxu0
        %v1477 = vsel %vm1150, %v1381, 0
        %v1480 = vsel %vm1386, %v1142, 0
        %1482 = vmatprep.subr.bf16.mxu0 0
        %1483 = vmatpush1.bf16.msra.mxu0 0
        %1484 = vmatprep.subr.bf16.mxu0 0
        %1485 = vmatpush1.bf16.msra.mxu0 0
        %1486 = vmatprep.subr.bf16.mxu0 0
        %1487 = vmatpush1.bf16.msra.mxu0 0
        %1488 = vmatprep.subr.bf16.mxu0 0
        %1489 = vmatpush1.bf16.msra.mxu0 0
        %1490 = vmatprep.subr.bf16.mxu0 0
        %1491 = vmatpush1.bf16.msra.mxu0 0
        %1492 = vmatprep.subr.bf16.mxu0 0
        %1493 = vmatpush1.bf16.msra.mxu0 0
        %1494 = vmatprep.subr.bf16.mxu0 0
        %1495 = vmatpush1.bf16.msra.mxu0 0
        %1496 = vmatprep.subr.bf16.mxu0 0
        %1497 = vmatpush1.bf16.msra.mxu0 %v1480
        %1498 = vmatprep.subr.bf16.mxu0 0
        %1499 = vmatpush2.bf16.msra.mxu0 0
        %1500 = vmatprep.subr.bf16.mxu0 0
        %1501 = vmatpush2.bf16.msra.mxu0 0
        %1502 = vmatprep.subr.bf16.mxu0 0
        %1503 = vmatpush2.bf16.msra.mxu0 0
        %1504 = vmatprep.subr.bf16.mxu0 0
        %1505 = vmatpush2.bf16.msra.mxu0 0
        %1506 = vmatprep.subr.bf16.mxu0 0
        %1507 = vmatpush2.bf16.msra.mxu0 0
        %1508 = vmatprep.subr.bf16.mxu0 0
        %1509 = vmatpush2.bf16.msra.mxu0 0
        %1510 = vmatprep.subr.bf16.mxu0 0
        %1511 = vmatpush2.bf16.msra.mxu0 0
        %1512 = vmatprep.subr.bf16.mxu0 0
        %1513 = vmatpush2.bf16.msra.mxu0 0
        %1514 = vmatprep.mubr.bf16.mxu0 0
        %1515 = vmatmul.mubr.bf16.gmra.mxu0 %v1477
        %v1516 = vpop.f32.mrf.mxu0
        %v1517 = vadd.f32 0.0, %v1516
        %v1518 = vpop.f32.mrf.mxu0
        %v1519 = vpop.f32.mrf.mxu0
        %v1520 = vpop.f32.mrf.mxu0
        %1521 = vdwg.mxu0
        %v1523 = vsel %vm1150, %v1382, 0
        %v1526 = vsel %vm1386, %v1143, 0
        %1528 = vmatprep.subr.bf16.mxu0 0
        %1529 = vmatpush1.bf16.msra.mxu0 0
        %1530 = vmatprep.subr.bf16.mxu0 0
        %1531 = vmatpush1.bf16.msra.mxu0 0
        %1532 = vmatprep.subr.bf16.mxu0 0
        %1533 = vmatpush1.bf16.msra.mxu0 0
        %1534 = vmatprep.subr.bf16.mxu0 0
        %1535 = vmatpush1.bf16.msra.mxu0 0
        %1536 = vmatprep.subr.bf16.mxu0 0
        %1537 = vmatpush1.bf16.msra.mxu0 0
        %1538 = vmatprep.subr.bf16.mxu0 0
        %1539 = vmatpush1.bf16.msra.mxu0 0
        %1540 = vmatprep.subr.bf16.mxu0 0
        %1541 = vmatpush1.bf16.msra.mxu0 0
        %1542 = vmatprep.subr.bf16.mxu0 0
        %1543 = vmatpush1.bf16.msra.mxu0 %v1526
        %1544 = vmatprep.subr.bf16.mxu0 0
        %1545 = vmatpush2.bf16.msra.mxu0 0
        %1546 = vmatprep.subr.bf16.mxu0 0
        %1547 = vmatpush2.bf16.msra.mxu0 0
        %1548 = vmatprep.subr.bf16.mxu0 0
        %1549 = vmatpush2.bf16.msra.mxu0 0
        %1550 = vmatprep.subr.bf16.mxu0 0
        %1551 = vmatpush2.bf16.msra.mxu0 0
        %1552 = vmatprep.subr.bf16.mxu0 0
        %1553 = vmatpush2.bf16.msra.mxu0 0
        %1554 = vmatprep.subr.bf16.mxu0 0
        %1555 = vmatpush2.bf16.msra.mxu0 0
        %1556 = vmatprep.subr.bf16.mxu0 0
        %1557 = vmatpush2.bf16.msra.mxu0 0
        %1558 = vmatprep.subr.bf16.mxu0 0
        %1559 = vmatpush2.bf16.msra.mxu0 0
        %1560 = vmatprep.mubr.bf16.mxu0 0
        %1561 = vmatmul.mubr.bf16.gmra.mxu0 %v1523
        %v1562 = vpop.f32.mrf.mxu0
        %v1563 = vadd.f32 0.0, %v1562
        %v1564 = vpop.f32.mrf.mxu0
        %v1565 = vpop.f32.mrf.mxu0
        %v1566 = vpop.f32.mrf.mxu0
        %1567 = vdwg.mxu0
        %v1568 = vcombine.low %v1425, %v1517
        %v1569 = vcombine.high %v1425, %v1517
        %v1571 = vunpack.c.l.s4 1983009808
        %v1572 = vunpack.c.0.s8 %v1571
        %v1573 = vlaneseq
        %v1574 = vshrl.u32 %v1573, 7
        %v1575 = vsub.s32 %v1572, %v1574
        %v1576 = vrot.slane %v1568, %v1575
        %v1578 = vunpack.c.l.s4 1983009808
        %v1579 = vunpack.c.0.s8 %v1578
        %v1580 = vlaneseq
        %v1581 = vshrl.u32 %v1580, 7
        %v1582 = vsub.s32 %v1579, %v1581
        %v1583 = vrot.slane %v1569, %v1582
        %v1584 = vcombine.low %v1471, %v1563
        %v1585 = vcombine.high %v1471, %v1563
        %v1587 = vunpack.c.l.s4 1983009808
        %v1588 = vunpack.c.0.s8 %v1587
        %v1589 = vlaneseq
        %v1590 = vshrl.u32 %v1589, 7
        %v1591 = vsub.s32 %v1588, %v1590
        %v1592 = vrot.slane %v1584, %v1591
        %v1594 = vunpack.c.l.s4 1983009808
        %v1595 = vunpack.c.0.s8 %v1594
        %v1596 = vlaneseq
        %v1597 = vshrl.u32 %v1596, 7
        %v1598 = vsub.s32 %v1595, %v1597
        %v1599 = vrot.slane %v1585, %v1598
        %v1600 = vcombine.low %v1576, %v1592
        %v1601 = vcombine.high %v1576, %v1592
        %v1603 = vunpack.c.l.s4 1934713408
        %v1604 = vunpack.c.0.s8 %v1603
        %v1605 = vlaneseq
        %v1606 = vshrl.u32 %v1605, 7
        %v1607 = vsub.s32 %v1604, %v1606
        %v1608 = vrot.slane %v1600, %v1607
        %v1610 = vunpack.c.l.s4 1934713408
        %v1611 = vunpack.c.0.s8 %v1610
        %v1612 = vlaneseq
        %v1613 = vshrl.u32 %v1612, 7
        %v1614 = vsub.s32 %v1611, %v1613
        %v1615 = vrot.slane %v1601, %v1614
        %v1616 = vcombine.low %v1583, %v1599
        %v1617 = vcombine.high %v1583, %v1599
        %v1619 = vunpack.c.l.s4 1934713408
        %v1620 = vunpack.c.0.s8 %v1619
        %v1621 = vlaneseq
        %v1622 = vshrl.u32 %v1621, 7
        %v1623 = vsub.s32 %v1620, %v1622
        %v1624 = vrot.slane %v1616, %v1623
        %v1626 = vunpack.c.l.s4 1934713408
        %v1627 = vunpack.c.0.s8 %v1626
        %v1628 = vlaneseq
        %v1629 = vshrl.u32 %v1628, 7
        %v1630 = vsub.s32 %v1627, %v1629
        %v1631 = vrot.slane %v1617, %v1630
        %v1632 = vcombine.high %v1608, 0.0
        %v1633 = vcombine.high %v1615, 0.0
        %v1634 = vcombine.high %v1624, 0.0
        %v1635 = vcombine.high %v1631, 0.0
        %v1636 = vcombine.low %v1608, %v1615
        %v1638 = vunpack.c.l.s4 1983009808
        %v1639 = vunpack.c.0.s8 %v1638
        %v1640 = vlaneseq
        %v1641 = vshrl.u32 %v1640, 7
        %v1642 = vsub.s32 %v1639, %v1641
        %v1643 = vrot.slane %v1636, %v1642
        %v1644 = vcombine.low %v1632, %v1633
        %v1646 = vunpack.c.l.s4 1983009808
        %v1647 = vunpack.c.0.s8 %v1646
        %v1648 = vlaneseq
        %v1649 = vshrl.u32 %v1648, 7
        %v1650 = vsub.s32 %v1647, %v1649
        %v1651 = vrot.slane %v1644, %v1650
        %v1652 = vcombine.low %v1624, %v1631
        %v1654 = vunpack.c.l.s4 1983009808
        %v1655 = vunpack.c.0.s8 %v1654
        %v1656 = vlaneseq
        %v1657 = vshrl.u32 %v1656, 7
        %v1658 = vsub.s32 %v1655, %v1657
        %v1659 = vrot.slane %v1652, %v1658
        %v1660 = vcombine.low %v1634, %v1635
        %v1662 = vunpack.c.l.s4 1983009808
        %v1663 = vunpack.c.0.s8 %v1662
        %v1664 = vlaneseq
        %v1665 = vshrl.u32 %v1664, 7
        %v1666 = vsub.s32 %v1663, %v1665
        %v1667 = vrot.slane %v1660, %v1666
        %v1668 = vcombine.low %v1643, %v1651
        %v1669 = vcombine.high %v1643, %v1651
        %v1671 = vunpack.c.l.s4 1934713408
        %v1672 = vunpack.c.0.s8 %v1671
        %v1673 = vlaneseq
        %v1674 = vshrl.u32 %v1673, 7
        %v1675 = vsub.s32 %v1672, %v1674
        %v1676 = vrot.slane %v1668, %v1675
        %v1678 = vunpack.c.l.s4 1934713408
        %v1679 = vunpack.c.0.s8 %v1678
        %v1680 = vlaneseq
        %v1681 = vshrl.u32 %v1680, 7
        %v1682 = vsub.s32 %v1679, %v1681
        %v1683 = vrot.slane %v1669, %v1682
        %v1684 = vcombine.low %v1659, %v1667
        %v1685 = vcombine.high %v1659, %v1667
        %v1687 = vunpack.c.l.s4 1934713408
        %v1688 = vunpack.c.0.s8 %v1687
        %v1689 = vlaneseq
        %v1690 = vshrl.u32 %v1689, 7
        %v1691 = vsub.s32 %v1688, %v1690
        %v1692 = vrot.slane %v1684, %v1691
        %v1694 = vunpack.c.l.s4 1934713408
        %v1695 = vunpack.c.0.s8 %v1694
        %v1696 = vlaneseq
        %v1697 = vshrl.u32 %v1696, 7
        %v1698 = vsub.s32 %v1695, %v1697
        %v1699 = vrot.slane %v1685, %v1698
        %v1700 = vcombine.low %v1676, %v1692
        %v1701 = vcombine.high %v1676, %v1692
        %v1702 = vcombine.low %v1683, %v1699
        %v1703 = vcombine.high %v1683, %v1699
        %1705 = vrot.lane.b32.xlu0 %v1701, 8
        %v1706 = vpop.permute.xlu0 %1705
        %1709 = vrot.lane.b32.xlu0 %v1702, 16
        %v1710 = vpop.permute.xlu0 %1709
        %1713 = vrot.lane.b32.xlu0 %v1703, 24
        %v1714 = vpop.permute.xlu0 %1713
        %v1716 = vsel %vm1150, %v1700, %v1706
        %vm1717 = vcmask 130048
        %v1718 = vsel %vm1717, %v1716, %v1710
        %vm1719 = vcmask 195584
        %v1720 = vsel %vm1719, %v1718, %v1714
        %v1721 = vpack.c.bf16 %v1720, %v1720
        %v1722 = vld [vmem:[%s6] sm:$0xf]
        %v1723 = vld [vmem:[%s6 + $0x4] sm:$0xf]
        %v1724 = vld [vmem:[%s6 + $0x8] sm:$0xf]
        %v1725 = vld [vmem:[%s6 + $0xc] sm:$0xf]
        %v1726 = vld [vmem:[#allocation10] sm:$0x1]
        %v1728 = vlaneseq
        %v1729 = vshrl.u32 %v1728, 7
        %v1730 = vsub.s32 0, %v1729
        %v1731 = vrot.slane %v1726, %v1730
        %v1737 = vunpack.c.l.b16 %v1722
        %v1738 = vunpack.c.l.b16 %v1723
        %v1739 = vunpack.c.l.b16 %v1724
        %v1740 = vunpack.c.l.b16 %v1725
        %v1741 = vpack.c.b16 %v1738, %v1737
        %v1742 = vpack.c.b16 %v1740, %v1739
        %v1746 = vsel %vm579, %v1721, 0
        %1748 = vmatprep.subr.bf16.mxu0 0
        %1749 = vmatpush1.bf16.msra.mxu0 0
        %1750 = vmatprep.subr.bf16.mxu0 0
        %1751 = vmatpush1.bf16.msra.mxu0 0
        %1752 = vmatprep.subr.bf16.mxu0 0
        %1753 = vmatpush1.bf16.msra.mxu0 0
        %1754 = vmatprep.subr.bf16.mxu0 0
        %1755 = vmatpush1.bf16.msra.mxu0 0
        %1756 = vmatprep.subr.bf16.mxu0 0
        %1757 = vmatpush1.bf16.msra.mxu0 0
        %1758 = vmatprep.subr.bf16.mxu0 0
        %1759 = vmatpush1.bf16.msra.mxu0 0
        %1760 = vmatprep.subr.bf16.mxu0 0
        %1761 = vmatpush1.bf16.msra.mxu0 %v1742
        %1762 = vmatprep.subr.bf16.mxu0 0
        %1763 = vmatpush1.bf16.msra.mxu0 %v1741
        %1764 = vmatprep.subr.bf16.mxu0 0
        %1765 = vmatpush2.bf16.msra.mxu0 0
        %1766 = vmatprep.subr.bf16.mxu0 0
        %1767 = vmatpush2.bf16.msra.mxu0 0
        %1768 = vmatprep.subr.bf16.mxu0 0
        %1769 = vmatpush2.bf16.msra.mxu0 0
        %1770 = vmatprep.subr.bf16.mxu0 0
        %1771 = vmatpush2.bf16.msra.mxu0 0
        %1772 = vmatprep.subr.bf16.mxu0 0
        %1773 = vmatpush2.bf16.msra.mxu0 0
        %1774 = vmatprep.subr.bf16.mxu0 0
        %1775 = vmatpush2.bf16.msra.mxu0 0
        %1776 = vmatprep.subr.bf16.mxu0 0
        %1777 = vmatpush2.bf16.msra.mxu0 0
        %1778 = vmatprep.subr.bf16.mxu0 0
        %1779 = vmatpush2.bf16.msra.mxu0 0
        %1780 = vmatprep.mubr.bf16.mxu0 0
        %1781 = vmatmul.mubr.bf16.gmra.mxu0 %v1746
        %v1782 = vpop.f32.mrf.mxu0
        %v1783 = vadd.f32 %v1731, %v1782
        %v1784 = vpop.f32.mrf.mxu0
        %v1785 = vpop.f32.mrf.mxu0
        %v1786 = vpop.f32.mrf.mxu0
        %1787 = vdwg.mxu0
        %v1788 = vadd.f32 %v573, %v1783
        %v1789 = vld [vmem:[#allocation11] sm:$0x1]
        %v1790 = vld [vmem:[#allocation13] sm:$0x1]
        %v1791 = vsel %vm579, %v1788, 0.0
        %1792 = vadd.xlane.f32.xlu0 %v1791
        %v1793 = vpop.xlane.xlu0 %1792
        %v1794 = vmul.f32 %v1793, %v583
        %v1795 = vsub.f32 %v1788, %v1794
        %v1796 = vmul.f32 %v1795, %v1795
        %v1797 = vsel %vm579, %v1796, 0.0
        %1798 = vadd.xlane.f32.xlu0 %v1797
        %v1799 = vpop.xlane.xlu0 %1798
        %v1800 = vmul.f32 %v1799, 0.032258064
        %v1801 = vrsqrt.pop %v1800
        %v1802 = vmul.f32 %v1800, %v1801
        %vm1803 = vcmp.eq.f32.partialorder %v1800, inf
        %v1804 = vsel %vm1803, %v1800, %v1802
        %vm1805 = vcmp.eq.f32.partialorder %v1800, 0.0
        %v1806 = vand.u32 %v1800, 2147483648
        %v1807 = vsel %vm1805, %v1806, %v1804
        %v1808 = vadd.f32 %v1807, 1e-06
        %v1809 = vrcp.pop %v1808
        %v1811 = vlaneseq
        %v1812 = vshrl.u32 %v1811, 7
        %v1813 = vsub.s32 0, %v1812
        %v1814 = vrot.slane %v1789, %v1813
        %v1816 = vmul.f32 %v1814, %v1795
        %v1817 = vmul.f32 %v1816, %v1809
        %v1819 = vlaneseq
        %v1820 = vshrl.u32 %v1819, 7
        %v1821 = vsub.s32 0, %v1820
        %v1822 = vrot.slane %v1790, %v1821
        %v1824 = vadd.f32 %v1817, %v1822
        %v1825 = vpack.c.bf16 %v1824, %v1824
        %v1826 = vld [vmem:[%s10] sm:$0xf]
        %v1827 = vld [vmem:[%s10 + $0x4] sm:$0xf]
        %v1828 = vld [vmem:[%s10 + $0x8] sm:$0xf]
        %v1829 = vld [vmem:[%s10 + $0xc] sm:$0xf]
        %v1830 = vld [vmem:[%s11] sm:$0x1]
        %v1832 = vlaneseq
        %v1833 = vshrl.u32 %v1832, 7
        %v1834 = vsub.s32 0, %v1833
        %v1835 = vrot.slane %v1830, %v1834
        %v1841 = vunpack.c.l.b16 %v1826
        %v1842 = vunpack.c.l.b16 %v1827
        %v1843 = vunpack.c.l.b16 %v1828
        %v1844 = vunpack.c.l.b16 %v1829
        %v1845 = vpack.c.b16 %v1842, %v1841
        %v1846 = vpack.c.b16 %v1844, %v1843
        %v1850 = vsel %vm579, %v1825, 0
        %1852 = vmatprep.subr.bf16.mxu0 0
        %1853 = vmatpush1.bf16.msra.mxu0 0
        %1854 = vmatprep.subr.bf16.mxu0 0
        %1855 = vmatpush1.bf16.msra.mxu0 0
        %1856 = vmatprep.subr.bf16.mxu0 0
        %1857 = vmatpush1.bf16.msra.mxu0 0
        %1858 = vmatprep.subr.bf16.mxu0 0
        %1859 = vmatpush1.bf16.msra.mxu0 0
        %1860 = vmatprep.subr.bf16.mxu0 0
        %1861 = vmatpush1.bf16.msra.mxu0 0
        %1862 = vmatprep.subr.bf16.mxu0 0
        %1863 = vmatpush1.bf16.msra.mxu0 0
        %1864 = vmatprep.subr.bf16.mxu0 0
        %1865 = vmatpush1.bf16.msra.mxu0 %v1846
        %1866 = vmatprep.subr.bf16.mxu0 0
        %1867 = vmatpush1.bf16.msra.mxu0 %v1845
        %1868 = vmatprep.subr.bf16.mxu0 0
        %1869 = vmatpush2.bf16.msra.mxu0 0
        %1870 = vmatprep.subr.bf16.mxu0 0
        %1871 = vmatpush2.bf16.msra.mxu0 0
        %1872 = vmatprep.subr.bf16.mxu0 0
        %1873 = vmatpush2.bf16.msra.mxu0 0
        %1874 = vmatprep.subr.bf16.mxu0 0
        %1875 = vmatpush2.bf16.msra.mxu0 0
        %1876 = vmatprep.subr.bf16.mxu0 0
        %1877 = vmatpush2.bf16.msra.mxu0 0
        %1878 = vmatprep.subr.bf16.mxu0 0
        %1879 = vmatpush2.bf16.msra.mxu0 0
        %1880 = vmatprep.subr.bf16.mxu0 0
        %1881 = vmatpush2.bf16.msra.mxu0 0
        %1882 = vmatprep.subr.bf16.mxu0 0
        %1883 = vmatpush2.bf16.msra.mxu0 0
        %1884 = vmatprep.mubr.bf16.mxu0 0
        %1885 = vmatmul.mubr.bf16.gmra.mxu0 %v1850
        %v1886 = vpop.f32.mrf.mxu0
        %v1887 = vadd.f32 %v1835, %v1886
        %v1888 = vpop.f32.mrf.mxu0
        %v1889 = vpop.f32.mrf.mxu0
        %v1890 = vpop.f32.mrf.mxu0
        %1891 = vdwg.mxu0
        %v1892 = vmax.f32 %v1887, 0.0
        %v1893 = vpack.c.bf16 %v1892, %v1892
        %v1894 = vld [vmem:[%s12] sm:$0xf]
        %v1895 = vld [vmem:[%s12 + $0x4] sm:$0xf]
        %v1896 = vld [vmem:[%s12 + $0x8] sm:$0xf]
        %v1897 = vld [vmem:[%s12 + $0xc] sm:$0xf]
        %v1898 = vld [vmem:[%s12 + $0x10] sm:$0xf]
        %v1899 = vld [vmem:[%s12 + $0x14] sm:$0xf]
        %v1900 = vld [vmem:[%s12 + $0x18] sm:$0xf]
        %v1901 = vld [vmem:[%s12 + $0x1c] sm:$0xf]
        %v1902 = vld [vmem:[%s13] sm:$0x1]
        %v1904 = vlaneseq
        %v1905 = vshrl.u32 %v1904, 7
        %v1906 = vsub.s32 0, %v1905
        %v1907 = vrot.slane %v1902, %v1906
        %v1917 = vunpack.c.l.b16 %v1894
        %v1918 = vunpack.c.l.b16 %v1895
        %v1919 = vunpack.c.l.b16 %v1896
        %v1920 = vunpack.c.l.b16 %v1897
        %v1921 = vunpack.c.l.b16 %v1898
        %v1922 = vunpack.c.l.b16 %v1899
        %v1923 = vunpack.c.l.b16 %v1900
        %v1924 = vunpack.c.l.b16 %v1901
        %v1925 = vpack.c.b16 %v1918, %v1917
        %v1926 = vpack.c.b16 %v1920, %v1919
        %v1927 = vpack.c.b16 %v1922, %v1921
        %v1928 = vpack.c.b16 %v1924, %v1923
        %vm1933 = vcmask 523264
        %v1935 = vsel %vm1933, %v1893, 0
        %1937 = vmatprep.subr.bf16.mxu0 0
        %1938 = vmatpush1.bf16.msra.mxu0 0
        %1939 = vmatprep.subr.bf16.mxu0 0
        %1940 = vmatpush1.bf16.msra.mxu0 0
        %1941 = vmatprep.subr.bf16.mxu0 0
        %1942 = vmatpush1.bf16.msra.mxu0 0
        %1943 = vmatprep.subr.bf16.mxu0 0
        %1944 = vmatpush1.bf16.msra.mxu0 0
        %1945 = vmatprep.subr.bf16.mxu0 0
        %1946 = vmatpush1.bf16.msra.mxu0 %v1928
        %1947 = vmatprep.subr.bf16.mxu0 0
        %1948 = vmatpush1.bf16.msra.mxu0 %v1927
        %1949 = vmatprep.subr.bf16.mxu0 0
        %1950 = vmatpush1.bf16.msra.mxu0 %v1926
        %1951 = vmatprep.subr.bf16.mxu0 0
        %1952 = vmatpush1.bf16.msra.mxu0 %v1925
        %1953 = vmatprep.subr.bf16.mxu0 0
        %1954 = vmatpush2.bf16.msra.mxu0 0
        %1955 = vmatprep.subr.bf16.mxu0 0
        %1956 = vmatpush2.bf16.msra.mxu0 0
        %1957 = vmatprep.subr.bf16.mxu0 0
        %1958 = vmatpush2.bf16.msra.mxu0 0
        %1959 = vmatprep.subr.bf16.mxu0 0
        %1960 = vmatpush2.bf16.msra.mxu0 0
        %1961 = vmatprep.subr.bf16.mxu0 0
        %1962 = vmatpush2.bf16.msra.mxu0 0
        %1963 = vmatprep.subr.bf16.mxu0 0
        %1964 = vmatpush2.bf16.msra.mxu0 0
        %1965 = vmatprep.subr.bf16.mxu0 0
        %1966 = vmatpush2.bf16.msra.mxu0 0
        %1967 = vmatprep.subr.bf16.mxu0 0
        %1968 = vmatpush2.bf16.msra.mxu0 0
        %1969 = vmatprep.mubr.bf16.mxu0 0
        %1970 = vmatmul.mubr.bf16.gmra.mxu0 %v1935
        %v1971 = vpop.f32.mrf.mxu0
        %v1972 = vadd.f32 %v1907, %v1971
        %v1973 = vpop.f32.mrf.mxu0
        %v1974 = vpop.f32.mrf.mxu0
        %v1975 = vpop.f32.mrf.mxu0
        %1976 = vdwg.mxu0
        %v1977 = vadd.f32 %v1788, %v1972
        %1978 = vst.msk [vmem:[%s567] sm:$0xff] %vm579, %v1977
        %s1979 = sand.u32 %s346, 1
        %s1980 = scalar_lea.sflag [#allocation4], %s1979
        %s1981 = sand.u32 %s346, 1
        %s1982 = smul.addr %s1981, 8
        %s1983 = scalar_lea.vmem [#allocation14], %s1982
        // Predicated region
        $region105: #{tpu_custom_call.1} parent=75 // pred_check
          %p1984 = pneg %p356
        $region106: #{tpu_custom_call.1} parent=75 // pred_check_branch
          %1986 = sbr.rel (%p1984) target = $region108
        $region107: #{tpu_custom_call.1} parent=75 // pred_region
          %s1988 = ssub.s32 128, 128
          %1989 = vsyncadd %s1980, %s1988
          %s1990 = smul.addr %s34, 128
          %s1991 = scalar_lea.hbm %s14, %s1990
          %s1993 = sshll.u32 %s1983, 4
          %s1994 = int_to_ptr.vmem [resolvable:$true] %s1993
          %1996 = dma.vmem_to_hbm [thread:$0]  %s1994, 128, %s1991, %s1980
        $region108: #{tpu_custom_call.1} parent=75 // pred_fallthru
          _
      $region76: #{tpu_custom_call.1} parent=5 // pred_fallthru
        _
      %p1997 = scmp.le.s32.totalorder 2, %s29
      // Predicated region
      $region109: #{tpu_custom_call.1} parent=5 // pred_check
        %p1998 = pneg %p1997
      $region110: #{tpu_custom_call.1} parent=5 // pred_check_branch
        %2000 = sbr.rel (%p1998) target = $region112
      $region111: #{tpu_custom_call.1} parent=5 // pred_region
        %s2001 = ssub.s32 %s29, 2
        // Predicated region
        $region113: #{tpu_custom_call.1} parent=111 // pred_check
          %p2002 = pneg %p362
        $region114: #{tpu_custom_call.1} parent=111 // pred_check_branch
          %2004 = sbr.rel (%p2002) target = $region116
        $region115: #{tpu_custom_call.1} parent=111 // pred_region
          %s2005 = sand.u32 %s347, 1
          %s2006 = scalar_lea.sflag [#allocation4], %s2005
          %s2007 = sand.u32 %s347, 1
          %s2008 = smul.addr %s2007, 8
          %s2009 = scalar_lea.vmem [#allocation14], %s2008
          %2010 = dma.done %s2006, 128
        $region116: #{tpu_custom_call.1} parent=111 // pred_fallthru
          _
      $region112: #{tpu_custom_call.1} parent=5 // pred_fallthru
        _
    $region6: #{tpu_custom_call.1} parent=1 // loop_footer
      %s33 = sadd.s32 1, %s29
    $region7: #{tpu_custom_call.1} parent=1 // loop_footer_branch
      %28 = sbr.rel target = $region3
    $region8: #{tpu_custom_call.1} parent=1 // loop_exit
      _
    %2011 = vsyncpa [#allocation3], 1
    %s2012 = scalar_lea.sflag [#allocation3], 1
    %2013 = vsyncpa %s2012, 1
    %2014 = vsyncpa [#allocation6], 1
    %2015 = vsyncpa [#allocation9], 1
    %2016 = vsyncpa [#allocation12], 1
    %2017 = vsyncpa [#allocation4], 1
    %s2018 = scalar_lea.sflag [#allocation4], 1
    %2019 = vsyncpa %s2018, 1

// kernel: tpu_custom_call.1
$region0: #{tpu_custom_call.1}
  #allocation0 [shape = 'u32[]', space=smem, size = 0x4, offset = 0x4, fixed_abs, tag = 'smem constant byte address 0x4 - core index']
  #allocation1 [shape = 'u32[144,128]{1,0:T(1,128)}', space=vmem, size = 0x12000, scoped, tag = 'internal scratch']
  %s0 = inlined_call_operand.vmem [shape: f32[16,32], index: 0, kind: input, shape index: {}]
  %s1 = inlined_call_operand.hbm [shape: f32[2,1,8], index: 1, kind: input, shape index: {}]
  %s2 = inlined_call_operand.hbm [shape: f32[1,32], index: 2, kind: input, shape index: {}]
  %s3 = inlined_call_operand.hbm [shape: f32[1,32], index: 3, kind: input, shape index: {}]
  %s4 = inlined_call_operand.vmem [shape: bf16[32,96], index: 4, kind: input, shape index: {}]
  %s5 = inlined_call_operand.hbm [shape: f32[1,96], index: 5, kind: input, shape index: {}]
  %s6 = inlined_call_operand.vmem [shape: bf16[32,32], index: 6, kind: input, shape index: {}]
  %s7 = inlined_call_operand.hbm [shape: f32[1,32], index: 7, kind: input, shape index: {}]
  %s8 = inlined_call_operand.hbm [shape: f32[1,32], index: 8, kind: input, shape index: {}]
  %s9 = inlined_call_operand.hbm [shape: f32[1,32], index: 9, kind: input, shape index: {}]
  %s10 = inlined_call_operand.vmem [shape: bf16[32,64], index: 10, kind: input, shape index: {}]
  %s11 = inlined_call_operand.vmem [shape: f32[1,64], index: 11, kind: input, shape index: {}]
  %s12 = inlined_call_operand.vmem [shape: bf16[64,32], index: 12, kind: input, shape index: {}]
  %s13 = inlined_call_operand.vmem [shape: f32[1,32], index: 13, kind: input, shape index: {}]
  %s14 = inlined_call_operand.hbm [shape: f32[16,32], index: 14, kind: output, shape index: {}]
  %s15 = sld [smem:[#allocation0]]
  $region117: #{tpu_custom_call.1} parent=0
    _
  %s17 = ssub.s32 1, %s15
  %s18 = scalar_select 0, %s17, %s15
  $region1: #{tpu_custom_call.1} parent=0
    #allocation2 [shape = 'u8[1024]{0}', space=vmem, size = 0x400, scoped, tag = 'input window, operand 1']
    #allocation3 [shape = 's32[2]{0}', space=sflag, size = 0x8, scoped, tag = 'scoped memory for tpu_custom_call.1']
    #allocation4 [shape = 's32[2]{0}', space=sflag, size = 0x8, scoped, tag = 'scoped memory for tpu_custom_call.1']
    #allocation5 [shape = 'u8[512]{0}', space=vmem, size = 0x400, scoped, tag = 'input window, operand 2, single buffered']
    #allocation6 [shape = 's32[1]{0}', space=sflag, size = 0x4, scoped, tag = 'scoped memory for tpu_custom_call.1']
    #allocation7 [shape = 'u8[512]{0}', space=vmem, size = 0x400, scoped, tag = 'input window, operand 3, single buffered']
    #allocation8 [shape = 'u8[512]{0}', space=vmem, size = 0x400, scoped, tag = 'input window, operand 5, single buffered']
    #allocation9 [shape = 's32[1]{0}', space=sflag, size = 0x4, scoped, tag = 'scoped memory for tpu_custom_call.1']
    #allocation10 [shape = 'u8[512]{0}', space=vmem, size = 0x400, scoped, tag = 'input window, operand 7, single buffered']
    #allocation11 [shape = 'u8[512]{0}', space=vmem, size = 0x400, scoped, tag = 'input window, operand 8, single buffered']
    #allocation12 [shape = 's32[1]{0}', space=sflag, size = 0x4, scoped, tag = 'scoped memory for tpu_custom_call.1']
    #allocation13 [shape = 'u8[512]{0}', space=vmem, size = 0x400, scoped, tag = 'input window, operand 9, single buffered']
    #allocation14 [shape = 'u8[8192]{0}', space=vmem, size = 0x2000, scoped, tag = 'output window, operand 0']
    %19 = vsyncpa [#allocation3], 0
    %s20 = scalar_lea.sflag [#allocation3], 1
    %21 = vsyncpa %s20, 0
    %22 = vsyncpa [#allocation6], 0
    %23 = vsyncpa [#allocation9], 0
    %24 = vsyncpa [#allocation12], 0
    %25 = vsyncpa [#allocation4], 0
    %s26 = scalar_lea.sflag [#allocation4], 1
    %27 = vsyncpa %s26, 0
    loop: start=0, step=1, limit=4
    $region2: #{tpu_custom_call.1} parent=1 // loop_pre_header
      _
    $region3: #{tpu_custom_call.1} parent=1 // loop_header
      %s29 = sphi 0, %s33
      %p30 = scmp.ge.s32.totalorder %s29, 4
      %s39 = sphi 0, %s41
      %s42 = sphi 0, %s39
      %s43 = sphi 0, %s42
      %s59 = sphi 0, %s43
      %s65 = sphi 0, %s67
      %s68 = sphi 0, %s65
      %s69 = sphi 0, %s68
      %s85 = sphi 0, %s69
      %s89 = sphi 0, %s89
      %s91 = sphi 0, %s89
      %s92 = sphi 0, %s91
      %s106 = sphi 0, %s92
      %s110 = sphi 0, %s110
      %s112 = sphi 0, %s110
      %s113 = sphi 0, %s112
      %s127 = sphi 0, %s113
      %s131 = sphi 0, %s131
      %s133 = sphi 0, %s131
      %s134 = sphi 0, %s133
      %s148 = sphi 0, %s134
      %s152 = sphi 0, %s152
      %s154 = sphi 0, %s152
      %s155 = sphi 0, %s154
      %s169 = sphi 0, %s155
      %s173 = sphi 0, %s173
      %s175 = sphi 0, %s173
      %s176 = sphi 0, %s175
      %s190 = sphi 0, %s176
      %s194 = sphi 0, %s194
      %s196 = sphi 0, %s194
      %s197 = sphi 0, %s196
      %s211 = sphi 0, %s197
      %s215 = sphi 0, %s215
      %s217 = sphi 0, %s215
      %s218 = sphi 0, %s217
      %s232 = sphi 0, %s218
      %s236 = sphi 0, %s236
      %s238 = sphi 0, %s236
      %s239 = sphi 0, %s238
      %s253 = sphi 0, %s239
      %s257 = sphi 0, %s257
      %s259 = sphi 0, %s257
      %s260 = sphi 0, %s259
      %s274 = sphi 0, %s260
      %s278 = sphi 0, %s278
      %s280 = sphi 0, %s278
      %s281 = sphi 0, %s280
      %s295 = sphi 0, %s281
      %s299 = sphi 0, %s299
      %s301 = sphi 0, %s299
      %s302 = sphi 0, %s301
      %s316 = sphi 0, %s302
      %s320 = sphi 0, %s320
      %s322 = sphi 0, %s320
      %s323 = sphi 0, %s322
      %s337 = sphi 0, %s323
      %s343 = sphi 0, %s345
      %s346 = sphi 0, %s343
      %s347 = sphi 0, %s346
      %s363 = sphi 0, %s347
    $region4: #{tpu_custom_call.1} parent=1 // loop_header_branch
      %32 = sbr.rel (%p30) target = $region8
    $region5: #{tpu_custom_call.1} parent=1 // loop_body
      %s34 = ssub.s32 %s29, 1
      %s35 = ssub.s32 %s29, 2
      %s36 = sadd.s32 %s29, 1
      %s37 = ssub.s32 %s29, %s36
      %p38 = scmp.eq.s32.totalorder %s37, 0
      %s40 = sadd.s32 %s39, 1
      %s41 = scalar_select %p38, %s39, %s40
      %p44 = pneg %p38
      %p45 = scmp.eq.s32.totalorder %s29, 1
      %p46 = por %p44, %p45
      %p47 = scmp.ne.s32.totalorder %s39, %s42
      %p48 = scmp.eq.s32.totalorder %s29, 0
      %p49 = por %p47, %p48
      %p50 = scmp.ne.s32.totalorder %s39, %s42
      %p51 = scmp.eq.s32.totalorder %s34, 1
      %p52 = por %p50, %p51
      %p53 = scmp.ne.s32.totalorder %s42, %s43
      %p54 = scmp.eq.s32.totalorder %s34, 0
      %p55 = por %p53, %p54
      %p56 = scmp.ne.s32.totalorder %s42, %s43
      %p57 = scmp.eq.s32.totalorder %s35, 1
      %p58 = por %p56, %p57
      %p60 = scmp.ne.s32.totalorder %s43, %s59
      %p61 = scmp.eq.s32.totalorder %s35, 0
      %p62 = por %p60, %p61
      %s63 = ssub.s32 %s29, %s36
      %p64 = scmp.eq.s32.totalorder %s63, 0
      %s66 = sadd.s32 %s65, 1
      %s67 = scalar_select %p64, %s65, %s66
      %p70 = pneg %p64
      %p71 = scmp.eq.s32.totalorder %s29, 1
      %p72 = por %p70, %p71
      %p73 = scmp.ne.s32.totalorder %s65, %s68
      %p74 = scmp.eq.s32.totalorder %s29, 0
      %p75 = por %p73, %p74
      %p76 = scmp.ne.s32.totalorder %s65, %s68
      %p77 = scmp.eq.s32.totalorder %s34, 1
      %p78 = por %p76, %p77
      %p79 = scmp.ne.s32.totalorder %s68, %s69
      %p80 = scmp.eq.s32.totalorder %s34, 0
      %p81 = por %p79, %p80
      %p82 = scmp.ne.s32.totalorder %s68, %s69
      %p83 = scmp.eq.s32.totalorder %s35, 1
      %p84 = por %p82, %p83
      %p86 = scmp.ne.s32.totalorder %s69, %s85
      %p87 = scmp.eq.s32.totalorder %s35, 0
      %p88 = por %p86, %p87
      %s90 = sadd.s32 %s89, 1
      %p93 = scmp.eq.s32.totalorder %s29, 1
      %p94 = scmp.ne.s32.totalorder %s89, %s91
      %p95 = scmp.eq.s32.totalorder %s29, 0
      %p96 = por %p94, %p95
      %p97 = scmp.ne.s32.totalorder %s89, %s91
      %p98 = scmp.eq.s32.totalorder %s34, 1
      %p99 = por %p97, %p98
      %p100 = scmp.ne.s32.totalorder %s91, %s92
      %p101 = scmp.eq.s32.totalorder %s34, 0
      %p102 = por %p100, %p101
      %p103 = scmp.ne.s32.totalorder %s91, %s92
      %p104 = scmp.eq.s32.totalorder %s35, 1
      %p105 = por %p103, %p104
      %p107 = scmp.ne.s32.totalorder %s92, %s106
      %p108 = scmp.eq.s32.totalorder %s35, 0
      %p109 = por %p107, %p108
      %s111 = sadd.s32 %s110, 1
      %p114 = scmp.eq.s32.totalorder %s29, 1
      %p115 = scmp.ne.s32.totalorder %s110, %s112
      %p116 = scmp.eq.s32.totalorder %s29, 0
      %p117 = por %p115, %p116
      %p118 = scmp.ne.s32.totalorder %s110, %s112
      %p119 = scmp.eq.s32.totalorder %s34, 1
      %p120 = por %p118, %p119
      %p121 = scmp.ne.s32.totalorder %s112, %s113
      %p122 = scmp.eq.s32.totalorder %s34, 0
      %p123 = por %p121, %p122
      %p124 = scmp.ne.s32.totalorder %s112, %s113
      %p125 = scmp.eq.s32.totalorder %s35, 1
      %p126 = por %p124, %p125
      %p128 = scmp.ne.s32.totalorder %s113, %s127
      %p129 = scmp.eq.s32.totalorder %s35, 0
      %p130 = por %p128, %p129
      %s132 = sadd.s32 %s131, 1
      %p135 = scmp.eq.s32.totalorder %s29, 1
      %p136 = scmp.ne.s32.totalorder %s131, %s133
      %p137 = scmp.eq.s32.totalorder %s29, 0
      %p138 = por %p136, %p137
      %p139 = scmp.ne.s32.totalorder %s131, %s133
      %p140 = scmp.eq.s32.totalorder %s34, 1
      %p141 = por %p139, %p140
      %p142 = scmp.ne.s32.totalorder %s133, %s134
      %p143 = scmp.eq.s32.totalorder %s34, 0
      %p144 = por %p142, %p143
      %p145 = scmp.ne.s32.totalorder %s133, %s134
      %p146 = scmp.eq.s32.totalorder %s35, 1
      %p147 = por %p145, %p146
      %p149 = scmp.ne.s32.totalorder %s134, %s148
      %p150 = scmp.eq.s32.totalorder %s35, 0
      %p151 = por %p149, %p150
      %s153 = sadd.s32 %s152, 1
      %p156 = scmp.eq.s32.totalorder %s29, 1
      %p157 = scmp.ne.s32.totalorder %s152, %s154
      %p158 = scmp.eq.s32.totalorder %s29, 0
      %p159 = por %p157, %p158
      %p160 = scmp.ne.s32.totalorder %s152, %s154
      %p161 = scmp.eq.s32.totalorder %s34, 1
      %p162 = por %p160, %p161
      %p163 = scmp.ne.s32.totalorder %s154, %s155
      %p164 = scmp.eq.s32.totalorder %s34, 0
      %p165 = por %p163, %p164
      %p166 = scmp.ne.s32.totalorder %s154, %s155
      %p167 = scmp.eq.s32.totalorder %s35, 1
      %p168 = por %p166, %p167
      %p170 = scmp.ne.s32.totalorder %s155, %s169
      %p171 = scmp.eq.s32.totalorder %s35, 0
      %p172 = por %p170, %p171
      %s174 = sadd.s32 %s173, 1
      %p177 = scmp.eq.s32.totalorder %s29, 1
      %p178 = scmp.ne.s32.totalorder %s173, %s175
      %p179 = scmp.eq.s32.totalorder %s29, 0
      %p180 = por %p178, %p179
      %p181 = scmp.ne.s32.totalorder %s173, %s175
      %p182 = scmp.eq.s32.totalorder %s34, 1
      %p183 = por %p181, %p182
      %p184 = scmp.ne.s32.totalorder %s175, %s176
      %p185 = scmp.eq.s32.totalorder %s34, 0
      %p186 = por %p184, %p185
      %p187 = scmp.ne.s32.totalorder %s175, %s176
      %p188 = scmp.eq.s32.totalorder %s35, 1
      %p189 = por %p187, %p188
      %p191 = scmp.ne.s32.totalorder %s176, %s190
      %p192 = scmp.eq.s32.totalorder %s35, 0
      %p193 = por %p191, %p192
      %s195 = sadd.s32 %s194, 1
      %p198 = scmp.eq.s32.totalorder %s29, 1
      %p199 = scmp.ne.s32.totalorder %s194, %s196
      %p200 = scmp.eq.s32.totalorder %s29, 0
      %p201 = por %p199, %p200
      %p202 = scmp.ne.s32.totalorder %s194, %s196
      %p203 = scmp.eq.s32.totalorder %s34, 1
      %p204 = por %p202, %p203
      %p205 = scmp.ne.s32.totalorder %s196, %s197
      %p206 = scmp.eq.s32.totalorder %s34, 0
      %p207 = por %p205, %p206
      %p208 = scmp.ne.s32.totalorder %s196, %s197
      %p209 = scmp.eq.s32.totalorder %s35, 1
      %p210 = por %p208, %p209
      %p212 = scmp.ne.s32.totalorder %s197, %s211
      %p213 = scmp.eq.s32.totalorder %s35, 0
      %p214 = por %p212, %p213
      %s216 = sadd.s32 %s215, 1
      %p219 = scmp.eq.s32.totalorder %s29, 1
      %p220 = scmp.ne.s32.totalorder %s215, %s217
      %p221 = scmp.eq.s32.totalorder %s29, 0
      %p222 = por %p220, %p221
      %p223 = scmp.ne.s32.totalorder %s215, %s217
      %p224 = scmp.eq.s32.totalorder %s34, 1
      %p225 = por %p223, %p224
      %p226 = scmp.ne.s32.totalorder %s217, %s218
      %p227 = scmp.eq.s32.totalorder %s34, 0
      %p228 = por %p226, %p227
      %p229 = scmp.ne.s32.totalorder %s217, %s218
      %p230 = scmp.eq.s32.totalorder %s35, 1
      %p231 = por %p229, %p230
      %p233 = scmp.ne.s32.totalorder %s218, %s232
      %p234 = scmp.eq.s32.totalorder %s35, 0
      %p235 = por %p233, %p234
      %s237 = sadd.s32 %s236, 1
      %p240 = scmp.eq.s32.totalorder %s29, 1
      %p241 = scmp.ne.s32.totalorder %s236, %s238
      %p242 = scmp.eq.s32.totalorder %s29, 0
      %p243 = por %p241, %p242
      %p244 = scmp.ne.s32.totalorder %s236, %s238
      %p245 = scmp.eq.s32.totalorder %s34, 1
      %p246 = por %p244, %p245
      %p247 = scmp.ne.s32.totalorder %s238, %s239
      %p248 = scmp.eq.s32.totalorder %s34, 0
      %p249 = por %p247, %p248
      %p250 = scmp.ne.s32.totalorder %s238, %s239
      %p251 = scmp.eq.s32.totalorder %s35, 1
      %p252 = por %p250, %p251
      %p254 = scmp.ne.s32.totalorder %s239, %s253
      %p255 = scmp.eq.s32.totalorder %s35, 0
      %p256 = por %p254, %p255
      %s258 = sadd.s32 %s257, 1
      %p261 = scmp.eq.s32.totalorder %s29, 1
      %p262 = scmp.ne.s32.totalorder %s257, %s259
      %p263 = scmp.eq.s32.totalorder %s29, 0
      %p264 = por %p262, %p263
      %p265 = scmp.ne.s32.totalorder %s257, %s259
      %p266 = scmp.eq.s32.totalorder %s34, 1
      %p267 = por %p265, %p266
      %p268 = scmp.ne.s32.totalorder %s259, %s260
      %p269 = scmp.eq.s32.totalorder %s34, 0
      %p270 = por %p268, %p269
      %p271 = scmp.ne.s32.totalorder %s259, %s260
      %p272 = scmp.eq.s32.totalorder %s35, 1
      %p273 = por %p271, %p272
      %p275 = scmp.ne.s32.totalorder %s260, %s274
      %p276 = scmp.eq.s32.totalorder %s35, 0
      %p277 = por %p275, %p276
      %s279 = sadd.s32 %s278, 1
      %p282 = scmp.eq.s32.totalorder %s29, 1
      %p283 = scmp.ne.s32.totalorder %s278, %s280
      %p284 = scmp.eq.s32.totalorder %s29, 0
      %p285 = por %p283, %p284
      %p286 = scmp.ne.s32.totalorder %s278, %s280
      %p287 = scmp.eq.s32.totalorder %s34, 1
      %p288 = por %p286, %p287
      %p289 = scmp.ne.s32.totalorder %s280, %s281
      %p290 = scmp.eq.s32.totalorder %s34, 0
      %p291 = por %p289, %p290
      %p292 = scmp.ne.s32.totalorder %s280, %s281
      %p293 = scmp.eq.s32.totalorder %s35, 1
      %p294 = por %p292, %p293
      %p296 = scmp.ne.s32.totalorder %s281, %s295
      %p297 = scmp.eq.s32.totalorder %s35, 0
      %p298 = por %p296, %p297
      %s300 = sadd.s32 %s299, 1
      %p303 = scmp.eq.s32.totalorder %s29, 1
      %p304 = scmp.ne.s32.totalorder %s299, %s301
      %p305 = scmp.eq.s32.totalorder %s29, 0
      %p306 = por %p304, %p305
      %p307 = scmp.ne.s32.totalorder %s299, %s301
      %p308 = scmp.eq.s32.totalorder %s34, 1
      %p309 = por %p307, %p308
      %p310 = scmp.ne.s32.totalorder %s301, %s302
      %p311 = scmp.eq.s32.totalorder %s34, 0
      %p312 = por %p310, %p311
      %p313 = scmp.ne.s32.totalorder %s301, %s302
      %p314 = scmp.eq.s32.totalorder %s35, 1
      %p315 = por %p313, %p314
      %p317 = scmp.ne.s32.totalorder %s302, %s316
      %p318 = scmp.eq.s32.totalorder %s35, 0
      %p319 = por %p317, %p318
      %s321 = sadd.s32 %s320, 1
      %p324 = scmp.eq.s32.totalorder %s29, 1
      %p325 = scmp.ne.s32.totalorder %s320, %s322
      %p326 = scmp.eq.s32.totalorder %s29, 0
      %p327 = por %p325, %p326
      %p328 = scmp.ne.s32.totalorder %s320, %s322
      %p329 = scmp.eq.s32.totalorder %s34, 1
      %p330 = por %p328, %p329
      %p331 = scmp.ne.s32.totalorder %s322, %s323
      %p332 = scmp.eq.s32.totalorder %s34, 0
      %p333 = por %p331, %p332
      %p334 = scmp.ne.s32.totalorder %s322, %s323
      %p335 = scmp.eq.s32.totalorder %s35, 1
      %p336 = por %p334, %p335
      %p338 = scmp.ne.s32.totalorder %s323, %s337
      %p339 = scmp.eq.s32.totalorder %s35, 0
      %p340 = por %p338, %p339
      %s341 = ssub.s32 %s29, %s36
      %p342 = scmp.eq.s32.totalorder %s341, 0
      %s344 = sadd.s32 %s343, 1
      %s345 = scalar_select %p342, %s343, %s344
      %p348 = pneg %p342
      %p349 = scmp.eq.s32.totalorder %s29, 1
      %p350 = por %p348, %p349
      %p351 = scmp.ne.s32.totalorder %s343, %s346
      %p352 = scmp.eq.s32.totalorder %s29, 0
      %p353 = por %p351, %p352
      %p354 = scmp.ne.s32.totalorder %s343, %s346
      %p355 = scmp.eq.s32.totalorder %s34, 1
      %p356 = por %p354, %p355
      %p357 = scmp.ne.s32.totalorder %s346, %s347
      %p358 = scmp.eq.s32.totalorder %s34, 0
      %p359 = por %p357, %p358
      %p360 = scmp.ne.s32.totalorder %s346, %s347
      %p361 = scmp.eq.s32.totalorder %s35, 1
      %p362 = por %p360, %p361
      %p364 = scmp.ne.s32.totalorder %s347, %s363
      %p365 = scmp.eq.s32.totalorder %s35, 0
      %p366 = por %p364, %p365
      %p367 = scmp.le.s32.totalorder 1, %s29
      %p368 = scmp.lt.s32.totalorder %s29, 3
      %p369 = pnand %p367, %p368
      %p370 = pneg %p369
      // Predicated region
      $region9: #{tpu_custom_call.1} parent=5 // pred_check
        _
      $region10: #{tpu_custom_call.1} parent=5 // pred_check_branch
        %372 = sbr.rel (%p369) target = $region12
      $region11: #{tpu_custom_call.1} parent=5 // pred_region
        %s373 = ssub.s32 %s29, 1
        // Predicated region
        $region13: #{tpu_custom_call.1} parent=11 // pred_check
          %p374 = pneg %p102
        $region14: #{tpu_custom_call.1} parent=11 // pred_check_branch
          %376 = sbr.rel (%p374) target = $region16
        $region15: #{tpu_custom_call.1} parent=11 // pred_region
          %s378 = ssub.s32 16, 16
          %379 = vsyncadd [#allocation6], %s378
          %s381 = sshll.u32 [#allocation5], 4
          %s382 = int_to_ptr.vmem [resolvable:$true] %s381
          %384 = dma.hbm_to_vmem [thread:$0]  %s2, 16, %s382, [#allocation6]
        $region16: #{tpu_custom_call.1} parent=11 // pred_fallthru
          _
        // Predicated region
        $region17: #{tpu_custom_call.1} parent=11 // pred_check
          %p385 = pneg %p123
        $region18: #{tpu_custom_call.1} parent=11 // pred_check_branch
          %387 = sbr.rel (%p385) target = $region20
        $region19: #{tpu_custom_call.1} parent=11 // pred_region
          %s389 = ssub.s32 16, 16
          %390 = vsyncadd [#allocation6], %s389
          %s392 = sshll.u32 [#allocation7], 4
          %s393 = int_to_ptr.vmem [resolvable:$true] %s392
          %395 = dma.hbm_to_vmem [thread:$0]  %s3, 16, %s393, [#allocation6]
        $region20: #{tpu_custom_call.1} parent=11 // pred_fallthru
          _
        // Predicated region
        $region21: #{tpu_custom_call.1} parent=11 // pred_check
          %p396 = pneg %p144
        $region22: #{tpu_custom_call.1} parent=11 // pred_check_branch
          %398 = sbr.rel (%p396) target = $region24
        $region23: #{tpu_custom_call.1} parent=11 // pred_region
          _
        $region24: #{tpu_custom_call.1} parent=11 // pred_fallthru
          _
        // Predicated region
        $region25: #{tpu_custom_call.1} parent=11 // pred_check
          %p399 = pneg %p165
        $region26: #{tpu_custom_call.1} parent=11 // pred_check_branch
          %401 = sbr.rel (%p399) target = $region28
        $region27: #{tpu_custom_call.1} parent=11 // pred_region
          %s403 = ssub.s32 16, 16
          %404 = vsyncadd [#allocation9], %s403
          %s406 = sshll.u32 [#allocation8], 4
          %s407 = int_to_ptr.vmem [resolvable:$true] %s406
          %409 = dma.hbm_to_vmem [thread:$0]  %s5, 16, %s407, [#allocation9]
        $region28: #{tpu_custom_call.1} parent=11 // pred_fallthru
          _
        // Predicated region
        $region29: #{tpu_custom_call.1} parent=11 // pred_check
          %p410 = pneg %p186
        $region30: #{tpu_custom_call.1} parent=11 // pred_check_branch
          %412 = sbr.rel (%p410) target = $region32
        $region31: #{tpu_custom_call.1} parent=11 // pred_region
          _
        $region32: #{tpu_custom_call.1} parent=11 // pred_fallthru
          _
        // Predicated region
        $region33: #{tpu_custom_call.1} parent=11 // pred_check
          %p413 = pneg %p207
        $region34: #{tpu_custom_call.1} parent=11 // pred_check_branch
          %415 = sbr.rel (%p413) target = $region36
        $region35: #{tpu_custom_call.1} parent=11 // pred_region
          %s417 = ssub.s32 16, 16
          %418 = vsyncadd [#allocation9], %s417
          %s420 = sshll.u32 [#allocation10], 4
          %s421 = int_to_ptr.vmem [resolvable:$true] %s420
          %423 = dma.hbm_to_vmem [thread:$0]  %s7, 16, %s421, [#allocation9]
        $region36: #{tpu_custom_call.1} parent=11 // pred_fallthru
          _
        // Predicated region
        $region37: #{tpu_custom_call.1} parent=11 // pred_check
          %p424 = pneg %p228
        $region38: #{tpu_custom_call.1} parent=11 // pred_check_branch
          %426 = sbr.rel (%p424) target = $region40
        $region39: #{tpu_custom_call.1} parent=11 // pred_region
          %s428 = ssub.s32 16, 16
          %429 = vsyncadd [#allocation12], %s428
          %s431 = sshll.u32 [#allocation11], 4
          %s432 = int_to_ptr.vmem [resolvable:$true] %s431
          %434 = dma.hbm_to_vmem [thread:$0]  %s8, 16, %s432, [#allocation12]
        $region40: #{tpu_custom_call.1} parent=11 // pred_fallthru
          _
        // Predicated region
        $region41: #{tpu_custom_call.1} parent=11 // pred_check
          %p435 = pneg %p249
        $region42: #{tpu_custom_call.1} parent=11 // pred_check_branch
          %437 = sbr.rel (%p435) target = $region44
        $region43: #{tpu_custom_call.1} parent=11 // pred_region
          %s439 = ssub.s32 16, 16
          %440 = vsyncadd [#allocation12], %s439
          %s442 = sshll.u32 [#allocation13], 4
          %s443 = int_to_ptr.vmem [resolvable:$true] %s442
          %445 = dma.hbm_to_vmem [thread:$0]  %s9, 16, %s443, [#allocation12]
        $region44: #{tpu_custom_call.1} parent=11 // pred_fallthru
          _
        // Predicated region
        $region45: #{tpu_custom_call.1} parent=11 // pred_check
          %p446 = pneg %p270
        $region46: #{tpu_custom_call.1} parent=11 // pred_check_branch
          %448 = sbr.rel (%p446) target = $region48
        $region47: #{tpu_custom_call.1} parent=11 // pred_region
          _
        $region48: #{tpu_custom_call.1} parent=11 // pred_fallthru
          _
        // Predicated region
        $region49: #{tpu_custom_call.1} parent=11 // pred_check
          %p449 = pneg %p291
        $region50: #{tpu_custom_call.1} parent=11 // pred_check_branch
          %451 = sbr.rel (%p449) target = $region52
        $region51: #{tpu_custom_call.1} parent=11 // pred_region
          _
        $region52: #{tpu_custom_call.1} parent=11 // pred_fallthru
          _
        // Predicated region
        $region53: #{tpu_custom_call.1} parent=11 // pred_check
          %p452 = pneg %p312
        $region54: #{tpu_custom_call.1} parent=11 // pred_check_branch
          %454 = sbr.rel (%p452) target = $region56
        $region55: #{tpu_custom_call.1} parent=11 // pred_region
          _
        $region56: #{tpu_custom_call.1} parent=11 // pred_fallthru
          _
        // Predicated region
        $region57: #{tpu_custom_call.1} parent=11 // pred_check
          %p455 = pneg %p333
        $region58: #{tpu_custom_call.1} parent=11 // pred_check_branch
          %457 = sbr.rel (%p455) target = $region60
        $region59: #{tpu_custom_call.1} parent=11 // pred_region
          _
        $region60: #{tpu_custom_call.1} parent=11 // pred_fallthru
          _
      $region12: #{tpu_custom_call.1} parent=5 // pred_fallthru
        _
      %p458 = scmp.lt.s32.totalorder %s29, 2
      // Predicated region
      $region61: #{tpu_custom_call.1} parent=5 // pred_check
        %p459 = pneg %p458
      $region62: #{tpu_custom_call.1} parent=5 // pred_check_branch
        %461 = sbr.rel (%p459) target = $region64
      $region63: #{tpu_custom_call.1} parent=5 // pred_region
        // Predicated region
        $region65: #{tpu_custom_call.1} parent=63 // pred_check
          %p462 = pneg %p49
        $region66: #{tpu_custom_call.1} parent=63 // pred_check_branch
          %464 = sbr.rel (%p462) target = $region68
        $region67: #{tpu_custom_call.1} parent=63 // pred_region
          %p465 = scmp.lt.s32.totalorder %s29, 1
          %s466 = scalar_select %p465, %s29, 1
          %s467 = smul.addr %s466, 8
          %s468 = scalar_lea.vmem %s0, %s467
        $region68: #{tpu_custom_call.1} parent=63 // pred_fallthru
          _
        // Predicated region
        $region69: #{tpu_custom_call.1} parent=63 // pred_check
          %p469 = pneg %p75
        $region70: #{tpu_custom_call.1} parent=63 // pred_check_branch
          %471 = sbr.rel (%p469) target = $region72
        $region71: #{tpu_custom_call.1} parent=63 // pred_region
          %s472 = sand.u32 %s65, 1
          %s473 = scalar_lea.sflag [#allocation3], %s472
          %s474 = sand.u32 %s65, 1
          %s475 = scalar_lea.vmem [#allocation2], %s474
          %s477 = ssub.s32 16, 16
          %478 = vsyncadd %s473, %s477
          %s479 = smul.addr %s29, 16
          %s480 = scalar_lea.hbm %s1, %s479
          %s482 = sshll.u32 %s475, 4
          %s483 = int_to_ptr.vmem [resolvable:$true] %s482
          %485 = dma.hbm_to_vmem [thread:$0]  %s480, 16, %s483, %s473
        $region72: #{tpu_custom_call.1} parent=63 // pred_fallthru
          _
      $region64: #{tpu_custom_call.1} parent=5 // pred_fallthru
        _
      %p486 = scmp.le.s32.totalorder 1, %s29
      %p487 = scmp.lt.s32.totalorder %s29, 3
      %p488 = pnand %p486, %p487
      %p489 = pneg %p488
      // Predicated region
      $region73: #{tpu_custom_call.1} parent=5 // pred_check
        _
      $region74: #{tpu_custom_call.1} parent=5 // pred_check_branch
        %491 = sbr.rel (%p488) target = $region76
      $region75: #{tpu_custom_call.1} parent=5 // pred_region
        %s492 = ssub.s32 %s29, 1
        %s493 = sand.u32 %s68, 1
        %s494 = scalar_lea.sflag [#allocation3], %s493
        %s495 = sand.u32 %s68, 1
        %s496 = scalar_lea.vmem [#allocation2], %s495
        // Predicated region
        $region77: #{tpu_custom_call.1} parent=75 // pred_check
          %p497 = pneg %p81
        $region78: #{tpu_custom_call.1} parent=75 // pred_check_branch
          %499 = sbr.rel (%p497) target = $region80
        $region79: #{tpu_custom_call.1} parent=75 // pred_region
          %500 = dma.done %s494, 16
        $region80: #{tpu_custom_call.1} parent=75 // pred_fallthru
          _
        // Predicated region
        $region81: #{tpu_custom_call.1} parent=75 // pred_check
          %p501 = pneg %p102
        $region82: #{tpu_custom_call.1} parent=75 // pred_check_branch
          %503 = sbr.rel (%p501) target = $region84
        $region83: #{tpu_custom_call.1} parent=75 // pred_region
          %504 = dma.done [#allocation6], 16
        $region84: #{tpu_custom_call.1} parent=75 // pred_fallthru
          _
        // Predicated region
        $region85: #{tpu_custom_call.1} parent=75 // pred_check
          %p505 = pneg %p123
        $region86: #{tpu_custom_call.1} parent=75 // pred_check_branch
          %507 = sbr.rel (%p505) target = $region88
        $region87: #{tpu_custom_call.1} parent=75 // pred_region
          %508 = dma.done [#allocation6], 16
        $region88: #{tpu_custom_call.1} parent=75 // pred_fallthru
          _
        // Predicated region
        $region89: #{tpu_custom_call.1} parent=75 // pred_check
          %p509 = pneg %p165
        $region90: #{tpu_custom_call.1} parent=75 // pred_check_branch
          %511 = sbr.rel (%p509) target = $region92
        $region91: #{tpu_custom_call.1} parent=75 // pred_region
          %512 = dma.done [#allocation9], 16
        $region92: #{tpu_custom_call.1} parent=75 // pred_fallthru
          _
        // Predicated region
        $region93: #{tpu_custom_call.1} parent=75 // pred_check
          %p513 = pneg %p207
        $region94: #{tpu_custom_call.1} parent=75 // pred_check_branch
          %515 = sbr.rel (%p513) target = $region96
        $region95: #{tpu_custom_call.1} parent=75 // pred_region
          %516 = dma.done [#allocation9], 16
        $region96: #{tpu_custom_call.1} parent=75 // pred_fallthru
          _
        // Predicated region
        $region97: #{tpu_custom_call.1} parent=75 // pred_check
          %p517 = pneg %p228
        $region98: #{tpu_custom_call.1} parent=75 // pred_check_branch
          %519 = sbr.rel (%p517) target = $region100
        $region99: #{tpu_custom_call.1} parent=75 // pred_region
          %520 = dma.done [#allocation12], 16
        $region100: #{tpu_custom_call.1} parent=75 // pred_fallthru
          _
        // Predicated region
        $region101: #{tpu_custom_call.1} parent=75 // pred_check
          %p521 = pneg %p249
        $region102: #{tpu_custom_call.1} parent=75 // pred_check_branch
          %523 = sbr.rel (%p521) target = $region104
        $region103: #{tpu_custom_call.1} parent=75 // pred_region
          %524 = dma.done [#allocation12], 16
        $region104: #{tpu_custom_call.1} parent=75 // pred_fallthru
          _
        %p525 = scmp.lt.s32.totalorder %s34, 1
        %s526 = scalar_select %p525, %s34, 1
        %s527 = smul.addr %s526, 8
        %s528 = scalar_lea.vmem %s0, %s527
        %p529 = pneg %p55
        %p530 = pneg %p52
        %s531 = sand.u32 %s68, 1
        %s532 = scalar_lea.sflag [#allocation3], %s531
        %s533 = sand.u32 %s68, 1
        %s534 = scalar_lea.vmem [#allocation2], %s533
        %p535 = pneg %p81
        %p536 = pneg %p78
        %p537 = pneg %p102
        %p538 = pneg %p99
        %p539 = pneg %p123
        %p540 = pneg %p120
        %p541 = pneg %p144
        %p542 = pneg %p141
        %p543 = pneg %p165
        %p544 = pneg %p162
        %p545 = pneg %p186
        %p546 = pneg %p183
        %p547 = pneg %p207
        %p548 = pneg %p204
        %p549 = pneg %p228
        %p550 = pneg %p225
        %p551 = pneg %p249
        %p552 = pneg %p246
        %p553 = pneg %p270
        %p554 = pneg %p267
        %p555 = pneg %p291
        %p556 = pneg %p288
        %p557 = pneg %p312
        %p558 = pneg %p309
        %p559 = pneg %p333
        %p560 = pneg %p330
        %p561 = pneg %p359
        %p562 = pneg %p356
        %s563 = sand.u32 %s346, 1
        %s564 = scalar_lea.sflag [#allocation4], %s563
        %s565 = sand.u32 %s346, 1
        %s566 = smul.addr %s565, 8
        %s567 = scalar_lea.vmem [#allocation14], %s566
        %p568 = scmp.lt.s32.totalorder %s34, 1
        %s569 = scalar_select %p568, %s34, 1
        %s570 = smul.addr %s569, 8
        %s571 = scalar_lea.vmem %s0, %s570
        %v573 = vld [vmem:[%s571] sm:$0xff]
        %v574 = vld [vmem:[%s496] sm:$0x1]
        %v575 = vsub.f32 %v574, 1.0
        %v576 = vmul.f32 %v575, 1e+09
        %v577 = vld [vmem:[#allocation5] sm:$0x1]
        %v578 = vld [vmem:[#allocation7] sm:$0x1]
        %vm579 = vcmask 261120
        %v580 = vsel %vm579, %v573, 0.0
        %581 = vadd.xlane.f32.xlu0 %v580
        %v582 = vpop.xlane.xlu0 %581
        %v583 = vrcp.pop 32.0
        %v584 = vmul.f32 %v582, %v583
        %v585 = vsub.f32 %v573, %v584
        %v586 = vmul.f32 %v585, %v585
        %v587 = vsel %vm579, %v586, 0.0
        %588 = vadd.xlane.f32.xlu0 %v587
        %v589 = vpop.xlane.xlu0 %588
        %v590 = vmul.f32 %v589, 0.032258064
        %v591 = vrsqrt.pop %v590
        %v592 = vmul.f32 %v590, %v591
        %vm593 = vcmp.eq.f32.partialorder %v590, inf
        %v594 = vsel %vm593, %v590, %v592
        %vm595 = vcmp.eq.f32.partialorder %v590, 0.0
        %v596 = vand.u32 %v590, 2147483648
        %v597 = vsel %vm595, %v596, %v594
        %v598 = vadd.f32 %v597, 1e-06
        %v599 = vrcp.pop %v598
        %v601 = vlaneseq
        %v602 = vshrl.u32 %v601, 7
        %v603 = vsub.s32 0, %v602
        %v604 = vrot.slane %v577, %v603
        %v606 = vmul.f32 %v604, %v585
        %v607 = vmul.f32 %v606, %v599
        %v609 = vlaneseq
        %v610 = vshrl.u32 %v609, 7
        %v611 = vsub.s32 0, %v610
        %v612 = vrot.slane %v578, %v611
        %v614 = vadd.f32 %v607, %v612
        %v615 = vpack.c.bf16 %v614, %v614
        %v616 = vld [vmem:[%s4] sm:$0xf]
        %v617 = vld [vmem:[%s4 + $0x4] sm:$0xf]
        %v618 = vld [vmem:[%s4 + $0x8] sm:$0xf]
        %v619 = vld [vmem:[%s4 + $0xc] sm:$0xf]
        %v620 = vld [vmem:[#allocation8] sm:$0x1]
        %v622 = vlaneseq
        %v623 = vshrl.u32 %v622, 7
        %v624 = vsub.s32 0, %v623
        %v625 = vrot.slane %v620, %v624
        %v631 = vunpack.c.l.b16 %v616
        %v632 = vunpack.c.l.b16 %v617
        %v633 = vunpack.c.l.b16 %v618
        %v634 = vunpack.c.l.b16 %v619
        %v635 = vpack.c.b16 %v632, %v631
        %v636 = vpack.c.b16 %v634, %v633
        %v640 = vsel %vm579, %v615, 0
        %642 = vmatprep.subr.bf16.mxu0 0
        %643 = vmatpush1.bf16.msra.mxu0 0
        %644 = vmatprep.subr.bf16.mxu0 0
        %645 = vmatpush1.bf16.msra.mxu0 0
        %646 = vmatprep.subr.bf16.mxu0 0
        %647 = vmatpush1.bf16.msra.mxu0 0
        %648 = vmatprep.subr.bf16.mxu0 0
        %649 = vmatpush1.bf16.msra.mxu0 0
        %650 = vmatprep.subr.bf16.mxu0 0
        %651 = vmatpush1.bf16.msra.mxu0 0
        %652 = vmatprep.subr.bf16.mxu0 0
        %653 = vmatpush1.bf16.msra.mxu0 0
        %654 = vmatprep.subr.bf16.mxu0 0
        %655 = vmatpush1.bf16.msra.mxu0 %v636
        %656 = vmatprep.subr.bf16.mxu0 0
        %657 = vmatpush1.bf16.msra.mxu0 %v635
        %658 = vmatprep.subr.bf16.mxu0 0
        %659 = vmatpush2.bf16.msra.mxu0 0
        %660 = vmatprep.subr.bf16.mxu0 0
        %661 = vmatpush2.bf16.msra.mxu0 0
        %662 = vmatprep.subr.bf16.mxu0 0
        %663 = vmatpush2.bf16.msra.mxu0 0
        %664 = vmatprep.subr.bf16.mxu0 0
        %665 = vmatpush2.bf16.msra.mxu0 0
        %666 = vmatprep.subr.bf16.mxu0 0
        %667 = vmatpush2.bf16.msra.mxu0 0
        %668 = vmatprep.subr.bf16.mxu0 0
        %669 = vmatpush2.bf16.msra.mxu0 0
        %670 = vmatprep.subr.bf16.mxu0 0
        %671 = vmatpush2.bf16.msra.mxu0 0
        %672 = vmatprep.subr.bf16.mxu0 0
        %673 = vmatpush2.bf16.msra.mxu0 0
        %674 = vmatprep.mubr.bf16.mxu0 0
        %675 = vmatmul.mubr.bf16.gmra.mxu0 %v640
        %v676 = vpop.f32.mrf.mxu0
        %v677 = vadd.f32 %v625, %v676
        %v678 = vpop.f32.mrf.mxu0
        %v679 = vpop.f32.mrf.mxu0
        %v680 = vpop.f32.mrf.mxu0
        %681 = vdwg.mxu0
        %v682 = vmul.f32 %v677, 0.35355338
        %v683 = vpack.c.bf16 %v682, %v682
        %685 = vrot.lane.b32.xlu0 %v677, 96
        %v686 = vpop.permute.xlu0 %685
        %688 = vxpose.xlu0.b32.start [1/16] %v686, 128
        %689 = vxpose.xlu0.b32.cont [2/16] 0.0, 128
        %690 = vxpose.xlu0.b32.cont [3/16] 0.0, 128
        %691 = vxpose.xlu0.b32.cont [4/16] 0.0, 128
        %692 = vxpose.xlu0.b32.cont [5/16] 0.0, 128
        %693 = vxpose.xlu0.b32.cont [6/16] 0.0, 128
        %694 = vxpose.xlu0.b32.cont [7/16] 0.0, 128
        %695 = vxpose.xlu0.b32.cont [8/16] 0.0, 128
        %696 = vxpose.xlu0.b32.cont [9/16] 0.0, 128
        %697 = vxpose.xlu0.b32.cont [10/16] 0.0, 128
        %698 = vxpose.xlu0.b32.cont [11/16] 0.0, 128
        %699 = vxpose.xlu0.b32.cont [12/16] 0.0, 128
        %700 = vxpose.xlu0.b32.cont [13/16] 0.0, 128
        %701 = vxpose.xlu0.b32.cont [14/16] 0.0, 128
        %702 = vxpose.xlu0.b32.cont [15/16] 0.0, 128
        %703 = vxpose.xlu0.b32.end [16/16] 0.0, 128
        %v704 = vpop.trf.xlu0
        %v705 = vpop.trf.xlu0
        %v706 = vpop.trf.xlu0
        %v707 = vpop.trf.xlu0
        %v708 = vpop.trf.xlu0
        %v709 = vpop.trf.xlu0
        %v710 = vpop.trf.xlu0
        %v711 = vpop.trf.xlu0
        %v712 = vpop.trf.xlu0
        %v713 = vpop.trf.xlu0
        %v714 = vpop.trf.xlu0
        %v715 = vpop.trf.xlu0
        %v716 = vpop.trf.xlu0
        %v717 = vpop.trf.xlu0
        %v718 = vpop.trf.xlu0
        %v719 = vpop.trf.xlu0
        %v720 = vpack.c.bf16 %v704, %v704
        %v722 = vlaneseq
        %v723 = vshrl.u32 %v722, 7
        %v724 = vsub.s32 0, %v723
        %v725 = vrot.slane %v576, %v724
        %vm727 = vcmask 64512
        %v729 = vsel %vm727, %v683, 0
        %vm731 = vcmask 1043456
        %v733 = vsel %vm731, %v720, 0
        %735 = vmatprep.subr.bf16.mxu0 0
        %736 = vmatpush1.bf16.msra.mxu0 0
        %737 = vmatprep.subr.bf16.mxu0 0
        %738 = vmatpush1.bf16.msra.mxu0 0
        %739 = vmatprep.subr.bf16.mxu0 0
        %740 = vmatpush1.bf16.msra.mxu0 0
        %741 = vmatprep.subr.bf16.mxu0 0
        %742 = vmatpush1.bf16.msra.mxu0 0
        %743 = vmatprep.subr.bf16.mxu0 0
        %744 = vmatpush1.bf16.msra.mxu0 0
        %745 = vmatprep.subr.bf16.mxu0 0
        %746 = vmatpush1.bf16.msra.mxu0 0
        %747 = vmatprep.subr.bf16.mxu0 0
        %748 = vmatpush1.bf16.msra.mxu0 0
        %749 = vmatprep.subr.bf16.mxu0 0
        %750 = vmatpush1.bf16.msra.mxu0 %v733
        %751 = vmatprep.subr.bf16.mxu0 0
        %752 = vmatpush2.bf16.msra.mxu0 0
        %753 = vmatprep.subr.bf16.mxu0 0
        %754 = vmatpush2.bf16.msra.mxu0 0
        %755 = vmatprep.subr.bf16.mxu0 0
        %756 = vmatpush2.bf16.msra.mxu0 0
        %757 = vmatprep.subr.bf16.mxu0 0
        %758 = vmatpush2.bf16.msra.mxu0 0
        %759 = vmatprep.subr.bf16.mxu0 0
        %760 = vmatpush2.bf16.msra.mxu0 0
        %761 = vmatprep.subr.bf16.mxu0 0
        %762 = vmatpush2.bf16.msra.mxu0 0
        %763 = vmatprep.subr.bf16.mxu0 0
        %764 = vmatpush2.bf16.msra.mxu0 0
        %765 = vmatprep.subr.bf16.mxu0 0
        %766 = vmatpush2.bf16.msra.mxu0 0
        %767 = vmatprep.mubr.bf16.mxu0 0
        %768 = vmatmul.mubr.bf16.gmra.mxu0 %v729
        %v769 = vpop.f32.mrf.mxu0
        %v770 = vadd.f32 %v725, %v769
        %v771 = vpop.f32.mrf.mxu0
        %v772 = vpop.f32.mrf.mxu0
        %v773 = vpop.f32.mrf.mxu0
        %774 = vdwg.mxu0
        %v775 = vsel %vm727, %v770, -inf
        %776 = vmax.xlane.f32.xlu0 %v775
        %v777 = vpop.xlane.xlu0 %776
        %v778 = vsub.f32 %v770, %v777
        %v779 = vmul.f32 %v778, 1.442695
        %v780 = vpow.pop %v779
        %v781 = vsel %vm727, %v780, 0.0
        %782 = vadd.xlane.f32.xlu0 %v781
        %v783 = vpop.xlane.xlu0 %782
        %v784 = vrcp.pop %v783
        %v785 = vmul.f32 %v780, %v784
        %v786 = vpack.c.bf16 %v785, %v785
        %v787 = vpack.c.bf16 %v677, %v677
        %789 = vrot.lane.b32.xlu0 %v787, 64
        %v790 = vpop.permute.xlu0 %789
        %v792 = vsel %vm727, %v786, 0
        %v795 = vsel %vm731, %v790, 0
        %797 = vmatprep.subr.bf16.mxu0 0
        %798 = vmatpush1.bf16.msra.mxu0 0
        %799 = vmatprep.subr.bf16.mxu0 0
        %800 = vmatpush1.bf16.msra.mxu0 0
        %801 = vmatprep.subr.bf16.mxu0 0
        %802 = vmatpush1.bf16.msra.mxu0 0
        %803 = vmatprep.subr.bf16.mxu0 0
        %804 = vmatpush1.bf16.msra.mxu0 0
        %805 = vmatprep.subr.bf16.mxu0 0
        %806 = vmatpush1.bf16.msra.mxu0 0
        %807 = vmatprep.subr.bf16.mxu0 0
        %808 = vmatpush1.bf16.msra.mxu0 0
        %809 = vmatprep.subr.bf16.mxu0 0
        %810 = vmatpush1.bf16.msra.mxu0 0
        %811 = vmatprep.subr.bf16.mxu0 0
        %812 = vmatpush1.bf16.msra.mxu0 %v795
        %813 = vmatprep.subr.bf16.mxu0 0
        %814 = vmatpush2.bf16.msra.mxu0 0
        %815 = vmatprep.subr.bf16.mxu0 0
        %816 = vmatpush2.bf16.msra.mxu0 0
        %817 = vmatprep.subr.bf16.mxu0 0
        %818 = vmatpush2.bf16.msra.mxu0 0
        %819 = vmatprep.subr.bf16.mxu0 0
        %820 = vmatpush2.bf16.msra.mxu0 0
        %821 = vmatprep.subr.bf16.mxu0 0
        %822 = vmatpush2.bf16.msra.mxu0 0
        %823 = vmatprep.subr.bf16.mxu0 0
        %824 = vmatpush2.bf16.msra.mxu0 0
        %825 = vmatprep.subr.bf16.mxu0 0
        %826 = vmatpush2.bf16.msra.mxu0 0
        %827 = vmatprep.subr.bf16.mxu0 0
        %828 = vmatpush2.bf16.msra.mxu0 0
        %829 = vmatprep.mubr.bf16.mxu0 0
        %830 = vmatmul.mubr.bf16.gmra.mxu0 %v792
        %v831 = vpop.f32.mrf.mxu0
        %v832 = vadd.f32 0.0, %v831
        %v833 = vpop.f32.mrf.mxu0
        %v834 = vpop.f32.mrf.mxu0
        %v835 = vpop.f32.mrf.mxu0
        %836 = vdwg.mxu0
        %837 = vrot.lane.b32.xlu0 %v677, 88
        %v838 = vpop.permute.xlu0 %837
        %840 = vxpose.xlu0.b32.start [1/16] %v838, 128
        %841 = vxpose.xlu0.b32.cont [2/16] 0.0, 128
        %842 = vxpose.xlu0.b32.cont [3/16] 0.0, 128
        %843 = vxpose.xlu0.b32.cont [4/16] 0.0, 128
        %844 = vxpose.xlu0.b32.cont [5/16] 0.0, 128
        %845 = vxpose.xlu0.b32.cont [6/16] 0.0, 128
        %846 = vxpose.xlu0.b32.cont [7/16] 0.0, 128
        %847 = vxpose.xlu0.b32.cont [8/16] 0.0, 128
        %848 = vxpose.xlu0.b32.cont [9/16] 0.0, 128
        %849 = vxpose.xlu0.b32.cont [10/16] 0.0, 128
        %850 = vxpose.xlu0.b32.cont [11/16] 0.0, 128
        %851 = vxpose.xlu0.b32.cont [12/16] 0.0, 128
        %852 = vxpose.xlu0.b32.cont [13/16] 0.0, 128
        %853 = vxpose.xlu0.b32.cont [14/16] 0.0, 128
        %854 = vxpose.xlu0.b32.cont [15/16] 0.0, 128
        %855 = vxpose.xlu0.b32.end [16/16] 0.0, 128
        %v856 = vpop.trf.xlu0
        %v857 = vpop.trf.xlu0
        %v858 = vpop.trf.xlu0
        %v859 = vpop.trf.xlu0
        %v860 = vpop.trf.xlu0
        %v861 = vpop.trf.xlu0
        %v862 = vpop.trf.xlu0
        %v863 = vpop.trf.xlu0
        %v864 = vpop.trf.xlu0
        %v865 = vpop.trf.xlu0
        %v866 = vpop.trf.xlu0
        %v867 = vpop.trf.xlu0
        %v868 = vpop.trf.xlu0
        %v869 = vpop.trf.xlu0
        %v870 = vpop.trf.xlu0
        %v871 = vpop.trf.xlu0
        %v872 = vpack.c.bf16 %v856, %v856
        %874 = vrot.lane.b32.xlu0 %v683, 120
        %v875 = vpop.permute.xlu0 %874
        %v877 = vsel %vm727, %v875, 0
        %v880 = vsel %vm731, %v872, 0
        %882 = vmatprep.subr.bf16.mxu0 0
        %883 = vmatpush1.bf16.msra.mxu0 0
        %884 = vmatprep.subr.bf16.mxu0 0
        %885 = vmatpush1.bf16.msra.mxu0 0
        %886 = vmatprep.subr.bf16.mxu0 0
        %887 = vmatpush1.bf16.msra.mxu0 0
        %888 = vmatprep.subr.bf16.mxu0 0
        %889 = vmatpush1.bf16.msra.mxu0 0
        %890 = vmatprep.subr.bf16.mxu0 0
        %891 = vmatpush1.bf16.msra.mxu0 0
        %892 = vmatprep.subr.bf16.mxu0 0
        %893 = vmatpush1.bf16.msra.mxu0 0
        %894 = vmatprep.subr.bf16.mxu0 0
        %895 = vmatpush1.bf16.msra.mxu0 0
        %896 = vmatprep.subr.bf16.mxu0 0
        %897 = vmatpush1.bf16.msra.mxu0 %v880
        %898 = vmatprep.subr.bf16.mxu0 0
        %899 = vmatpush2.bf16.msra.mxu0 0
        %900 = vmatprep.subr.bf16.mxu0 0
        %901 = vmatpush2.bf16.msra.mxu0 0
        %902 = vmatprep.subr.bf16.mxu0 0
        %903 = vmatpush2.bf16.msra.mxu0 0
        %904 = vmatprep.subr.bf16.mxu0 0
        %905 = vmatpush2.bf16.msra.mxu0 0
        %906 = vmatprep.subr.bf16.mxu0 0
        %907 = vmatpush2.bf16.msra.mxu0 0
        %908 = vmatprep.subr.bf16.mxu0 0
        %909 = vmatpush2.bf16.msra.mxu0 0
        %910 = vmatprep.subr.bf16.mxu0 0
        %911 = vmatpush2.bf16.msra.mxu0 0
        %912 = vmatprep.subr.bf16.mxu0 0
        %913 = vmatpush2.bf16.msra.mxu0 0
        %914 = vmatprep.mubr.bf16.mxu0 0
        %915 = vmatmul.mubr.bf16.gmra.mxu0 %v877
        %v916 = vpop.f32.mrf.mxu0
        %v917 = vadd.f32 %v725, %v916
        %v918 = vpop.f32.mrf.mxu0
        %v919 = vpop.f32.mrf.mxu0
        %v920 = vpop.f32.mrf.mxu0
        %921 = vdwg.mxu0
        %v922 = vsel %vm727, %v917, -inf
        %923 = vmax.xlane.f32.xlu0 %v922
        %v924 = vpop.xlane.xlu0 %923
        %v925 = vsub.f32 %v917, %v924
        %v926 = vmul.f32 %v925, 1.442695
        %v927 = vpow.pop %v926
        %v928 = vsel %vm727, %v927, 0.0
        %929 = vadd.xlane.f32.xlu0 %v928
        %v930 = vpop.xlane.xlu0 %929
        %v931 = vrcp.pop %v930
        %v932 = vmul.f32 %v927, %v931
        %v933 = vpack.c.bf16 %v932, %v932
        %934 = vrot.lane.b32.xlu0 %v787, 56
        %v935 = vpop.permute.xlu0 %934
        %v937 = vsel %vm727, %v933, 0
        %v940 = vsel %vm731, %v935, 0
        %942 = vmatprep.subr.bf16.mxu0 0
        %943 = vmatpush1.bf16.msra.mxu0 0
        %944 = vmatprep.subr.bf16.mxu0 0
        %945 = vmatpush1.bf16.msra.mxu0 0
        %946 = vmatprep.subr.bf16.mxu0 0
        %947 = vmatpush1.bf16.msra.mxu0 0
        %948 = vmatprep.subr.bf16.mxu0 0
        %949 = vmatpush1.bf16.msra.mxu0 0
        %950 = vmatprep.subr.bf16.mxu0 0
        %951 = vmatpush1.bf16.msra.mxu0 0
        %952 = vmatprep.subr.bf16.mxu0 0
        %953 = vmatpush1.bf16.msra.mxu0 0
        %954 = vmatprep.subr.bf16.mxu0 0
        %955 = vmatpush1.bf16.msra.mxu0 0
        %956 = vmatprep.subr.bf16.mxu0 0
        %957 = vmatpush1.bf16.msra.mxu0 %v940
        %958 = vmatprep.subr.bf16.mxu0 0
        %959 = vmatpush2.bf16.msra.mxu0 0
        %960 = vmatprep.subr.bf16.mxu0 0
        %961 = vmatpush2.bf16.msra.mxu0 0
        %962 = vmatprep.subr.bf16.mxu0 0
        %963 = vmatpush2.bf16.msra.mxu0 0
        %964 = vmatprep.subr.bf16.mxu0 0
        %965 = vmatpush2.bf16.msra.mxu0 0
        %966 = vmatprep.subr.bf16.mxu0 0
        %967 = vmatpush2.bf16.msra.mxu0 0
        %968 = vmatprep.subr.bf16.mxu0 0
        %969 = vmatpush2.bf16.msra.mxu0 0
        %970 = vmatprep.subr.bf16.mxu0 0
        %971 = vmatpush2.bf16.msra.mxu0 0
        %972 = vmatprep.subr.bf16.mxu0 0
        %973 = vmatpush2.bf16.msra.mxu0 0
        %974 = vmatprep.mubr.bf16.mxu0 0
        %975 = vmatmul.mubr.bf16.gmra.mxu0 %v937
        %v976 = vpop.f32.mrf.mxu0
        %v977 = vadd.f32 0.0, %v976
        %v978 = vpop.f32.mrf.mxu0
        %v979 = vpop.f32.mrf.mxu0
        %v980 = vpop.f32.mrf.mxu0
        %981 = vdwg.mxu0
        %982 = vrot.lane.b32.xlu0 %v677, 80
        %v983 = vpop.permute.xlu0 %982
        %985 = vxpose.xlu0.b32.start [1/16] %v983, 128
        %986 = vxpose.xlu0.b32.cont [2/16] 0.0, 128
        %987 = vxpose.xlu0.b32.cont [3/16] 0.0, 128
        %988 = vxpose.xlu0.b32.cont [4/16] 0.0, 128
        %989 = vxpose.xlu0.b32.cont [5/16] 0.0, 128
        %990 = vxpose.xlu0.b32.cont [6/16] 0.0, 128
        %991 = vxpose.xlu0.b32.cont [7/16] 0.0, 128
        %992 = vxpose.xlu0.b32.cont [8/16] 0.0, 128
        %993 = vxpose.xlu0.b32.cont [9/16] 0.0, 128
        %994 = vxpose.xlu0.b32.cont [10/16] 0.0, 128
        %995 = vxpose.xlu0.b32.cont [11/16] 0.0, 128
        %996 = vxpose.xlu0.b32.cont [12/16] 0.0, 128
        %997 = vxpose.xlu0.b32.cont [13/16] 0.0, 128
        %998 = vxpose.xlu0.b32.cont [14/16] 0.0, 128
        %999 = vxpose.xlu0.b32.cont [15/16] 0.0, 128
        %1000 = vxpose.xlu0.b32.end [16/16] 0.0, 128
        %v1001 = vpop.trf.xlu0
        %v1002 = vpop.trf.xlu0
        %v1003 = vpop.trf.xlu0
        %v1004 = vpop.trf.xlu0
        %v1005 = vpop.trf.xlu0
        %v1006 = vpop.trf.xlu0
        %v1007 = vpop.trf.xlu0
        %v1008 = vpop.trf.xlu0
        %v1009 = vpop.trf.xlu0
        %v1010 = vpop.trf.xlu0
        %v1011 = vpop.trf.xlu0
        %v1012 = vpop.trf.xlu0
        %v1013 = vpop.trf.xlu0
        %v1014 = vpop.trf.xlu0
        %v1015 = vpop.trf.xlu0
        %v1016 = vpop.trf.xlu0
        %v1017 = vpack.c.bf16 %v1001, %v1001
        %1018 = vrot.lane.b32.xlu0 %v683, 112
        %v1019 = vpop.permute.xlu0 %1018
        %v1021 = vsel %vm727, %v1019, 0
        %v1024 = vsel %vm731, %v1017, 0
        %1026 = vmatprep.subr.bf16.mxu0 0
        %1027 = vmatpush1.bf16.msra.mxu0 0
        %1028 = vmatprep.subr.bf16.mxu0 0
        %1029 = vmatpush1.bf16.msra.mxu0 0
        %1030 = vmatprep.subr.bf16.mxu0 0
        %1031 = vmatpush1.bf16.msra.mxu0 0
        %1032 = vmatprep.subr.bf16.mxu0 0
        %1033 = vmatpush1.bf16.msra.mxu0 0
        %1034 = vmatprep.subr.bf16.mxu0 0
        %1035 = vmatpush1.bf16.msra.mxu0 0
        %1036 = vmatprep.subr.bf16.mxu0 0
        %1037 = vmatpush1.bf16.msra.mxu0 0
        %1038 = vmatprep.subr.bf16.mxu0 0
        %1039 = vmatpush1.bf16.msra.mxu0 0
        %1040 = vmatprep.subr.bf16.mxu0 0
        %1041 = vmatpush1.bf16.msra.mxu0 %v1024
        %1042 = vmatprep.subr.bf16.mxu0 0
        %1043 = vmatpush2.bf16.msra.mxu0 0
        %1044 = vmatprep.subr.bf16.mxu0 0
        %1045 = vmatpush2.bf16.msra.mxu0 0
        %1046 = vmatprep.subr.bf16.mxu0 0
        %1047 = vmatpush2.bf16.msra.mxu0 0
        %1048 = vmatprep.subr.bf16.mxu0 0
        %1049 = vmatpush2.bf16.msra.mxu0 0
        %1050 = vmatprep.subr.bf16.mxu0 0
        %1051 = vmatpush2.bf16.msra.mxu0 0
        %1052 = vmatprep.subr.bf16.mxu0 0
        %1053 = vmatpush2.bf16.msra.mxu0 0
        %1054 = vmatprep.subr.bf16.mxu0 0
        %1055 = vmatpush2.bf16.msra.mxu0 0
        %1056 = vmatprep.subr.bf16.mxu0 0
        %1057 = vmatpush2.bf16.msra.mxu0 0
        %1058 = vmatprep.mubr.bf16.mxu0 0
        %1059 = vmatmul.mubr.bf16.gmra.mxu0 %v1021
        %v1060 = vpop.f32.mrf.mxu0
        %v1061 = vadd.f32 %v725, %v1060
        %v1062 = vpop.f32.mrf.mxu0
        %v1063 = vpop.f32.mrf.mxu0
        %v1064 = vpop.f32.mrf.mxu0
        %1065 = vdwg.mxu0
        %v1066 = vsel %vm727, %v1061, -inf
        %1067 = vmax.xlane.f32.xlu0 %v1066
        %v1068 = vpop.xlane.xlu0 %1067
        %v1069 = vsub.f32 %v1061, %v1068
        %v1070 = vmul.f32 %v1069, 1.442695
        %v1071 = vpow.pop %v1070
        %v1072 = vsel %vm727, %v1071, 0.0
        %1073 = vadd.xlane.f32.xlu0 %v1072
        %v1074 = vpop.xlane.xlu0 %1073
        %v1075 = vrcp.pop %v1074
        %v1076 = vmul.f32 %v1071, %v1075
        %v1077 = vpack.c.bf16 %v1076, %v1076
        %1078 = vrot.lane.b32.xlu0 %v787, 48
        %v1079 = vpop.permute.xlu0 %1078
        %v1081 = vsel %vm727, %v1077, 0
        %v1084 = vsel %vm731, %v1079, 0
        %1086 = vmatprep.subr.bf16.mxu0 0
        %1087 = vmatpush1.bf16.msra.mxu0 0
        %1088 = vmatprep.subr.bf16.mxu0 0
        %1089 = vmatpush1.bf16.msra.mxu0 0
        %1090 = vmatprep.subr.bf16.mxu0 0
        %1091 = vmatpush1.bf16.msra.mxu0 0
        %1092 = vmatprep.subr.bf16.mxu0 0
        %1093 = vmatpush1.bf16.msra.mxu0 0
        %1094 = vmatprep.subr.bf16.mxu0 0
        %1095 = vmatpush1.bf16.msra.mxu0 0
        %1096 = vmatprep.subr.bf16.mxu0 0
        %1097 = vmatpush1.bf16.msra.mxu0 0
        %1098 = vmatprep.subr.bf16.mxu0 0
        %1099 = vmatpush1.bf16.msra.mxu0 0
        %1100 = vmatprep.subr.bf16.mxu0 0
        %1101 = vmatpush1.bf16.msra.mxu0 %v1084
        %1102 = vmatprep.subr.bf16.mxu0 0
        %1103 = vmatpush2.bf16.msra.mxu0 0
        %1104 = vmatprep.subr.bf16.mxu0 0
        %1105 = vmatpush2.bf16.msra.mxu0 0
        %1106 = vmatprep.subr.bf16.mxu0 0
        %1107 = vmatpush2.bf16.msra.mxu0 0
        %1108 = vmatprep.subr.bf16.mxu0 0
        %1109 = vmatpush2.bf16.msra.mxu0 0
        %1110 = vmatprep.subr.bf16.mxu0 0
        %1111 = vmatpush2.bf16.msra.mxu0 0
        %1112 = vmatprep.subr.bf16.mxu0 0
        %1113 = vmatpush2.bf16.msra.mxu0 0
        %1114 = vmatprep.subr.bf16.mxu0 0
        %1115 = vmatpush2.bf16.msra.mxu0 0
        %1116 = vmatprep.subr.bf16.mxu0 0
        %1117 = vmatpush2.bf16.msra.mxu0 0
        %1118 = vmatprep.mubr.bf16.mxu0 0
        %1119 = vmatmul.mubr.bf16.gmra.mxu0 %v1081
        %v1120 = vpop.f32.mrf.mxu0
        %v1121 = vadd.f32 0.0, %v1120
        %v1122 = vpop.f32.mrf.mxu0
        %v1123 = vpop.f32.mrf.mxu0
        %v1124 = vpop.f32.mrf.mxu0
        %1125 = vdwg.mxu0
        %1126 = vrot.lane.b32.xlu0 %v677, 72
        %v1127 = vpop.permute.xlu0 %1126
        %1129 = vxpose.xlu0.b32.start [1/16] %v1127, 128
        %1130 = vxpose.xlu0.b32.cont [2/16] 0.0, 128
        %1131 = vxpose.xlu0.b32.cont [3/16] 0.0, 128
        %1132 = vxpose.xlu0.b32.cont [4/16] 0.0, 128
        %1133 = vxpose.xlu0.b32.cont [5/16] 0.0, 128
        %1134 = vxpose.xlu0.b32.cont [6/16] 0.0, 128
        %1135 = vxpose.xlu0.b32.cont [7/16] 0.0, 128
        %1136 = vxpose.xlu0.b32.cont [8/16] 0.0, 128
        %1137 = vxpose.xlu0.b32.cont [9/16] 0.0, 128
        %1138 = vxpose.xlu0.b32.cont [10/16] 0.0, 128
        %1139 = vxpose.xlu0.b32.cont [11/16] 0.0, 128
        %1140 = vxpose.xlu0.b32.cont [12/16] 0.0, 128
        %1141 = vxpose.xlu0.b32.cont [13/16] 0.0, 128
        %1142 = vxpose.xlu0.b32.cont [14/16] 0.0, 128
        %1143 = vxpose.xlu0.b32.cont [15/16] 0.0, 128
        %1144 = vxpose.xlu0.b32.end [16/16] 0.0, 128
        %v1145 = vpop.trf.xlu0
        %v1146 = vpop.trf.xlu0
        %v1147 = vpop.trf.xlu0
        %v1148 = vpop.trf.xlu0
        %v1149 = vpop.trf.xlu0
        %v1150 = vpop.trf.xlu0
        %v1151 = vpop.trf.xlu0
        %v1152 = vpop.trf.xlu0
        %v1153 = vpop.trf.xlu0
        %v1154 = vpop.trf.xlu0
        %v1155 = vpop.trf.xlu0
        %v1156 = vpop.trf.xlu0
        %v1157 = vpop.trf.xlu0
        %v1158 = vpop.trf.xlu0
        %v1159 = vpop.trf.xlu0
        %v1160 = vpop.trf.xlu0
        %v1161 = vpack.c.bf16 %v1145, %v1145
        %1162 = vrot.lane.b32.xlu0 %v683, 104
        %v1163 = vpop.permute.xlu0 %1162
        %v1165 = vsel %vm727, %v1163, 0
        %v1168 = vsel %vm731, %v1161, 0
        %1170 = vmatprep.subr.bf16.mxu0 0
        %1171 = vmatpush1.bf16.msra.mxu0 0
        %1172 = vmatprep.subr.bf16.mxu0 0
        %1173 = vmatpush1.bf16.msra.mxu0 0
        %1174 = vmatprep.subr.bf16.mxu0 0
        %1175 = vmatpush1.bf16.msra.mxu0 0
        %1176 = vmatprep.subr.bf16.mxu0 0
        %1177 = vmatpush1.bf16.msra.mxu0 0
        %1178 = vmatprep.subr.bf16.mxu0 0
        %1179 = vmatpush1.bf16.msra.mxu0 0
        %1180 = vmatprep.subr.bf16.mxu0 0
        %1181 = vmatpush1.bf16.msra.mxu0 0
        %1182 = vmatprep.subr.bf16.mxu0 0
        %1183 = vmatpush1.bf16.msra.mxu0 0
        %1184 = vmatprep.subr.bf16.mxu0 0
        %1185 = vmatpush1.bf16.msra.mxu0 %v1168
        %1186 = vmatprep.subr.bf16.mxu0 0
        %1187 = vmatpush2.bf16.msra.mxu0 0
        %1188 = vmatprep.subr.bf16.mxu0 0
        %1189 = vmatpush2.bf16.msra.mxu0 0
        %1190 = vmatprep.subr.bf16.mxu0 0
        %1191 = vmatpush2.bf16.msra.mxu0 0
        %1192 = vmatprep.subr.bf16.mxu0 0
        %1193 = vmatpush2.bf16.msra.mxu0 0
        %1194 = vmatprep.subr.bf16.mxu0 0
        %1195 = vmatpush2.bf16.msra.mxu0 0
        %1196 = vmatprep.subr.bf16.mxu0 0
        %1197 = vmatpush2.bf16.msra.mxu0 0
        %1198 = vmatprep.subr.bf16.mxu0 0
        %1199 = vmatpush2.bf16.msra.mxu0 0
        %1200 = vmatprep.subr.bf16.mxu0 0
        %1201 = vmatpush2.bf16.msra.mxu0 0
        %1202 = vmatprep.mubr.bf16.mxu0 0
        %1203 = vmatmul.mubr.bf16.gmra.mxu0 %v1165
        %v1204 = vpop.f32.mrf.mxu0
        %v1205 = vadd.f32 %v725, %v1204
        %v1206 = vpop.f32.mrf.mxu0
        %v1207 = vpop.f32.mrf.mxu0
        %v1208 = vpop.f32.mrf.mxu0
        %1209 = vdwg.mxu0
        %v1210 = vsel %vm727, %v1205, -inf
        %1211 = vmax.xlane.f32.xlu0 %v1210
        %v1212 = vpop.xlane.xlu0 %1211
        %v1213 = vsub.f32 %v1205, %v1212
        %v1214 = vmul.f32 %v1213, 1.442695
        %v1215 = vpow.pop %v1214
        %v1216 = vsel %vm727, %v1215, 0.0
        %1217 = vadd.xlane.f32.xlu0 %v1216
        %v1218 = vpop.xlane.xlu0 %1217
        %v1219 = vrcp.pop %v1218
        %v1220 = vmul.f32 %v1215, %v1219
        %v1221 = vpack.c.bf16 %v1220, %v1220
        %1222 = vrot.lane.b32.xlu0 %v787, 40
        %v1223 = vpop.permute.xlu0 %1222
        %v1225 = vsel %vm727, %v1221, 0
        %v1228 = vsel %vm731, %v1223, 0
        %1230 = vmatprep.subr.bf16.mxu0 0
        %1231 = vmatpush1.bf16.msra.mxu0 0
        %1232 = vmatprep.subr.bf16.mxu0 0
        %1233 = vmatpush1.bf16.msra.mxu0 0
        %1234 = vmatprep.subr.bf16.mxu0 0
        %1235 = vmatpush1.bf16.msra.mxu0 0
        %1236 = vmatprep.subr.bf16.mxu0 0
        %1237 = vmatpush1.bf16.msra.mxu0 0
        %1238 = vmatprep.subr.bf16.mxu0 0
        %1239 = vmatpush1.bf16.msra.mxu0 0
        %1240 = vmatprep.subr.bf16.mxu0 0
        %1241 = vmatpush1.bf16.msra.mxu0 0
        %1242 = vmatprep.subr.bf16.mxu0 0
        %1243 = vmatpush1.bf16.msra.mxu0 0
        %1244 = vmatprep.subr.bf16.mxu0 0
        %1245 = vmatpush1.bf16.msra.mxu0 %v1228
        %1246 = vmatprep.subr.bf16.mxu0 0
        %1247 = vmatpush2.bf16.msra.mxu0 0
        %1248 = vmatprep.subr.bf16.mxu0 0
        %1249 = vmatpush2.bf16.msra.mxu0 0
        %1250 = vmatprep.subr.bf16.mxu0 0
        %1251 = vmatpush2.bf16.msra.mxu0 0
        %1252 = vmatprep.subr.bf16.mxu0 0
        %1253 = vmatpush2.bf16.msra.mxu0 0
        %1254 = vmatprep.subr.bf16.mxu0 0
        %1255 = vmatpush2.bf16.msra.mxu0 0
        %1256 = vmatprep.subr.bf16.mxu0 0
        %1257 = vmatpush2.bf16.msra.mxu0 0
        %1258 = vmatprep.subr.bf16.mxu0 0
        %1259 = vmatpush2.bf16.msra.mxu0 0
        %1260 = vmatprep.subr.bf16.mxu0 0
        %1261 = vmatpush2.bf16.msra.mxu0 0
        %1262 = vmatprep.mubr.bf16.mxu0 0
        %1263 = vmatmul.mubr.bf16.gmra.mxu0 %v1225
        %v1264 = vpop.f32.mrf.mxu0
        %v1265 = vadd.f32 0.0, %v1264
        %v1266 = vpop.f32.mrf.mxu0
        %v1267 = vpop.f32.mrf.mxu0
        %v1268 = vpop.f32.mrf.mxu0
        %1269 = vdwg.mxu0
        %1271 = vrot.lane.b32.xlu0 %v977, 8
        %v1272 = vpop.permute.xlu0 %1271
        %1275 = vrot.lane.b32.xlu0 %v1121, 16
        %v1276 = vpop.permute.xlu0 %1275
        %1279 = vrot.lane.b32.xlu0 %v1265, 24
        %v1280 = vpop.permute.xlu0 %1279
        %v1282 = vsel %vm727, %v832, %v1272
        %vm1283 = vcmask 130048
        %v1284 = vsel %vm1283, %v1282, %v1276
        %vm1285 = vcmask 195584
        %v1286 = vsel %vm1285, %v1284, %v1280
        %v1287 = vpack.c.bf16 %v1286, %v1286
        %v1288 = vld [vmem:[%s6] sm:$0xf]
        %v1289 = vld [vmem:[%s6 + $0x4] sm:$0xf]
        %v1290 = vld [vmem:[%s6 + $0x8] sm:$0xf]
        %v1291 = vld [vmem:[%s6 + $0xc] sm:$0xf]
        %v1292 = vld [vmem:[#allocation10] sm:$0x1]
        %v1294 = vlaneseq
        %v1295 = vshrl.u32 %v1294, 7
        %v1296 = vsub.s32 0, %v1295
        %v1297 = vrot.slane %v1292, %v1296
        %v1303 = vunpack.c.l.b16 %v1288
        %v1304 = vunpack.c.l.b16 %v1289
        %v1305 = vunpack.c.l.b16 %v1290
        %v1306 = vunpack.c.l.b16 %v1291
        %v1307 = vpack.c.b16 %v1304, %v1303
        %v1308 = vpack.c.b16 %v1306, %v1305
        %v1312 = vsel %vm579, %v1287, 0
        %1314 = vmatprep.subr.bf16.mxu0 0
        %1315 = vmatpush1.bf16.msra.mxu0 0
        %1316 = vmatprep.subr.bf16.mxu0 0
        %1317 = vmatpush1.bf16.msra.mxu0 0
        %1318 = vmatprep.subr.bf16.mxu0 0
        %1319 = vmatpush1.bf16.msra.mxu0 0
        %1320 = vmatprep.subr.bf16.mxu0 0
        %1321 = vmatpush1.bf16.msra.mxu0 0
        %1322 = vmatprep.subr.bf16.mxu0 0
        %1323 = vmatpush1.bf16.msra.mxu0 0
        %1324 = vmatprep.subr.bf16.mxu0 0
        %1325 = vmatpush1.bf16.msra.mxu0 0
        %1326 = vmatprep.subr.bf16.mxu0 0
        %1327 = vmatpush1.bf16.msra.mxu0 %v1308
        %1328 = vmatprep.subr.bf16.mxu0 0
        %1329 = vmatpush1.bf16.msra.mxu0 %v1307
        %1330 = vmatprep.subr.bf16.mxu0 0
        %1331 = vmatpush2.bf16.msra.mxu0 0
        %1332 = vmatprep.subr.bf16.mxu0 0
        %1333 = vmatpush2.bf16.msra.mxu0 0
        %1334 = vmatprep.subr.bf16.mxu0 0
        %1335 = vmatpush2.bf16.msra.mxu0 0
        %1336 = vmatprep.subr.bf16.mxu0 0
        %1337 = vmatpush2.bf16.msra.mxu0 0
        %1338 = vmatprep.subr.bf16.mxu0 0
        %1339 = vmatpush2.bf16.msra.mxu0 0
        %1340 = vmatprep.subr.bf16.mxu0 0
        %1341 = vmatpush2.bf16.msra.mxu0 0
        %1342 = vmatprep.subr.bf16.mxu0 0
        %1343 = vmatpush2.bf16.msra.mxu0 0
        %1344 = vmatprep.subr.bf16.mxu0 0
        %1345 = vmatpush2.bf16.msra.mxu0 0
        %1346 = vmatprep.mubr.bf16.mxu0 0
        %1347 = vmatmul.mubr.bf16.gmra.mxu0 %v1312
        %v1348 = vpop.f32.mrf.mxu0
        %v1349 = vadd.f32 %v1297, %v1348
        %v1350 = vpop.f32.mrf.mxu0
        %v1351 = vpop.f32.mrf.mxu0
        %v1352 = vpop.f32.mrf.mxu0
        %1353 = vdwg.mxu0
        %v1354 = vadd.f32 %v573, %v1349
        %v1355 = vld [vmem:[#allocation11] sm:$0x1]
        %v1356 = vld [vmem:[#allocation13] sm:$0x1]
        %v1357 = vsel %vm579, %v1354, 0.0
        %1358 = vadd.xlane.f32.xlu0 %v1357
        %v1359 = vpop.xlane.xlu0 %1358
        %v1360 = vmul.f32 %v1359, %v583
        %v1361 = vsub.f32 %v1354, %v1360
        %v1362 = vmul.f32 %v1361, %v1361
        %v1363 = vsel %vm579, %v1362, 0.0
        %1364 = vadd.xlane.f32.xlu0 %v1363
        %v1365 = vpop.xlane.xlu0 %1364
        %v1366 = vmul.f32 %v1365, 0.032258064
        %v1367 = vrsqrt.pop %v1366
        %v1368 = vmul.f32 %v1366, %v1367
        %vm1369 = vcmp.eq.f32.partialorder %v1366, inf
        %v1370 = vsel %vm1369, %v1366, %v1368
        %vm1371 = vcmp.eq.f32.partialorder %v1366, 0.0
        %v1372 = vand.u32 %v1366, 2147483648
        %v1373 = vsel %vm1371, %v1372, %v1370
        %v1374 = vadd.f32 %v1373, 1e-06
        %v1375 = vrcp.pop %v1374
        %v1377 = vlaneseq
        %v1378 = vshrl.u32 %v1377, 7
        %v1379 = vsub.s32 0, %v1378
        %v1380 = vrot.slane %v1355, %v1379
        %v1382 = vmul.f32 %v1380, %v1361
        %v1383 = vmul.f32 %v1382, %v1375
        %v1385 = vlaneseq
        %v1386 = vshrl.u32 %v1385, 7
        %v1387 = vsub.s32 0, %v1386
        %v1388 = vrot.slane %v1356, %v1387
        %v1390 = vadd.f32 %v1383, %v1388
        %v1391 = vpack.c.bf16 %v1390, %v1390
        %v1392 = vld [vmem:[%s10] sm:$0xf]
        %v1393 = vld [vmem:[%s10 + $0x4] sm:$0xf]
        %v1394 = vld [vmem:[%s10 + $0x8] sm:$0xf]
        %v1395 = vld [vmem:[%s10 + $0xc] sm:$0xf]
        %v1396 = vld [vmem:[%s11] sm:$0x1]
        %v1398 = vlaneseq
        %v1399 = vshrl.u32 %v1398, 7
        %v1400 = vsub.s32 0, %v1399
        %v1401 = vrot.slane %v1396, %v1400
        %v1407 = vunpack.c.l.b16 %v1392
        %v1408 = vunpack.c.l.b16 %v1393
        %v1409 = vunpack.c.l.b16 %v1394
        %v1410 = vunpack.c.l.b16 %v1395
        %v1411 = vpack.c.b16 %v1408, %v1407
        %v1412 = vpack.c.b16 %v1410, %v1409
        %v1416 = vsel %vm579, %v1391, 0
        %1418 = vmatprep.subr.bf16.mxu0 0
        %1419 = vmatpush1.bf16.msra.mxu0 0
        %1420 = vmatprep.subr.bf16.mxu0 0
        %1421 = vmatpush1.bf16.msra.mxu0 0
        %1422 = vmatprep.subr.bf16.mxu0 0
        %1423 = vmatpush1.bf16.msra.mxu0 0
        %1424 = vmatprep.subr.bf16.mxu0 0
        %1425 = vmatpush1.bf16.msra.mxu0 0
        %1426 = vmatprep.subr.bf16.mxu0 0
        %1427 = vmatpush1.bf16.msra.mxu0 0
        %1428 = vmatprep.subr.bf16.mxu0 0
        %1429 = vmatpush1.bf16.msra.mxu0 0
        %1430 = vmatprep.subr.bf16.mxu0 0
        %1431 = vmatpush1.bf16.msra.mxu0 %v1412
        %1432 = vmatprep.subr.bf16.mxu0 0
        %1433 = vmatpush1.bf16.msra.mxu0 %v1411
        %1434 = vmatprep.subr.bf16.mxu0 0
        %1435 = vmatpush2.bf16.msra.mxu0 0
        %1436 = vmatprep.subr.bf16.mxu0 0
        %1437 = vmatpush2.bf16.msra.mxu0 0
        %1438 = vmatprep.subr.bf16.mxu0 0
        %1439 = vmatpush2.bf16.msra.mxu0 0
        %1440 = vmatprep.subr.bf16.mxu0 0
        %1441 = vmatpush2.bf16.msra.mxu0 0
        %1442 = vmatprep.subr.bf16.mxu0 0
        %1443 = vmatpush2.bf16.msra.mxu0 0
        %1444 = vmatprep.subr.bf16.mxu0 0
        %1445 = vmatpush2.bf16.msra.mxu0 0
        %1446 = vmatprep.subr.bf16.mxu0 0
        %1447 = vmatpush2.bf16.msra.mxu0 0
        %1448 = vmatprep.subr.bf16.mxu0 0
        %1449 = vmatpush2.bf16.msra.mxu0 0
        %1450 = vmatprep.mubr.bf16.mxu0 0
        %1451 = vmatmul.mubr.bf16.gmra.mxu0 %v1416
        %v1452 = vpop.f32.mrf.mxu0
        %v1453 = vadd.f32 %v1401, %v1452
        %v1454 = vpop.f32.mrf.mxu0
        %v1455 = vpop.f32.mrf.mxu0
        %v1456 = vpop.f32.mrf.mxu0
        %1457 = vdwg.mxu0
        %v1458 = vmax.f32 %v1453, 0.0
        %v1459 = vpack.c.bf16 %v1458, %v1458
        %v1460 = vld [vmem:[%s12] sm:$0xf]
        %v1461 = vld [vmem:[%s12 + $0x4] sm:$0xf]
        %v1462 = vld [vmem:[%s12 + $0x8] sm:$0xf]
        %v1463 = vld [vmem:[%s12 + $0xc] sm:$0xf]
        %v1464 = vld [vmem:[%s12 + $0x10] sm:$0xf]
        %v1465 = vld [vmem:[%s12 + $0x14] sm:$0xf]
        %v1466 = vld [vmem:[%s12 + $0x18] sm:$0xf]
        %v1467 = vld [vmem:[%s12 + $0x1c] sm:$0xf]
        %v1468 = vld [vmem:[%s13] sm:$0x1]
        %v1470 = vlaneseq
        %v1471 = vshrl.u32 %v1470, 7
        %v1472 = vsub.s32 0, %v1471
        %v1473 = vrot.slane %v1468, %v1472
        %v1483 = vunpack.c.l.b16 %v1460
        %v1484 = vunpack.c.l.b16 %v1461
        %v1485 = vunpack.c.l.b16 %v1462
        %v1486 = vunpack.c.l.b16 %v1463
        %v1487 = vunpack.c.l.b16 %v1464
        %v1488 = vunpack.c.l.b16 %v1465
        %v1489 = vunpack.c.l.b16 %v1466
        %v1490 = vunpack.c.l.b16 %v1467
        %v1491 = vpack.c.b16 %v1484, %v1483
        %v1492 = vpack.c.b16 %v1486, %v1485
        %v1493 = vpack.c.b16 %v1488, %v1487
        %v1494 = vpack.c.b16 %v1490, %v1489
        %vm1499 = vcmask 523264
        %v1501 = vsel %vm1499, %v1459, 0
        %1503 = vmatprep.subr.bf16.mxu0 0
        %1504 = vmatpush1.bf16.msra.mxu0 0
        %1505 = vmatprep.subr.bf16.mxu0 0
        %1506 = vmatpush1.bf16.msra.mxu0 0
        %1507 = vmatprep.subr.bf16.mxu0 0
        %1508 = vmatpush1.bf16.msra.mxu0 0
        %1509 = vmatprep.subr.bf16.mxu0 0
        %1510 = vmatpush1.bf16.msra.mxu0 0
        %1511 = vmatprep.subr.bf16.mxu0 0
        %1512 = vmatpush1.bf16.msra.mxu0 %v1494
        %1513 = vmatprep.subr.bf16.mxu0 0
        %1514 = vmatpush1.bf16.msra.mxu0 %v1493
        %1515 = vmatprep.subr.bf16.mxu0 0
        %1516 = vmatpush1.bf16.msra.mxu0 %v1492
        %1517 = vmatprep.subr.bf16.mxu0 0
        %1518 = vmatpush1.bf16.msra.mxu0 %v1491
        %1519 = vmatprep.subr.bf16.mxu0 0
        %1520 = vmatpush2.bf16.msra.mxu0 0
        %1521 = vmatprep.subr.bf16.mxu0 0
        %1522 = vmatpush2.bf16.msra.mxu0 0
        %1523 = vmatprep.subr.bf16.mxu0 0
        %1524 = vmatpush2.bf16.msra.mxu0 0
        %1525 = vmatprep.subr.bf16.mxu0 0
        %1526 = vmatpush2.bf16.msra.mxu0 0
        %1527 = vmatprep.subr.bf16.mxu0 0
        %1528 = vmatpush2.bf16.msra.mxu0 0
        %1529 = vmatprep.subr.bf16.mxu0 0
        %1530 = vmatpush2.bf16.msra.mxu0 0
        %1531 = vmatprep.subr.bf16.mxu0 0
        %1532 = vmatpush2.bf16.msra.mxu0 0
        %1533 = vmatprep.subr.bf16.mxu0 0
        %1534 = vmatpush2.bf16.msra.mxu0 0
        %1535 = vmatprep.mubr.bf16.mxu0 0
        %1536 = vmatmul.mubr.bf16.gmra.mxu0 %v1501
        %v1537 = vpop.f32.mrf.mxu0
        %v1538 = vadd.f32 %v1473, %v1537
        %v1539 = vpop.f32.mrf.mxu0
        %v1540 = vpop.f32.mrf.mxu0
        %v1541 = vpop.f32.mrf.mxu0
        %1542 = vdwg.mxu0
        %v1543 = vadd.f32 %v1354, %v1538
        %1544 = vst.msk [vmem:[%s567] sm:$0xff] %vm579, %v1543
        %s1545 = sand.u32 %s346, 1
        %s1546 = scalar_lea.sflag [#allocation4], %s1545
        %s1547 = sand.u32 %s346, 1
        %s1548 = smul.addr %s1547, 8
        %s1549 = scalar_lea.vmem [#allocation14], %s1548
        // Predicated region
        $region105: #{tpu_custom_call.1} parent=75 // pred_check
          %p1550 = pneg %p356
        $region106: #{tpu_custom_call.1} parent=75 // pred_check_branch
          %1552 = sbr.rel (%p1550) target = $region108
        $region107: #{tpu_custom_call.1} parent=75 // pred_region
          %s1554 = ssub.s32 128, 128
          %1555 = vsyncadd %s1546, %s1554
          %s1556 = smul.addr %s34, 128
          %s1557 = scalar_lea.hbm %s14, %s1556
          %s1559 = sshll.u32 %s1549, 4
          %s1560 = int_to_ptr.vmem [resolvable:$true] %s1559
          %1562 = dma.vmem_to_hbm [thread:$0]  %s1560, 128, %s1557, %s1546
        $region108: #{tpu_custom_call.1} parent=75 // pred_fallthru
          _
      $region76: #{tpu_custom_call.1} parent=5 // pred_fallthru
        _
      %p1563 = scmp.le.s32.totalorder 2, %s29
      // Predicated region
      $region109: #{tpu_custom_call.1} parent=5 // pred_check
        %p1564 = pneg %p1563
      $region110: #{tpu_custom_call.1} parent=5 // pred_check_branch
        %1566 = sbr.rel (%p1564) target = $region112
      $region111: #{tpu_custom_call.1} parent=5 // pred_region
        %s1567 = ssub.s32 %s29, 2
        // Predicated region
        $region113: #{tpu_custom_call.1} parent=111 // pred_check
          %p1568 = pneg %p362
        $region114: #{tpu_custom_call.1} parent=111 // pred_check_branch
          %1570 = sbr.rel (%p1568) target = $region116
        $region115: #{tpu_custom_call.1} parent=111 // pred_region
          %s1571 = sand.u32 %s347, 1
          %s1572 = scalar_lea.sflag [#allocation4], %s1571
          %s1573 = sand.u32 %s347, 1
          %s1574 = smul.addr %s1573, 8
          %s1575 = scalar_lea.vmem [#allocation14], %s1574
          %1576 = dma.done %s1572, 128
        $region116: #{tpu_custom_call.1} parent=111 // pred_fallthru
          _
      $region112: #{tpu_custom_call.1} parent=5 // pred_fallthru
        _
    $region6: #{tpu_custom_call.1} parent=1 // loop_footer
      %s33 = sadd.s32 1, %s29
    $region7: #{tpu_custom_call.1} parent=1 // loop_footer_branch
      %28 = sbr.rel target = $region3
    $region8: #{tpu_custom_call.1} parent=1 // loop_exit
      _
    %1577 = vsyncpa [#allocation3], 1
    %s1578 = scalar_lea.sflag [#allocation3], 1
    %1579 = vsyncpa %s1578, 1
    %1580 = vsyncpa [#allocation6], 1
    %1581 = vsyncpa [#allocation9], 1
    %1582 = vsyncpa [#allocation12], 1
    %1583 = vsyncpa [#allocation4], 1
    %s1584 = scalar_lea.sflag [#allocation4], 1
    %1585 = vsyncpa %s1584, 1

// kernel: tpu_custom_call.1
$region0: #{tpu_custom_call.1}
  #allocation0 [shape = 'u32[]', space=smem, size = 0x4, offset = 0x4, fixed_abs, tag = 'smem constant byte address 0x4 - core index']
  #allocation1 [shape = 'u32[144,128]{1,0:T(1,128)}', space=vmem, size = 0x12000, scoped, tag = 'internal scratch']
  %s0 = inlined_call_operand.vmem [shape: f32[16,32], index: 0, kind: input, shape index: {}]
  %s1 = inlined_call_operand.hbm [shape: f32[2,1,8], index: 1, kind: input, shape index: {}]
  %s2 = inlined_call_operand.hbm [shape: f32[1,32], index: 2, kind: input, shape index: {}]
  %s3 = inlined_call_operand.hbm [shape: f32[1,32], index: 3, kind: input, shape index: {}]
  %s4 = inlined_call_operand.vmem [shape: bf16[32,96], index: 4, kind: input, shape index: {}]
  %s5 = inlined_call_operand.hbm [shape: f32[1,96], index: 5, kind: input, shape index: {}]
  %s6 = inlined_call_operand.vmem [shape: bf16[32,32], index: 6, kind: input, shape index: {}]
  %s7 = inlined_call_operand.hbm [shape: f32[1,32], index: 7, kind: input, shape index: {}]
  %s8 = inlined_call_operand.hbm [shape: f32[1,32], index: 8, kind: input, shape index: {}]
  %s9 = inlined_call_operand.hbm [shape: f32[1,32], index: 9, kind: input, shape index: {}]
  %s10 = inlined_call_operand.vmem [shape: bf16[32,64], index: 10, kind: input, shape index: {}]
  %s11 = inlined_call_operand.vmem [shape: f32[1,64], index: 11, kind: input, shape index: {}]
  %s12 = inlined_call_operand.vmem [shape: bf16[64,32], index: 12, kind: input, shape index: {}]
  %s13 = inlined_call_operand.vmem [shape: f32[1,32], index: 13, kind: input, shape index: {}]
  %s14 = inlined_call_operand.hbm [shape: f32[16,32], index: 14, kind: output, shape index: {}]
  %s15 = sld [smem:[#allocation0]]
  $region117: #{tpu_custom_call.1} parent=0
    _
  %s17 = ssub.s32 1, %s15
  %s18 = scalar_select 0, %s17, %s15
  $region1: #{tpu_custom_call.1} parent=0
    #allocation2 [shape = 'u8[1024]{0}', space=vmem, size = 0x400, scoped, tag = 'input window, operand 1']
    #allocation3 [shape = 's32[2]{0}', space=sflag, size = 0x8, scoped, tag = 'scoped memory for tpu_custom_call.1']
    #allocation4 [shape = 's32[2]{0}', space=sflag, size = 0x8, scoped, tag = 'scoped memory for tpu_custom_call.1']
    #allocation5 [shape = 'u8[512]{0}', space=vmem, size = 0x400, scoped, tag = 'input window, operand 2, single buffered']
    #allocation6 [shape = 's32[1]{0}', space=sflag, size = 0x4, scoped, tag = 'scoped memory for tpu_custom_call.1']
    #allocation7 [shape = 'u8[512]{0}', space=vmem, size = 0x400, scoped, tag = 'input window, operand 3, single buffered']
    #allocation8 [shape = 'u8[512]{0}', space=vmem, size = 0x400, scoped, tag = 'input window, operand 5, single buffered']
    #allocation9 [shape = 's32[1]{0}', space=sflag, size = 0x4, scoped, tag = 'scoped memory for tpu_custom_call.1']
    #allocation10 [shape = 'u8[512]{0}', space=vmem, size = 0x400, scoped, tag = 'input window, operand 7, single buffered']
    #allocation11 [shape = 'u8[512]{0}', space=vmem, size = 0x400, scoped, tag = 'input window, operand 8, single buffered']
    #allocation12 [shape = 's32[1]{0}', space=sflag, size = 0x4, scoped, tag = 'scoped memory for tpu_custom_call.1']
    #allocation13 [shape = 'u8[512]{0}', space=vmem, size = 0x400, scoped, tag = 'input window, operand 9, single buffered']
    #allocation14 [shape = 'u8[8192]{0}', space=vmem, size = 0x2000, scoped, tag = 'output window, operand 0']
    %19 = vsyncpa [#allocation3], 0
    %s20 = scalar_lea.sflag [#allocation3], 1
    %21 = vsyncpa %s20, 0
    %22 = vsyncpa [#allocation6], 0
    %23 = vsyncpa [#allocation9], 0
    %24 = vsyncpa [#allocation12], 0
    %25 = vsyncpa [#allocation4], 0
    %s26 = scalar_lea.sflag [#allocation4], 1
    %27 = vsyncpa %s26, 0
    loop: start=0, step=1, limit=4
    $region2: #{tpu_custom_call.1} parent=1 // loop_pre_header
      _
    $region3: #{tpu_custom_call.1} parent=1 // loop_header
      %s29 = sphi 0, %s33
      %p30 = scmp.ge.s32.totalorder %s29, 4
      %s39 = sphi 0, %s41
      %s42 = sphi 0, %s39
      %s43 = sphi 0, %s42
      %s59 = sphi 0, %s43
      %s65 = sphi 0, %s67
      %s68 = sphi 0, %s65
      %s69 = sphi 0, %s68
      %s85 = sphi 0, %s69
      %s89 = sphi 0, %s89
      %s91 = sphi 0, %s89
      %s92 = sphi 0, %s91
      %s106 = sphi 0, %s92
      %s110 = sphi 0, %s110
      %s112 = sphi 0, %s110
      %s113 = sphi 0, %s112
      %s127 = sphi 0, %s113
      %s131 = sphi 0, %s131
      %s133 = sphi 0, %s131
      %s134 = sphi 0, %s133
      %s148 = sphi 0, %s134
      %s152 = sphi 0, %s152
      %s154 = sphi 0, %s152
      %s155 = sphi 0, %s154
      %s169 = sphi 0, %s155
      %s173 = sphi 0, %s173
      %s175 = sphi 0, %s173
      %s176 = sphi 0, %s175
      %s190 = sphi 0, %s176
      %s194 = sphi 0, %s194
      %s196 = sphi 0, %s194
      %s197 = sphi 0, %s196
      %s211 = sphi 0, %s197
      %s215 = sphi 0, %s215
      %s217 = sphi 0, %s215
      %s218 = sphi 0, %s217
      %s232 = sphi 0, %s218
      %s236 = sphi 0, %s236
      %s238 = sphi 0, %s236
      %s239 = sphi 0, %s238
      %s253 = sphi 0, %s239
      %s257 = sphi 0, %s257
      %s259 = sphi 0, %s257
      %s260 = sphi 0, %s259
      %s274 = sphi 0, %s260
      %s278 = sphi 0, %s278
      %s280 = sphi 0, %s278
      %s281 = sphi 0, %s280
      %s295 = sphi 0, %s281
      %s299 = sphi 0, %s299
      %s301 = sphi 0, %s299
      %s302 = sphi 0, %s301
      %s316 = sphi 0, %s302
      %s320 = sphi 0, %s320
      %s322 = sphi 0, %s320
      %s323 = sphi 0, %s322
      %s337 = sphi 0, %s323
      %s343 = sphi 0, %s345
      %s346 = sphi 0, %s343
      %s347 = sphi 0, %s346
      %s363 = sphi 0, %s347
    $region4: #{tpu_custom_call.1} parent=1 // loop_header_branch
      %32 = sbr.rel (%p30) target = $region8
    $region5: #{tpu_custom_call.1} parent=1 // loop_body
      %s34 = ssub.s32 %s29, 1
      %s35 = ssub.s32 %s29, 2
      %s36 = sadd.s32 %s29, 1
      %s37 = ssub.s32 %s29, %s36
      %p38 = scmp.eq.s32.totalorder %s37, 0
      %s40 = sadd.s32 %s39, 1
      %s41 = scalar_select %p38, %s39, %s40
      %p44 = pneg %p38
      %p45 = scmp.eq.s32.totalorder %s29, 1
      %p46 = por %p44, %p45
      %p47 = scmp.ne.s32.totalorder %s39, %s42
      %p48 = scmp.eq.s32.totalorder %s29, 0
      %p49 = por %p47, %p48
      %p50 = scmp.ne.s32.totalorder %s39, %s42
      %p51 = scmp.eq.s32.totalorder %s34, 1
      %p52 = por %p50, %p51
      %p53 = scmp.ne.s32.totalorder %s42, %s43
      %p54 = scmp.eq.s32.totalorder %s34, 0
      %p55 = por %p53, %p54
      %p56 = scmp.ne.s32.totalorder %s42, %s43
      %p57 = scmp.eq.s32.totalorder %s35, 1
      %p58 = por %p56, %p57
      %p60 = scmp.ne.s32.totalorder %s43, %s59
      %p61 = scmp.eq.s32.totalorder %s35, 0
      %p62 = por %p60, %p61
      %s63 = ssub.s32 %s29, %s36
      %p64 = scmp.eq.s32.totalorder %s63, 0
      %s66 = sadd.s32 %s65, 1
      %s67 = scalar_select %p64, %s65, %s66
      %p70 = pneg %p64
      %p71 = scmp.eq.s32.totalorder %s29, 1
      %p72 = por %p70, %p71
      %p73 = scmp.ne.s32.totalorder %s65, %s68
      %p74 = scmp.eq.s32.totalorder %s29, 0
      %p75 = por %p73, %p74
      %p76 = scmp.ne.s32.totalorder %s65, %s68
      %p77 = scmp.eq.s32.totalorder %s34, 1
      %p78 = por %p76, %p77
      %p79 = scmp.ne.s32.totalorder %s68, %s69
      %p80 = scmp.eq.s32.totalorder %s34, 0
      %p81 = por %p79, %p80
      %p82 = scmp.ne.s32.totalorder %s68, %s69
      %p83 = scmp.eq.s32.totalorder %s35, 1
      %p84 = por %p82, %p83
      %p86 = scmp.ne.s32.totalorder %s69, %s85
      %p87 = scmp.eq.s32.totalorder %s35, 0
      %p88 = por %p86, %p87
      %s90 = sadd.s32 %s89, 1
      %p93 = scmp.eq.s32.totalorder %s29, 1
      %p94 = scmp.ne.s32.totalorder %s89, %s91
      %p95 = scmp.eq.s32.totalorder %s29, 0
      %p96 = por %p94, %p95
      %p97 = scmp.ne.s32.totalorder %s89, %s91
      %p98 = scmp.eq.s32.totalorder %s34, 1
      %p99 = por %p97, %p98
      %p100 = scmp.ne.s32.totalorder %s91, %s92
      %p101 = scmp.eq.s32.totalorder %s34, 0
      %p102 = por %p100, %p101
      %p103 = scmp.ne.s32.totalorder %s91, %s92
      %p104 = scmp.eq.s32.totalorder %s35, 1
      %p105 = por %p103, %p104
      %p107 = scmp.ne.s32.totalorder %s92, %s106
      %p108 = scmp.eq.s32.totalorder %s35, 0
      %p109 = por %p107, %p108
      %s111 = sadd.s32 %s110, 1
      %p114 = scmp.eq.s32.totalorder %s29, 1
      %p115 = scmp.ne.s32.totalorder %s110, %s112
      %p116 = scmp.eq.s32.totalorder %s29, 0
      %p117 = por %p115, %p116
      %p118 = scmp.ne.s32.totalorder %s110, %s112
      %p119 = scmp.eq.s32.totalorder %s34, 1
      %p120 = por %p118, %p119
      %p121 = scmp.ne.s32.totalorder %s112, %s113
      %p122 = scmp.eq.s32.totalorder %s34, 0
      %p123 = por %p121, %p122
      %p124 = scmp.ne.s32.totalorder %s112, %s113
      %p125 = scmp.eq.s32.totalorder %s35, 1
      %p126 = por %p124, %p125
      %p128 = scmp.ne.s32.totalorder %s113, %s127
      %p129 = scmp.eq.s32.totalorder %s35, 0
      %p130 = por %p128, %p129
      %s132 = sadd.s32 %s131, 1
      %p135 = scmp.eq.s32.totalorder %s29, 1
      %p136 = scmp.ne.s32.totalorder %s131, %s133
      %p137 = scmp.eq.s32.totalorder %s29, 0
      %p138 = por %p136, %p137
      %p139 = scmp.ne.s32.totalorder %s131, %s133
      %p140 = scmp.eq.s32.totalorder %s34, 1
      %p141 = por %p139, %p140
      %p142 = scmp.ne.s32.totalorder %s133, %s134
      %p143 = scmp.eq.s32.totalorder %s34, 0
      %p144 = por %p142, %p143
      %p145 = scmp.ne.s32.totalorder %s133, %s134
      %p146 = scmp.eq.s32.totalorder %s35, 1
      %p147 = por %p145, %p146
      %p149 = scmp.ne.s32.totalorder %s134, %s148
      %p150 = scmp.eq.s32.totalorder %s35, 0
      %p151 = por %p149, %p150
      %s153 = sadd.s32 %s152, 1
      %p156 = scmp.eq.s32.totalorder %s29, 1
      %p157 = scmp.ne.s32.totalorder %s152, %s154
      %p158 = scmp.eq.s32.totalorder %s29, 0
      %p159 = por %p157, %p158
      %p160 = scmp.ne.s32.totalorder %s152, %s154
      %p161 = scmp.eq.s32.totalorder %s34, 1
      %p162 = por %p160, %p161
      %p163 = scmp.ne.s32.totalorder %s154, %s155
      %p164 = scmp.eq.s32.totalorder %s34, 0
      %p165 = por %p163, %p164
      %p166 = scmp.ne.s32.totalorder %s154, %s155
      %p167 = scmp.eq.s32.totalorder %s35, 1
      %p168 = por %p166, %p167
      %p170 = scmp.ne.s32.totalorder %s155, %s169
      %p171 = scmp.eq.s32.totalorder %s35, 0
      %p172 = por %p170, %p171
      %s174 = sadd.s32 %s173, 1
      %p177 = scmp.eq.s32.totalorder %s29, 1
      %p178 = scmp.ne.s32.totalorder %s173, %s175
      %p179 = scmp.eq.s32.totalorder %s29, 0
      %p180 = por %p178, %p179
      %p181 = scmp.ne.s32.totalorder %s173, %s175
      %p182 = scmp.eq.s32.totalorder %s34, 1
      %p183 = por %p181, %p182
      %p184 = scmp.ne.s32.totalorder %s175, %s176
      %p185 = scmp.eq.s32.totalorder %s34, 0
      %p186 = por %p184, %p185
      %p187 = scmp.ne.s32.totalorder %s175, %s176
      %p188 = scmp.eq.s32.totalorder %s35, 1
      %p189 = por %p187, %p188
      %p191 = scmp.ne.s32.totalorder %s176, %s190
      %p192 = scmp.eq.s32.totalorder %s35, 0
      %p193 = por %p191, %p192
      %s195 = sadd.s32 %s194, 1
      %p198 = scmp.eq.s32.totalorder %s29, 1
      %p199 = scmp.ne.s32.totalorder %s194, %s196
      %p200 = scmp.eq.s32.totalorder %s29, 0
      %p201 = por %p199, %p200
      %p202 = scmp.ne.s32.totalorder %s194, %s196
      %p203 = scmp.eq.s32.totalorder %s34, 1
      %p204 = por %p202, %p203
      %p205 = scmp.ne.s32.totalorder %s196, %s197
      %p206 = scmp.eq.s32.totalorder %s34, 0
      %p207 = por %p205, %p206
      %p208 = scmp.ne.s32.totalorder %s196, %s197
      %p209 = scmp.eq.s32.totalorder %s35, 1
      %p210 = por %p208, %p209
      %p212 = scmp.ne.s32.totalorder %s197, %s211
      %p213 = scmp.eq.s32.totalorder %s35, 0
      %p214 = por %p212, %p213
      %s216 = sadd.s32 %s215, 1
      %p219 = scmp.eq.s32.totalorder %s29, 1
      %p220 = scmp.ne.s32.totalorder %s215, %s217
      %p221 = scmp.eq.s32.totalorder %s29, 0
      %p222 = por %p220, %p221
      %p223 = scmp.ne.s32.totalorder %s215, %s217
      %p224 = scmp.eq.s32.totalorder %s34, 1
      %p225 = por %p223, %p224
      %p226 = scmp.ne.s32.totalorder %s217, %s218
      %p227 = scmp.eq.s32.totalorder %s34, 0
      %p228 = por %p226, %p227
      %p229 = scmp.ne.s32.totalorder %s217, %s218
      %p230 = scmp.eq.s32.totalorder %s35, 1
      %p231 = por %p229, %p230
      %p233 = scmp.ne.s32.totalorder %s218, %s232
      %p234 = scmp.eq.s32.totalorder %s35, 0
      %p235 = por %p233, %p234
      %s237 = sadd.s32 %s236, 1
      %p240 = scmp.eq.s32.totalorder %s29, 1
      %p241 = scmp.ne.s32.totalorder %s236, %s238
      %p242 = scmp.eq.s32.totalorder %s29, 0
      %p243 = por %p241, %p242
      %p244 = scmp.ne.s32.totalorder %s236, %s238
      %p245 = scmp.eq.s32.totalorder %s34, 1
      %p246 = por %p244, %p245
      %p247 = scmp.ne.s32.totalorder %s238, %s239
      %p248 = scmp.eq.s32.totalorder %s34, 0
      %p249 = por %p247, %p248
      %p250 = scmp.ne.s32.totalorder %s238, %s239
      %p251 = scmp.eq.s32.totalorder %s35, 1
      %p252 = por %p250, %p251
      %p254 = scmp.ne.s32.totalorder %s239, %s253
      %p255 = scmp.eq.s32.totalorder %s35, 0
      %p256 = por %p254, %p255
      %s258 = sadd.s32 %s257, 1
      %p261 = scmp.eq.s32.totalorder %s29, 1
      %p262 = scmp.ne.s32.totalorder %s257, %s259
      %p263 = scmp.eq.s32.totalorder %s29, 0
      %p264 = por %p262, %p263
      %p265 = scmp.ne.s32.totalorder %s257, %s259
      %p266 = scmp.eq.s32.totalorder %s34, 1
      %p267 = por %p265, %p266
      %p268 = scmp.ne.s32.totalorder %s259, %s260
      %p269 = scmp.eq.s32.totalorder %s34, 0
      %p270 = por %p268, %p269
      %p271 = scmp.ne.s32.totalorder %s259, %s260
      %p272 = scmp.eq.s32.totalorder %s35, 1
      %p273 = por %p271, %p272
      %p275 = scmp.ne.s32.totalorder %s260, %s274
      %p276 = scmp.eq.s32.totalorder %s35, 0
      %p277 = por %p275, %p276
      %s279 = sadd.s32 %s278, 1
      %p282 = scmp.eq.s32.totalorder %s29, 1
      %p283 = scmp.ne.s32.totalorder %s278, %s280
      %p284 = scmp.eq.s32.totalorder %s29, 0
      %p285 = por %p283, %p284
      %p286 = scmp.ne.s32.totalorder %s278, %s280
      %p287 = scmp.eq.s32.totalorder %s34, 1
      %p288 = por %p286, %p287
      %p289 = scmp.ne.s32.totalorder %s280, %s281
      %p290 = scmp.eq.s32.totalorder %s34, 0
      %p291 = por %p289, %p290
      %p292 = scmp.ne.s32.totalorder %s280, %s281
      %p293 = scmp.eq.s32.totalorder %s35, 1
      %p294 = por %p292, %p293
      %p296 = scmp.ne.s32.totalorder %s281, %s295
      %p297 = scmp.eq.s32.totalorder %s35, 0
      %p298 = por %p296, %p297
      %s300 = sadd.s32 %s299, 1
      %p303 = scmp.eq.s32.totalorder %s29, 1
      %p304 = scmp.ne.s32.totalorder %s299, %s301
      %p305 = scmp.eq.s32.totalorder %s29, 0
      %p306 = por %p304, %p305
      %p307 = scmp.ne.s32.totalorder %s299, %s301
      %p308 = scmp.eq.s32.totalorder %s34, 1
      %p309 = por %p307, %p308
      %p310 = scmp.ne.s32.totalorder %s301, %s302
      %p311 = scmp.eq.s32.totalorder %s34, 0
      %p312 = por %p310, %p311
      %p313 = scmp.ne.s32.totalorder %s301, %s302
      %p314 = scmp.eq.s32.totalorder %s35, 1
      %p315 = por %p313, %p314
      %p317 = scmp.ne.s32.totalorder %s302, %s316
      %p318 = scmp.eq.s32.totalorder %s35, 0
      %p319 = por %p317, %p318
      %s321 = sadd.s32 %s320, 1
      %p324 = scmp.eq.s32.totalorder %s29, 1
      %p325 = scmp.ne.s32.totalorder %s320, %s322
      %p326 = scmp.eq.s32.totalorder %s29, 0
      %p327 = por %p325, %p326
      %p328 = scmp.ne.s32.totalorder %s320, %s322
      %p329 = scmp.eq.s32.totalorder %s34, 1
      %p330 = por %p328, %p329
      %p331 = scmp.ne.s32.totalorder %s322, %s323
      %p332 = scmp.eq.s32.totalorder %s34, 0
      %p333 = por %p331, %p332
      %p334 = scmp.ne.s32.totalorder %s322, %s323
      %p335 = scmp.eq.s32.totalorder %s35, 1
      %p336 = por %p334, %p335
      %p338 = scmp.ne.s32.totalorder %s323, %s337
      %p339 = scmp.eq.s32.totalorder %s35, 0
      %p340 = por %p338, %p339
      %s341 = ssub.s32 %s29, %s36
      %p342 = scmp.eq.s32.totalorder %s341, 0
      %s344 = sadd.s32 %s343, 1
      %s345 = scalar_select %p342, %s343, %s344
      %p348 = pneg %p342
      %p349 = scmp.eq.s32.totalorder %s29, 1
      %p350 = por %p348, %p349
      %p351 = scmp.ne.s32.totalorder %s343, %s346
      %p352 = scmp.eq.s32.totalorder %s29, 0
      %p353 = por %p351, %p352
      %p354 = scmp.ne.s32.totalorder %s343, %s346
      %p355 = scmp.eq.s32.totalorder %s34, 1
      %p356 = por %p354, %p355
      %p357 = scmp.ne.s32.totalorder %s346, %s347
      %p358 = scmp.eq.s32.totalorder %s34, 0
      %p359 = por %p357, %p358
      %p360 = scmp.ne.s32.totalorder %s346, %s347
      %p361 = scmp.eq.s32.totalorder %s35, 1
      %p362 = por %p360, %p361
      %p364 = scmp.ne.s32.totalorder %s347, %s363
      %p365 = scmp.eq.s32.totalorder %s35, 0
      %p366 = por %p364, %p365
      %p367 = scmp.le.s32.totalorder 1, %s29
      %p368 = scmp.lt.s32.totalorder %s29, 3
      %p369 = pnand %p367, %p368
      %p370 = pneg %p369
      // Predicated region
      $region9: #{tpu_custom_call.1} parent=5 // pred_check
        _
      $region10: #{tpu_custom_call.1} parent=5 // pred_check_branch
        %372 = sbr.rel (%p369) target = $region12
      $region11: #{tpu_custom_call.1} parent=5 // pred_region
        %s373 = ssub.s32 %s29, 1
        // Predicated region
        $region13: #{tpu_custom_call.1} parent=11 // pred_check
          %p374 = pneg %p102
        $region14: #{tpu_custom_call.1} parent=11 // pred_check_branch
          %376 = sbr.rel (%p374) target = $region16
        $region15: #{tpu_custom_call.1} parent=11 // pred_region
          %s378 = ssub.s32 16, 16
          %379 = vsyncadd [#allocation6], %s378
          %s381 = sshll.u32 [#allocation5], 4
          %s382 = int_to_ptr.vmem [resolvable:$true] %s381
          %384 = dma.hbm_to_vmem [thread:$0]  %s2, 16, %s382, [#allocation6]
        $region16: #{tpu_custom_call.1} parent=11 // pred_fallthru
          _
        // Predicated region
        $region17: #{tpu_custom_call.1} parent=11 // pred_check
          %p385 = pneg %p123
        $region18: #{tpu_custom_call.1} parent=11 // pred_check_branch
          %387 = sbr.rel (%p385) target = $region20
        $region19: #{tpu_custom_call.1} parent=11 // pred_region
          %s389 = ssub.s32 16, 16
          %390 = vsyncadd [#allocation6], %s389
          %s392 = sshll.u32 [#allocation7], 4
          %s393 = int_to_ptr.vmem [resolvable:$true] %s392
          %395 = dma.hbm_to_vmem [thread:$0]  %s3, 16, %s393, [#allocation6]
        $region20: #{tpu_custom_call.1} parent=11 // pred_fallthru
          _
        // Predicated region
        $region21: #{tpu_custom_call.1} parent=11 // pred_check
          %p396 = pneg %p144
        $region22: #{tpu_custom_call.1} parent=11 // pred_check_branch
          %398 = sbr.rel (%p396) target = $region24
        $region23: #{tpu_custom_call.1} parent=11 // pred_region
          _
        $region24: #{tpu_custom_call.1} parent=11 // pred_fallthru
          _
        // Predicated region
        $region25: #{tpu_custom_call.1} parent=11 // pred_check
          %p399 = pneg %p165
        $region26: #{tpu_custom_call.1} parent=11 // pred_check_branch
          %401 = sbr.rel (%p399) target = $region28
        $region27: #{tpu_custom_call.1} parent=11 // pred_region
          %s403 = ssub.s32 16, 16
          %404 = vsyncadd [#allocation9], %s403
          %s406 = sshll.u32 [#allocation8], 4
          %s407 = int_to_ptr.vmem [resolvable:$true] %s406
          %409 = dma.hbm_to_vmem [thread:$0]  %s5, 16, %s407, [#allocation9]
        $region28: #{tpu_custom_call.1} parent=11 // pred_fallthru
          _
        // Predicated region
        $region29: #{tpu_custom_call.1} parent=11 // pred_check
          %p410 = pneg %p186
        $region30: #{tpu_custom_call.1} parent=11 // pred_check_branch
          %412 = sbr.rel (%p410) target = $region32
        $region31: #{tpu_custom_call.1} parent=11 // pred_region
          _
        $region32: #{tpu_custom_call.1} parent=11 // pred_fallthru
          _
        // Predicated region
        $region33: #{tpu_custom_call.1} parent=11 // pred_check
          %p413 = pneg %p207
        $region34: #{tpu_custom_call.1} parent=11 // pred_check_branch
          %415 = sbr.rel (%p413) target = $region36
        $region35: #{tpu_custom_call.1} parent=11 // pred_region
          %s417 = ssub.s32 16, 16
          %418 = vsyncadd [#allocation9], %s417
          %s420 = sshll.u32 [#allocation10], 4
          %s421 = int_to_ptr.vmem [resolvable:$true] %s420
          %423 = dma.hbm_to_vmem [thread:$0]  %s7, 16, %s421, [#allocation9]
        $region36: #{tpu_custom_call.1} parent=11 // pred_fallthru
          _
        // Predicated region
        $region37: #{tpu_custom_call.1} parent=11 // pred_check
          %p424 = pneg %p228
        $region38: #{tpu_custom_call.1} parent=11 // pred_check_branch
          %426 = sbr.rel (%p424) target = $region40
        $region39: #{tpu_custom_call.1} parent=11 // pred_region
          %s428 = ssub.s32 16, 16
          %429 = vsyncadd [#allocation12], %s428
          %s431 = sshll.u32 [#allocation11], 4
          %s432 = int_to_ptr.vmem [resolvable:$true] %s431
          %434 = dma.hbm_to_vmem [thread:$0]  %s8, 16, %s432, [#allocation12]
        $region40: #{tpu_custom_call.1} parent=11 // pred_fallthru
          _
        // Predicated region
        $region41: #{tpu_custom_call.1} parent=11 // pred_check
          %p435 = pneg %p249
        $region42: #{tpu_custom_call.1} parent=11 // pred_check_branch
          %437 = sbr.rel (%p435) target = $region44
        $region43: #{tpu_custom_call.1} parent=11 // pred_region
          %s439 = ssub.s32 16, 16
          %440 = vsyncadd [#allocation12], %s439
          %s442 = sshll.u32 [#allocation13], 4
          %s443 = int_to_ptr.vmem [resolvable:$true] %s442
          %445 = dma.hbm_to_vmem [thread:$0]  %s9, 16, %s443, [#allocation12]
        $region44: #{tpu_custom_call.1} parent=11 // pred_fallthru
          _
        // Predicated region
        $region45: #{tpu_custom_call.1} parent=11 // pred_check
          %p446 = pneg %p270
        $region46: #{tpu_custom_call.1} parent=11 // pred_check_branch
          %448 = sbr.rel (%p446) target = $region48
        $region47: #{tpu_custom_call.1} parent=11 // pred_region
          _
        $region48: #{tpu_custom_call.1} parent=11 // pred_fallthru
          _
        // Predicated region
        $region49: #{tpu_custom_call.1} parent=11 // pred_check
          %p449 = pneg %p291
        $region50: #{tpu_custom_call.1} parent=11 // pred_check_branch
          %451 = sbr.rel (%p449) target = $region52
        $region51: #{tpu_custom_call.1} parent=11 // pred_region
          _
        $region52: #{tpu_custom_call.1} parent=11 // pred_fallthru
          _
        // Predicated region
        $region53: #{tpu_custom_call.1} parent=11 // pred_check
          %p452 = pneg %p312
        $region54: #{tpu_custom_call.1} parent=11 // pred_check_branch
          %454 = sbr.rel (%p452) target = $region56
        $region55: #{tpu_custom_call.1} parent=11 // pred_region
          _
        $region56: #{tpu_custom_call.1} parent=11 // pred_fallthru
          _
        // Predicated region
        $region57: #{tpu_custom_call.1} parent=11 // pred_check
          %p455 = pneg %p333
        $region58: #{tpu_custom_call.1} parent=11 // pred_check_branch
          %457 = sbr.rel (%p455) target = $region60
        $region59: #{tpu_custom_call.1} parent=11 // pred_region
          _
        $region60: #{tpu_custom_call.1} parent=11 // pred_fallthru
          _
      $region12: #{tpu_custom_call.1} parent=5 // pred_fallthru
        _
      %p458 = scmp.lt.s32.totalorder %s29, 2
      // Predicated region
      $region61: #{tpu_custom_call.1} parent=5 // pred_check
        %p459 = pneg %p458
      $region62: #{tpu_custom_call.1} parent=5 // pred_check_branch
        %461 = sbr.rel (%p459) target = $region64
      $region63: #{tpu_custom_call.1} parent=5 // pred_region
        // Predicated region
        $region65: #{tpu_custom_call.1} parent=63 // pred_check
          %p462 = pneg %p49
        $region66: #{tpu_custom_call.1} parent=63 // pred_check_branch
          %464 = sbr.rel (%p462) target = $region68
        $region67: #{tpu_custom_call.1} parent=63 // pred_region
          %p465 = scmp.lt.s32.totalorder %s29, 1
          %s466 = scalar_select %p465, %s29, 1
          %s467 = smul.addr %s466, 8
          %s468 = scalar_lea.vmem %s0, %s467
        $region68: #{tpu_custom_call.1} parent=63 // pred_fallthru
          _
        // Predicated region
        $region69: #{tpu_custom_call.1} parent=63 // pred_check
          %p469 = pneg %p75
        $region70: #{tpu_custom_call.1} parent=63 // pred_check_branch
          %471 = sbr.rel (%p469) target = $region72
        $region71: #{tpu_custom_call.1} parent=63 // pred_region
          %s472 = sand.u32 %s65, 1
          %s473 = scalar_lea.sflag [#allocation3], %s472
          %s474 = sand.u32 %s65, 1
          %s475 = scalar_lea.vmem [#allocation2], %s474
          %s477 = ssub.s32 16, 16
          %478 = vsyncadd %s473, %s477
          %s479 = smul.addr %s29, 16
          %s480 = scalar_lea.hbm %s1, %s479
          %s482 = sshll.u32 %s475, 4
          %s483 = int_to_ptr.vmem [resolvable:$true] %s482
          %485 = dma.hbm_to_vmem [thread:$0]  %s480, 16, %s483, %s473
        $region72: #{tpu_custom_call.1} parent=63 // pred_fallthru
          _
      $region64: #{tpu_custom_call.1} parent=5 // pred_fallthru
        _
      %p486 = scmp.le.s32.totalorder 1, %s29
      %p487 = scmp.lt.s32.totalorder %s29, 3
      %p488 = pnand %p486, %p487
      %p489 = pneg %p488
      // Predicated region
      $region73: #{tpu_custom_call.1} parent=5 // pred_check
        _
      $region74: #{tpu_custom_call.1} parent=5 // pred_check_branch
        %491 = sbr.rel (%p488) target = $region76
      $region75: #{tpu_custom_call.1} parent=5 // pred_region
        %s492 = ssub.s32 %s29, 1
        %s493 = sand.u32 %s68, 1
        %s494 = scalar_lea.sflag [#allocation3], %s493
        %s495 = sand.u32 %s68, 1
        %s496 = scalar_lea.vmem [#allocation2], %s495
        // Predicated region
        $region77: #{tpu_custom_call.1} parent=75 // pred_check
          %p497 = pneg %p81
        $region78: #{tpu_custom_call.1} parent=75 // pred_check_branch
          %499 = sbr.rel (%p497) target = $region80
        $region79: #{tpu_custom_call.1} parent=75 // pred_region
          %500 = dma.done %s494, 16
        $region80: #{tpu_custom_call.1} parent=75 // pred_fallthru
          _
        // Predicated region
        $region81: #{tpu_custom_call.1} parent=75 // pred_check
          %p501 = pneg %p102
        $region82: #{tpu_custom_call.1} parent=75 // pred_check_branch
          %503 = sbr.rel (%p501) target = $region84
        $region83: #{tpu_custom_call.1} parent=75 // pred_region
          %504 = dma.done [#allocation6], 16
        $region84: #{tpu_custom_call.1} parent=75 // pred_fallthru
          _
        // Predicated region
        $region85: #{tpu_custom_call.1} parent=75 // pred_check
          %p505 = pneg %p123
        $region86: #{tpu_custom_call.1} parent=75 // pred_check_branch
          %507 = sbr.rel (%p505) target = $region88
        $region87: #{tpu_custom_call.1} parent=75 // pred_region
          %508 = dma.done [#allocation6], 16
        $region88: #{tpu_custom_call.1} parent=75 // pred_fallthru
          _
        // Predicated region
        $region89: #{tpu_custom_call.1} parent=75 // pred_check
          %p509 = pneg %p165
        $region90: #{tpu_custom_call.1} parent=75 // pred_check_branch
          %511 = sbr.rel (%p509) target = $region92
        $region91: #{tpu_custom_call.1} parent=75 // pred_region
          %512 = dma.done [#allocation9], 16
        $region92: #{tpu_custom_call.1} parent=75 // pred_fallthru
          _
        // Predicated region
        $region93: #{tpu_custom_call.1} parent=75 // pred_check
          %p513 = pneg %p207
        $region94: #{tpu_custom_call.1} parent=75 // pred_check_branch
          %515 = sbr.rel (%p513) target = $region96
        $region95: #{tpu_custom_call.1} parent=75 // pred_region
          %516 = dma.done [#allocation9], 16
        $region96: #{tpu_custom_call.1} parent=75 // pred_fallthru
          _
        // Predicated region
        $region97: #{tpu_custom_call.1} parent=75 // pred_check
          %p517 = pneg %p228
        $region98: #{tpu_custom_call.1} parent=75 // pred_check_branch
          %519 = sbr.rel (%p517) target = $region100
        $region99: #{tpu_custom_call.1} parent=75 // pred_region
          %520 = dma.done [#allocation12], 16
        $region100: #{tpu_custom_call.1} parent=75 // pred_fallthru
          _
        // Predicated region
        $region101: #{tpu_custom_call.1} parent=75 // pred_check
          %p521 = pneg %p249
        $region102: #{tpu_custom_call.1} parent=75 // pred_check_branch
          %523 = sbr.rel (%p521) target = $region104
        $region103: #{tpu_custom_call.1} parent=75 // pred_region
          %524 = dma.done [#allocation12], 16
        $region104: #{tpu_custom_call.1} parent=75 // pred_fallthru
          _
        %p525 = scmp.lt.s32.totalorder %s34, 1
        %s526 = scalar_select %p525, %s34, 1
        %s527 = smul.addr %s526, 8
        %s528 = scalar_lea.vmem %s0, %s527
        %p529 = pneg %p55
        %p530 = pneg %p52
        %s531 = sand.u32 %s68, 1
        %s532 = scalar_lea.sflag [#allocation3], %s531
        %s533 = sand.u32 %s68, 1
        %s534 = scalar_lea.vmem [#allocation2], %s533
        %p535 = pneg %p81
        %p536 = pneg %p78
        %p537 = pneg %p102
        %p538 = pneg %p99
        %p539 = pneg %p123
        %p540 = pneg %p120
        %p541 = pneg %p144
        %p542 = pneg %p141
        %p543 = pneg %p165
        %p544 = pneg %p162
        %p545 = pneg %p186
        %p546 = pneg %p183
        %p547 = pneg %p207
        %p548 = pneg %p204
        %p549 = pneg %p228
        %p550 = pneg %p225
        %p551 = pneg %p249
        %p552 = pneg %p246
        %p553 = pneg %p270
        %p554 = pneg %p267
        %p555 = pneg %p291
        %p556 = pneg %p288
        %p557 = pneg %p312
        %p558 = pneg %p309
        %p559 = pneg %p333
        %p560 = pneg %p330
        %p561 = pneg %p359
        %p562 = pneg %p356
        %s563 = sand.u32 %s346, 1
        %s564 = scalar_lea.sflag [#allocation4], %s563
        %s565 = sand.u32 %s346, 1
        %s566 = smul.addr %s565, 8
        %s567 = scalar_lea.vmem [#allocation14], %s566
        %p568 = scmp.lt.s32.totalorder %s34, 1
        %s569 = scalar_select %p568, %s34, 1
        %s570 = smul.addr %s569, 8
        %s571 = scalar_lea.vmem %s0, %s570
        %v573 = vld [vmem:[%s571] sm:$0xff]
        %v574 = vld [vmem:[%s496] sm:$0x1]
        %v575 = vsub.f32 %v574, 1.0
        %v576 = vmul.f32 %v575, 1e+09
        %v577 = vld [vmem:[#allocation5] sm:$0x1]
        %v578 = vld [vmem:[#allocation7] sm:$0x1]
        %vm579 = vcmask 261120
        %v580 = vsel %vm579, %v573, 0.0
        %581 = vadd.xlane.f32.xlu0 %v580
        %v582 = vpop.xlane.xlu0 %581
        %v583 = vrcp.pop 32.0
        %v584 = vmul.f32 %v582, %v583
        %v585 = vsub.f32 %v573, %v584
        %v586 = vmul.f32 %v585, %v585
        %v587 = vsel %vm579, %v586, 0.0
        %588 = vadd.xlane.f32.xlu0 %v587
        %v589 = vpop.xlane.xlu0 %588
        %v590 = vmul.f32 %v589, 0.032258064
        %v591 = vrsqrt.pop %v590
        %v592 = vmul.f32 %v590, %v591
        %vm593 = vcmp.eq.f32.partialorder %v590, inf
        %v594 = vsel %vm593, %v590, %v592
        %vm595 = vcmp.eq.f32.partialorder %v590, 0.0
        %v596 = vand.u32 %v590, 2147483648
        %v597 = vsel %vm595, %v596, %v594
        %v598 = vadd.f32 %v597, 1e-06
        %v599 = vrcp.pop %v598
        %v601 = vlaneseq
        %v602 = vshrl.u32 %v601, 7
        %v603 = vsub.s32 0, %v602
        %v604 = vrot.slane %v577, %v603
        %v606 = vmul.f32 %v604, %v585
        %v607 = vmul.f32 %v606, %v599
        %v609 = vlaneseq
        %v610 = vshrl.u32 %v609, 7
        %v611 = vsub.s32 0, %v610
        %v612 = vrot.slane %v578, %v611
        %v614 = vadd.f32 %v607, %v612
        %v615 = vpack.c.bf16 %v614, %v614
        %v616 = vld [vmem:[%s4] sm:$0xf]
        %v617 = vld [vmem:[%s4 + $0x4] sm:$0xf]
        %v618 = vld [vmem:[%s4 + $0x8] sm:$0xf]
        %v619 = vld [vmem:[%s4 + $0xc] sm:$0xf]
        %v620 = vld [vmem:[#allocation8] sm:$0x1]
        %v622 = vlaneseq
        %v623 = vshrl.u32 %v622, 7
        %v624 = vsub.s32 0, %v623
        %v625 = vrot.slane %v620, %v624
        %v631 = vunpack.c.l.b16 %v616
        %v632 = vunpack.c.l.b16 %v617
        %v633 = vunpack.c.l.b16 %v618
        %v634 = vunpack.c.l.b16 %v619
        %v635 = vpack.c.b16 %v632, %v631
        %v636 = vpack.c.b16 %v634, %v633
        %v640 = vsel %vm579, %v615, 0
        %642 = vmatprep.subr.bf16.mxu0 0
        %643 = vmatpush1.bf16.msra.mxu0 0
        %644 = vmatprep.subr.bf16.mxu0 0
        %645 = vmatpush1.bf16.msra.mxu0 0
        %646 = vmatprep.subr.bf16.mxu0 0
        %647 = vmatpush1.bf16.msra.mxu0 0
        %648 = vmatprep.subr.bf16.mxu0 0
        %649 = vmatpush1.bf16.msra.mxu0 0
        %650 = vmatprep.subr.bf16.mxu0 0
        %651 = vmatpush1.bf16.msra.mxu0 0
        %652 = vmatprep.subr.bf16.mxu0 0
        %653 = vmatpush1.bf16.msra.mxu0 0
        %654 = vmatprep.subr.bf16.mxu0 0
        %655 = vmatpush1.bf16.msra.mxu0 %v636
        %656 = vmatprep.subr.bf16.mxu0 0
        %657 = vmatpush1.bf16.msra.mxu0 %v635
        %658 = vmatprep.subr.bf16.mxu0 0
        %659 = vmatpush2.bf16.msra.mxu0 0
        %660 = vmatprep.subr.bf16.mxu0 0
        %661 = vmatpush2.bf16.msra.mxu0 0
        %662 = vmatprep.subr.bf16.mxu0 0
        %663 = vmatpush2.bf16.msra.mxu0 0
        %664 = vmatprep.subr.bf16.mxu0 0
        %665 = vmatpush2.bf16.msra.mxu0 0
        %666 = vmatprep.subr.bf16.mxu0 0
        %667 = vmatpush2.bf16.msra.mxu0 0
        %668 = vmatprep.subr.bf16.mxu0 0
        %669 = vmatpush2.bf16.msra.mxu0 0
        %670 = vmatprep.subr.bf16.mxu0 0
        %671 = vmatpush2.bf16.msra.mxu0 0
        %672 = vmatprep.subr.bf16.mxu0 0
        %673 = vmatpush2.bf16.msra.mxu0 0
        %674 = vmatprep.mubr.bf16.mxu0 0
        %675 = vmatmul.mubr.bf16.gmra.mxu0 %v640
        %v676 = vpop.f32.mrf.mxu0
        %v677 = vadd.f32 %v625, %v676
        %v678 = vpop.f32.mrf.mxu0
        %v679 = vpop.f32.mrf.mxu0
        %v680 = vpop.f32.mrf.mxu0
        %681 = vdwg.mxu0
        %v682 = vmul.f32 %v677, 0.35355338
        %v683 = vpack.c.bf16 %v682, %v682
        %685 = vrot.lane.b32.xlu0 %v677, 96
        %v686 = vpop.permute.xlu0 %685
        %688 = vxpose.xlu0.b32.start [1/16] %v686, 128
        %689 = vxpose.xlu0.b32.cont [2/16] 0.0, 128
        %690 = vxpose.xlu0.b32.cont [3/16] 0.0, 128
        %691 = vxpose.xlu0.b32.cont [4/16] 0.0, 128
        %692 = vxpose.xlu0.b32.cont [5/16] 0.0, 128
        %693 = vxpose.xlu0.b32.cont [6/16] 0.0, 128
        %694 = vxpose.xlu0.b32.cont [7/16] 0.0, 128
        %695 = vxpose.xlu0.b32.cont [8/16] 0.0, 128
        %696 = vxpose.xlu0.b32.cont [9/16] 0.0, 128
        %697 = vxpose.xlu0.b32.cont [10/16] 0.0, 128
        %698 = vxpose.xlu0.b32.cont [11/16] 0.0, 128
        %699 = vxpose.xlu0.b32.cont [12/16] 0.0, 128
        %700 = vxpose.xlu0.b32.cont [13/16] 0.0, 128
        %701 = vxpose.xlu0.b32.cont [14/16] 0.0, 128
        %702 = vxpose.xlu0.b32.cont [15/16] 0.0, 128
        %703 = vxpose.xlu0.b32.end [16/16] 0.0, 128
        %v704 = vpop.trf.xlu0
        %v705 = vpop.trf.xlu0
        %v706 = vpop.trf.xlu0
        %v707 = vpop.trf.xlu0
        %v708 = vpop.trf.xlu0
        %v709 = vpop.trf.xlu0
        %v710 = vpop.trf.xlu0
        %v711 = vpop.trf.xlu0
        %v712 = vpop.trf.xlu0
        %v713 = vpop.trf.xlu0
        %v714 = vpop.trf.xlu0
        %v715 = vpop.trf.xlu0
        %v716 = vpop.trf.xlu0
        %v717 = vpop.trf.xlu0
        %v718 = vpop.trf.xlu0
        %v719 = vpop.trf.xlu0
        %v720 = vpack.c.bf16 %v704, %v704
        %v722 = vlaneseq
        %v723 = vshrl.u32 %v722, 7
        %v724 = vsub.s32 0, %v723
        %v725 = vrot.slane %v576, %v724
        %vm727 = vcmask 64512
        %v729 = vsel %vm727, %v683, 0
        %vm731 = vcmask 1043456
        %v733 = vsel %vm731, %v720, 0
        %735 = vmatprep.subr.bf16.mxu0 0
        %736 = vmatpush1.bf16.msra.mxu0 0
        %737 = vmatprep.subr.bf16.mxu0 0
        %738 = vmatpush1.bf16.msra.mxu0 0
        %739 = vmatprep.subr.bf16.mxu0 0
        %740 = vmatpush1.bf16.msra.mxu0 0
        %741 = vmatprep.subr.bf16.mxu0 0
        %742 = vmatpush1.bf16.msra.mxu0 0
        %743 = vmatprep.subr.bf16.mxu0 0
        %744 = vmatpush1.bf16.msra.mxu0 0
        %745 = vmatprep.subr.bf16.mxu0 0
        %746 = vmatpush1.bf16.msra.mxu0 0
        %747 = vmatprep.subr.bf16.mxu0 0
        %748 = vmatpush1.bf16.msra.mxu0 0
        %749 = vmatprep.subr.bf16.mxu0 0
        %750 = vmatpush1.bf16.msra.mxu0 %v733
        %751 = vmatprep.subr.bf16.mxu0 0
        %752 = vmatpush2.bf16.msra.mxu0 0
        %753 = vmatprep.subr.bf16.mxu0 0
        %754 = vmatpush2.bf16.msra.mxu0 0
        %755 = vmatprep.subr.bf16.mxu0 0
        %756 = vmatpush2.bf16.msra.mxu0 0
        %757 = vmatprep.subr.bf16.mxu0 0
        %758 = vmatpush2.bf16.msra.mxu0 0
        %759 = vmatprep.subr.bf16.mxu0 0
        %760 = vmatpush2.bf16.msra.mxu0 0
        %761 = vmatprep.subr.bf16.mxu0 0
        %762 = vmatpush2.bf16.msra.mxu0 0
        %763 = vmatprep.subr.bf16.mxu0 0
        %764 = vmatpush2.bf16.msra.mxu0 0
        %765 = vmatprep.subr.bf16.mxu0 0
        %766 = vmatpush2.bf16.msra.mxu0 0
        %767 = vmatprep.mubr.bf16.mxu0 0
        %768 = vmatmul.mubr.bf16.gmra.mxu0 %v729
        %v769 = vpop.f32.mrf.mxu0
        %v770 = vadd.f32 %v725, %v769
        %v771 = vpop.f32.mrf.mxu0
        %v772 = vpop.f32.mrf.mxu0
        %v773 = vpop.f32.mrf.mxu0
        %774 = vdwg.mxu0
        %v775 = vsel %vm727, %v770, -inf
        %776 = vmax.xlane.f32.xlu0 %v775
        %v777 = vpop.xlane.xlu0 %776
        %v778 = vsub.f32 %v770, %v777
        %v779 = vmul.f32 %v778, 1.442695
        %v780 = vpow.pop %v779
        %v781 = vsel %vm727, %v780, 0.0
        %782 = vadd.xlane.f32.xlu0 %v781
        %v783 = vpop.xlane.xlu0 %782
        %v784 = vrcp.pop %v783
        %v785 = vmul.f32 %v780, %v784
        %v786 = vpack.c.bf16 %v785, %v785
        %v787 = vpack.c.bf16 %v677, %v677
        %789 = vrot.lane.b32.xlu0 %v787, 64
        %v790 = vpop.permute.xlu0 %789
        %v792 = vsel %vm727, %v786, 0
        %v795 = vsel %vm731, %v790, 0
        %797 = vmatprep.subr.bf16.mxu0 0
        %798 = vmatpush1.bf16.msra.mxu0 0
        %799 = vmatprep.subr.bf16.mxu0 0
        %800 = vmatpush1.bf16.msra.mxu0 0
        %801 = vmatprep.subr.bf16.mxu0 0
        %802 = vmatpush1.bf16.msra.mxu0 0
        %803 = vmatprep.subr.bf16.mxu0 0
        %804 = vmatpush1.bf16.msra.mxu0 0
        %805 = vmatprep.subr.bf16.mxu0 0
        %806 = vmatpush1.bf16.msra.mxu0 0
        %807 = vmatprep.subr.bf16.mxu0 0
        %808 = vmatpush1.bf16.msra.mxu0 0
        %809 = vmatprep.subr.bf16.mxu0 0
        %810 = vmatpush1.bf16.msra.mxu0 0
        %811 = vmatprep.subr.bf16.mxu0 0
        %812 = vmatpush1.bf16.msra.mxu0 %v795
        %813 = vmatprep.subr.bf16.mxu0 0
        %814 = vmatpush2.bf16.msra.mxu0 0
        %815 = vmatprep.subr.bf16.mxu0 0
        %816 = vmatpush2.bf16.msra.mxu0 0
        %817 = vmatprep.subr.bf16.mxu0 0
        %818 = vmatpush2.bf16.msra.mxu0 0
        %819 = vmatprep.subr.bf16.mxu0 0
        %820 = vmatpush2.bf16.msra.mxu0 0
        %821 = vmatprep.subr.bf16.mxu0 0
        %822 = vmatpush2.bf16.msra.mxu0 0
        %823 = vmatprep.subr.bf16.mxu0 0
        %824 = vmatpush2.bf16.msra.mxu0 0
        %825 = vmatprep.subr.bf16.mxu0 0
        %826 = vmatpush2.bf16.msra.mxu0 0
        %827 = vmatprep.subr.bf16.mxu0 0
        %828 = vmatpush2.bf16.msra.mxu0 0
        %829 = vmatprep.mubr.bf16.mxu0 0
        %830 = vmatmul.mubr.bf16.gmra.mxu0 %v792
        %v831 = vpop.f32.mrf.mxu0
        %v832 = vadd.f32 0.0, %v831
        %v833 = vpop.f32.mrf.mxu0
        %v834 = vpop.f32.mrf.mxu0
        %v835 = vpop.f32.mrf.mxu0
        %836 = vdwg.mxu0
        %837 = vrot.lane.b32.xlu0 %v677, 88
        %v838 = vpop.permute.xlu0 %837
        %840 = vxpose.xlu0.b32.start [1/16] %v838, 128
        %841 = vxpose.xlu0.b32.cont [2/16] 0.0, 128
        %842 = vxpose.xlu0.b32.cont [3/16] 0.0, 128
        %843 = vxpose.xlu0.b32.cont [4/16] 0.0, 128
        %844 = vxpose.xlu0.b32.cont [5/16] 0.0, 128
        %845 = vxpose.xlu0.b32.cont [6/16] 0.0, 128
        %846 = vxpose.xlu0.b32.cont [7/16] 0.0, 128
        %847 = vxpose.xlu0.b32.cont [8/16] 0.0, 128
        %848 = vxpose.xlu0.b32.cont [9/16] 0.0, 128
        %849 = vxpose.xlu0.b32.cont [10/16] 0.0, 128
        %850 = vxpose.xlu0.b32.cont [11/16] 0.0, 128
        %851 = vxpose.xlu0.b32.cont [12/16] 0.0, 128
        %852 = vxpose.xlu0.b32.cont [13/16] 0.0, 128
        %853 = vxpose.xlu0.b32.cont [14/16] 0.0, 128
        %854 = vxpose.xlu0.b32.cont [15/16] 0.0, 128
        %855 = vxpose.xlu0.b32.end [16/16] 0.0, 128
        %v856 = vpop.trf.xlu0
        %v857 = vpop.trf.xlu0
        %v858 = vpop.trf.xlu0
        %v859 = vpop.trf.xlu0
        %v860 = vpop.trf.xlu0
        %v861 = vpop.trf.xlu0
        %v862 = vpop.trf.xlu0
        %v863 = vpop.trf.xlu0
        %v864 = vpop.trf.xlu0
        %v865 = vpop.trf.xlu0
        %v866 = vpop.trf.xlu0
        %v867 = vpop.trf.xlu0
        %v868 = vpop.trf.xlu0
        %v869 = vpop.trf.xlu0
        %v870 = vpop.trf.xlu0
        %v871 = vpop.trf.xlu0
        %v872 = vpack.c.bf16 %v856, %v856
        %874 = vrot.lane.b32.xlu0 %v683, 120
        %v875 = vpop.permute.xlu0 %874
        %v877 = vsel %vm727, %v875, 0
        %v880 = vsel %vm731, %v872, 0
        %882 = vmatprep.subr.bf16.mxu0 0
        %883 = vmatpush1.bf16.msra.mxu0 0
        %884 = vmatprep.subr.bf16.mxu0 0
        %885 = vmatpush1.bf16.msra.mxu0 0
        %886 = vmatprep.subr.bf16.mxu0 0
        %887 = vmatpush1.bf16.msra.mxu0 0
        %888 = vmatprep.subr.bf16.mxu0 0
        %889 = vmatpush1.bf16.msra.mxu0 0
        %890 = vmatprep.subr.bf16.mxu0 0
        %891 = vmatpush1.bf16.msra.mxu0 0
        %892 = vmatprep.subr.bf16.mxu0 0
        %893 = vmatpush1.bf16.msra.mxu0 0
        %894 = vmatprep.subr.bf16.mxu0 0
        %895 = vmatpush1.bf16.msra.mxu0 0
        %896 = vmatprep.subr.bf16.mxu0 0
        %897 = vmatpush1.bf16.msra.mxu0 %v880
        %898 = vmatprep.subr.bf16.mxu0 0
        %899 = vmatpush2.bf16.msra.mxu0 0
        %900 = vmatprep.subr.bf16.mxu0 0
        %901 = vmatpush2.bf16.msra.mxu0 0
        %902 = vmatprep.subr.bf16.mxu0 0
        %903 = vmatpush2.bf16.msra.mxu0 0
        %904 = vmatprep.subr.bf16.mxu0 0
        %905 = vmatpush2.bf16.msra.mxu0 0
        %906 = vmatprep.subr.bf16.mxu0 0
        %907 = vmatpush2.bf16.msra.mxu0 0
        %908 = vmatprep.subr.bf16.mxu0 0
        %909 = vmatpush2.bf16.msra.mxu0 0
        %910 = vmatprep.subr.bf16.mxu0 0
        %911 = vmatpush2.bf16.msra.mxu0 0
        %912 = vmatprep.subr.bf16.mxu0 0
        %913 = vmatpush2.bf16.msra.mxu0 0
        %914 = vmatprep.mubr.bf16.mxu0 0
        %915 = vmatmul.mubr.bf16.gmra.mxu0 %v877
        %v916 = vpop.f32.mrf.mxu0
        %v917 = vadd.f32 %v725, %v916
        %v918 = vpop.f32.mrf.mxu0
        %v919 = vpop.f32.mrf.mxu0
        %v920 = vpop.f32.mrf.mxu0
        %921 = vdwg.mxu0
        %v922 = vsel %vm727, %v917, -inf
        %923 = vmax.xlane.f32.xlu0 %v922
        %v924 = vpop.xlane.xlu0 %923
        %v925 = vsub.f32 %v917, %v924
        %v926 = vmul.f32 %v925, 1.442695
        %v927 = vpow.pop %v926
        %v928 = vsel %vm727, %v927, 0.0
        %929 = vadd.xlane.f32.xlu0 %v928
        %v930 = vpop.xlane.xlu0 %929
        %v931 = vrcp.pop %v930
        %v932 = vmul.f32 %v927, %v931
        %v933 = vpack.c.bf16 %v932, %v932
        %934 = vrot.lane.b32.xlu0 %v787, 56
        %v935 = vpop.permute.xlu0 %934
        %v937 = vsel %vm727, %v933, 0
        %v940 = vsel %vm731, %v935, 0
        %942 = vmatprep.subr.bf16.mxu0 0
        %943 = vmatpush1.bf16.msra.mxu0 0
        %944 = vmatprep.subr.bf16.mxu0 0
        %945 = vmatpush1.bf16.msra.mxu0 0
        %946 = vmatprep.subr.bf16.mxu0 0
        %947 = vmatpush1.bf16.msra.mxu0 0
        %948 = vmatprep.subr.bf16.mxu0 0
        %949 = vmatpush1.bf16.msra.mxu0 0
        %950 = vmatprep.subr.bf16.mxu0 0
        %951 = vmatpush1.bf16.msra.mxu0 0
        %952 = vmatprep.subr.bf16.mxu0 0
        %953 = vmatpush1.bf16.msra.mxu0 0
        %954 = vmatprep.subr.bf16.mxu0 0
        %955 = vmatpush1.bf16.msra.mxu0 0
        %956 = vmatprep.subr.bf16.mxu0 0
        %957 = vmatpush1.bf16.msra.mxu0 %v940
        %958 = vmatprep.subr.bf16.mxu0 0
        %959 = vmatpush2.bf16.msra.mxu0 0
        %960 = vmatprep.subr.bf16.mxu0 0
        %961 = vmatpush2.bf16.msra.mxu0 0
        %962 = vmatprep.subr.bf16.mxu0 0
        %963 = vmatpush2.bf16.msra.mxu0 0
        %964 = vmatprep.subr.bf16.mxu0 0
        %965 = vmatpush2.bf16.msra.mxu0 0
        %966 = vmatprep.subr.bf16.mxu0 0
        %967 = vmatpush2.bf16.msra.mxu0 0
        %968 = vmatprep.subr.bf16.mxu0 0
        %969 = vmatpush2.bf16.msra.mxu0 0
        %970 = vmatprep.subr.bf16.mxu0 0
        %971 = vmatpush2.bf16.msra.mxu0 0
        %972 = vmatprep.subr.bf16.mxu0 0
        %973 = vmatpush2.bf16.msra.mxu0 0
        %974 = vmatprep.mubr.bf16.mxu0 0
        %975 = vmatmul.mubr.bf16.gmra.mxu0 %v937
        %v976 = vpop.f32.mrf.mxu0
        %v977 = vadd.f32 0.0, %v976
        %v978 = vpop.f32.mrf.mxu0
        %v979 = vpop.f32.mrf.mxu0
        %v980 = vpop.f32.mrf.mxu0
        %981 = vdwg.mxu0
        %982 = vrot.lane.b32.xlu0 %v677, 80
        %v983 = vpop.permute.xlu0 %982
        %985 = vxpose.xlu0.b32.start [1/16] %v983, 128
        %986 = vxpose.xlu0.b32.cont [2/16] 0.0, 128
        %987 = vxpose.xlu0.b32.cont [3/16] 0.0, 128
        %988 = vxpose.xlu0.b32.cont [4/16] 0.0, 128
        %989 = vxpose.xlu0.b32.cont [5/16] 0.0, 128
        %990 = vxpose.xlu0.b32.cont [6/16] 0.0, 128
        %991 = vxpose.xlu0.b32.cont [7/16] 0.0, 128
        %992 = vxpose.xlu0.b32.cont [8/16] 0.0, 128
        %993 = vxpose.xlu0.b32.cont [9/16] 0.0, 128
        %994 = vxpose.xlu0.b32.cont [10/16] 0.0, 128
        %995 = vxpose.xlu0.b32.cont [11/16] 0.0, 128
        %996 = vxpose.xlu0.b32.cont [12/16] 0.0, 128
        %997 = vxpose.xlu0.b32.cont [13/16] 0.0, 128
        %998 = vxpose.xlu0.b32.cont [14/16] 0.0, 128
        %999 = vxpose.xlu0.b32.cont [15/16] 0.0, 128
        %1000 = vxpose.xlu0.b32.end [16/16] 0.0, 128
        %v1001 = vpop.trf.xlu0
        %v1002 = vpop.trf.xlu0
        %v1003 = vpop.trf.xlu0
        %v1004 = vpop.trf.xlu0
        %v1005 = vpop.trf.xlu0
        %v1006 = vpop.trf.xlu0
        %v1007 = vpop.trf.xlu0
        %v1008 = vpop.trf.xlu0
        %v1009 = vpop.trf.xlu0
        %v1010 = vpop.trf.xlu0
        %v1011 = vpop.trf.xlu0
        %v1012 = vpop.trf.xlu0
        %v1013 = vpop.trf.xlu0
        %v1014 = vpop.trf.xlu0
        %v1015 = vpop.trf.xlu0
        %v1016 = vpop.trf.xlu0
        %v1017 = vpack.c.bf16 %v1001, %v1001
        %1018 = vrot.lane.b32.xlu0 %v683, 112
        %v1019 = vpop.permute.xlu0 %1018
        %v1021 = vsel %vm727, %v1019, 0
        %v1024 = vsel %vm731, %v1017, 0
        %1026 = vmatprep.subr.bf16.mxu0 0
        %1027 = vmatpush1.bf16.msra.mxu0 0
        %1028 = vmatprep.subr.bf16.mxu0 0
        %1029 = vmatpush1.bf16.msra.mxu0 0
        %1030 = vmatprep.subr.bf16.mxu0 0
        %1031 = vmatpush1.bf16.msra.mxu0 0
        %1032 = vmatprep.subr.bf16.mxu0 0
        %1033 = vmatpush1.bf16.msra.mxu0 0
        %1034 = vmatprep.subr.bf16.mxu0 0
        %1035 = vmatpush1.bf16.msra.mxu0 0
        %1036 = vmatprep.subr.bf16.mxu0 0
        %1037 = vmatpush1.bf16.msra.mxu0 0
        %1038 = vmatprep.subr.bf16.mxu0 0
        %1039 = vmatpush1.bf16.msra.mxu0 0
        %1040 = vmatprep.subr.bf16.mxu0 0
        %1041 = vmatpush1.bf16.msra.mxu0 %v1024
        %1042 = vmatprep.subr.bf16.mxu0 0
        %1043 = vmatpush2.bf16.msra.mxu0 0
        %1044 = vmatprep.subr.bf16.mxu0 0
        %1045 = vmatpush2.bf16.msra.mxu0 0
        %1046 = vmatprep.subr.bf16.mxu0 0
        %1047 = vmatpush2.bf16.msra.mxu0 0
        %1048 = vmatprep.subr.bf16.mxu0 0
        %1049 = vmatpush2.bf16.msra.mxu0 0
        %1050 = vmatprep.subr.bf16.mxu0 0
        %1051 = vmatpush2.bf16.msra.mxu0 0
        %1052 = vmatprep.subr.bf16.mxu0 0
        %1053 = vmatpush2.bf16.msra.mxu0 0
        %1054 = vmatprep.subr.bf16.mxu0 0
        %1055 = vmatpush2.bf16.msra.mxu0 0
        %1056 = vmatprep.subr.bf16.mxu0 0
        %1057 = vmatpush2.bf16.msra.mxu0 0
        %1058 = vmatprep.mubr.bf16.mxu0 0
        %1059 = vmatmul.mubr.bf16.gmra.mxu0 %v1021
        %v1060 = vpop.f32.mrf.mxu0
        %v1061 = vadd.f32 %v725, %v1060
        %v1062 = vpop.f32.mrf.mxu0
        %v1063 = vpop.f32.mrf.mxu0
        %v1064 = vpop.f32.mrf.mxu0
        %1065 = vdwg.mxu0
        %v1066 = vsel %vm727, %v1061, -inf
        %1067 = vmax.xlane.f32.xlu0 %v1066
        %v1068 = vpop.xlane.xlu0 %1067
        %v1069 = vsub.f32 %v1061, %v1068
        %v1070 = vmul.f32 %v1069, 1.442695
        %v1071 = vpow.pop %v1070
        %v1072 = vsel %vm727, %v1071, 0.0
        %1073 = vadd.xlane.f32.xlu0 %v1072
        %v1074 = vpop.xlane.xlu0 %1073
        %v1075 = vrcp.pop %v1074
        %v1076 = vmul.f32 %v1071, %v1075
        %v1077 = vpack.c.bf16 %v1076, %v1076
        %1078 = vrot.lane.b32.xlu0 %v787, 48
        %v1079 = vpop.permute.xlu0 %1078
        %v1081 = vsel %vm727, %v1077, 0
        %v1084 = vsel %vm731, %v1079, 0
        %1086 = vmatprep.subr.bf16.mxu0 0
        %1087 = vmatpush1.bf16.msra.mxu0 0
        %1088 = vmatprep.subr.bf16.mxu0 0
        %1089 = vmatpush1.bf16.msra.mxu0 0
        %1090 = vmatprep.subr.bf16.mxu0 0
        %1091 = vmatpush1.bf16.msra.mxu0 0
        %1092 = vmatprep.subr.bf16.mxu0 0
        %1093 = vmatpush1.bf16.msra.mxu0 0
        %1094 = vmatprep.subr.bf16.mxu0 0
        %1095 = vmatpush1.bf16.msra.mxu0 0
        %1096 = vmatprep.subr.bf16.mxu0 0
        %1097 = vmatpush1.bf16.msra.mxu0 0
        %1098 = vmatprep.subr.bf16.mxu0 0
        %1099 = vmatpush1.bf16.msra.mxu0 0
        %1100 = vmatprep.subr.bf16.mxu0 0
        %1101 = vmatpush1.bf16.msra.mxu0 %v1084
        %1102 = vmatprep.subr.bf16.mxu0 0
        %1103 = vmatpush2.bf16.msra.mxu0 0
        %1104 = vmatprep.subr.bf16.mxu0 0
        %1105 = vmatpush2.bf16.msra.mxu0 0
        %1106 = vmatprep.subr.bf16.mxu0 0
        %1107 = vmatpush2.bf16.msra.mxu0 0
        %1108 = vmatprep.subr.bf16.mxu0 0
        %1109 = vmatpush2.bf16.msra.mxu0 0
        %1110 = vmatprep.subr.bf16.mxu0 0
        %1111 = vmatpush2.bf16.msra.mxu0 0
        %1112 = vmatprep.subr.bf16.mxu0 0
        %1113 = vmatpush2.bf16.msra.mxu0 0
        %1114 = vmatprep.subr.bf16.mxu0 0
        %1115 = vmatpush2.bf16.msra.mxu0 0
        %1116 = vmatprep.subr.bf16.mxu0 0
        %1117 = vmatpush2.bf16.msra.mxu0 0
        %1118 = vmatprep.mubr.bf16.mxu0 0
        %1119 = vmatmul.mubr.bf16.gmra.mxu0 %v1081
        %v1120 = vpop.f32.mrf.mxu0
        %v1121 = vadd.f32 0.0, %v1120
        %v1122 = vpop.f32.mrf.mxu0
        %v1123 = vpop.f32.mrf.mxu0
        %v1124 = vpop.f32.mrf.mxu0
        %1125 = vdwg.mxu0
        %1126 = vrot.lane.b32.xlu0 %v677, 72
        %v1127 = vpop.permute.xlu0 %1126
        %1129 = vxpose.xlu0.b32.start [1/16] %v1127, 128
        %1130 = vxpose.xlu0.b32.cont [2/16] 0.0, 128
        %1131 = vxpose.xlu0.b32.cont [3/16] 0.0, 128
        %1132 = vxpose.xlu0.b32.cont [4/16] 0.0, 128
        %1133 = vxpose.xlu0.b32.cont [5/16] 0.0, 128
        %1134 = vxpose.xlu0.b32.cont [6/16] 0.0, 128
        %1135 = vxpose.xlu0.b32.cont [7/16] 0.0, 128
        %1136 = vxpose.xlu0.b32.cont [8/16] 0.0, 128
        %1137 = vxpose.xlu0.b32.cont [9/16] 0.0, 128
        %1138 = vxpose.xlu0.b32.cont [10/16] 0.0, 128
        %1139 = vxpose.xlu0.b32.cont [11/16] 0.0, 128
        %1140 = vxpose.xlu0.b32.cont [12/16] 0.0, 128
        %1141 = vxpose.xlu0.b32.cont [13/16] 0.0, 128
        %1142 = vxpose.xlu0.b32.cont [14/16] 0.0, 128
        %1143 = vxpose.xlu0.b32.cont [15/16] 0.0, 128
        %1144 = vxpose.xlu0.b32.end [16/16] 0.0, 128
        %v1145 = vpop.trf.xlu0
        %v1146 = vpop.trf.xlu0
        %v1147 = vpop.trf.xlu0
        %v1148 = vpop.trf.xlu0
        %v1149 = vpop.trf.xlu0
        %v1150 = vpop.trf.xlu0
        %v1151 = vpop.trf.xlu0
        %v1152 = vpop.trf.xlu0
        %v1153 = vpop.trf.xlu0
        %v1154 = vpop.trf.xlu0
        %v1155 = vpop.trf.xlu0
        %v1156 = vpop.trf.xlu0
        %v1157 = vpop.trf.xlu0
        %v1158 = vpop.trf.xlu0
        %v1159 = vpop.trf.xlu0
        %v1160 = vpop.trf.xlu0
        %v1161 = vpack.c.bf16 %v1145, %v1145
        %1162 = vrot.lane.b32.xlu0 %v683, 104
        %v1163 = vpop.permute.xlu0 %1162
        %v1165 = vsel %vm727, %v1163, 0
        %v1168 = vsel %vm731, %v1161, 0
        %1170 = vmatprep.subr.bf16.mxu0 0
        %1171 = vmatpush1.bf16.msra.mxu0 0
        %1172 = vmatprep.subr.bf16.mxu0 0
        %1173 = vmatpush1.bf16.msra.mxu0 0
        %1174 = vmatprep.subr.bf16.mxu0 0
        %1175 = vmatpush1.bf16.msra.mxu0 0
        %1176 = vmatprep.subr.bf16.mxu0 0
        %1177 = vmatpush1.bf16.msra.mxu0 0
        %1178 = vmatprep.subr.bf16.mxu0 0
        %1179 = vmatpush1.bf16.msra.mxu0 0
        %1180 = vmatprep.subr.bf16.mxu0 0
        %1181 = vmatpush1.bf16.msra.mxu0 0
        %1182 = vmatprep.subr.bf16.mxu0 0
        %1183 = vmatpush1.bf16.msra.mxu0 0
        %1184 = vmatprep.subr.bf16.mxu0 0
        %1185 = vmatpush1.bf16.msra.mxu0 %v1168
        %1186 = vmatprep.subr.bf16.mxu0 0
        %1187 = vmatpush2.bf16.msra.mxu0 0
        %1188 = vmatprep.subr.bf16.mxu0 0
        %1189 = vmatpush2.bf16.msra.mxu0 0
        %1190 = vmatprep.subr.bf16.mxu0 0
        %1191 = vmatpush2.bf16.msra.mxu0 0
        %1192 = vmatprep.subr.bf16.mxu0 0
        %1193 = vmatpush2.bf16.msra.mxu0 0
        %1194 = vmatprep.subr.bf16.mxu0 0
        %1195 = vmatpush2.bf16.msra.mxu0 0
        %1196 = vmatprep.subr.bf16.mxu0 0
        %1197 = vmatpush2.bf16.msra.mxu0 0
        %1198 = vmatprep.subr.bf16.mxu0 0
        %1199 = vmatpush2.bf16.msra.mxu0 0
        %1200 = vmatprep.subr.bf16.mxu0 0
        %1201 = vmatpush2.bf16.msra.mxu0 0
        %1202 = vmatprep.mubr.bf16.mxu0 0
        %1203 = vmatmul.mubr.bf16.gmra.mxu0 %v1165
        %v1204 = vpop.f32.mrf.mxu0
        %v1205 = vadd.f32 %v725, %v1204
        %v1206 = vpop.f32.mrf.mxu0
        %v1207 = vpop.f32.mrf.mxu0
        %v1208 = vpop.f32.mrf.mxu0
        %1209 = vdwg.mxu0
        %v1210 = vsel %vm727, %v1205, -inf
        %1211 = vmax.xlane.f32.xlu0 %v1210
        %v1212 = vpop.xlane.xlu0 %1211
        %v1213 = vsub.f32 %v1205, %v1212
        %v1214 = vmul.f32 %v1213, 1.442695
        %v1215 = vpow.pop %v1214
        %v1216 = vsel %vm727, %v1215, 0.0
        %1217 = vadd.xlane.f32.xlu0 %v1216
        %v1218 = vpop.xlane.xlu0 %1217
        %v1219 = vrcp.pop %v1218
        %v1220 = vmul.f32 %v1215, %v1219
        %v1221 = vpack.c.bf16 %v1220, %v1220
        %1222 = vrot.lane.b32.xlu0 %v787, 40
        %v1223 = vpop.permute.xlu0 %1222
        %v1225 = vsel %vm727, %v1221, 0
        %v1228 = vsel %vm731, %v1223, 0
        %1230 = vmatprep.subr.bf16.mxu0 0
        %1231 = vmatpush1.bf16.msra.mxu0 0
        %1232 = vmatprep.subr.bf16.mxu0 0
        %1233 = vmatpush1.bf16.msra.mxu0 0
        %1234 = vmatprep.subr.bf16.mxu0 0
        %1235 = vmatpush1.bf16.msra.mxu0 0
        %1236 = vmatprep.subr.bf16.mxu0 0
        %1237 = vmatpush1.bf16.msra.mxu0 0
        %1238 = vmatprep.subr.bf16.mxu0 0
        %1239 = vmatpush1.bf16.msra.mxu0 0
        %1240 = vmatprep.subr.bf16.mxu0 0
        %1241 = vmatpush1.bf16.msra.mxu0 0
        %1242 = vmatprep.subr.bf16.mxu0 0
        %1243 = vmatpush1.bf16.msra.mxu0 0
        %1244 = vmatprep.subr.bf16.mxu0 0
        %1245 = vmatpush1.bf16.msra.mxu0 %v1228
        %1246 = vmatprep.subr.bf16.mxu0 0
        %1247 = vmatpush2.bf16.msra.mxu0 0
        %1248 = vmatprep.subr.bf16.mxu0 0
        %1249 = vmatpush2.bf16.msra.mxu0 0
        %1250 = vmatprep.subr.bf16.mxu0 0
        %1251 = vmatpush2.bf16.msra.mxu0 0
        %1252 = vmatprep.subr.bf16.mxu0 0
        %1253 = vmatpush2.bf16.msra.mxu0 0
        %1254 = vmatprep.subr.bf16.mxu0 0
        %1255 = vmatpush2.bf16.msra.mxu0 0
        %1256 = vmatprep.subr.bf16.mxu0 0
        %1257 = vmatpush2.bf16.msra.mxu0 0
        %1258 = vmatprep.subr.bf16.mxu0 0
        %1259 = vmatpush2.bf16.msra.mxu0 0
        %1260 = vmatprep.subr.bf16.mxu0 0
        %1261 = vmatpush2.bf16.msra.mxu0 0
        %1262 = vmatprep.mubr.bf16.mxu0 0
        %1263 = vmatmul.mubr.bf16.gmra.mxu0 %v1225
        %v1264 = vpop.f32.mrf.mxu0
        %v1265 = vadd.f32 0.0, %v1264
        %v1266 = vpop.f32.mrf.mxu0
        %v1267 = vpop.f32.mrf.mxu0
        %v1268 = vpop.f32.mrf.mxu0
        %1269 = vdwg.mxu0
        %1271 = vrot.lane.b32.xlu0 %v977, 8
        %v1272 = vpop.permute.xlu0 %1271
        %1275 = vrot.lane.b32.xlu0 %v1121, 16
        %v1276 = vpop.permute.xlu0 %1275
        %1279 = vrot.lane.b32.xlu0 %v1265, 24
        %v1280 = vpop.permute.xlu0 %1279
        %v1282 = vsel %vm727, %v832, %v1272
        %vm1283 = vcmask 130048
        %v1284 = vsel %vm1283, %v1282, %v1276
        %vm1285 = vcmask 195584
        %v1286 = vsel %vm1285, %v1284, %v1280
        %v1287 = vpack.c.bf16 %v1286, %v1286
        %v1288 = vld [vmem:[%s6] sm:$0xf]
        %v1289 = vld [vmem:[%s6 + $0x4] sm:$0xf]
        %v1290 = vld [vmem:[%s6 + $0x8] sm:$0xf]
        %v1291 = vld [vmem:[%s6 + $0xc] sm:$0xf]
        %v1292 = vld [vmem:[#allocation10] sm:$0x1]
        %v1294 = vlaneseq
        %v1295 = vshrl.u32 %v1294, 7
        %v1296 = vsub.s32 0, %v1295
        %v1297 = vrot.slane %v1292, %v1296
        %v1303 = vunpack.c.l.b16 %v1288
        %v1304 = vunpack.c.l.b16 %v1289
        %v1305 = vunpack.c.l.b16 %v1290
        %v1306 = vunpack.c.l.b16 %v1291
        %v1307 = vpack.c.b16 %v1304, %v1303
        %v1308 = vpack.c.b16 %v1306, %v1305
        %v1312 = vsel %vm579, %v1287, 0
        %1314 = vmatprep.subr.bf16.mxu0 0
        %1315 = vmatpush1.bf16.msra.mxu0 0
        %1316 = vmatprep.subr.bf16.mxu0 0
        %1317 = vmatpush1.bf16.msra.mxu0 0
        %1318 = vmatprep.subr.bf16.mxu0 0
        %1319 = vmatpush1.bf16.msra.mxu0 0
        %1320 = vmatprep.subr.bf16.mxu0 0
        %1321 = vmatpush1.bf16.msra.mxu0 0
        %1322 = vmatprep.subr.bf16.mxu0 0
        %1323 = vmatpush1.bf16.msra.mxu0 0
        %1324 = vmatprep.subr.bf16.mxu0 0
        %1325 = vmatpush1.bf16.msra.mxu0 0
        %1326 = vmatprep.subr.bf16.mxu0 0
        %1327 = vmatpush1.bf16.msra.mxu0 %v1308
        %1328 = vmatprep.subr.bf16.mxu0 0
        %1329 = vmatpush1.bf16.msra.mxu0 %v1307
        %1330 = vmatprep.subr.bf16.mxu0 0
        %1331 = vmatpush2.bf16.msra.mxu0 0
        %1332 = vmatprep.subr.bf16.mxu0 0
        %1333 = vmatpush2.bf16.msra.mxu0 0
        %1334 = vmatprep.subr.bf16.mxu0 0
        %1335 = vmatpush2.bf16.msra.mxu0 0
        %1336 = vmatprep.subr.bf16.mxu0 0
        %1337 = vmatpush2.bf16.msra.mxu0 0
        %1338 = vmatprep.subr.bf16.mxu0 0
        %1339 = vmatpush2.bf16.msra.mxu0 0
        %1340 = vmatprep.subr.bf16.mxu0 0
        %1341 = vmatpush2.bf16.msra.mxu0 0
        %1342 = vmatprep.subr.bf16.mxu0 0
        %1343 = vmatpush2.bf16.msra.mxu0 0
        %1344 = vmatprep.subr.bf16.mxu0 0
        %1345 = vmatpush2.bf16.msra.mxu0 0
        %1346 = vmatprep.mubr.bf16.mxu0 0
        %1347 = vmatmul.mubr.bf16.gmra.mxu0 %v1312
        %v1348 = vpop.f32.mrf.mxu0
        %v1349 = vadd.f32 %v1297, %v1348
        %v1350 = vpop.f32.mrf.mxu0
        %v1351 = vpop.f32.mrf.mxu0
        %v1352 = vpop.f32.mrf.mxu0
        %1353 = vdwg.mxu0
        %v1354 = vadd.f32 %v573, %v1349
        %v1355 = vld [vmem:[#allocation11] sm:$0x1]
        %v1356 = vld [vmem:[#allocation13] sm:$0x1]
        %v1357 = vsel %vm579, %v1354, 0.0
        %1358 = vadd.xlane.f32.xlu0 %v1357
        %v1359 = vpop.xlane.xlu0 %1358
        %v1360 = vmul.f32 %v1359, %v583
        %v1361 = vsub.f32 %v1354, %v1360
        %v1362 = vmul.f32 %v1361, %v1361
        %v1363 = vsel %vm579, %v1362, 0.0
        %1364 = vadd.xlane.f32.xlu0 %v1363
        %v1365 = vpop.xlane.xlu0 %1364
        %v1366 = vmul.f32 %v1365, 0.032258064
        %v1367 = vrsqrt.pop %v1366
        %v1368 = vmul.f32 %v1366, %v1367
        %vm1369 = vcmp.eq.f32.partialorder %v1366, inf
        %v1370 = vsel %vm1369, %v1366, %v1368
        %vm1371 = vcmp.eq.f32.partialorder %v1366, 0.0
        %v1372 = vand.u32 %v1366, 2147483648
        %v1373 = vsel %vm1371, %v1372, %v1370
        %v1374 = vadd.f32 %v1373, 1e-06
        %v1375 = vrcp.pop %v1374
        %v1377 = vlaneseq
        %v1378 = vshrl.u32 %v1377, 7
        %v1379 = vsub.s32 0, %v1378
        %v1380 = vrot.slane %v1355, %v1379
        %v1382 = vmul.f32 %v1380, %v1361
        %v1383 = vmul.f32 %v1382, %v1375
        %v1385 = vlaneseq
        %v1386 = vshrl.u32 %v1385, 7
        %v1387 = vsub.s32 0, %v1386
        %v1388 = vrot.slane %v1356, %v1387
        %v1390 = vadd.f32 %v1383, %v1388
        %v1391 = vpack.c.bf16 %v1390, %v1390
        %v1392 = vld [vmem:[%s10] sm:$0xf]
        %v1393 = vld [vmem:[%s10 + $0x4] sm:$0xf]
        %v1394 = vld [vmem:[%s10 + $0x8] sm:$0xf]
        %v1395 = vld [vmem:[%s10 + $0xc] sm:$0xf]
        %v1396 = vld [vmem:[%s11] sm:$0x1]
        %v1398 = vlaneseq
        %v1399 = vshrl.u32 %v1398, 7
        %v1400 = vsub.s32 0, %v1399
        %v1401 = vrot.slane %v1396, %v1400
        %v1407 = vunpack.c.l.b16 %v1392
        %v1408 = vunpack.c.l.b16 %v1393
        %v1409 = vunpack.c.l.b16 %v1394
        %v1410 = vunpack.c.l.b16 %v1395
        %v1411 = vpack.c.b16 %v1408, %v1407
        %v1412 = vpack.c.b16 %v1410, %v1409
        %v1416 = vsel %vm579, %v1391, 0
        %1418 = vmatprep.subr.bf16.mxu0 0
        %1419 = vmatpush1.bf16.msra.mxu0 0
        %1420 = vmatprep.subr.bf16.mxu0 0
        %1421 = vmatpush1.bf16.msra.mxu0 0
        %1422 = vmatprep.subr.bf16.mxu0 0
        %1423 = vmatpush1.bf16.msra.mxu0 0
        %1424 = vmatprep.subr.bf16.mxu0 0
        %1425 = vmatpush1.bf16.msra.mxu0 0
        %1426 = vmatprep.subr.bf16.mxu0 0
        %1427 = vmatpush1.bf16.msra.mxu0 0
        %1428 = vmatprep.subr.bf16.mxu0 0
        %1429 = vmatpush1.bf16.msra.mxu0 0
        %1430 = vmatprep.subr.bf16.mxu0 0
        %1431 = vmatpush1.bf16.msra.mxu0 %v1412
        %1432 = vmatprep.subr.bf16.mxu0 0
        %1433 = vmatpush1.bf16.msra.mxu0 %v1411
        %1434 = vmatprep.subr.bf16.mxu0 0
        %1435 = vmatpush2.bf16.msra.mxu0 0
        %1436 = vmatprep.subr.bf16.mxu0 0
        %1437 = vmatpush2.bf16.msra.mxu0 0
        %1438 = vmatprep.subr.bf16.mxu0 0
        %1439 = vmatpush2.bf16.msra.mxu0 0
        %1440 = vmatprep.subr.bf16.mxu0 0
        %1441 = vmatpush2.bf16.msra.mxu0 0
        %1442 = vmatprep.subr.bf16.mxu0 0
        %1443 = vmatpush2.bf16.msra.mxu0 0
        %1444 = vmatprep.subr.bf16.mxu0 0
        %1445 = vmatpush2.bf16.msra.mxu0 0
        %1446 = vmatprep.subr.bf16.mxu0 0
        %1447 = vmatpush2.bf16.msra.mxu0 0
        %1448 = vmatprep.subr.bf16.mxu0 0
        %1449 = vmatpush2.bf16.msra.mxu0 0
        %1450 = vmatprep.mubr.bf16.mxu0 0
        %1451 = vmatmul.mubr.bf16.gmra.mxu0 %v1416
        %v1452 = vpop.f32.mrf.mxu0
        %v1453 = vadd.f32 %v1401, %v1452
        %v1454 = vpop.f32.mrf.mxu0
        %v1455 = vpop.f32.mrf.mxu0
        %v1456 = vpop.f32.mrf.mxu0
        %1457 = vdwg.mxu0
        %v1458 = vmax.f32 %v1453, 0.0
        %v1459 = vpack.c.bf16 %v1458, %v1458
        %v1460 = vld [vmem:[%s12] sm:$0xf]
        %v1461 = vld [vmem:[%s12 + $0x4] sm:$0xf]
        %v1462 = vld [vmem:[%s12 + $0x8] sm:$0xf]
        %v1463 = vld [vmem:[%s12 + $0xc] sm:$0xf]
        %v1464 = vld [vmem:[%s12 + $0x10] sm:$0xf]
        %v1465 = vld [vmem:[%s12 + $0x14] sm:$0xf]
        %v1466 = vld [vmem:[%s12 + $0x18] sm:$0xf]
        %v1467 = vld [vmem:[%s12 + $0x1c] sm:$0xf]
        %v1468 = vld [vmem:[%s13] sm:$0x1]
        %v1470 = vlaneseq
        %v1471 = vshrl.u32 %v1470, 7
        %v1472 = vsub.s32 0, %v1471
        %v1473 = vrot.slane %v1468, %v1472
        %v1483 = vunpack.c.l.b16 %v1460
        %v1484 = vunpack.c.l.b16 %v1461
        %v1485 = vunpack.c.l.b16 %v1462
        %v1486 = vunpack.c.l.b16 %v1463
        %v1487 = vunpack.c.l.b16 %v1464
        %v1488 = vunpack.c.l.b16 %v1465
        %v1489 = vunpack.c.l.b16 %v1466
        %v1490 = vunpack.c.l.b16 %v1467
        %v1491 = vpack.c.b16 %v1484, %v1483
        %v1492 = vpack.c.b16 %v1486, %v1485
        %v1493 = vpack.c.b16 %v1488, %v1487
        %v1494 = vpack.c.b16 %v1490, %v1489
        %vm1499 = vcmask 523264
        %v1501 = vsel %vm1499, %v1459, 0
        %1503 = vmatprep.subr.bf16.mxu0 0
        %1504 = vmatpush1.bf16.msra.mxu0 0
        %1505 = vmatprep.subr.bf16.mxu0 0
        %1506 = vmatpush1.bf16.msra.mxu0 0
        %1507 = vmatprep.subr.bf16.mxu0 0
        %1508 = vmatpush1.bf16.msra.mxu0 0
        %1509 = vmatprep.subr.bf16.mxu0 0
        %1510 = vmatpush1.bf16.msra.mxu0 0
        %1511 = vmatprep.subr.bf16.mxu0 0
        %1512 = vmatpush1.bf16.msra.mxu0 %v1494
        %1513 = vmatprep.subr.bf16.mxu0 0
        %1514 = vmatpush1.bf16.msra.mxu0 %v1493
        %1515 = vmatprep.subr.bf16.mxu0 0
        %1516 = vmatpush1.bf16.msra.mxu0 %v1492
        %1517 = vmatprep.subr.bf16.mxu0 0
        %1518 = vmatpush1.bf16.msra.mxu0 %v1491
        %1519 = vmatprep.subr.bf16.mxu0 0
        %1520 = vmatpush2.bf16.msra.mxu0 0
        %1521 = vmatprep.subr.bf16.mxu0 0
        %1522 = vmatpush2.bf16.msra.mxu0 0
        %1523 = vmatprep.subr.bf16.mxu0 0
        %1524 = vmatpush2.bf16.msra.mxu0 0
        %1525 = vmatprep.subr.bf16.mxu0 0
        %1526 = vmatpush2.bf16.msra.mxu0 0
        %1527 = vmatprep.subr.bf16.mxu0 0
        %1528 = vmatpush2.bf16.msra.mxu0 0
        %1529 = vmatprep.subr.bf16.mxu0 0
        %1530 = vmatpush2.bf16.msra.mxu0 0
        %1531 = vmatprep.subr.bf16.mxu0 0
        %1532 = vmatpush2.bf16.msra.mxu0 0
        %1533 = vmatprep.subr.bf16.mxu0 0
        %1534 = vmatpush2.bf16.msra.mxu0 0
        %1535 = vmatprep.mubr.bf16.mxu0 0
        %1536 = vmatmul.mubr.bf16.gmra.mxu0 %v1501
        %v1537 = vpop.f32.mrf.mxu0
        %v1538 = vadd.f32 %v1473, %v1537
        %v1539 = vpop.f32.mrf.mxu0
        %v1540 = vpop.f32.mrf.mxu0
        %v1541 = vpop.f32.mrf.mxu0
        %1542 = vdwg.mxu0
        %v1543 = vadd.f32 %v1354, %v1538
        %1544 = vst.msk [vmem:[%s567] sm:$0xff] %vm579, %v1543
        %s1545 = sand.u32 %s346, 1
        %s1546 = scalar_lea.sflag [#allocation4], %s1545
        %s1547 = sand.u32 %s346, 1
        %s1548 = smul.addr %s1547, 8
        %s1549 = scalar_lea.vmem [#allocation14], %s1548
        // Predicated region
        $region105: #{tpu_custom_call.1} parent=75 // pred_check
          %p1550 = pneg %p356
        $region106: #{tpu_custom_call.1} parent=75 // pred_check_branch
          %1552 = sbr.rel (%p1550) target = $region108
        $region107: #{tpu_custom_call.1} parent=75 // pred_region
          %s1554 = ssub.s32 128, 128
          %1555 = vsyncadd %s1546, %s1554
          %s1556 = smul.addr %s34, 128
          %s1557 = scalar_lea.hbm %s14, %s1556
          %s1559 = sshll.u32 %s1549, 4
          %s1560 = int_to_ptr.vmem [resolvable:$true] %s1559
          %1562 = dma.vmem_to_hbm [thread:$0]  %s1560, 128, %s1557, %s1546
        $region108: #{tpu_custom_call.1} parent=75 // pred_fallthru
          _
      $region76: #{tpu_custom_call.1} parent=5 // pred_fallthru
        _
      %p1563 = scmp.le.s32.totalorder 2, %s29
      // Predicated region
      $region109: #{tpu_custom_call.1} parent=5 // pred_check
        %p1564 = pneg %p1563
      $region110: #{tpu_custom_call.1} parent=5 // pred_check_branch
        %1566 = sbr.rel (%p1564) target = $region112
      $region111: #{tpu_custom_call.1} parent=5 // pred_region
        %s1567 = ssub.s32 %s29, 2
        // Predicated region
        $region113: #{tpu_custom_call.1} parent=111 // pred_check
          %p1568 = pneg %p362
        $region114: #{tpu_custom_call.1} parent=111 // pred_check_branch
          %1570 = sbr.rel (%p1568) target = $region116
        $region115: #{tpu_custom_call.1} parent=111 // pred_region
          %s1571 = sand.u32 %s347, 1
          %s1572 = scalar_lea.sflag [#allocation4], %s1571
          %s1573 = sand.u32 %s347, 1
          %s1574 = smul.addr %s1573, 8
          %s1575 = scalar_lea.vmem [#allocation14], %s1574
          %1576 = dma.done %s1572, 128
        $region116: #{tpu_custom_call.1} parent=111 // pred_fallthru
          _
      $region112: #{tpu_custom_call.1} parent=5 // pred_fallthru
        _
    $region6: #{tpu_custom_call.1} parent=1 // loop_footer
      %s33 = sadd.s32 1, %s29
    $region7: #{tpu_custom_call.1} parent=1 // loop_footer_branch
      %28 = sbr.rel target = $region3
    $region8: #{tpu_custom_call.1} parent=1 // loop_exit
      _
    %1577 = vsyncpa [#allocation3], 1
    %s1578 = scalar_lea.sflag [#allocation3], 1
    %1579 = vsyncpa %s1578, 1
    %1580 = vsyncpa [#allocation6], 1
    %1581 = vsyncpa [#allocation9], 1
    %1582 = vsyncpa [#allocation12], 1
    %1583 = vsyncpa [#allocation4], 1
    %s1584 = scalar_lea.sflag [#allocation4], 1
    %1585 = vsyncpa %s1584, 1

</llo_original>
